<compile_context>
chip_gen: v6e
topology: v6e:2x2x1
jax: 0.10.0
libtpu: 0.0.40
codegen_flags: <defaults>
</compile_context>

<pallas_src>
import functools
import numpy as np
import jax
import jax.numpy as jnp
from jax import lax
from jax.experimental import pallas as pl
from jax.experimental.pallas import tpu as pltpu


def _round_up(x, m):
    return (x + m - 1) // m * m


def _padded_bytes(shape, dtype):
    """VMEM bytes of `shape` after (sublane, lane) layout padding."""
    itemsize = jnp.dtype(dtype).itemsize
    sub = 8 * max(1, 4 // itemsize)          # 8 rows f32, 16 rows bf16
    shape = tuple(int(s) for s in shape)
    lanes = _round_up(shape[-1], 128)
    subs = _round_up(shape[-2], sub) if len(shape) >= 2 else 1
    lead = int(np.prod(shape[:-2])) if len(shape) > 2 else 1
    return lead * subs * lanes * itemsize


# ------------------------------- Pallas kernel ------------------------------

def _conv_block_kernel(xw_ref, w1_ref, w2_ref, s1_ref, b1_ref, s2_ref, b2_ref,
                       out_ref, h_ref, yh_ref, *,
                       W, Wh, Wc2, tile_h, ph, pw, pool_type):
    """Fused conv1+bn1+relu -> conv2+bn2+relu -> pool for one (n, row tile)."""
    t = pl.program_id(1)
    coutp = out_ref.shape[-1]
    th2 = tile_h + 2                       # conv1 rows incl. conv2's row halo
    c3 = xw_ref.shape[-1]                  # 3 * Cin (dx taps pre-folded)

    # ---- conv1 + bn1 + relu -------------------------------------------------
    # xw has the 3 dx taps folded onto channels, so each dy tap is one matmul
    # over a contiguous VMEM slice (no concat, weights pre-flattened).
    m1 = th2 * Wh
    acc1 = jnp.zeros((m1, coutp), jnp.float32)
    for dy in range(3):
        lhs = xw_ref[dy:dy + th2, :, :].reshape(m1, c3)
        acc1 = acc1 + jnp.dot(lhs, w1_ref[dy],
                              preferred_element_type=jnp.float32)
    y1 = jnp.maximum(acc1 * s1_ref[...] + b1_ref[...], 0.0)
    h_ref[...] = y1.reshape(th2, Wh, coutp).astype(h_ref.dtype)

    # conv2's zero padding: border columns are padding on every tile; border
    # rows only on the first / last row tile.  Small stores, no full-tile mask.
    h_ref[:, 0:1, :] = jnp.zeros((th2, 1, coutp), h_ref.dtype)
    h_ref[:, W + 1:Wh, :] = jnp.zeros((th2, Wh - W - 1, coutp), h_ref.dtype)

    @pl.when(t == 0)
    def _():
        h_ref[0:1, :, :] = jnp.zeros((1, Wh, coutp), h_ref.dtype)

    @pl.when(t == pl.num_programs(1) - 1)
    def _():
        h_ref[th2 - 1:th2, :, :] = jnp.zeros((1, Wh, coutp), h_ref.dtype)

    # ---- conv2 + bn2 + relu -------------------------------------------------
    # 9 accumulating matmuls (K = coutp) fed from shifted slices of the conv1
    # tile; avoids materializing a (m, 3K) concat LHS (vst traffic on v5e).
    m2 = tile_h * Wc2
    acc2 = jnp.zeros((m2, coutp), jnp.float32)
    for dy in range(3):
        for dx in range(3):
            lhs = h_ref[dy:dy + tile_h, dx:dx + Wc2, :].reshape(m2, coutp)
            acc2 = acc2 + jnp.dot(lhs, w2_ref[dy, dx],
                                  preferred_element_type=jnp.float32)
    y2 = jnp.maximum(acc2 * s2_ref[...] + b2_ref[...], 0.0)
    y2 = y2.reshape(tile_h // ph, ph, Wc2, coutp)

    # ---- pooling: H via leading-dim reduce, W via strided VMEM reads -------
    def pool_w(combine):
        res = yh_ref[:, pl.ds(0, W // pw, stride=pw), :]
        for j in range(1, pw):
            res = combine(res, yh_ref[:, pl.ds(j, W // pw, stride=pw), :])
        return res

    out_val = None
    if pool_type in ("avg", "avg+max"):
        yh_ref[...] = jnp.sum(y2, axis=1)
        out_val = pool_w(jnp.add) * (1.0 / (ph * pw))
    if pool_type in ("max", "avg+max"):
        yh_ref[...] = jnp.max(y2, axis=1)
        mx = pool_w(jnp.maximum)
        out_val = mx if out_val is None else out_val + mx
    out_ref[...] = out_val.astype(out_ref.dtype)


# --------------------------------- wrapper ----------------------------------

def _fold_bn(gamma, beta, mean, var, coutp, eps=1e-5):
    scale = gamma * lax.rsqrt(var + eps)
    bias = beta - mean * scale
    pad = coutp - scale.shape[0]
    scale = jnp.pad(scale, (0, pad)).reshape(1, coutp).astype(jnp.float32)
    bias = jnp.pad(bias, (0, pad)).reshape(1, coutp).astype(jnp.float32)
    return scale, bias


def _physical_vmem_bytes():
    try:
        info = pltpu.get_tpu_info()
        cap = int(getattr(info, "vmem_capacity_bytes", 0))
        if cap > 0:
            return cap
    except Exception:
        pass
    return 64 * 1024 * 1024                # conservative (v7x-sized) fallback


def _pick_tile_h(H, ph, fits):
    cands = sorted((t for t in range(ph, H + 1, ph) if H % t == 0),
                   reverse=True)
    for t in cands:
        if fits(t):
            return t
    return cands[-1]


def conv_block_apply_nhwc(params, x_nhwc, pool_size=(2, 2), pool_type="avg"):
    """ConvBlock forward on NHWC input.

    Returns bf16 NHWC output of shape (N, H/ph, W/pw, round_up(Cout, 128)).
    Padded channels are exactly zero, so stacked ConvBlocks can consume this
    directly (with zero-padded weights) without slicing in XLA.
    """
    if pool_type not in ("avg", "max", "avg+max"):
        raise ValueError("Incorrect argument!")
    N, H, W, Cin = x_nhwc.shape
    Cout = params["w1"].shape[-1]
    ph, pw = pool_size
    assert H % ph == 0 and W % pw == 0, "pool_size must divide H, W"

    coutp = _round_up(Cout, 128)           # lane-dense output channels
    Wc2 = _round_up(W, 8)                  # conv2 / pooling working width
    Wh = _round_up(Wc2 + 2, 8)             # conv1-tile width incl. conv2 halo
    C3 = 3 * Cin                           # dx-folded input channels

    # VMEM budget (layout-padded sizes) -> largest row tile that fits.
    vmem_limit = max(_physical_vmem_bytes() * 3 // 4, 32 * 1024 * 1024)
    budget = int(vmem_limit * 0.8)

    def vmem_estimate(th):
        b = 0
        b += 2 * _padded_bytes((th + 4, Wh, C3), jnp.bfloat16)          # xw (dbl)
        b += _padded_bytes((3, 3 * Cin, coutp), jnp.bfloat16)           # w1 (1x)
        b += _padded_bytes((3, 3, coutp, coutp), jnp.bfloat16)          # w2 (1x)
        b += 4 * _padded_bytes((1, coutp), jnp.float32)                 # bn (1x)
        b += 2 * _padded_bytes((th // ph, W // pw, coutp), jnp.bfloat16)  # out
        b += _padded_bytes((th + 2, Wh, coutp), jnp.bfloat16)           # h scratch
        b += _padded_bytes((th // ph, Wc2, coutp), jnp.float32)         # yh scratch
        work = (2 * (th + 2) * Wh * coutp * 4      # conv1 acc + activation
                + 2 * th * Wc2 * coutp * 4         # conv2 acc + activation
                + th * Wc2 * coutp * 2)            # matmul LHS staging
        return int(1.25 * (b + work))

    tile_h = _pick_tile_h(H, ph, lambda th: vmem_estimate(th) <= budget)
    n_ht = H // tile_h

    # ---- XLA-side input repack (fused by XLA into one gather/copy) ---------
    #  * zero pad rows by (2, 2), cols by (2, Wh - W): both convs' halos,
    #  * fold the 3 dx taps onto the channel axis: conv1 only needs dy taps,
    #  * cut overlapping row windows of tile_h + 4 rows per grid step.
    xp = jnp.pad(x_nhwc.astype(jnp.bfloat16),
                 ((0, 0), (2, 2), (2, Wh - W), (0, 0)))
    xd = jnp.concatenate([xp[:, :, dx:dx + Wh, :] for dx in range(3)], axis=-1)
    xw = jnp.concatenate(
        [xd[:, None, t * tile_h:t * tile_h + tile_h + 4] for t in range(n_ht)],
        axis=1)                            # (N, n_ht, tile_h + 4, Wh, 3 * Cin)

    # ---- weights: pre-flattened / padded / cast; BN folded ------------------
    w1f = jnp.pad(params["w1"].reshape(3, 3 * Cin, Cout),
                  ((0, 0), (0, 0), (0, coutp - Cout))).astype(jnp.bfloat16)
    w2f = jnp.pad(params["w2"],
                  ((0, 0), (0, 0), (0, coutp - Cout),
                   (0, coutp - Cout))).astype(jnp.bfloat16)
    s1, b1 = _fold_bn(params["bn1_gamma"], params["bn1_beta"],
                      params["bn1_mean"], params["bn1_var"], coutp)
    s2, b2 = _fold_bn(params["bn2_gamma"], params["bn2_beta"],
                      params["bn2_mean"], params["bn2_var"], coutp)

    kernel = functools.partial(
        _conv_block_kernel, W=W, Wh=Wh, Wc2=Wc2,
        tile_h=tile_h, ph=ph, pw=pw, pool_type=pool_type)

    single = pl.Buffered(1)                # grid-invariant operands: 1 buffer
    out = pl.pallas_call(
        kernel,
        out_shape=jax.ShapeDtypeStruct((N, H // ph, W // pw, coutp),
                                       jnp.bfloat16),
        grid=(N, n_ht),
        in_specs=[
            pl.BlockSpec((None, None, tile_h + 4, Wh, C3),
                         lambda n, t: (n, t, 0, 0, 0)),
            pl.BlockSpec((3, 3 * Cin, coutp), lambda n, t: (0, 0, 0),
                         pipeline_mode=single),
            pl.BlockSpec((3, 3, coutp, coutp), lambda n, t: (0, 0, 0, 0),
                         pipeline_mode=single),
            pl.BlockSpec((1, coutp), lambda n, t: (0, 0), pipeline_mode=single),
            pl.BlockSpec((1, coutp), lambda n, t: (0, 0), pipeline_mode=single),
            pl.BlockSpec((1, coutp), lambda n, t: (0, 0), pipeline_mode=single),
            pl.BlockSpec((1, coutp), lambda n, t: (0, 0), pipeline_mode=single),
        ],
        out_specs=pl.BlockSpec((None, tile_h // ph, W // pw, coutp),
                               lambda n, t: (n, t, 0, 0)),
        scratch_shapes=[
            pltpu.VMEM((tile_h + 2, Wh, coutp), jnp.bfloat16),     # conv1 tile
            pltpu.VMEM((tile_h // ph, Wc2, coutp), jnp.float32),   # H-pooled
        ],
        compiler_params=pltpu.CompilerParams(
            dimension_semantics=("parallel", "parallel"),
            vmem_limit_bytes=int(vmem_limit)),
    )(xw, w1f, w2f, s1, b1, s2, b2)
    return out


@functools.partial(jax.jit, static_argnames=("pool_size", "pool_type"))
def conv_block_forward(params, x_nchw, pool_size=(2, 2), pool_type="avg"):
    """ConvBlock.forward with the PyTorch NCHW interface.

    When stacking ConvBlocks, call conv_block_apply_nhwc directly and keep the
    activations NHWC / bf16 / channel-padded end-to-end to avoid the per-block
    HBM transpose + slice done here for interface fidelity.
    """
    x = jnp.transpose(x_nchw, (0, 2, 3, 1))                        # NCHW->NHWC
    y = conv_block_apply_nhwc(params, x, pool_size, pool_type)
    Cout = params["w1"].shape[-1]
    y = y[..., :Cout].astype(jnp.float32)
    return jnp.transpose(y, (0, 3, 1, 2))                          # NHWC->NCHW


# --------------------------- parameters / reference -------------------------

def init_conv_block_params(key, in_channels, out_channels):
    """Deterministic init mirroring ConvBlock.init_weight()."""
    k1, k2 = jax.random.split(key)

    def xavier_conv(k, cout, cin):
        fan_in = cin * 9
        fan_out = cout * 9
        bound = float(np.sqrt(6.0 / (fan_in + fan_out)))
        # PyTorch layout (Cout, Cin, 3, 3) -> kernel layout (3, 3, Cin, Cout).
        w = jax.random.uniform(k, (cout, cin, 3, 3), jnp.float32, -bound, bound)
        return jnp.transpose(w, (2, 3, 1, 0))

    zeros = jnp.zeros((out_channels,), jnp.float32)
    ones = jnp.ones((out_channels,), jnp.float32)
    return dict(
        w1=xavier_conv(k1, out_channels, in_channels),
        w2=xavier_conv(k2, out_channels, out_channels),
        bn1_gamma=ones, bn1_beta=zeros, bn1_mean=zeros, bn1_var=ones,
        bn2_gamma=ones, bn2_beta=zeros, bn2_mean=zeros, bn2_var=ones,
    )


def reference_forward(params, x_nchw, pool_size=(2, 2), pool_type="avg",
                      eps=1e-5):
    x = jnp.transpose(x_nchw, (0, 2, 3, 1)).astype(jnp.float32)

    def conv(x, w):
        return lax.conv_general_dilated(
            x, w, (1, 1), ((1, 1), (1, 1)),
            dimension_numbers=("NHWC", "HWIO", "NHWC"))

    def bn(x, g, b, m, v):
        return (x - m) / jnp.sqrt(v + eps) * g + b

    h = jax.nn.relu(bn(conv(x, params["w1"]), params["bn1_gamma"],
                       params["bn1_beta"], params["bn1_mean"],
                       params["bn1_var"]))
    h = jax.nn.relu(bn(conv(h, params["w2"]), params["bn2_gamma"],
                       params["bn2_beta"], params["bn2_mean"],
                       params["bn2_var"]))
    N, H, W, C = h.shape
    ph, pw = pool_size
    hw = h.reshape(N, H // ph, ph, W // pw, pw, C)
    if pool_type == "avg":
        hp = hw.mean(axis=(2, 4))
    elif pool_type == "max":
        hp = hw.max(axis=(2, 4))
    else:
        hp = hw.mean(axis=(2, 4)) + hw.max(axis=(2, 4))
    return jnp.transpose(hp, (0, 3, 1, 2))


# ------------------------------------ main ----------------------------------

if __name__ == "__main__":
    key = jax.random.PRNGKey(0)
    kp, kx = jax.random.split(key)

    in_channels, out_channels = 4, 8
    N, H, W = 2, 16, 16

    params = init_conv_block_params(kp, in_channels, out_channels)
    x = jax.random.normal(kx, (N, in_channels, H, W), jnp.float32)   # NCHW

    for pool_type in ("avg", "max", "avg+max"):
        out = jax.block_until_ready(
            conv_block_forward(params, x, pool_size=(2, 2),
                               pool_type=pool_type))
        assert out.shape == (N, out_channels, H // 2, W // 2), out.shape
        ref = np.asarray(reference_forward(params, x, (2, 2), pool_type))
        # bf16 MXU inputs / bf16 output across two stacked convs -> ~1e-2-scale
        # absolute differences on O(1) activations.
        if not np.allclose(np.asarray(out), ref, rtol=2e-2, atol=3e-2):
            err = float(np.max(np.abs(np.asarray(out) - ref)))
            raise AssertionError(
                f"Pallas ConvBlock mismatch (pool_type={pool_type}), "
                f"max abs err={err}")

    print("KERNEL_OK")
</pallas_src>

<mosaic_0001>
module attributes {stable_mosaic.version = 11 : i64} {
  func.func @_conv_block_kernel(%arg0: i32, %arg1: i32, %arg2: memref<1x1x20x24x12xbf16, #tpu.memory_space<vmem>>, %arg3: memref<3x12x128xbf16, #tpu.memory_space<vmem>>, %arg4: memref<3x3x128x128xbf16, #tpu.memory_space<vmem>>, %arg5: memref<1x128xf32, #tpu.memory_space<vmem>>, %arg6: memref<1x128xf32, #tpu.memory_space<vmem>>, %arg7: memref<1x128xf32, #tpu.memory_space<vmem>>, %arg8: memref<1x128xf32, #tpu.memory_space<vmem>>, %arg9: memref<1x8x8x128xbf16, #tpu.memory_space<vmem>>, %arg10: memref<18x24x128xbf16, #tpu.memory_space<vmem>>, %arg11: memref<8x16x128xf32, #tpu.memory_space<vmem>>) attributes {dimension_semantics = [#tpu.dimension_semantics<parallel>, #tpu.dimension_semantics<parallel>], iteration_bounds = array<i64: 2, 1>, scalar_prefetch = 0 : i64, scratch_operands = 2 : i64, tpu.core_type = #tpu.core_type<tc>, window_params = [{transform_indices = @transform_0, window_bounds = array<i64: 1, 1, 20, 24, 12>}, {pipeline_mode = #tpu.pipeline_mode<synchronous>, transform_indices = @transform_1, window_bounds = array<i64: 3, 12, 128>}, {pipeline_mode = #tpu.pipeline_mode<synchronous>, transform_indices = @transform_2, window_bounds = array<i64: 3, 3, 128, 128>}, {pipeline_mode = #tpu.pipeline_mode<synchronous>, transform_indices = @transform_3, window_bounds = array<i64: 1, 128>}, {pipeline_mode = #tpu.pipeline_mode<synchronous>, transform_indices = @transform_4, window_bounds = array<i64: 1, 128>}, {pipeline_mode = #tpu.pipeline_mode<synchronous>, transform_indices = @transform_5, window_bounds = array<i64: 1, 128>}, {pipeline_mode = #tpu.pipeline_mode<synchronous>, transform_indices = @transform_6, window_bounds = array<i64: 1, 128>}, {transform_indices = @transform_7, window_bounds = array<i64: 1, 8, 8, 128>}]} {
    %cst = arith.constant 0.000000e+00 : f32
    %0 = vector.broadcast %cst : f32 to vector<432x128xf32>
    %c0 = arith.constant 0 : index
    %c0_0 = arith.constant 0 : index
    %c0_1 = arith.constant 0 : index
    %c0_2 = arith.constant 0 : index
    %c0_3 = arith.constant 0 : index
    %1 = vector.load %arg2[%c0, %c0_0, %c0_1, %c0_2, %c0_3] : memref<1x1x20x24x12xbf16, #tpu.memory_space<vmem>>, vector<1x1x18x24x12xbf16>
    %2 = vector.shape_cast %1 : vector<1x1x18x24x12xbf16> to vector<18x24x12xbf16>
    %3 = vector.shape_cast %2 : vector<18x24x12xbf16> to vector<432x12xbf16>
    %c0_4 = arith.constant 0 : index
    %c0_5 = arith.constant 0 : index
    %c0_6 = arith.constant 0 : index
    %4 = vector.load %arg3[%c0_4, %c0_5, %c0_6] : memref<3x12x128xbf16, #tpu.memory_space<vmem>>, vector<1x12x128xbf16>
    %5 = vector.shape_cast %4 : vector<1x12x128xbf16> to vector<12x128xbf16>
    %cst_7 = arith.constant dense<0.000000e+00> : vector<432x128xf32>
    %6 = tpu.matmul %3, %5, %cst_7 {dimension_numbers = #tpu.dot_dimension_numbers<[1], [0], [0], [1], [0, 0, 1, 1], [], []>} : vector<432x12xbf16>, vector<12x128xbf16>, vector<432x128xf32> -> vector<432x128xf32>
    %7 = arith.addf %0, %6 : vector<432x128xf32>
    %c0_8 = arith.constant 0 : index
    %c0_9 = arith.constant 0 : index
    %c1 = arith.constant 1 : index
    %c0_10 = arith.constant 0 : index
    %c0_11 = arith.constant 0 : index
    %8 = vector.load %arg2[%c0_8, %c0_9, %c1, %c0_10, %c0_11] : memref<1x1x20x24x12xbf16, #tpu.memory_space<vmem>>, vector<1x1x18x24x12xbf16>
    %9 = vector.shape_cast %8 : vector<1x1x18x24x12xbf16> to vector<18x24x12xbf16>
    %10 = vector.shape_cast %9 : vector<18x24x12xbf16> to vector<432x12xbf16>
    %c1_12 = arith.constant 1 : index
    %c0_13 = arith.constant 0 : index
    %c0_14 = arith.constant 0 : index
    %11 = vector.load %arg3[%c1_12, %c0_13, %c0_14] : memref<3x12x128xbf16, #tpu.memory_space<vmem>>, vector<1x12x128xbf16>
    %12 = vector.shape_cast %11 : vector<1x12x128xbf16> to vector<12x128xbf16>
    %cst_15 = arith.constant dense<0.000000e+00> : vector<432x128xf32>
    %13 = tpu.matmul %10, %12, %cst_15 {dimension_numbers = #tpu.dot_dimension_numbers<[1], [0], [0], [1], [0, 0, 1, 1], [], []>} : vector<432x12xbf16>, vector<12x128xbf16>, vector<432x128xf32> -> vector<432x128xf32>
    %14 = arith.addf %7, %13 : vector<432x128xf32>
    %c0_16 = arith.constant 0 : index
    %c0_17 = arith.constant 0 : index
    %c2 = arith.constant 2 : index
    %c0_18 = arith.constant 0 : index
    %c0_19 = arith.constant 0 : index
    %15 = vector.load %arg2[%c0_16, %c0_17, %c2, %c0_18, %c0_19] : memref<1x1x20x24x12xbf16, #tpu.memory_space<vmem>>, vector<1x1x18x24x12xbf16>
    %16 = vector.shape_cast %15 : vector<1x1x18x24x12xbf16> to vector<18x24x12xbf16>
    %17 = vector.shape_cast %16 : vector<18x24x12xbf16> to vector<432x12xbf16>
    %c2_20 = arith.constant 2 : index
    %c0_21 = arith.constant 0 : index
    %c0_22 = arith.constant 0 : index
    %18 = vector.load %arg3[%c2_20, %c0_21, %c0_22] : memref<3x12x128xbf16, #tpu.memory_space<vmem>>, vector<1x12x128xbf16>
    %19 = vector.shape_cast %18 : vector<1x12x128xbf16> to vector<12x128xbf16>
    %cst_23 = arith.constant dense<0.000000e+00> : vector<432x128xf32>
    %20 = tpu.matmul %17, %19, %cst_23 {dimension_numbers = #tpu.dot_dimension_numbers<[1], [0], [0], [1], [0, 0, 1, 1], [], []>} : vector<432x12xbf16>, vector<12x128xbf16>, vector<432x128xf32> -> vector<432x128xf32>
    %21 = arith.addf %14, %20 : vector<432x128xf32>
    %c0_24 = arith.constant 0 : index
    %c0_25 = arith.constant 0 : index
    %22 = vector.load %arg5[%c0_24, %c0_25] : memref<1x128xf32, #tpu.memory_space<vmem>>, vector<1x128xf32>
    %23 = vector.broadcast %22 : vector<1x128xf32> to vector<432x128xf32>
    %24 = arith.mulf %21, %23 : vector<432x128xf32>
    %c0_26 = arith.constant 0 : index
    %c0_27 = arith.constant 0 : index
    %25 = vector.load %arg6[%c0_26, %c0_27] : memref<1x128xf32, #tpu.memory_space<vmem>>, vector<1x128xf32>
    %26 = vector.broadcast %25 : vector<1x128xf32> to vector<432x128xf32>
    %27 = arith.addf %24, %26 : vector<432x128xf32>
    %cst_28 = arith.constant 0.000000e+00 : f32
    %28 = vector.broadcast %cst_28 : f32 to vector<432x128xf32>
    %29 = arith.maximumf %27, %28 : vector<432x128xf32>
    %30 = vector.shape_cast %29 : vector<432x128xf32> to vector<18x24x128xf32>
    %31 = arith.truncf %30 : vector<18x24x128xf32> to vector<18x24x128xbf16>
    %c0_29 = arith.constant 0 : index
    %c0_30 = arith.constant 0 : index
    %c0_31 = arith.constant 0 : index
    %32 = vector.load %arg10[%c0_29, %c0_30, %c0_31] : memref<18x24x128xbf16, #tpu.memory_space<vmem>>, vector<18x24x128xbf16>
    tpu.vector_store %arg10[%c0_29, %c0_30, %c0_31], %31 {strides = array<i32>} : memref<18x24x128xbf16, #tpu.memory_space<vmem>>, vector<18x24x128xbf16>,
    %cst_32 = arith.constant 0.000000e+00 : bf16
    %33 = vector.broadcast %cst_32 : bf16 to vector<18x1x128xbf16>
    %c0_33 = arith.constant 0 : index
    %c0_34 = arith.constant 0 : index
    %c0_35 = arith.constant 0 : index
    %34 = vector.load %arg10[%c0_33, %c0_34, %c0_35] : memref<18x24x128xbf16, #tpu.memory_space<vmem>>, vector<18x1x128xbf16>
    tpu.vector_store %arg10[%c0_33, %c0_34, %c0_35], %33 {strides = array<i32>} : memref<18x24x128xbf16, #tpu.memory_space<vmem>>, vector<18x1x128xbf16>,
    %cst_36 = arith.constant 0.000000e+00 : bf16
    %35 = vector.broadcast %cst_36 : bf16 to vector<18x7x128xbf16>
    %c0_37 = arith.constant 0 : index
    %c17 = arith.constant 17 : index
    %c0_38 = arith.constant 0 : index
    %36 = vector.load %arg10[%c0_37, %c17, %c0_38] : memref<18x24x128xbf16, #tpu.memory_space<vmem>>, vector<18x7x128xbf16>
    tpu.vector_store %arg10[%c0_37, %c17, %c0_38], %35 {strides = array<i32>} : memref<18x24x128xbf16, #tpu.memory_space<vmem>>, vector<18x7x128xbf16>,
    %c0_i32 = arith.constant 0 : i32
    %37 = arith.cmpi eq, %arg1, %c0_i32 : i32
    %38 = arith.extui %37 : i1 to i32
    %c0_i32_39 = arith.constant 0 : i32
    %39 = arith.cmpi ne, %38, %c0_i32_39 : i32
    scf.if %39 {
      %cst_135 = arith.constant 0.000000e+00 : bf16
      %118 = vector.broadcast %cst_135 : bf16 to vector<1x24x128xbf16>
      %c0_136 = arith.constant 0 : index
      %c0_137 = arith.constant 0 : index
      %c0_138 = arith.constant 0 : index
      %119 = vector.load %arg10[%c0_136, %c0_137, %c0_138] : memref<18x24x128xbf16, #tpu.memory_space<vmem>>, vector<1x24x128xbf16>
      tpu.vector_store %arg10[%c0_136, %c0_137, %c0_138], %118 {strides = array<i32>} : memref<18x24x128xbf16, #tpu.memory_space<vmem>>, vector<1x24x128xbf16>,
    } else {
    }
    %c0_i32_40 = arith.constant 0 : i32
    %40 = arith.cmpi eq, %arg1, %c0_i32_40 : i32
    %41 = arith.extui %40 : i1 to i32
    %c0_i32_41 = arith.constant 0 : i32
    %42 = arith.cmpi ne, %41, %c0_i32_41 : i32
    scf.if %42 {
      %cst_135 = arith.constant 0.000000e+00 : bf16
      %118 = vector.broadcast %cst_135 : bf16 to vector<1x24x128xbf16>
      %c17_136 = arith.constant 17 : index
      %c0_137 = arith.constant 0 : index
      %c0_138 = arith.constant 0 : index
      %119 = vector.load %arg10[%c17_136, %c0_137, %c0_138] : memref<18x24x128xbf16, #tpu.memory_space<vmem>>, vector<1x24x128xbf16>
      tpu.vector_store %arg10[%c17_136, %c0_137, %c0_138], %118 {strides = array<i32>} : memref<18x24x128xbf16, #tpu.memory_space<vmem>>, vector<1x24x128xbf16>,
    } else {
    }
    %cst_42 = arith.constant 0.000000e+00 : f32
    %43 = vector.broadcast %cst_42 : f32 to vector<256x128xf32>
    %c0_43 = arith.constant 0 : index
    %c0_44 = arith.constant 0 : index
    %c0_45 = arith.constant 0 : index
    %44 = vector.load %arg10[%c0_43, %c0_44, %c0_45] : memref<18x24x128xbf16, #tpu.memory_space<vmem>>, vector<16x16x128xbf16>
    %45 = vector.shape_cast %44 : vector<16x16x128xbf16> to vector<256x128xbf16>
    %c0_46 = arith.constant 0 : index
    %c0_47 = arith.constant 0 : index
    %c0_48 = arith.constant 0 : index
    %c0_49 = arith.constant 0 : index
    %46 = vector.load %arg4[%c0_46, %c0_47, %c0_48, %c0_49] : memref<3x3x128x128xbf16, #tpu.memory_space<vmem>>, vector<1x1x128x128xbf16>
    %47 = vector.shape_cast %46 : vector<1x1x128x128xbf16> to vector<128x128xbf16>
    %cst_50 = arith.constant dense<0.000000e+00> : vector<256x128xf32>
    %48 = tpu.matmul %45, %47, %cst_50 {dimension_numbers = #tpu.dot_dimension_numbers<[1], [0], [0], [1], [0, 0, 1, 1], [], []>} : vector<256x128xbf16>, vector<128x128xbf16>, vector<256x128xf32> -> vector<256x128xf32>
    %49 = arith.addf %43, %48 : vector<256x128xf32>
    %c0_51 = arith.constant 0 : index
    %c1_52 = arith.constant 1 : index
    %c0_53 = arith.constant 0 : index
    %50 = vector.load %arg10[%c0_51, %c1_52, %c0_53] : memref<18x24x128xbf16, #tpu.memory_space<vmem>>, vector<16x16x128xbf16>
    %51 = vector.shape_cast %50 : vector<16x16x128xbf16> to vector<256x128xbf16>
    %c0_54 = arith.constant 0 : index
    %c1_55 = arith.constant 1 : index
    %c0_56 = arith.constant 0 : index
    %c0_57 = arith.constant 0 : index
    %52 = vector.load %arg4[%c0_54, %c1_55, %c0_56, %c0_57] : memref<3x3x128x128xbf16, #tpu.memory_space<vmem>>, vector<1x1x128x128xbf16>
    %53 = vector.shape_cast %52 : vector<1x1x128x128xbf16> to vector<128x128xbf16>
    %cst_58 = arith.constant dense<0.000000e+00> : vector<256x128xf32>
    %54 = tpu.matmul %51, %53, %cst_58 {dimension_numbers = #tpu.dot_dimension_numbers<[1], [0], [0], [1], [0, 0, 1, 1], [], []>} : vector<256x128xbf16>, vector<128x128xbf16>, vector<256x128xf32> -> vector<256x128xf32>
    %55 = arith.addf %49, %54 : vector<256x128xf32>
    %c0_59 = arith.constant 0 : index
    %c2_60 = arith.constant 2 : index
    %c0_61 = arith.constant 0 : index
    %56 = vector.load %arg10[%c0_59, %c2_60, %c0_61] : memref<18x24x128xbf16, #tpu.memory_space<vmem>>, vector<16x16x128xbf16>
    %57 = vector.shape_cast %56 : vector<16x16x128xbf16> to vector<256x128xbf16>
    %c0_62 = arith.constant 0 : index
    %c2_63 = arith.constant 2 : index
    %c0_64 = arith.constant 0 : index
    %c0_65 = arith.constant 0 : index
    %58 = vector.load %arg4[%c0_62, %c2_63, %c0_64, %c0_65] : memref<3x3x128x128xbf16, #tpu.memory_space<vmem>>, vector<1x1x128x128xbf16>
    %59 = vector.shape_cast %58 : vector<1x1x128x128xbf16> to vector<128x128xbf16>
    %cst_66 = arith.constant dense<0.000000e+00> : vector<256x128xf32>
    %60 = tpu.matmul %57, %59, %cst_66 {dimension_numbers = #tpu.dot_dimension_numbers<[1], [0], [0], [1], [0, 0, 1, 1], [], []>} : vector<256x128xbf16>, vector<128x128xbf16>, vector<256x128xf32> -> vector<256x128xf32>
    %61 = arith.addf %55, %60 : vector<256x128xf32>
    %c1_67 = arith.constant 1 : index
    %c0_68 = arith.constant 0 : index
    %c0_69 = arith.constant 0 : index
    %62 = vector.load %arg10[%c1_67, %c0_68, %c0_69] : memref<18x24x128xbf16, #tpu.memory_space<vmem>>, vector<16x16x128xbf16>
    %63 = vector.shape_cast %62 : vector<16x16x128xbf16> to vector<256x128xbf16>
    %c1_70 = arith.constant 1 : index
    %c0_71 = arith.constant 0 : index
    %c0_72 = arith.constant 0 : index
    %c0_73 = arith.constant 0 : index
    %64 = vector.load %arg4[%c1_70, %c0_71, %c0_72, %c0_73] : memref<3x3x128x128xbf16, #tpu.memory_space<vmem>>, vector<1x1x128x128xbf16>
    %65 = vector.shape_cast %64 : vector<1x1x128x128xbf16> to vector<128x128xbf16>
    %cst_74 = arith.constant dense<0.000000e+00> : vector<256x128xf32>
    %66 = tpu.matmul %63, %65, %cst_74 {dimension_numbers = #tpu.dot_dimension_numbers<[1], [0], [0], [1], [0, 0, 1, 1], [], []>} : vector<256x128xbf16>, vector<128x128xbf16>, vector<256x128xf32> -> vector<256x128xf32>
    %67 = arith.addf %61, %66 : vector<256x128xf32>
    %c1_75 = arith.constant 1 : index
    %c1_76 = arith.constant 1 : index
    %c0_77 = arith.constant 0 : index
    %68 = vector.load %arg10[%c1_75, %c1_76, %c0_77] : memref<18x24x128xbf16, #tpu.memory_space<vmem>>, vector<16x16x128xbf16>
    %69 = vector.shape_cast %68 : vector<16x16x128xbf16> to vector<256x128xbf16>
    %c1_78 = arith.constant 1 : index
    %c1_79 = arith.constant 1 : index
    %c0_80 = arith.constant 0 : index
    %c0_81 = arith.constant 0 : index
    %70 = vector.load %arg4[%c1_78, %c1_79, %c0_80, %c0_81] : memref<3x3x128x128xbf16, #tpu.memory_space<vmem>>, vector<1x1x128x128xbf16>
    %71 = vector.shape_cast %70 : vector<1x1x128x128xbf16> to vector<128x128xbf16>
    %cst_82 = arith.constant dense<0.000000e+00> : vector<256x128xf32>
    %72 = tpu.matmul %69, %71, %cst_82 {dimension_numbers = #tpu.dot_dimension_numbers<[1], [0], [0], [1], [0, 0, 1, 1], [], []>} : vector<256x128xbf16>, vector<128x128xbf16>, vector<256x128xf32> -> vector<256x128xf32>
    %73 = arith.addf %67, %72 : vector<256x128xf32>
    %c1_83 = arith.constant 1 : index
    %c2_84 = arith.constant 2 : index
    %c0_85 = arith.constant 0 : index
    %74 = vector.load %arg10[%c1_83, %c2_84, %c0_85] : memref<18x24x128xbf16, #tpu.memory_space<vmem>>, vector<16x16x128xbf16>
    %75 = vector.shape_cast %74 : vector<16x16x128xbf16> to vector<256x128xbf16>
    %c1_86 = arith.constant 1 : index
    %c2_87 = arith.constant 2 : index
    %c0_88 = arith.constant 0 : index
    %c0_89 = arith.constant 0 : index
    %76 = vector.load %arg4[%c1_86, %c2_87, %c0_88, %c0_89] : memref<3x3x128x128xbf16, #tpu.memory_space<vmem>>, vector<1x1x128x128xbf16>
    %77 = vector.shape_cast %76 : vector<1x1x128x128xbf16> to vector<128x128xbf16>
    %cst_90 = arith.constant dense<0.000000e+00> : vector<256x128xf32>
    %78 = tpu.matmul %75, %77, %cst_90 {dimension_numbers = #tpu.dot_dimension_numbers<[1], [0], [0], [1], [0, 0, 1, 1], [], []>} : vector<256x128xbf16>, vector<128x128xbf16>, vector<256x128xf32> -> vector<256x128xf32>
    %79 = arith.addf %73, %78 : vector<256x128xf32>
    %c2_91 = arith.constant 2 : index
    %c0_92 = arith.constant 0 : index
    %c0_93 = arith.constant 0 : index
    %80 = vector.load %arg10[%c2_91, %c0_92, %c0_93] : memref<18x24x128xbf16, #tpu.memory_space<vmem>>, vector<16x16x128xbf16>
    %81 = vector.shape_cast %80 : vector<16x16x128xbf16> to vector<256x128xbf16>
    %c2_94 = arith.constant 2 : index
    %c0_95 = arith.constant 0 : index
    %c0_96 = arith.constant 0 : index
    %c0_97 = arith.constant 0 : index
    %82 = vector.load %arg4[%c2_94, %c0_95, %c0_96, %c0_97] : memref<3x3x128x128xbf16, #tpu.memory_space<vmem>>, vector<1x1x128x128xbf16>
    %83 = vector.shape_cast %82 : vector<1x1x128x128xbf16> to vector<128x128xbf16>
    %cst_98 = arith.constant dense<0.000000e+00> : vector<256x128xf32>
    %84 = tpu.matmul %81, %83, %cst_98 {dimension_numbers = #tpu.dot_dimension_numbers<[1], [0], [0], [1], [0, 0, 1, 1], [], []>} : vector<256x128xbf16>, vector<128x128xbf16>, vector<256x128xf32> -> vector<256x128xf32>
    %85 = arith.addf %79, %84 : vector<256x128xf32>
    %c2_99 = arith.constant 2 : index
    %c1_100 = arith.constant 1 : index
    %c0_101 = arith.constant 0 : index
    %86 = vector.load %arg10[%c2_99, %c1_100, %c0_101] : memref<18x24x128xbf16, #tpu.memory_space<vmem>>, vector<16x16x128xbf16>
    %87 = vector.shape_cast %86 : vector<16x16x128xbf16> to vector<256x128xbf16>
    %c2_102 = arith.constant 2 : index
    %c1_103 = arith.constant 1 : index
    %c0_104 = arith.constant 0 : index
    %c0_105 = arith.constant 0 : index
    %88 = vector.load %arg4[%c2_102, %c1_103, %c0_104, %c0_105] : memref<3x3x128x128xbf16, #tpu.memory_space<vmem>>, vector<1x1x128x128xbf16>
    %89 = vector.shape_cast %88 : vector<1x1x128x128xbf16> to vector<128x128xbf16>
    %cst_106 = arith.constant dense<0.000000e+00> : vector<256x128xf32>
    %90 = tpu.matmul %87, %89, %cst_106 {dimension_numbers = #tpu.dot_dimension_numbers<[1], [0], [0], [1], [0, 0, 1, 1], [], []>} : vector<256x128xbf16>, vector<128x128xbf16>, vector<256x128xf32> -> vector<256x128xf32>
    %91 = arith.addf %85, %90 : vector<256x128xf32>
    %c2_107 = arith.constant 2 : index
    %c2_108 = arith.constant 2 : index
    %c0_109 = arith.constant 0 : index
    %92 = vector.load %arg10[%c2_107, %c2_108, %c0_109] : memref<18x24x128xbf16, #tpu.memory_space<vmem>>, vector<16x16x128xbf16>
    %93 = vector.shape_cast %92 : vector<16x16x128xbf16> to vector<256x128xbf16>
    %c2_110 = arith.constant 2 : index
    %c2_111 = arith.constant 2 : index
    %c0_112 = arith.constant 0 : index
    %c0_113 = arith.constant 0 : index
    %94 = vector.load %arg4[%c2_110, %c2_111, %c0_112, %c0_113] : memref<3x3x128x128xbf16, #tpu.memory_space<vmem>>, vector<1x1x128x128xbf16>
    %95 = vector.shape_cast %94 : vector<1x1x128x128xbf16> to vector<128x128xbf16>
    %cst_114 = arith.constant dense<0.000000e+00> : vector<256x128xf32>
    %96 = tpu.matmul %93, %95, %cst_114 {dimension_numbers = #tpu.dot_dimension_numbers<[1], [0], [0], [1], [0, 0, 1, 1], [], []>} : vector<256x128xbf16>, vector<128x128xbf16>, vector<256x128xf32> -> vector<256x128xf32>
    %97 = arith.addf %91, %96 : vector<256x128xf32>
    %c0_115 = arith.constant 0 : index
    %c0_116 = arith.constant 0 : index
    %98 = vector.load %arg7[%c0_115, %c0_116] : memref<1x128xf32, #tpu.memory_space<vmem>>, vector<1x128xf32>
    %99 = vector.broadcast %98 : vector<1x128xf32> to vector<256x128xf32>
    %100 = arith.mulf %97, %99 : vector<256x128xf32>
    %c0_117 = arith.constant 0 : index
    %c0_118 = arith.constant 0 : index
    %101 = vector.load %arg8[%c0_117, %c0_118] : memref<1x128xf32, #tpu.memory_space<vmem>>, vector<1x128xf32>
    %102 = vector.broadcast %101 : vector<1x128xf32> to vector<256x128xf32>
    %103 = arith.addf %100, %102 : vector<256x128xf32>
    %cst_119 = arith.constant 0.000000e+00 : f32
    %104 = vector.broadcast %cst_119 : f32 to vector<256x128xf32>
    %105 = arith.maximumf %103, %104 : vector<256x128xf32>
    %106 = vector.shape_cast %105 : vector<256x128xf32> to vector<8x2x16x128xf32>
    %cst_120 = arith.constant dense<0.000000e+00> : vector<8x16x128xf32>
    %107 = vector.multi_reduction <add>, %106, %cst_120 [1] : vector<8x2x16x128xf32> to vector<8x16x128xf32>
    %c0_121 = arith.constant 0 : index
    %c0_122 = arith.constant 0 : index
    %c0_123 = arith.constant 0 : index
    %108 = vector.load %arg11[%c0_121, %c0_122, %c0_123] : memref<8x16x128xf32, #tpu.memory_space<vmem>>, vector<8x16x128xf32>
    tpu.vector_store %arg11[%c0_121, %c0_122, %c0_123], %107 {strides = array<i32>} : memref<8x16x128xf32, #tpu.memory_space<vmem>>, vector<8x16x128xf32>,
    %c0_124 = arith.constant 0 : index
    %c0_125 = arith.constant 0 : index
    %c0_126 = arith.constant 0 : index
    %109 = tpu.strided_load %arg11[%c0_124, %c0_125, %c0_126] {strides = array<i32: 1, 2, 1>} : memref<8x16x128xf32, #tpu.memory_space<vmem>>, vector<8x8x128xf32>
    %c0_127 = arith.constant 0 : index
    %c1_128 = arith.constant 1 : index
    %c0_129 = arith.constant 0 : index
    %110 = tpu.strided_load %arg11[%c0_127, %c1_128, %c0_129] {strides = array<i32: 1, 2, 1>} : memref<8x16x128xf32, #tpu.memory_space<vmem>>, vector<8x8x128xf32>
    %111 = arith.addf %109, %110 : vector<8x8x128xf32>
    %cst_130 = arith.constant 2.500000e-01 : f32
    %112 = vector.broadcast %cst_130 : f32 to vector<8x8x128xf32>
    %113 = arith.mulf %111, %112 : vector<8x8x128xf32>
    %114 = arith.truncf %113 : vector<8x8x128xf32> to vector<8x8x128xbf16>
    %c0_131 = arith.constant 0 : index
    %c0_132 = arith.constant 0 : index
    %c0_133 = arith.constant 0 : index
    %c0_134 = arith.constant 0 : index
    %115 = vector.load %arg9[%c0_131, %c0_132, %c0_133, %c0_134] : memref<1x8x8x128xbf16, #tpu.memory_space<vmem>>, vector<1x8x8x128xbf16>
    %116 = vector.shape_cast %115 : vector<1x8x8x128xbf16> to vector<8x8x128xbf16>
    %117 = vector.shape_cast %114 : vector<8x8x128xbf16> to vector<1x8x8x128xbf16>
    tpu.vector_store %arg9[%c0_131, %c0_132, %c0_133, %c0_134], %117 {strides = array<i32>} : memref<1x8x8x128xbf16, #tpu.memory_space<vmem>>, vector<1x8x8x128xbf16>,
    return
  }
  func.func @transform_0(%arg0: i32, %arg1: i32) -> (i32, i32, i32, i32, i32) {
    %c0_i32 = arith.constant 0 : i32
    %c0_i32_0 = arith.constant 0 : i32
    %c0_i32_1 = arith.constant 0 : i32
    %c0_i32_2 = arith.constant 0 : i32
    return %arg0, %arg1, %c0_i32, %c0_i32_0, %c0_i32_1 : i32, i32, i32, i32, i32
  }
  func.func @transform_1(%arg0: i32, %arg1: i32) -> (i32, i32, i32) {
    %c0_i32 = arith.constant 0 : i32
    %c0_i32_0 = arith.constant 0 : i32
    %c0_i32_1 = arith.constant 0 : i32
    %c0_i32_2 = arith.constant 0 : i32
    return %c0_i32, %c0_i32_0, %c0_i32_1 : i32, i32, i32
  }
  func.func @transform_2(%arg0: i32, %arg1: i32) -> (i32, i32, i32, i32) {
    %c0_i32 = arith.constant 0 : i32
    %c0_i32_0 = arith.constant 0 : i32
    %c0_i32_1 = arith.constant 0 : i32
    %c0_i32_2 = arith.constant 0 : i32
    %c0_i32_3 = arith.constant 0 : i32
    return %c0_i32, %c0_i32_0, %c0_i32_1, %c0_i32_2 : i32, i32, i32, i32
  }
  func.func @transform_3(%arg0: i32, %arg1: i32) -> (i32, i32) {
    %c0_i32 = arith.constant 0 : i32
    %c0_i32_0 = arith.constant 0 : i32
    %c0_i32_1 = arith.constant 0 : i32
    return %c0_i32, %c0_i32_0 : i32, i32
  }
  func.func @transform_4(%arg0: i32, %arg1: i32) -> (i32, i32) {
    %c0_i32 = arith.constant 0 : i32
    %c0_i32_0 = arith.constant 0 : i32
    %c0_i32_1 = arith.constant 0 : i32
    return %c0_i32, %c0_i32_0 : i32, i32
  }
  func.func @transform_5(%arg0: i32, %arg1: i32) -> (i32, i32) {
    %c0_i32 = arith.constant 0 : i32
    %c0_i32_0 = arith.constant 0 : i32
    %c0_i32_1 = arith.constant 0 : i32
    return %c0_i32, %c0_i32_0 : i32, i32
  }
  func.func @transform_6(%arg0: i32, %arg1: i32) -> (i32, i32) {
    %c0_i32 = arith.constant 0 : i32
    %c0_i32_0 = arith.constant 0 : i32
    %c0_i32_1 = arith.constant 0 : i32
    return %c0_i32, %c0_i32_0 : i32, i32
  }
  func.func @transform_7(%arg0: i32, %arg1: i32) -> (i32, i32, i32, i32) {
    %c0_i32 = arith.constant 0 : i32
    %c0_i32_0 = arith.constant 0 : i32
    %c0_i32_1 = arith.constant 0 : i32
    return %arg0, %arg1, %c0_i32, %c0_i32_0 : i32, i32, i32, i32
  }
}

</mosaic_0001>

<llo_original>
// kernel: conv_block_forward.1
$region0: #{conv_block_forward.1}
  #allocation0 [shape = 'u32[]', space=smem, size = 0x4, offset = 0x4, fixed_abs, tag = 'smem constant byte address 0x4 - core index']
  #allocation1 [shape = 'u32[144,128]{1,0:T(1,128)}', space=vmem, size = 0x12000, scoped, tag = 'internal scratch']
  #allocation2 [shape = 'bf16[18,24,128]{2,1,0:T(8,128)(2,1)}', space=vmem, size = 0x1b000, scoped, tag = 'scratch operand']
  #allocation3 [shape = 'f32[8,16,128]{2,1,0:T(8,128)}', space=vmem, size = 0x10000, scoped, tag = 'scratch operand']
  %s0 = inlined_call_operand.vmem [shape: bf16[2,1,20,24,12], index: 0, kind: input, shape index: {}]
  %s1 = inlined_call_operand.vmem [shape: bf16[3,12,128], index: 1, kind: input, shape index: {}]
  %s2 = inlined_call_operand.vmem [shape: bf16[3,3,128,128], index: 2, kind: input, shape index: {}]
  %s3 = inlined_call_operand.vmem [shape: f32[1,128], index: 3, kind: input, shape index: {}]
  %s4 = inlined_call_operand.vmem [shape: f32[1,128], index: 4, kind: input, shape index: {}]
  %s5 = inlined_call_operand.vmem [shape: f32[1,128], index: 5, kind: input, shape index: {}]
  %s6 = inlined_call_operand.vmem [shape: f32[1,128], index: 6, kind: input, shape index: {}]
  %s7 = inlined_call_operand.vmem [shape: bf16[2,8,8,128], index: 7, kind: output, shape index: {}]
  %s8 = sld [smem:[#allocation0]]
  $region65: #{conv_block_forward.1} parent=0
    _
  %s10 = ssub.s32 1, %s8
  %s11 = scalar_select 0, %s10, %s8
  loop: start=0, step=1, limit=4
  $region2: #{conv_block_forward.1} parent=0 // loop_pre_header
    _
  $region3: #{conv_block_forward.1} parent=0 // loop_header
    %s13 = sphi 0, %s17
    %p14 = scmp.ge.s32.totalorder %s13, 4
    %s20 = sphi 0, %s32
    %s21 = sphi 0, %s28
    %s22 = sphi 0, %s20
    %s23 = sphi 0, %s21
    %s24 = sphi 0, %s22
    %s25 = sphi 0, %s23
    %s37 = sphi 0, %s39
    %s40 = sphi 0, %s37
    %s41 = sphi 0, %s40
    %s57 = sphi 0, %s41
    %s61 = sphi 0, %s61
    %s63 = sphi 0, %s61
    %s64 = sphi 0, %s63
    %s78 = sphi 0, %s64
    %s82 = sphi 0, %s82
    %s84 = sphi 0, %s82
    %s85 = sphi 0, %s84
    %s99 = sphi 0, %s85
    %s103 = sphi 0, %s103
    %s105 = sphi 0, %s103
    %s106 = sphi 0, %s105
    %s120 = sphi 0, %s106
    %s124 = sphi 0, %s124
    %s126 = sphi 0, %s124
    %s127 = sphi 0, %s126
    %s141 = sphi 0, %s127
    %s145 = sphi 0, %s145
    %s147 = sphi 0, %s145
    %s148 = sphi 0, %s147
    %s162 = sphi 0, %s148
    %s166 = sphi 0, %s166
    %s168 = sphi 0, %s166
    %s169 = sphi 0, %s168
    %s183 = sphi 0, %s169
    %s191 = sphi 0, %s193
    %s194 = sphi 0, %s191
    %s195 = sphi 0, %s194
    %s211 = sphi 0, %s195
  $region4: #{conv_block_forward.1} parent=0 // loop_header_branch
    %16 = sbr.rel (%p14) target = $region8
  $region5: #{conv_block_forward.1} parent=0 // loop_body
    %s18 = ssub.s32 %s13, 1
    %s19 = ssub.s32 %s13, 2
    %s26 = sadd.s32 1, %s21
    %p27 = scmp.ge.s32.totalorder %s26, 1
    %s28 = scalar_select %p27, 0, %s26
    %s29 = sadd.s32 1, %s20
    %s30 = scalar_select %p27, %s29, %s20
    %p31 = scmp.ge.s32.totalorder %s30, 2
    %s32 = scalar_select %p31, 0, %s30
    %s33 = ssub.s32 %s20, %s32
    %s34 = ssub.s32 %s21, %s28
    %s35 = sor.u32 %s33, %s34
    %p36 = scmp.eq.s32.totalorder %s35, 0
    %s38 = sadd.s32 %s37, 1
    %s39 = scalar_select %p36, %s37, %s38
    %p42 = pneg %p36
    %p43 = scmp.eq.s32.totalorder %s13, 1
    %p44 = por %p42, %p43
    %p45 = scmp.ne.s32.totalorder %s37, %s40
    %p46 = scmp.eq.s32.totalorder %s13, 0
    %p47 = por %p45, %p46
    %p48 = scmp.ne.s32.totalorder %s37, %s40
    %p49 = scmp.eq.s32.totalorder %s18, 1
    %p50 = por %p48, %p49
    %p51 = scmp.ne.s32.totalorder %s40, %s41
    %p52 = scmp.eq.s32.totalorder %s18, 0
    %p53 = por %p51, %p52
    %p54 = scmp.ne.s32.totalorder %s40, %s41
    %p55 = scmp.eq.s32.totalorder %s19, 1
    %p56 = por %p54, %p55
    %p58 = scmp.ne.s32.totalorder %s41, %s57
    %p59 = scmp.eq.s32.totalorder %s19, 0
    %p60 = por %p58, %p59
    %s62 = sadd.s32 %s61, 1
    %p65 = scmp.eq.s32.totalorder %s13, 1
    %p66 = scmp.ne.s32.totalorder %s61, %s63
    %p67 = scmp.eq.s32.totalorder %s13, 0
    %p68 = por %p66, %p67
    %p69 = scmp.ne.s32.totalorder %s61, %s63
    %p70 = scmp.eq.s32.totalorder %s18, 1
    %p71 = por %p69, %p70
    %p72 = scmp.ne.s32.totalorder %s63, %s64
    %p73 = scmp.eq.s32.totalorder %s18, 0
    %p74 = por %p72, %p73
    %p75 = scmp.ne.s32.totalorder %s63, %s64
    %p76 = scmp.eq.s32.totalorder %s19, 1
    %p77 = por %p75, %p76
    %p79 = scmp.ne.s32.totalorder %s64, %s78
    %p80 = scmp.eq.s32.totalorder %s19, 0
    %p81 = por %p79, %p80
    %s83 = sadd.s32 %s82, 1
    %p86 = scmp.eq.s32.totalorder %s13, 1
    %p87 = scmp.ne.s32.totalorder %s82, %s84
    %p88 = scmp.eq.s32.totalorder %s13, 0
    %p89 = por %p87, %p88
    %p90 = scmp.ne.s32.totalorder %s82, %s84
    %p91 = scmp.eq.s32.totalorder %s18, 1
    %p92 = por %p90, %p91
    %p93 = scmp.ne.s32.totalorder %s84, %s85
    %p94 = scmp.eq.s32.totalorder %s18, 0
    %p95 = por %p93, %p94
    %p96 = scmp.ne.s32.totalorder %s84, %s85
    %p97 = scmp.eq.s32.totalorder %s19, 1
    %p98 = por %p96, %p97
    %p100 = scmp.ne.s32.totalorder %s85, %s99
    %p101 = scmp.eq.s32.totalorder %s19, 0
    %p102 = por %p100, %p101
    %s104 = sadd.s32 %s103, 1
    %p107 = scmp.eq.s32.totalorder %s13, 1
    %p108 = scmp.ne.s32.totalorder %s103, %s105
    %p109 = scmp.eq.s32.totalorder %s13, 0
    %p110 = por %p108, %p109
    %p111 = scmp.ne.s32.totalorder %s103, %s105
    %p112 = scmp.eq.s32.totalorder %s18, 1
    %p113 = por %p111, %p112
    %p114 = scmp.ne.s32.totalorder %s105, %s106
    %p115 = scmp.eq.s32.totalorder %s18, 0
    %p116 = por %p114, %p115
    %p117 = scmp.ne.s32.totalorder %s105, %s106
    %p118 = scmp.eq.s32.totalorder %s19, 1
    %p119 = por %p117, %p118
    %p121 = scmp.ne.s32.totalorder %s106, %s120
    %p122 = scmp.eq.s32.totalorder %s19, 0
    %p123 = por %p121, %p122
    %s125 = sadd.s32 %s124, 1
    %p128 = scmp.eq.s32.totalorder %s13, 1
    %p129 = scmp.ne.s32.totalorder %s124, %s126
    %p130 = scmp.eq.s32.totalorder %s13, 0
    %p131 = por %p129, %p130
    %p132 = scmp.ne.s32.totalorder %s124, %s126
    %p133 = scmp.eq.s32.totalorder %s18, 1
    %p134 = por %p132, %p133
    %p135 = scmp.ne.s32.totalorder %s126, %s127
    %p136 = scmp.eq.s32.totalorder %s18, 0
    %p137 = por %p135, %p136
    %p138 = scmp.ne.s32.totalorder %s126, %s127
    %p139 = scmp.eq.s32.totalorder %s19, 1
    %p140 = por %p138, %p139
    %p142 = scmp.ne.s32.totalorder %s127, %s141
    %p143 = scmp.eq.s32.totalorder %s19, 0
    %p144 = por %p142, %p143
    %s146 = sadd.s32 %s145, 1
    %p149 = scmp.eq.s32.totalorder %s13, 1
    %p150 = scmp.ne.s32.totalorder %s145, %s147
    %p151 = scmp.eq.s32.totalorder %s13, 0
    %p152 = por %p150, %p151
    %p153 = scmp.ne.s32.totalorder %s145, %s147
    %p154 = scmp.eq.s32.totalorder %s18, 1
    %p155 = por %p153, %p154
    %p156 = scmp.ne.s32.totalorder %s147, %s148
    %p157 = scmp.eq.s32.totalorder %s18, 0
    %p158 = por %p156, %p157
    %p159 = scmp.ne.s32.totalorder %s147, %s148
    %p160 = scmp.eq.s32.totalorder %s19, 1
    %p161 = por %p159, %p160
    %p163 = scmp.ne.s32.totalorder %s148, %s162
    %p164 = scmp.eq.s32.totalorder %s19, 0
    %p165 = por %p163, %p164
    %s167 = sadd.s32 %s166, 1
    %p170 = scmp.eq.s32.totalorder %s13, 1
    %p171 = scmp.ne.s32.totalorder %s166, %s168
    %p172 = scmp.eq.s32.totalorder %s13, 0
    %p173 = por %p171, %p172
    %p174 = scmp.ne.s32.totalorder %s166, %s168
    %p175 = scmp.eq.s32.totalorder %s18, 1
    %p176 = por %p174, %p175
    %p177 = scmp.ne.s32.totalorder %s168, %s169
    %p178 = scmp.eq.s32.totalorder %s18, 0
    %p179 = por %p177, %p178
    %p180 = scmp.ne.s32.totalorder %s168, %s169
    %p181 = scmp.eq.s32.totalorder %s19, 1
    %p182 = por %p180, %p181
    %p184 = scmp.ne.s32.totalorder %s169, %s183
    %p185 = scmp.eq.s32.totalorder %s19, 0
    %p186 = por %p184, %p185
    %s187 = ssub.s32 %s20, %s32
    %s188 = ssub.s32 %s21, %s28
    %s189 = sor.u32 %s187, %s188
    %p190 = scmp.eq.s32.totalorder %s189, 0
    %s192 = sadd.s32 %s191, 1
    %s193 = scalar_select %p190, %s191, %s192
    %p196 = pneg %p190
    %p197 = scmp.eq.s32.totalorder %s13, 1
    %p198 = por %p196, %p197
    %p199 = scmp.ne.s32.totalorder %s191, %s194
    %p200 = scmp.eq.s32.totalorder %s13, 0
    %p201 = por %p199, %p200
    %p202 = scmp.ne.s32.totalorder %s191, %s194
    %p203 = scmp.eq.s32.totalorder %s18, 1
    %p204 = por %p202, %p203
    %p205 = scmp.ne.s32.totalorder %s194, %s195
    %p206 = scmp.eq.s32.totalorder %s18, 0
    %p207 = por %p205, %p206
    %p208 = scmp.ne.s32.totalorder %s194, %s195
    %p209 = scmp.eq.s32.totalorder %s19, 1
    %p210 = por %p208, %p209
    %p212 = scmp.ne.s32.totalorder %s195, %s211
    %p213 = scmp.eq.s32.totalorder %s19, 0
    %p214 = por %p212, %p213
    %p215 = scmp.le.s32.totalorder 1, %s13
    %p216 = scmp.lt.s32.totalorder %s13, 3
    %p217 = pnand %p215, %p216
    %p218 = pneg %p217
    // Predicated region
    $region9: #{conv_block_forward.1} parent=5 // pred_check
      _
    $region10: #{conv_block_forward.1} parent=5 // pred_check_branch
      %220 = sbr.rel (%p217) target = $region12
    $region11: #{conv_block_forward.1} parent=5 // pred_region
      %s221 = ssub.s32 %s13, 1
      // Predicated region
      $region13: #{conv_block_forward.1} parent=11 // pred_check
        %p222 = pneg %p74
      $region14: #{conv_block_forward.1} parent=11 // pred_check_branch
        %224 = sbr.rel (%p222) target = $region16
      $region15: #{conv_block_forward.1} parent=11 // pred_region
        _
      $region16: #{conv_block_forward.1} parent=11 // pred_fallthru
        _
      // Predicated region
      $region17: #{conv_block_forward.1} parent=11 // pred_check
        %p225 = pneg %p95
      $region18: #{conv_block_forward.1} parent=11 // pred_check_branch
        %227 = sbr.rel (%p225) target = $region20
      $region19: #{conv_block_forward.1} parent=11 // pred_region
        _
      $region20: #{conv_block_forward.1} parent=11 // pred_fallthru
        _
      // Predicated region
      $region21: #{conv_block_forward.1} parent=11 // pred_check
        %p228 = pneg %p116
      $region22: #{conv_block_forward.1} parent=11 // pred_check_branch
        %230 = sbr.rel (%p228) target = $region24
      $region23: #{conv_block_forward.1} parent=11 // pred_region
        _
      $region24: #{conv_block_forward.1} parent=11 // pred_fallthru
        _
      // Predicated region
      $region25: #{conv_block_forward.1} parent=11 // pred_check
        %p231 = pneg %p137
      $region26: #{conv_block_forward.1} parent=11 // pred_check_branch
        %233 = sbr.rel (%p231) target = $region28
      $region27: #{conv_block_forward.1} parent=11 // pred_region
        _
      $region28: #{conv_block_forward.1} parent=11 // pred_fallthru
        _
      // Predicated region
      $region29: #{conv_block_forward.1} parent=11 // pred_check
        %p234 = pneg %p158
      $region30: #{conv_block_forward.1} parent=11 // pred_check_branch
        %236 = sbr.rel (%p234) target = $region32
      $region31: #{conv_block_forward.1} parent=11 // pred_region
        _
      $region32: #{conv_block_forward.1} parent=11 // pred_fallthru
        _
      // Predicated region
      $region33: #{conv_block_forward.1} parent=11 // pred_check
        %p237 = pneg %p179
      $region34: #{conv_block_forward.1} parent=11 // pred_check_branch
        %239 = sbr.rel (%p237) target = $region36
      $region35: #{conv_block_forward.1} parent=11 // pred_region
        _
      $region36: #{conv_block_forward.1} parent=11 // pred_fallthru
        _
    $region12: #{conv_block_forward.1} parent=5 // pred_fallthru
      _
    %p240 = scmp.lt.s32.totalorder %s13, 2
    // Predicated region
    $region37: #{conv_block_forward.1} parent=5 // pred_check
      %p241 = pneg %p240
    $region38: #{conv_block_forward.1} parent=5 // pred_check_branch
      %243 = sbr.rel (%p241) target = $region40
    $region39: #{conv_block_forward.1} parent=5 // pred_region
      // Predicated region
      $region41: #{conv_block_forward.1} parent=39 // pred_check
        %p244 = pneg %p47
      $region42: #{conv_block_forward.1} parent=39 // pred_check_branch
        %246 = sbr.rel (%p244) target = $region44
      $region43: #{conv_block_forward.1} parent=39 // pred_region
        %p247 = scmp.lt.s32.totalorder %s20, 1
        %s248 = scalar_select %p247, %s20, 1
        %p249 = scmp.lt.s32.totalorder %s21, 0
        %s250 = scalar_select %p249, %s21, 0
        %s251 = smul.addr %s250, 60
        %s252 = smul.addr %s248, 60
        %s253 = sadd.s32 %s251, %s252
        %s254 = smul.addr %s253, 4
        %s255 = scalar_lea.vmem %s0, %s254
      $region44: #{conv_block_forward.1} parent=39 // pred_fallthru
        _
    $region40: #{conv_block_forward.1} parent=5 // pred_fallthru
      _
    %p256 = scmp.le.s32.totalorder 1, %s13
    %p257 = scmp.lt.s32.totalorder %s13, 3
    %p258 = pnand %p256, %p257
    %p259 = pneg %p258
    // Predicated region
    $region45: #{conv_block_forward.1} parent=5 // pred_check
      _
    $region46: #{conv_block_forward.1} parent=5 // pred_check_branch
      %261 = sbr.rel (%p258) target = $region48
    $region47: #{conv_block_forward.1} parent=5 // pred_region
      %s262 = ssub.s32 %s13, 1
      %p263 = scmp.lt.s32.totalorder %s22, 1
      %s264 = scalar_select %p263, %s22, 1
      %p265 = scmp.lt.s32.totalorder %s23, 0
      %s266 = scalar_select %p265, %s23, 0
      %s267 = smul.addr %s266, 60
      %s268 = smul.addr %s264, 60
      %s269 = sadd.s32 %s267, %s268
      %s270 = smul.addr %s269, 4
      %s271 = scalar_lea.vmem %s0, %s270
      %p272 = pneg %p53
      %p273 = pneg %p50
      %p274 = pneg %p74
      %p275 = pneg %p71
      %p276 = pneg %p95
      %p277 = pneg %p92
      %p278 = pneg %p116
      %p279 = pneg %p113
      %p280 = pneg %p137
      %p281 = pneg %p134
      %p282 = pneg %p158
      %p283 = pneg %p155
      %p284 = pneg %p179
      %p285 = pneg %p176
      %p286 = pneg %p207
      %p287 = pneg %p204
      %s288 = smul.u32 8, %s23
      %p289 = scmp.lt.s32.totalorder %s22, 1
      %s290 = scalar_select %p289, %s22, 1
      %p291 = scmp.lt.s32.totalorder %s288, 7
      %s292 = scalar_select %p291, %s288, 7
      %s293 = smul.addr %s290, 8
      %s294 = sadd.s32 %s292, %s293
      %s295 = smul.addr %s294, 4
      %s296 = scalar_lea.vmem %s7, %s295
      %p297 = scmp.lt.s32.totalorder %s22, 1
      %s298 = scalar_select %p297, %s22, 1
      %p299 = scmp.lt.s32.totalorder %s23, 0
      %s300 = scalar_select %p299, %s23, 0
      %s301 = smul.addr %s300, 60
      %s302 = smul.addr %s298, 60
      %s303 = sadd.s32 %s301, %s302
      %s304 = smul.addr %s303, 4
      %s305 = scalar_lea.vmem %s0, %s304
      %s306 = smul.u32 8, %s23
      %p307 = scmp.lt.s32.totalorder %s22, 1
      %s308 = scalar_select %p307, %s22, 1
      %p309 = scmp.lt.s32.totalorder %s306, 7
      %s310 = scalar_select %p309, %s306, 7
      %s311 = smul.addr %s308, 8
      %s312 = sadd.s32 %s310, %s311
      %s313 = smul.addr %s312, 4
      %s314 = scalar_lea.vmem %s7, %s313
      %s315 = smul.u32 8, %s23
      %v317 = vld [vmem:[%s305] sm:$0xf]
      %v318 = vld [vmem:[%s305 + $0x4] sm:$0xf]
      %v319 = vld [vmem:[%s305 + $0x8] sm:$0xf]
      %v320 = vld [vmem:[%s305 + $0xc] sm:$0xf]
      %v321 = vld [vmem:[%s305 + $0x10] sm:$0xf]
      %v322 = vld [vmem:[%s305 + $0x14] sm:$0xf]
      %v323 = vld [vmem:[%s305 + $0x18] sm:$0xf]
      %v324 = vld [vmem:[%s305 + $0x1c] sm:$0xf]
      %v325 = vld [vmem:[%s305 + $0x20] sm:$0xf]
      %v326 = vld [vmem:[%s305 + $0x24] sm:$0xf]
      %v327 = vld [vmem:[%s305 + $0x28] sm:$0xf]
      %v328 = vld [vmem:[%s305 + $0x2c] sm:$0xf]
      %v329 = vld [vmem:[%s305 + $0x30] sm:$0xf]
      %v330 = vld [vmem:[%s305 + $0x34] sm:$0xf]
      %v331 = vld [vmem:[%s305 + $0x38] sm:$0xf]
      %v332 = vld [vmem:[%s305 + $0x3c] sm:$0xf]
      %v333 = vld [vmem:[%s305 + $0x40] sm:$0xf]
      %v334 = vld [vmem:[%s305 + $0x44] sm:$0xf]
      %v335 = vld [vmem:[%s305 + $0x48] sm:$0xf]
      %v336 = vld [vmem:[%s305 + $0x4c] sm:$0xf]
      %v337 = vld [vmem:[%s305 + $0x50] sm:$0xf]
      %v338 = vld [vmem:[%s305 + $0x54] sm:$0xf]
      %v339 = vld [vmem:[%s305 + $0x58] sm:$0xf]
      %v340 = vld [vmem:[%s305 + $0x5c] sm:$0xf]
      %v341 = vld [vmem:[%s305 + $0x60] sm:$0xf]
      %v342 = vld [vmem:[%s305 + $0x64] sm:$0xf]
      %v343 = vld [vmem:[%s305 + $0x68] sm:$0xf]
      %v344 = vld [vmem:[%s305 + $0x6c] sm:$0xf]
      %v345 = vld [vmem:[%s305 + $0x70] sm:$0xf]
      %v346 = vld [vmem:[%s305 + $0x74] sm:$0xf]
      %v347 = vld [vmem:[%s305 + $0x78] sm:$0xf]
      %v348 = vld [vmem:[%s305 + $0x7c] sm:$0xf]
      %v349 = vld [vmem:[%s305 + $0x80] sm:$0xf]
      %v350 = vld [vmem:[%s305 + $0x84] sm:$0xf]
      %v351 = vld [vmem:[%s305 + $0x88] sm:$0xf]
      %v352 = vld [vmem:[%s305 + $0x8c] sm:$0xf]
      %v353 = vld [vmem:[%s305 + $0x90] sm:$0xf]
      %v354 = vld [vmem:[%s305 + $0x94] sm:$0xf]
      %v355 = vld [vmem:[%s305 + $0x98] sm:$0xf]
      %v356 = vld [vmem:[%s305 + $0x9c] sm:$0xf]
      %v357 = vld [vmem:[%s305 + $0xa0] sm:$0xf]
      %v358 = vld [vmem:[%s305 + $0xa4] sm:$0xf]
      %v359 = vld [vmem:[%s305 + $0xa8] sm:$0xf]
      %v360 = vld [vmem:[%s305 + $0xac] sm:$0xf]
      %v361 = vld [vmem:[%s305 + $0xb0] sm:$0xf]
      %v362 = vld [vmem:[%s305 + $0xb4] sm:$0xf]
      %v363 = vld [vmem:[%s305 + $0xb8] sm:$0xf]
      %v364 = vld [vmem:[%s305 + $0xbc] sm:$0xf]
      %v365 = vld [vmem:[%s305 + $0xc0] sm:$0xf]
      %v366 = vld [vmem:[%s305 + $0xc4] sm:$0xf]
      %v367 = vld [vmem:[%s305 + $0xc8] sm:$0xf]
      %v368 = vld [vmem:[%s305 + $0xcc] sm:$0xf]
      %v369 = vld [vmem:[%s305 + $0xd0] sm:$0xf]
      %v370 = vld [vmem:[%s305 + $0xd4] sm:$0xf]
      %v371 = vld [vmem:[%s1] sm:$0xf]
      %v372 = vld [vmem:[%s1 + $0x4] sm:$0x3]
      %s373 = scalar_lea.vmem %s305, 12
      %v374 = vld [vmem:[%s373] sm:$0xf]
      %v375 = vld [vmem:[%s373 + $0x4] sm:$0xf]
      %v376 = vld [vmem:[%s373 + $0x8] sm:$0xf]
      %v377 = vld [vmem:[%s373 + $0xc] sm:$0xf]
      %v378 = vld [vmem:[%s373 + $0x10] sm:$0xf]
      %v379 = vld [vmem:[%s373 + $0x14] sm:$0xf]
      %v380 = vld [vmem:[%s373 + $0x18] sm:$0xf]
      %v381 = vld [vmem:[%s373 + $0x1c] sm:$0xf]
      %v382 = vld [vmem:[%s373 + $0x20] sm:$0xf]
      %v383 = vld [vmem:[%s373 + $0x24] sm:$0xf]
      %v384 = vld [vmem:[%s373 + $0x28] sm:$0xf]
      %v385 = vld [vmem:[%s373 + $0x2c] sm:$0xf]
      %v386 = vld [vmem:[%s373 + $0x30] sm:$0xf]
      %v387 = vld [vmem:[%s373 + $0x34] sm:$0xf]
      %v388 = vld [vmem:[%s373 + $0x38] sm:$0xf]
      %v389 = vld [vmem:[%s373 + $0x3c] sm:$0xf]
      %v390 = vld [vmem:[%s373 + $0x40] sm:$0xf]
      %v391 = vld [vmem:[%s373 + $0x44] sm:$0xf]
      %v392 = vld [vmem:[%s373 + $0x48] sm:$0xf]
      %v393 = vld [vmem:[%s373 + $0x4c] sm:$0xf]
      %v394 = vld [vmem:[%s373 + $0x50] sm:$0xf]
      %v395 = vld [vmem:[%s373 + $0x54] sm:$0xf]
      %v396 = vld [vmem:[%s373 + $0x58] sm:$0xf]
      %v397 = vld [vmem:[%s373 + $0x5c] sm:$0xf]
      %v398 = vld [vmem:[%s373 + $0x60] sm:$0xf]
      %v399 = vld [vmem:[%s373 + $0x64] sm:$0xf]
      %v400 = vld [vmem:[%s373 + $0x68] sm:$0xf]
      %v401 = vld [vmem:[%s373 + $0x6c] sm:$0xf]
      %v402 = vld [vmem:[%s373 + $0x70] sm:$0xf]
      %v403 = vld [vmem:[%s373 + $0x74] sm:$0xf]
      %v404 = vld [vmem:[%s373 + $0x78] sm:$0xf]
      %v405 = vld [vmem:[%s373 + $0x7c] sm:$0xf]
      %v406 = vld [vmem:[%s373 + $0x80] sm:$0xf]
      %v407 = vld [vmem:[%s373 + $0x84] sm:$0xf]
      %v408 = vld [vmem:[%s373 + $0x88] sm:$0xf]
      %v409 = vld [vmem:[%s373 + $0x8c] sm:$0xf]
      %v410 = vld [vmem:[%s373 + $0x90] sm:$0xf]
      %v411 = vld [vmem:[%s373 + $0x94] sm:$0xf]
      %v412 = vld [vmem:[%s373 + $0x98] sm:$0xf]
      %v413 = vld [vmem:[%s373 + $0x9c] sm:$0xf]
      %v414 = vld [vmem:[%s373 + $0xa0] sm:$0xf]
      %v415 = vld [vmem:[%s373 + $0xa4] sm:$0xf]
      %v416 = vld [vmem:[%s373 + $0xa8] sm:$0xf]
      %v417 = vld [vmem:[%s373 + $0xac] sm:$0xf]
      %v418 = vld [vmem:[%s373 + $0xb0] sm:$0xf]
      %v419 = vld [vmem:[%s373 + $0xb4] sm:$0xf]
      %v420 = vld [vmem:[%s373 + $0xb8] sm:$0xf]
      %v421 = vld [vmem:[%s373 + $0xbc] sm:$0xf]
      %v422 = vld [vmem:[%s373 + $0xc0] sm:$0xf]
      %v423 = vld [vmem:[%s373 + $0xc4] sm:$0xf]
      %v424 = vld [vmem:[%s373 + $0xc8] sm:$0xf]
      %v425 = vld [vmem:[%s373 + $0xcc] sm:$0xf]
      %v426 = vld [vmem:[%s373 + $0xd0] sm:$0xf]
      %v427 = vld [vmem:[%s373 + $0xd4] sm:$0xf]
      %s428 = scalar_lea.vmem %s1, 8
      %v429 = vld [vmem:[%s428] sm:$0xf]
      %v430 = vld [vmem:[%s428 + $0x4] sm:$0x3]
      %v485 = vunpack.c.l.b16 %v374
      %v486 = vunpack.c.l.b16 %v375
      %v487 = vunpack.c.l.b16 %v376
      %v488 = vunpack.c.l.b16 %v377
      %v489 = vunpack.c.l.b16 %v378
      %v490 = vunpack.c.l.b16 %v379
      %v491 = vunpack.c.l.b16 %v380
      %v492 = vunpack.c.l.b16 %v381
      %v493 = vunpack.c.l.b16 %v382
      %v494 = vunpack.c.l.b16 %v383
      %v495 = vunpack.c.l.b16 %v384
      %v496 = vunpack.c.l.b16 %v385
      %v497 = vunpack.c.l.b16 %v386
      %v498 = vunpack.c.l.b16 %v387
      %v499 = vunpack.c.l.b16 %v388
      %v500 = vunpack.c.l.b16 %v389
      %v501 = vunpack.c.l.b16 %v390
      %v502 = vunpack.c.l.b16 %v391
      %v503 = vunpack.c.l.b16 %v392
      %v504 = vunpack.c.l.b16 %v393
      %v505 = vunpack.c.l.b16 %v394
      %v506 = vunpack.c.l.b16 %v395
      %v507 = vunpack.c.l.b16 %v396
      %v508 = vunpack.c.l.b16 %v397
      %v509 = vunpack.c.l.b16 %v398
      %v510 = vunpack.c.l.b16 %v399
      %v511 = vunpack.c.l.b16 %v400
      %v512 = vunpack.c.l.b16 %v401
      %v513 = vunpack.c.l.b16 %v402
      %v514 = vunpack.c.l.b16 %v403
      %v515 = vunpack.c.l.b16 %v404
      %v516 = vunpack.c.l.b16 %v405
      %v517 = vunpack.c.l.b16 %v406
      %v518 = vunpack.c.l.b16 %v407
      %v519 = vunpack.c.l.b16 %v408
      %v520 = vunpack.c.l.b16 %v409
      %v521 = vunpack.c.l.b16 %v410
      %v522 = vunpack.c.l.b16 %v411
      %v523 = vunpack.c.l.b16 %v412
      %v524 = vunpack.c.l.b16 %v413
      %v525 = vunpack.c.l.b16 %v414
      %v526 = vunpack.c.l.b16 %v415
      %v527 = vunpack.c.l.b16 %v416
      %v528 = vunpack.c.l.b16 %v417
      %v529 = vunpack.c.l.b16 %v418
      %v530 = vunpack.c.l.b16 %v419
      %v531 = vunpack.c.l.b16 %v420
      %v532 = vunpack.c.l.b16 %v421
      %v533 = vunpack.c.l.b16 %v422
      %v534 = vunpack.c.l.b16 %v423
      %v535 = vunpack.c.l.b16 %v424
      %v536 = vunpack.c.l.b16 %v425
      %v537 = vunpack.c.l.b16 %v426
      %v538 = vunpack.c.l.b16 %v427
      %v539 = vpack.c.b16 %v486, %v485
      %v540 = vpack.c.b16 %v488, %v487
      %v541 = vpack.c.b16 %v490, %v489
      %v542 = vpack.c.b16 %v492, %v491
      %v543 = vpack.c.b16 %v494, %v493
      %v544 = vpack.c.b16 %v496, %v495
      %v545 = vpack.c.b16 %v498, %v497
      %v546 = vpack.c.b16 %v500, %v499
      %v547 = vpack.c.b16 %v502, %v501
      %v548 = vpack.c.b16 %v504, %v503
      %v549 = vpack.c.b16 %v506, %v505
      %v550 = vpack.c.b16 %v508, %v507
      %v551 = vpack.c.b16 %v510, %v509
      %v552 = vpack.c.b16 %v512, %v511
      %v553 = vpack.c.b16 %v514, %v513
      %v554 = vpack.c.b16 %v516, %v515
      %v555 = vpack.c.b16 %v518, %v517
      %v556 = vpack.c.b16 %v520, %v519
      %v557 = vpack.c.b16 %v522, %v521
      %v558 = vpack.c.b16 %v524, %v523
      %v559 = vpack.c.b16 %v526, %v525
      %v560 = vpack.c.b16 %v528, %v527
      %v561 = vpack.c.b16 %v530, %v529
      %v562 = vpack.c.b16 %v532, %v531
      %v563 = vpack.c.b16 %v534, %v533
      %v564 = vpack.c.b16 %v536, %v535
      %v565 = vpack.c.b16 %v538, %v537
      %v568 = vunpack.c.l.b16 %v429
      %v569 = vunpack.c.l.b16 %v430
      %v570 = vpack.c.b16 %v569, %v568
      %vm571 = vcmask 97280
      %v573 = vsel %vm571, %v539, 0
      %v576 = vsel %vm571, %v540, 0
      %v579 = vsel %vm571, %v541, 0
      %v582 = vsel %vm571, %v542, 0
      %v585 = vsel %vm571, %v543, 0
      %v588 = vsel %vm571, %v544, 0
      %v591 = vsel %vm571, %v545, 0
      %v594 = vsel %vm571, %v546, 0
      %v597 = vsel %vm571, %v547, 0
      %v600 = vsel %vm571, %v548, 0
      %v603 = vsel %vm571, %v549, 0
      %v606 = vsel %vm571, %v550, 0
      %v609 = vsel %vm571, %v551, 0
      %v612 = vsel %vm571, %v552, 0
      %v615 = vsel %vm571, %v553, 0
      %v618 = vsel %vm571, %v554, 0
      %v621 = vsel %vm571, %v555, 0
      %v624 = vsel %vm571, %v556, 0
      %v627 = vsel %vm571, %v557, 0
      %v630 = vsel %vm571, %v558, 0
      %v633 = vsel %vm571, %v559, 0
      %v636 = vsel %vm571, %v560, 0
      %v639 = vsel %vm571, %v561, 0
      %v642 = vsel %vm571, %v562, 0
      %v645 = vsel %vm571, %v563, 0
      %v648 = vsel %vm571, %v564, 0
      %v651 = vsel %vm571, %v565, 0
      %vm653 = vcmask 1045504
      %v655 = vsel %vm653, %v570, 0
      %657 = vmatprep.subr.bf16.mxu0 0
      %658 = vmatpush1.bf16.msra.mxu0 0
      %659 = vmatprep.subr.bf16.mxu0 0
      %660 = vmatpush1.bf16.msra.mxu0 0
      %661 = vmatprep.subr.bf16.mxu0 0
      %662 = vmatpush1.bf16.msra.mxu0 0
      %663 = vmatprep.subr.bf16.mxu0 0
      %664 = vmatpush1.bf16.msra.mxu0 0
      %665 = vmatprep.subr.bf16.mxu0 0
      %666 = vmatpush1.bf16.msra.mxu0 0
      %667 = vmatprep.subr.bf16.mxu0 0
      %668 = vmatpush1.bf16.msra.mxu0 0
      %669 = vmatprep.subr.bf16.mxu0 0
      %670 = vmatpush1.bf16.msra.mxu0 0
      %671 = vmatprep.subr.bf16.mxu0 0
      %672 = vmatpush1.bf16.msra.mxu0 %v655
      %673 = vmatprep.subr.bf16.mxu0 0
      %674 = vmatpush2.bf16.msra.mxu0 0
      %675 = vmatprep.subr.bf16.mxu0 0
      %676 = vmatpush2.bf16.msra.mxu0 0
      %677 = vmatprep.subr.bf16.mxu0 0
      %678 = vmatpush2.bf16.msra.mxu0 0
      %679 = vmatprep.subr.bf16.mxu0 0
      %680 = vmatpush2.bf16.msra.mxu0 0
      %681 = vmatprep.subr.bf16.mxu0 0
      %682 = vmatpush2.bf16.msra.mxu0 0
      %683 = vmatprep.subr.bf16.mxu0 0
      %684 = vmatpush2.bf16.msra.mxu0 0
      %685 = vmatprep.subr.bf16.mxu0 0
      %686 = vmatpush2.bf16.msra.mxu0 0
      %687 = vmatprep.subr.bf16.mxu0 0
      %688 = vmatpush2.bf16.msra.mxu0 0
      %689 = vmatprep.mubr.bf16.mxu0 0
      %690 = vmatmul.mubr.bf16.gmra.mxu0 %v573
      %v691 = vpop.f32.mrf.mxu0
      %v692 = vadd.f32 0.0, %v691
      %v693 = vpop.f32.mrf.mxu0
      %v694 = vpop.f32.mrf.mxu0
      %v695 = vadd.f32 0.0, %v694
      %v696 = vpop.f32.mrf.mxu0
      %697 = vmatprep.mubr.bf16.mxu0 0
      %698 = vmatmul.mubr.bf16.gmra.mxu0 %v576
      %v699 = vpop.f32.mrf.mxu0
      %v700 = vadd.f32 0.0, %v699
      %v701 = vpop.f32.mrf.mxu0
      %v702 = vpop.f32.mrf.mxu0
      %v703 = vadd.f32 0.0, %v702
      %v704 = vpop.f32.mrf.mxu0
      %705 = vmatprep.mubr.bf16.mxu0 0
      %706 = vmatmul.mubr.bf16.gmra.mxu0 %v579
      %v707 = vpop.f32.mrf.mxu0
      %v708 = vadd.f32 0.0, %v707
      %v709 = vpop.f32.mrf.mxu0
      %v710 = vpop.f32.mrf.mxu0
      %v711 = vadd.f32 0.0, %v710
      %v712 = vpop.f32.mrf.mxu0
      %713 = vmatprep.mubr.bf16.mxu0 0
      %714 = vmatmul.mubr.bf16.gmra.mxu0 %v582
      %v715 = vpop.f32.mrf.mxu0
      %v716 = vadd.f32 0.0, %v715
      %v717 = vpop.f32.mrf.mxu0
      %v718 = vpop.f32.mrf.mxu0
      %v719 = vadd.f32 0.0, %v718
      %v720 = vpop.f32.mrf.mxu0
      %721 = vmatprep.mubr.bf16.mxu0 0
      %722 = vmatmul.mubr.bf16.gmra.mxu0 %v585
      %v723 = vpop.f32.mrf.mxu0
      %v724 = vadd.f32 0.0, %v723
      %v725 = vpop.f32.mrf.mxu0
      %v726 = vpop.f32.mrf.mxu0
      %v727 = vadd.f32 0.0, %v726
      %v728 = vpop.f32.mrf.mxu0
      %729 = vmatprep.mubr.bf16.mxu0 0
      %730 = vmatmul.mubr.bf16.gmra.mxu0 %v588
      %v731 = vpop.f32.mrf.mxu0
      %v732 = vadd.f32 0.0, %v731
      %v733 = vpop.f32.mrf.mxu0
      %v734 = vpop.f32.mrf.mxu0
      %v735 = vadd.f32 0.0, %v734
      %v736 = vpop.f32.mrf.mxu0
      %737 = vmatprep.mubr.bf16.mxu0 0
      %738 = vmatmul.mubr.bf16.gmra.mxu0 %v591
      %v739 = vpop.f32.mrf.mxu0
      %v740 = vadd.f32 0.0, %v739
      %v741 = vpop.f32.mrf.mxu0
      %v742 = vpop.f32.mrf.mxu0
      %v743 = vadd.f32 0.0, %v742
      %v744 = vpop.f32.mrf.mxu0
      %745 = vmatprep.mubr.bf16.mxu0 0
      %746 = vmatmul.mubr.bf16.gmra.mxu0 %v594
      %v747 = vpop.f32.mrf.mxu0
      %v748 = vadd.f32 0.0, %v747
      %v749 = vpop.f32.mrf.mxu0
      %v750 = vpop.f32.mrf.mxu0
      %v751 = vadd.f32 0.0, %v750
      %v752 = vpop.f32.mrf.mxu0
      %753 = vmatprep.mubr.bf16.mxu0 0
      %754 = vmatmul.mubr.bf16.gmra.mxu0 %v597
      %v755 = vpop.f32.mrf.mxu0
      %v756 = vadd.f32 0.0, %v755
      %v757 = vpop.f32.mrf.mxu0
      %v758 = vpop.f32.mrf.mxu0
      %v759 = vadd.f32 0.0, %v758
      %v760 = vpop.f32.mrf.mxu0
      %761 = vmatprep.mubr.bf16.mxu0 0
      %762 = vmatmul.mubr.bf16.gmra.mxu0 %v600
      %v763 = vpop.f32.mrf.mxu0
      %v764 = vadd.f32 0.0, %v763
      %v765 = vpop.f32.mrf.mxu0
      %v766 = vpop.f32.mrf.mxu0
      %v767 = vadd.f32 0.0, %v766
      %v768 = vpop.f32.mrf.mxu0
      %769 = vmatprep.mubr.bf16.mxu0 0
      %770 = vmatmul.mubr.bf16.gmra.mxu0 %v603
      %v771 = vpop.f32.mrf.mxu0
      %v772 = vadd.f32 0.0, %v771
      %v773 = vpop.f32.mrf.mxu0
      %v774 = vpop.f32.mrf.mxu0
      %v775 = vadd.f32 0.0, %v774
      %v776 = vpop.f32.mrf.mxu0
      %777 = vmatprep.mubr.bf16.mxu0 0
      %778 = vmatmul.mubr.bf16.gmra.mxu0 %v606
      %v779 = vpop.f32.mrf.mxu0
      %v780 = vadd.f32 0.0, %v779
      %v781 = vpop.f32.mrf.mxu0
      %v782 = vpop.f32.mrf.mxu0
      %v783 = vadd.f32 0.0, %v782
      %v784 = vpop.f32.mrf.mxu0
      %785 = vmatprep.mubr.bf16.mxu0 0
      %786 = vmatmul.mubr.bf16.gmra.mxu0 %v609
      %v787 = vpop.f32.mrf.mxu0
      %v788 = vadd.f32 0.0, %v787
      %v789 = vpop.f32.mrf.mxu0
      %v790 = vpop.f32.mrf.mxu0
      %v791 = vadd.f32 0.0, %v790
      %v792 = vpop.f32.mrf.mxu0
      %793 = vmatprep.mubr.bf16.mxu0 0
      %794 = vmatmul.mubr.bf16.gmra.mxu0 %v612
      %v795 = vpop.f32.mrf.mxu0
      %v796 = vadd.f32 0.0, %v795
      %v797 = vpop.f32.mrf.mxu0
      %v798 = vpop.f32.mrf.mxu0
      %v799 = vadd.f32 0.0, %v798
      %v800 = vpop.f32.mrf.mxu0
      %801 = vmatprep.mubr.bf16.mxu0 0
      %802 = vmatmul.mubr.bf16.gmra.mxu0 %v615
      %v803 = vpop.f32.mrf.mxu0
      %v804 = vadd.f32 0.0, %v803
      %v805 = vpop.f32.mrf.mxu0
      %v806 = vpop.f32.mrf.mxu0
      %v807 = vadd.f32 0.0, %v806
      %v808 = vpop.f32.mrf.mxu0
      %809 = vmatprep.mubr.bf16.mxu0 0
      %810 = vmatmul.mubr.bf16.gmra.mxu0 %v618
      %v811 = vpop.f32.mrf.mxu0
      %v812 = vadd.f32 0.0, %v811
      %v813 = vpop.f32.mrf.mxu0
      %v814 = vpop.f32.mrf.mxu0
      %v815 = vadd.f32 0.0, %v814
      %v816 = vpop.f32.mrf.mxu0
      %817 = vmatprep.mubr.bf16.mxu0 0
      %818 = vmatmul.mubr.bf16.gmra.mxu0 %v621
      %v819 = vpop.f32.mrf.mxu0
      %v820 = vadd.f32 0.0, %v819
      %v821 = vpop.f32.mrf.mxu0
      %v822 = vpop.f32.mrf.mxu0
      %v823 = vadd.f32 0.0, %v822
      %v824 = vpop.f32.mrf.mxu0
      %825 = vmatprep.mubr.bf16.mxu0 0
      %826 = vmatmul.mubr.bf16.gmra.mxu0 %v624
      %v827 = vpop.f32.mrf.mxu0
      %v828 = vadd.f32 0.0, %v827
      %v829 = vpop.f32.mrf.mxu0
      %v830 = vpop.f32.mrf.mxu0
      %v831 = vadd.f32 0.0, %v830
      %v832 = vpop.f32.mrf.mxu0
      %833 = vmatprep.mubr.bf16.mxu0 0
      %834 = vmatmul.mubr.bf16.gmra.mxu0 %v627
      %v835 = vpop.f32.mrf.mxu0
      %v836 = vadd.f32 0.0, %v835
      %v837 = vpop.f32.mrf.mxu0
      %v838 = vpop.f32.mrf.mxu0
      %v839 = vadd.f32 0.0, %v838
      %v840 = vpop.f32.mrf.mxu0
      %841 = vmatprep.mubr.bf16.mxu0 0
      %842 = vmatmul.mubr.bf16.gmra.mxu0 %v630
      %v843 = vpop.f32.mrf.mxu0
      %v844 = vadd.f32 0.0, %v843
      %v845 = vpop.f32.mrf.mxu0
      %v846 = vpop.f32.mrf.mxu0
      %v847 = vadd.f32 0.0, %v846
      %v848 = vpop.f32.mrf.mxu0
      %849 = vmatprep.mubr.bf16.mxu0 0
      %850 = vmatmul.mubr.bf16.gmra.mxu0 %v633
      %v851 = vpop.f32.mrf.mxu0
      %v852 = vadd.f32 0.0, %v851
      %v853 = vpop.f32.mrf.mxu0
      %v854 = vpop.f32.mrf.mxu0
      %v855 = vadd.f32 0.0, %v854
      %v856 = vpop.f32.mrf.mxu0
      %857 = vmatprep.mubr.bf16.mxu0 0
      %858 = vmatmul.mubr.bf16.gmra.mxu0 %v636
      %v859 = vpop.f32.mrf.mxu0
      %v860 = vadd.f32 0.0, %v859
      %v861 = vpop.f32.mrf.mxu0
      %v862 = vpop.f32.mrf.mxu0
      %v863 = vadd.f32 0.0, %v862
      %v864 = vpop.f32.mrf.mxu0
      %865 = vmatprep.mubr.bf16.mxu0 0
      %866 = vmatmul.mubr.bf16.gmra.mxu0 %v639
      %v867 = vpop.f32.mrf.mxu0
      %v868 = vadd.f32 0.0, %v867
      %v869 = vpop.f32.mrf.mxu0
      %v870 = vpop.f32.mrf.mxu0
      %v871 = vadd.f32 0.0, %v870
      %v872 = vpop.f32.mrf.mxu0
      %873 = vmatprep.mubr.bf16.mxu0 0
      %874 = vmatmul.mubr.bf16.gmra.mxu0 %v642
      %v875 = vpop.f32.mrf.mxu0
      %v876 = vadd.f32 0.0, %v875
      %v877 = vpop.f32.mrf.mxu0
      %v878 = vpop.f32.mrf.mxu0
      %v879 = vadd.f32 0.0, %v878
      %v880 = vpop.f32.mrf.mxu0
      %881 = vmatprep.mubr.bf16.mxu0 0
      %882 = vmatmul.mubr.bf16.gmra.mxu0 %v645
      %v883 = vpop.f32.mrf.mxu0
      %v884 = vadd.f32 0.0, %v883
      %v885 = vpop.f32.mrf.mxu0
      %v886 = vpop.f32.mrf.mxu0
      %v887 = vadd.f32 0.0, %v886
      %v888 = vpop.f32.mrf.mxu0
      %889 = vmatprep.mubr.bf16.mxu0 0
      %890 = vmatmul.mubr.bf16.gmra.mxu0 %v648
      %v891 = vpop.f32.mrf.mxu0
      %v892 = vadd.f32 0.0, %v891
      %v893 = vpop.f32.mrf.mxu0
      %v894 = vpop.f32.mrf.mxu0
      %v895 = vadd.f32 0.0, %v894
      %v896 = vpop.f32.mrf.mxu0
      %897 = vmatprep.mubr.bf16.mxu0 0
      %898 = vmatmul.mubr.bf16.gmra.mxu0 %v651
      %v899 = vpop.f32.mrf.mxu0
      %v900 = vadd.f32 0.0, %v899
      %v901 = vpop.f32.mrf.mxu0
      %v902 = vpop.f32.mrf.mxu0
      %v903 = vadd.f32 0.0, %v902
      %v904 = vpop.f32.mrf.mxu0
      %905 = vdwg.mxu0
      %v960 = vunpack.c.l.b16 %v317
      %v961 = vunpack.c.l.b16 %v318
      %v962 = vunpack.c.l.b16 %v319
      %v963 = vunpack.c.l.b16 %v320
      %v964 = vunpack.c.l.b16 %v321
      %v965 = vunpack.c.l.b16 %v322
      %v966 = vunpack.c.l.b16 %v323
      %v967 = vunpack.c.l.b16 %v324
      %v968 = vunpack.c.l.b16 %v325
      %v969 = vunpack.c.l.b16 %v326
      %v970 = vunpack.c.l.b16 %v327
      %v971 = vunpack.c.l.b16 %v328
      %v972 = vunpack.c.l.b16 %v329
      %v973 = vunpack.c.l.b16 %v330
      %v974 = vunpack.c.l.b16 %v331
      %v975 = vunpack.c.l.b16 %v332
      %v976 = vunpack.c.l.b16 %v333
      %v977 = vunpack.c.l.b16 %v334
      %v978 = vunpack.c.l.b16 %v335
      %v979 = vunpack.c.l.b16 %v336
      %v980 = vunpack.c.l.b16 %v337
      %v981 = vunpack.c.l.b16 %v338
      %v982 = vunpack.c.l.b16 %v339
      %v983 = vunpack.c.l.b16 %v340
      %v984 = vunpack.c.l.b16 %v341
      %v985 = vunpack.c.l.b16 %v342
      %v986 = vunpack.c.l.b16 %v343
      %v987 = vunpack.c.l.b16 %v344
      %v988 = vunpack.c.l.b16 %v345
      %v989 = vunpack.c.l.b16 %v346
      %v990 = vunpack.c.l.b16 %v347
      %v991 = vunpack.c.l.b16 %v348
      %v992 = vunpack.c.l.b16 %v349
      %v993 = vunpack.c.l.b16 %v350
      %v994 = vunpack.c.l.b16 %v351
      %v995 = vunpack.c.l.b16 %v352
      %v996 = vunpack.c.l.b16 %v353
      %v997 = vunpack.c.l.b16 %v354
      %v998 = vunpack.c.l.b16 %v355
      %v999 = vunpack.c.l.b16 %v356
      %v1000 = vunpack.c.l.b16 %v357
      %v1001 = vunpack.c.l.b16 %v358
      %v1002 = vunpack.c.l.b16 %v359
      %v1003 = vunpack.c.l.b16 %v360
      %v1004 = vunpack.c.l.b16 %v361
      %v1005 = vunpack.c.l.b16 %v362
      %v1006 = vunpack.c.l.b16 %v363
      %v1007 = vunpack.c.l.b16 %v364
      %v1008 = vunpack.c.l.b16 %v365
      %v1009 = vunpack.c.l.b16 %v366
      %v1010 = vunpack.c.l.b16 %v367
      %v1011 = vunpack.c.l.b16 %v368
      %v1012 = vunpack.c.l.b16 %v369
      %v1013 = vunpack.c.l.b16 %v370
      %v1014 = vpack.c.b16 %v961, %v960
      %v1015 = vpack.c.b16 %v963, %v962
      %v1016 = vpack.c.b16 %v965, %v964
      %v1017 = vpack.c.b16 %v967, %v966
      %v1018 = vpack.c.b16 %v969, %v968
      %v1019 = vpack.c.b16 %v971, %v970
      %v1020 = vpack.c.b16 %v973, %v972
      %v1021 = vpack.c.b16 %v975, %v974
      %v1022 = vpack.c.b16 %v977, %v976
      %v1023 = vpack.c.b16 %v979, %v978
      %v1024 = vpack.c.b16 %v981, %v980
      %v1025 = vpack.c.b16 %v983, %v982
      %v1026 = vpack.c.b16 %v985, %v984
      %v1027 = vpack.c.b16 %v987, %v986
      %v1028 = vpack.c.b16 %v989, %v988
      %v1029 = vpack.c.b16 %v991, %v990
      %v1030 = vpack.c.b16 %v993, %v992
      %v1031 = vpack.c.b16 %v995, %v994
      %v1032 = vpack.c.b16 %v997, %v996
      %v1033 = vpack.c.b16 %v999, %v998
      %v1034 = vpack.c.b16 %v1001, %v1000
      %v1035 = vpack.c.b16 %v1003, %v1002
      %v1036 = vpack.c.b16 %v1005, %v1004
      %v1037 = vpack.c.b16 %v1007, %v1006
      %v1038 = vpack.c.b16 %v1009, %v1008
      %v1039 = vpack.c.b16 %v1011, %v1010
      %v1040 = vpack.c.b16 %v1013, %v1012
      %v1043 = vunpack.c.l.b16 %v371
      %v1044 = vunpack.c.l.b16 %v372
      %v1045 = vpack.c.b16 %v1044, %v1043
      %v1047 = vsel %vm571, %v1014, 0
      %v1050 = vsel %vm571, %v1015, 0
      %v1053 = vsel %vm571, %v1016, 0
      %v1056 = vsel %vm571, %v1017, 0
      %v1059 = vsel %vm571, %v1018, 0
      %v1062 = vsel %vm571, %v1019, 0
      %v1065 = vsel %vm571, %v1020, 0
      %v1068 = vsel %vm571, %v1021, 0
      %v1071 = vsel %vm571, %v1022, 0
      %v1074 = vsel %vm571, %v1023, 0
      %v1077 = vsel %vm571, %v1024, 0
      %v1080 = vsel %vm571, %v1025, 0
      %v1083 = vsel %vm571, %v1026, 0
      %v1086 = vsel %vm571, %v1027, 0
      %v1089 = vsel %vm571, %v1028, 0
      %v1092 = vsel %vm571, %v1029, 0
      %v1095 = vsel %vm571, %v1030, 0
      %v1098 = vsel %vm571, %v1031, 0
      %v1101 = vsel %vm571, %v1032, 0
      %v1104 = vsel %vm571, %v1033, 0
      %v1107 = vsel %vm571, %v1034, 0
      %v1110 = vsel %vm571, %v1035, 0
      %v1113 = vsel %vm571, %v1036, 0
      %v1116 = vsel %vm571, %v1037, 0
      %v1119 = vsel %vm571, %v1038, 0
      %v1122 = vsel %vm571, %v1039, 0
      %v1125 = vsel %vm571, %v1040, 0
      %v1128 = vsel %vm653, %v1045, 0
      %1130 = vmatprep.subr.bf16.mxu0 0
      %1131 = vmatpush1.bf16.msra.mxu0 0
      %1132 = vmatprep.subr.bf16.mxu0 0
      %1133 = vmatpush1.bf16.msra.mxu0 0
      %1134 = vmatprep.subr.bf16.mxu0 0
      %1135 = vmatpush1.bf16.msra.mxu0 0
      %1136 = vmatprep.subr.bf16.mxu0 0
      %1137 = vmatpush1.bf16.msra.mxu0 0
      %1138 = vmatprep.subr.bf16.mxu0 0
      %1139 = vmatpush1.bf16.msra.mxu0 0
      %1140 = vmatprep.subr.bf16.mxu0 0
      %1141 = vmatpush1.bf16.msra.mxu0 0
      %1142 = vmatprep.subr.bf16.mxu0 0
      %1143 = vmatpush1.bf16.msra.mxu0 0
      %1144 = vmatprep.subr.bf16.mxu0 0
      %1145 = vmatpush1.bf16.msra.mxu0 %v1128
      %1146 = vmatprep.subr.bf16.mxu0 0
      %1147 = vmatpush2.bf16.msra.mxu0 0
      %1148 = vmatprep.subr.bf16.mxu0 0
      %1149 = vmatpush2.bf16.msra.mxu0 0
      %1150 = vmatprep.subr.bf16.mxu0 0
      %1151 = vmatpush2.bf16.msra.mxu0 0
      %1152 = vmatprep.subr.bf16.mxu0 0
      %1153 = vmatpush2.bf16.msra.mxu0 0
      %1154 = vmatprep.subr.bf16.mxu0 0
      %1155 = vmatpush2.bf16.msra.mxu0 0
      %1156 = vmatprep.subr.bf16.mxu0 0
      %1157 = vmatpush2.bf16.msra.mxu0 0
      %1158 = vmatprep.subr.bf16.mxu0 0
      %1159 = vmatpush2.bf16.msra.mxu0 0
      %1160 = vmatprep.subr.bf16.mxu0 0
      %1161 = vmatpush2.bf16.msra.mxu0 0
      %1162 = vmatprep.mubr.bf16.mxu0 0
      %1163 = vmatmul.mubr.bf16.gmra.mxu0 %v1047
      %v1164 = vpop.f32.mrf.mxu0
      %v1165 = vadd.f32 %v692, %v1164
      %v1166 = vpop.f32.mrf.mxu0
      %v1167 = vpop.f32.mrf.mxu0
      %v1168 = vadd.f32 %v695, %v1167
      %v1169 = vpop.f32.mrf.mxu0
      %1170 = vmatprep.mubr.bf16.mxu0 0
      %1171 = vmatmul.mubr.bf16.gmra.mxu0 %v1050
      %v1172 = vpop.f32.mrf.mxu0
      %v1173 = vadd.f32 %v700, %v1172
      %v1174 = vpop.f32.mrf.mxu0
      %v1175 = vpop.f32.mrf.mxu0
      %v1176 = vadd.f32 %v703, %v1175
      %v1177 = vpop.f32.mrf.mxu0
      %1178 = vmatprep.mubr.bf16.mxu0 0
      %1179 = vmatmul.mubr.bf16.gmra.mxu0 %v1053
      %v1180 = vpop.f32.mrf.mxu0
      %v1181 = vadd.f32 %v708, %v1180
      %v1182 = vpop.f32.mrf.mxu0
      %v1183 = vpop.f32.mrf.mxu0
      %v1184 = vadd.f32 %v711, %v1183
      %v1185 = vpop.f32.mrf.mxu0
      %1186 = vmatprep.mubr.bf16.mxu0 0
      %1187 = vmatmul.mubr.bf16.gmra.mxu0 %v1056
      %v1188 = vpop.f32.mrf.mxu0
      %v1189 = vadd.f32 %v716, %v1188
      %v1190 = vpop.f32.mrf.mxu0
      %v1191 = vpop.f32.mrf.mxu0
      %v1192 = vadd.f32 %v719, %v1191
      %v1193 = vpop.f32.mrf.mxu0
      %1194 = vmatprep.mubr.bf16.mxu0 0
      %1195 = vmatmul.mubr.bf16.gmra.mxu0 %v1059
      %v1196 = vpop.f32.mrf.mxu0
      %v1197 = vadd.f32 %v724, %v1196
      %v1198 = vpop.f32.mrf.mxu0
      %v1199 = vpop.f32.mrf.mxu0
      %v1200 = vadd.f32 %v727, %v1199
      %v1201 = vpop.f32.mrf.mxu0
      %1202 = vmatprep.mubr.bf16.mxu0 0
      %1203 = vmatmul.mubr.bf16.gmra.mxu0 %v1062
      %v1204 = vpop.f32.mrf.mxu0
      %v1205 = vadd.f32 %v732, %v1204
      %v1206 = vpop.f32.mrf.mxu0
      %v1207 = vpop.f32.mrf.mxu0
      %v1208 = vadd.f32 %v735, %v1207
      %v1209 = vpop.f32.mrf.mxu0
      %1210 = vmatprep.mubr.bf16.mxu0 0
      %1211 = vmatmul.mubr.bf16.gmra.mxu0 %v1065
      %v1212 = vpop.f32.mrf.mxu0
      %v1213 = vadd.f32 %v740, %v1212
      %v1214 = vpop.f32.mrf.mxu0
      %v1215 = vpop.f32.mrf.mxu0
      %v1216 = vadd.f32 %v743, %v1215
      %v1217 = vpop.f32.mrf.mxu0
      %1218 = vmatprep.mubr.bf16.mxu0 0
      %1219 = vmatmul.mubr.bf16.gmra.mxu0 %v1068
      %v1220 = vpop.f32.mrf.mxu0
      %v1221 = vadd.f32 %v748, %v1220
      %v1222 = vpop.f32.mrf.mxu0
      %v1223 = vpop.f32.mrf.mxu0
      %v1224 = vadd.f32 %v751, %v1223
      %v1225 = vpop.f32.mrf.mxu0
      %1226 = vmatprep.mubr.bf16.mxu0 0
      %1227 = vmatmul.mubr.bf16.gmra.mxu0 %v1071
      %v1228 = vpop.f32.mrf.mxu0
      %v1229 = vadd.f32 %v756, %v1228
      %v1230 = vpop.f32.mrf.mxu0
      %v1231 = vpop.f32.mrf.mxu0
      %v1232 = vadd.f32 %v759, %v1231
      %v1233 = vpop.f32.mrf.mxu0
      %1234 = vmatprep.mubr.bf16.mxu0 0
      %1235 = vmatmul.mubr.bf16.gmra.mxu0 %v1074
      %v1236 = vpop.f32.mrf.mxu0
      %v1237 = vadd.f32 %v764, %v1236
      %v1238 = vpop.f32.mrf.mxu0
      %v1239 = vpop.f32.mrf.mxu0
      %v1240 = vadd.f32 %v767, %v1239
      %v1241 = vpop.f32.mrf.mxu0
      %1242 = vmatprep.mubr.bf16.mxu0 0
      %1243 = vmatmul.mubr.bf16.gmra.mxu0 %v1077
      %v1244 = vpop.f32.mrf.mxu0
      %v1245 = vadd.f32 %v772, %v1244
      %v1246 = vpop.f32.mrf.mxu0
      %v1247 = vpop.f32.mrf.mxu0
      %v1248 = vadd.f32 %v775, %v1247
      %v1249 = vpop.f32.mrf.mxu0
      %1250 = vmatprep.mubr.bf16.mxu0 0
      %1251 = vmatmul.mubr.bf16.gmra.mxu0 %v1080
      %v1252 = vpop.f32.mrf.mxu0
      %v1253 = vadd.f32 %v780, %v1252
      %v1254 = vpop.f32.mrf.mxu0
      %v1255 = vpop.f32.mrf.mxu0
      %v1256 = vadd.f32 %v783, %v1255
      %v1257 = vpop.f32.mrf.mxu0
      %1258 = vmatprep.mubr.bf16.mxu0 0
      %1259 = vmatmul.mubr.bf16.gmra.mxu0 %v1083
      %v1260 = vpop.f32.mrf.mxu0
      %v1261 = vadd.f32 %v788, %v1260
      %v1262 = vpop.f32.mrf.mxu0
      %v1263 = vpop.f32.mrf.mxu0
      %v1264 = vadd.f32 %v791, %v1263
      %v1265 = vpop.f32.mrf.mxu0
      %1266 = vmatprep.mubr.bf16.mxu0 0
      %1267 = vmatmul.mubr.bf16.gmra.mxu0 %v1086
      %v1268 = vpop.f32.mrf.mxu0
      %v1269 = vadd.f32 %v796, %v1268
      %v1270 = vpop.f32.mrf.mxu0
      %v1271 = vpop.f32.mrf.mxu0
      %v1272 = vadd.f32 %v799, %v1271
      %v1273 = vpop.f32.mrf.mxu0
      %1274 = vmatprep.mubr.bf16.mxu0 0
      %1275 = vmatmul.mubr.bf16.gmra.mxu0 %v1089
      %v1276 = vpop.f32.mrf.mxu0
      %v1277 = vadd.f32 %v804, %v1276
      %v1278 = vpop.f32.mrf.mxu0
      %v1279 = vpop.f32.mrf.mxu0
      %v1280 = vadd.f32 %v807, %v1279
      %v1281 = vpop.f32.mrf.mxu0
      %1282 = vmatprep.mubr.bf16.mxu0 0
      %1283 = vmatmul.mubr.bf16.gmra.mxu0 %v1092
      %v1284 = vpop.f32.mrf.mxu0
      %v1285 = vadd.f32 %v812, %v1284
      %v1286 = vpop.f32.mrf.mxu0
      %v1287 = vpop.f32.mrf.mxu0
      %v1288 = vadd.f32 %v815, %v1287
      %v1289 = vpop.f32.mrf.mxu0
      %1290 = vmatprep.mubr.bf16.mxu0 0
      %1291 = vmatmul.mubr.bf16.gmra.mxu0 %v1095
      %v1292 = vpop.f32.mrf.mxu0
      %v1293 = vadd.f32 %v820, %v1292
      %v1294 = vpop.f32.mrf.mxu0
      %v1295 = vpop.f32.mrf.mxu0
      %v1296 = vadd.f32 %v823, %v1295
      %v1297 = vpop.f32.mrf.mxu0
      %1298 = vmatprep.mubr.bf16.mxu0 0
      %1299 = vmatmul.mubr.bf16.gmra.mxu0 %v1098
      %v1300 = vpop.f32.mrf.mxu0
      %v1301 = vadd.f32 %v828, %v1300
      %v1302 = vpop.f32.mrf.mxu0
      %v1303 = vpop.f32.mrf.mxu0
      %v1304 = vadd.f32 %v831, %v1303
      %v1305 = vpop.f32.mrf.mxu0
      %1306 = vmatprep.mubr.bf16.mxu0 0
      %1307 = vmatmul.mubr.bf16.gmra.mxu0 %v1101
      %v1308 = vpop.f32.mrf.mxu0
      %v1309 = vadd.f32 %v836, %v1308
      %v1310 = vpop.f32.mrf.mxu0
      %v1311 = vpop.f32.mrf.mxu0
      %v1312 = vadd.f32 %v839, %v1311
      %v1313 = vpop.f32.mrf.mxu0
      %1314 = vmatprep.mubr.bf16.mxu0 0
      %1315 = vmatmul.mubr.bf16.gmra.mxu0 %v1104
      %v1316 = vpop.f32.mrf.mxu0
      %v1317 = vadd.f32 %v844, %v1316
      %v1318 = vpop.f32.mrf.mxu0
      %v1319 = vpop.f32.mrf.mxu0
      %v1320 = vadd.f32 %v847, %v1319
      %v1321 = vpop.f32.mrf.mxu0
      %1322 = vmatprep.mubr.bf16.mxu0 0
      %1323 = vmatmul.mubr.bf16.gmra.mxu0 %v1107
      %v1324 = vpop.f32.mrf.mxu0
      %v1325 = vadd.f32 %v852, %v1324
      %v1326 = vpop.f32.mrf.mxu0
      %v1327 = vpop.f32.mrf.mxu0
      %v1328 = vadd.f32 %v855, %v1327
      %v1329 = vpop.f32.mrf.mxu0
      %1330 = vmatprep.mubr.bf16.mxu0 0
      %1331 = vmatmul.mubr.bf16.gmra.mxu0 %v1110
      %v1332 = vpop.f32.mrf.mxu0
      %v1333 = vadd.f32 %v860, %v1332
      %v1334 = vpop.f32.mrf.mxu0
      %v1335 = vpop.f32.mrf.mxu0
      %v1336 = vadd.f32 %v863, %v1335
      %v1337 = vpop.f32.mrf.mxu0
      %1338 = vmatprep.mubr.bf16.mxu0 0
      %1339 = vmatmul.mubr.bf16.gmra.mxu0 %v1113
      %v1340 = vpop.f32.mrf.mxu0
      %v1341 = vadd.f32 %v868, %v1340
      %v1342 = vpop.f32.mrf.mxu0
      %v1343 = vpop.f32.mrf.mxu0
      %v1344 = vadd.f32 %v871, %v1343
      %v1345 = vpop.f32.mrf.mxu0
      %1346 = vmatprep.mubr.bf16.mxu0 0
      %1347 = vmatmul.mubr.bf16.gmra.mxu0 %v1116
      %v1348 = vpop.f32.mrf.mxu0
      %v1349 = vadd.f32 %v876, %v1348
      %v1350 = vpop.f32.mrf.mxu0
      %v1351 = vpop.f32.mrf.mxu0
      %v1352 = vadd.f32 %v879, %v1351
      %v1353 = vpop.f32.mrf.mxu0
      %1354 = vmatprep.mubr.bf16.mxu0 0
      %1355 = vmatmul.mubr.bf16.gmra.mxu0 %v1119
      %v1356 = vpop.f32.mrf.mxu0
      %v1357 = vadd.f32 %v884, %v1356
      %v1358 = vpop.f32.mrf.mxu0
      %v1359 = vpop.f32.mrf.mxu0
      %v1360 = vadd.f32 %v887, %v1359
      %v1361 = vpop.f32.mrf.mxu0
      %1362 = vmatprep.mubr.bf16.mxu0 0
      %1363 = vmatmul.mubr.bf16.gmra.mxu0 %v1122
      %v1364 = vpop.f32.mrf.mxu0
      %v1365 = vadd.f32 %v892, %v1364
      %v1366 = vpop.f32.mrf.mxu0
      %v1367 = vpop.f32.mrf.mxu0
      %v1368 = vadd.f32 %v895, %v1367
      %v1369 = vpop.f32.mrf.mxu0
      %1370 = vmatprep.mubr.bf16.mxu0 0
      %1371 = vmatmul.mubr.bf16.gmra.mxu0 %v1125
      %v1372 = vpop.f32.mrf.mxu0
      %v1373 = vadd.f32 %v900, %v1372
      %v1374 = vpop.f32.mrf.mxu0
      %v1375 = vpop.f32.mrf.mxu0
      %v1376 = vadd.f32 %v903, %v1375
      %v1377 = vpop.f32.mrf.mxu0
      %1378 = vdwg.mxu0
      %s1379 = scalar_lea.vmem %s305, 24
      %v1380 = vld [vmem:[%s1379] sm:$0xf]
      %v1381 = vld [vmem:[%s1379 + $0x4] sm:$0xf]
      %v1382 = vld [vmem:[%s1379 + $0x8] sm:$0xf]
      %v1383 = vld [vmem:[%s1379 + $0xc] sm:$0xf]
      %v1384 = vld [vmem:[%s1379 + $0x10] sm:$0xf]
      %v1385 = vld [vmem:[%s1379 + $0x14] sm:$0xf]
      %v1386 = vld [vmem:[%s1379 + $0x18] sm:$0xf]
      %v1387 = vld [vmem:[%s1379 + $0x1c] sm:$0xf]
      %v1388 = vld [vmem:[%s1379 + $0x20] sm:$0xf]
      %v1389 = vld [vmem:[%s1379 + $0x24] sm:$0xf]
      %v1390 = vld [vmem:[%s1379 + $0x28] sm:$0xf]
      %v1391 = vld [vmem:[%s1379 + $0x2c] sm:$0xf]
      %v1392 = vld [vmem:[%s1379 + $0x30] sm:$0xf]
      %v1393 = vld [vmem:[%s1379 + $0x34] sm:$0xf]
      %v1394 = vld [vmem:[%s1379 + $0x38] sm:$0xf]
      %v1395 = vld [vmem:[%s1379 + $0x3c] sm:$0xf]
      %v1396 = vld [vmem:[%s1379 + $0x40] sm:$0xf]
      %v1397 = vld [vmem:[%s1379 + $0x44] sm:$0xf]
      %v1398 = vld [vmem:[%s1379 + $0x48] sm:$0xf]
      %v1399 = vld [vmem:[%s1379 + $0x4c] sm:$0xf]
      %v1400 = vld [vmem:[%s1379 + $0x50] sm:$0xf]
      %v1401 = vld [vmem:[%s1379 + $0x54] sm:$0xf]
      %v1402 = vld [vmem:[%s1379 + $0x58] sm:$0xf]
      %v1403 = vld [vmem:[%s1379 + $0x5c] sm:$0xf]
      %v1404 = vld [vmem:[%s1379 + $0x60] sm:$0xf]
      %v1405 = vld [vmem:[%s1379 + $0x64] sm:$0xf]
      %v1406 = vld [vmem:[%s1379 + $0x68] sm:$0xf]
      %v1407 = vld [vmem:[%s1379 + $0x6c] sm:$0xf]
      %v1408 = vld [vmem:[%s1379 + $0x70] sm:$0xf]
      %v1409 = vld [vmem:[%s1379 + $0x74] sm:$0xf]
      %v1410 = vld [vmem:[%s1379 + $0x78] sm:$0xf]
      %v1411 = vld [vmem:[%s1379 + $0x7c] sm:$0xf]
      %v1412 = vld [vmem:[%s1379 + $0x80] sm:$0xf]
      %v1413 = vld [vmem:[%s1379 + $0x84] sm:$0xf]
      %v1414 = vld [vmem:[%s1379 + $0x88] sm:$0xf]
      %v1415 = vld [vmem:[%s1379 + $0x8c] sm:$0xf]
      %v1416 = vld [vmem:[%s1379 + $0x90] sm:$0xf]
      %v1417 = vld [vmem:[%s1379 + $0x94] sm:$0xf]
      %v1418 = vld [vmem:[%s1379 + $0x98] sm:$0xf]
      %v1419 = vld [vmem:[%s1379 + $0x9c] sm:$0xf]
      %v1420 = vld [vmem:[%s1379 + $0xa0] sm:$0xf]
      %v1421 = vld [vmem:[%s1379 + $0xa4] sm:$0xf]
      %v1422 = vld [vmem:[%s1379 + $0xa8] sm:$0xf]
      %v1423 = vld [vmem:[%s1379 + $0xac] sm:$0xf]
      %v1424 = vld [vmem:[%s1379 + $0xb0] sm:$0xf]
      %v1425 = vld [vmem:[%s1379 + $0xb4] sm:$0xf]
      %v1426 = vld [vmem:[%s1379 + $0xb8] sm:$0xf]
      %v1427 = vld [vmem:[%s1379 + $0xbc] sm:$0xf]
      %v1428 = vld [vmem:[%s1379 + $0xc0] sm:$0xf]
      %v1429 = vld [vmem:[%s1379 + $0xc4] sm:$0xf]
      %v1430 = vld [vmem:[%s1379 + $0xc8] sm:$0xf]
      %v1431 = vld [vmem:[%s1379 + $0xcc] sm:$0xf]
      %v1432 = vld [vmem:[%s1379 + $0xd0] sm:$0xf]
      %v1433 = vld [vmem:[%s1379 + $0xd4] sm:$0xf]
      %s1434 = scalar_lea.vmem %s1, 16
      %v1435 = vld [vmem:[%s1434] sm:$0xf]
      %v1436 = vld [vmem:[%s1434 + $0x4] sm:$0x3]
      %v1491 = vunpack.c.l.b16 %v1380
      %v1492 = vunpack.c.l.b16 %v1381
      %v1493 = vunpack.c.l.b16 %v1382
      %v1494 = vunpack.c.l.b16 %v1383
      %v1495 = vunpack.c.l.b16 %v1384
      %v1496 = vunpack.c.l.b16 %v1385
      %v1497 = vunpack.c.l.b16 %v1386
      %v1498 = vunpack.c.l.b16 %v1387
      %v1499 = vunpack.c.l.b16 %v1388
      %v1500 = vunpack.c.l.b16 %v1389
      %v1501 = vunpack.c.l.b16 %v1390
      %v1502 = vunpack.c.l.b16 %v1391
      %v1503 = vunpack.c.l.b16 %v1392
      %v1504 = vunpack.c.l.b16 %v1393
      %v1505 = vunpack.c.l.b16 %v1394
      %v1506 = vunpack.c.l.b16 %v1395
      %v1507 = vunpack.c.l.b16 %v1396
      %v1508 = vunpack.c.l.b16 %v1397
      %v1509 = vunpack.c.l.b16 %v1398
      %v1510 = vunpack.c.l.b16 %v1399
      %v1511 = vunpack.c.l.b16 %v1400
      %v1512 = vunpack.c.l.b16 %v1401
      %v1513 = vunpack.c.l.b16 %v1402
      %v1514 = vunpack.c.l.b16 %v1403
      %v1515 = vunpack.c.l.b16 %v1404
      %v1516 = vunpack.c.l.b16 %v1405
      %v1517 = vunpack.c.l.b16 %v1406
      %v1518 = vunpack.c.l.b16 %v1407
      %v1519 = vunpack.c.l.b16 %v1408
      %v1520 = vunpack.c.l.b16 %v1409
      %v1521 = vunpack.c.l.b16 %v1410
      %v1522 = vunpack.c.l.b16 %v1411
      %v1523 = vunpack.c.l.b16 %v1412
      %v1524 = vunpack.c.l.b16 %v1413
      %v1525 = vunpack.c.l.b16 %v1414
      %v1526 = vunpack.c.l.b16 %v1415
      %v1527 = vunpack.c.l.b16 %v1416
      %v1528 = vunpack.c.l.b16 %v1417
      %v1529 = vunpack.c.l.b16 %v1418
      %v1530 = vunpack.c.l.b16 %v1419
      %v1531 = vunpack.c.l.b16 %v1420
      %v1532 = vunpack.c.l.b16 %v1421
      %v1533 = vunpack.c.l.b16 %v1422
      %v1534 = vunpack.c.l.b16 %v1423
      %v1535 = vunpack.c.l.b16 %v1424
      %v1536 = vunpack.c.l.b16 %v1425
      %v1537 = vunpack.c.l.b16 %v1426
      %v1538 = vunpack.c.l.b16 %v1427
      %v1539 = vunpack.c.l.b16 %v1428
      %v1540 = vunpack.c.l.b16 %v1429
      %v1541 = vunpack.c.l.b16 %v1430
      %v1542 = vunpack.c.l.b16 %v1431
      %v1543 = vunpack.c.l.b16 %v1432
      %v1544 = vunpack.c.l.b16 %v1433
      %v1545 = vpack.c.b16 %v1492, %v1491
      %v1546 = vpack.c.b16 %v1494, %v1493
      %v1547 = vpack.c.b16 %v1496, %v1495
      %v1548 = vpack.c.b16 %v1498, %v1497
      %v1549 = vpack.c.b16 %v1500, %v1499
      %v1550 = vpack.c.b16 %v1502, %v1501
      %v1551 = vpack.c.b16 %v1504, %v1503
      %v1552 = vpack.c.b16 %v1506, %v1505
      %v1553 = vpack.c.b16 %v1508, %v1507
      %v1554 = vpack.c.b16 %v1510, %v1509
      %v1555 = vpack.c.b16 %v1512, %v1511
      %v1556 = vpack.c.b16 %v1514, %v1513
      %v1557 = vpack.c.b16 %v1516, %v1515
      %v1558 = vpack.c.b16 %v1518, %v1517
      %v1559 = vpack.c.b16 %v1520, %v1519
      %v1560 = vpack.c.b16 %v1522, %v1521
      %v1561 = vpack.c.b16 %v1524, %v1523
      %v1562 = vpack.c.b16 %v1526, %v1525
      %v1563 = vpack.c.b16 %v1528, %v1527
      %v1564 = vpack.c.b16 %v1530, %v1529
      %v1565 = vpack.c.b16 %v1532, %v1531
      %v1566 = vpack.c.b16 %v1534, %v1533
      %v1567 = vpack.c.b16 %v1536, %v1535
      %v1568 = vpack.c.b16 %v1538, %v1537
      %v1569 = vpack.c.b16 %v1540, %v1539
      %v1570 = vpack.c.b16 %v1542, %v1541
      %v1571 = vpack.c.b16 %v1544, %v1543
      %v1574 = vunpack.c.l.b16 %v1435
      %v1575 = vunpack.c.l.b16 %v1436
      %v1576 = vpack.c.b16 %v1575, %v1574
      %v1578 = vsel %vm571, %v1545, 0
      %v1581 = vsel %vm571, %v1546, 0
      %v1584 = vsel %vm571, %v1547, 0
      %v1587 = vsel %vm571, %v1548, 0
      %v1590 = vsel %vm571, %v1549, 0
      %v1593 = vsel %vm571, %v1550, 0
      %v1596 = vsel %vm571, %v1551, 0
      %v1599 = vsel %vm571, %v1552, 0
      %v1602 = vsel %vm571, %v1553, 0
      %v1605 = vsel %vm571, %v1554, 0
      %v1608 = vsel %vm571, %v1555, 0
      %v1611 = vsel %vm571, %v1556, 0
      %v1614 = vsel %vm571, %v1557, 0
      %v1617 = vsel %vm571, %v1558, 0
      %v1620 = vsel %vm571, %v1559, 0
      %v1623 = vsel %vm571, %v1560, 0
      %v1626 = vsel %vm571, %v1561, 0
      %v1629 = vsel %vm571, %v1562, 0
      %v1632 = vsel %vm571, %v1563, 0
      %v1635 = vsel %vm571, %v1564, 0
      %v1638 = vsel %vm571, %v1565, 0
      %v1641 = vsel %vm571, %v1566, 0
      %v1644 = vsel %vm571, %v1567, 0
      %v1647 = vsel %vm571, %v1568, 0
      %v1650 = vsel %vm571, %v1569, 0
      %v1653 = vsel %vm571, %v1570, 0
      %v1656 = vsel %vm571, %v1571, 0
      %v1659 = vsel %vm653, %v1576, 0
      %1661 = vmatprep.subr.bf16.mxu0 0
      %1662 = vmatpush1.bf16.msra.mxu0 0
      %1663 = vmatprep.subr.bf16.mxu0 0
      %1664 = vmatpush1.bf16.msra.mxu0 0
      %1665 = vmatprep.subr.bf16.mxu0 0
      %1666 = vmatpush1.bf16.msra.mxu0 0
      %1667 = vmatprep.subr.bf16.mxu0 0
      %1668 = vmatpush1.bf16.msra.mxu0 0
      %1669 = vmatprep.subr.bf16.mxu0 0
      %1670 = vmatpush1.bf16.msra.mxu0 0
      %1671 = vmatprep.subr.bf16.mxu0 0
      %1672 = vmatpush1.bf16.msra.mxu0 0
      %1673 = vmatprep.subr.bf16.mxu0 0
      %1674 = vmatpush1.bf16.msra.mxu0 0
      %1675 = vmatprep.subr.bf16.mxu0 0
      %1676 = vmatpush1.bf16.msra.mxu0 %v1659
      %1677 = vmatprep.subr.bf16.mxu0 0
      %1678 = vmatpush2.bf16.msra.mxu0 0
      %1679 = vmatprep.subr.bf16.mxu0 0
      %1680 = vmatpush2.bf16.msra.mxu0 0
      %1681 = vmatprep.subr.bf16.mxu0 0
      %1682 = vmatpush2.bf16.msra.mxu0 0
      %1683 = vmatprep.subr.bf16.mxu0 0
      %1684 = vmatpush2.bf16.msra.mxu0 0
      %1685 = vmatprep.subr.bf16.mxu0 0
      %1686 = vmatpush2.bf16.msra.mxu0 0
      %1687 = vmatprep.subr.bf16.mxu0 0
      %1688 = vmatpush2.bf16.msra.mxu0 0
      %1689 = vmatprep.subr.bf16.mxu0 0
      %1690 = vmatpush2.bf16.msra.mxu0 0
      %1691 = vmatprep.subr.bf16.mxu0 0
      %1692 = vmatpush2.bf16.msra.mxu0 0
      %1693 = vmatprep.mubr.bf16.mxu0 0
      %1694 = vmatmul.mubr.bf16.gmra.mxu0 %v1578
      %v1695 = vpop.f32.mrf.mxu0
      %v1696 = vadd.f32 0.0, %v1695
      %v1697 = vpop.f32.mrf.mxu0
      %v1698 = vpop.f32.mrf.mxu0
      %v1699 = vadd.f32 0.0, %v1698
      %v1700 = vpop.f32.mrf.mxu0
      %1701 = vmatprep.mubr.bf16.mxu0 0
      %1702 = vmatmul.mubr.bf16.gmra.mxu0 %v1581
      %v1703 = vpop.f32.mrf.mxu0
      %v1704 = vadd.f32 0.0, %v1703
      %v1705 = vpop.f32.mrf.mxu0
      %v1706 = vpop.f32.mrf.mxu0
      %v1707 = vadd.f32 0.0, %v1706
      %v1708 = vpop.f32.mrf.mxu0
      %1709 = vmatprep.mubr.bf16.mxu0 0
      %1710 = vmatmul.mubr.bf16.gmra.mxu0 %v1584
      %v1711 = vpop.f32.mrf.mxu0
      %v1712 = vadd.f32 0.0, %v1711
      %v1713 = vpop.f32.mrf.mxu0
      %v1714 = vpop.f32.mrf.mxu0
      %v1715 = vadd.f32 0.0, %v1714
      %v1716 = vpop.f32.mrf.mxu0
      %1717 = vmatprep.mubr.bf16.mxu0 0
      %1718 = vmatmul.mubr.bf16.gmra.mxu0 %v1587
      %v1719 = vpop.f32.mrf.mxu0
      %v1720 = vadd.f32 0.0, %v1719
      %v1721 = vpop.f32.mrf.mxu0
      %v1722 = vpop.f32.mrf.mxu0
      %v1723 = vadd.f32 0.0, %v1722
      %v1724 = vpop.f32.mrf.mxu0
      %1725 = vmatprep.mubr.bf16.mxu0 0
      %1726 = vmatmul.mubr.bf16.gmra.mxu0 %v1590
      %v1727 = vpop.f32.mrf.mxu0
      %v1728 = vadd.f32 0.0, %v1727
      %v1729 = vpop.f32.mrf.mxu0
      %v1730 = vpop.f32.mrf.mxu0
      %v1731 = vadd.f32 0.0, %v1730
      %v1732 = vpop.f32.mrf.mxu0
      %1733 = vmatprep.mubr.bf16.mxu0 0
      %1734 = vmatmul.mubr.bf16.gmra.mxu0 %v1593
      %v1735 = vpop.f32.mrf.mxu0
      %v1736 = vadd.f32 0.0, %v1735
      %v1737 = vpop.f32.mrf.mxu0
      %v1738 = vpop.f32.mrf.mxu0
      %v1739 = vadd.f32 0.0, %v1738
      %v1740 = vpop.f32.mrf.mxu0
      %1741 = vmatprep.mubr.bf16.mxu0 0
      %1742 = vmatmul.mubr.bf16.gmra.mxu0 %v1596
      %v1743 = vpop.f32.mrf.mxu0
      %v1744 = vadd.f32 0.0, %v1743
      %v1745 = vpop.f32.mrf.mxu0
      %v1746 = vpop.f32.mrf.mxu0
      %v1747 = vadd.f32 0.0, %v1746
      %v1748 = vpop.f32.mrf.mxu0
      %1749 = vmatprep.mubr.bf16.mxu0 0
      %1750 = vmatmul.mubr.bf16.gmra.mxu0 %v1599
      %v1751 = vpop.f32.mrf.mxu0
      %v1752 = vadd.f32 0.0, %v1751
      %v1753 = vpop.f32.mrf.mxu0
      %v1754 = vpop.f32.mrf.mxu0
      %v1755 = vadd.f32 0.0, %v1754
      %v1756 = vpop.f32.mrf.mxu0
      %1757 = vmatprep.mubr.bf16.mxu0 0
      %1758 = vmatmul.mubr.bf16.gmra.mxu0 %v1602
      %v1759 = vpop.f32.mrf.mxu0
      %v1760 = vadd.f32 0.0, %v1759
      %v1761 = vpop.f32.mrf.mxu0
      %v1762 = vpop.f32.mrf.mxu0
      %v1763 = vadd.f32 0.0, %v1762
      %v1764 = vpop.f32.mrf.mxu0
      %1765 = vmatprep.mubr.bf16.mxu0 0
      %1766 = vmatmul.mubr.bf16.gmra.mxu0 %v1605
      %v1767 = vpop.f32.mrf.mxu0
      %v1768 = vadd.f32 0.0, %v1767
      %v1769 = vpop.f32.mrf.mxu0
      %v1770 = vpop.f32.mrf.mxu0
      %v1771 = vadd.f32 0.0, %v1770
      %v1772 = vpop.f32.mrf.mxu0
      %1773 = vmatprep.mubr.bf16.mxu0 0
      %1774 = vmatmul.mubr.bf16.gmra.mxu0 %v1608
      %v1775 = vpop.f32.mrf.mxu0
      %v1776 = vadd.f32 0.0, %v1775
      %v1777 = vpop.f32.mrf.mxu0
      %v1778 = vpop.f32.mrf.mxu0
      %v1779 = vadd.f32 0.0, %v1778
      %v1780 = vpop.f32.mrf.mxu0
      %1781 = vmatprep.mubr.bf16.mxu0 0
      %1782 = vmatmul.mubr.bf16.gmra.mxu0 %v1611
      %v1783 = vpop.f32.mrf.mxu0
      %v1784 = vadd.f32 0.0, %v1783
      %v1785 = vpop.f32.mrf.mxu0
      %v1786 = vpop.f32.mrf.mxu0
      %v1787 = vadd.f32 0.0, %v1786
      %v1788 = vpop.f32.mrf.mxu0
      %1789 = vmatprep.mubr.bf16.mxu0 0
      %1790 = vmatmul.mubr.bf16.gmra.mxu0 %v1614
      %v1791 = vpop.f32.mrf.mxu0
      %v1792 = vadd.f32 0.0, %v1791
      %v1793 = vpop.f32.mrf.mxu0
      %v1794 = vpop.f32.mrf.mxu0
      %v1795 = vadd.f32 0.0, %v1794
      %v1796 = vpop.f32.mrf.mxu0
      %1797 = vmatprep.mubr.bf16.mxu0 0
      %1798 = vmatmul.mubr.bf16.gmra.mxu0 %v1617
      %v1799 = vpop.f32.mrf.mxu0
      %v1800 = vadd.f32 0.0, %v1799
      %v1801 = vpop.f32.mrf.mxu0
      %v1802 = vpop.f32.mrf.mxu0
      %v1803 = vadd.f32 0.0, %v1802
      %v1804 = vpop.f32.mrf.mxu0
      %1805 = vmatprep.mubr.bf16.mxu0 0
      %1806 = vmatmul.mubr.bf16.gmra.mxu0 %v1620
      %v1807 = vpop.f32.mrf.mxu0
      %v1808 = vadd.f32 0.0, %v1807
      %v1809 = vpop.f32.mrf.mxu0
      %v1810 = vpop.f32.mrf.mxu0
      %v1811 = vadd.f32 0.0, %v1810
      %v1812 = vpop.f32.mrf.mxu0
      %1813 = vmatprep.mubr.bf16.mxu0 0
      %1814 = vmatmul.mubr.bf16.gmra.mxu0 %v1623
      %v1815 = vpop.f32.mrf.mxu0
      %v1816 = vadd.f32 0.0, %v1815
      %v1817 = vpop.f32.mrf.mxu0
      %v1818 = vpop.f32.mrf.mxu0
      %v1819 = vadd.f32 0.0, %v1818
      %v1820 = vpop.f32.mrf.mxu0
      %1821 = vmatprep.mubr.bf16.mxu0 0
      %1822 = vmatmul.mubr.bf16.gmra.mxu0 %v1626
      %v1823 = vpop.f32.mrf.mxu0
      %v1824 = vadd.f32 0.0, %v1823
      %v1825 = vpop.f32.mrf.mxu0
      %v1826 = vpop.f32.mrf.mxu0
      %v1827 = vadd.f32 0.0, %v1826
      %v1828 = vpop.f32.mrf.mxu0
      %1829 = vmatprep.mubr.bf16.mxu0 0
      %1830 = vmatmul.mubr.bf16.gmra.mxu0 %v1629
      %v1831 = vpop.f32.mrf.mxu0
      %v1832 = vadd.f32 0.0, %v1831
      %v1833 = vpop.f32.mrf.mxu0
      %v1834 = vpop.f32.mrf.mxu0
      %v1835 = vadd.f32 0.0, %v1834
      %v1836 = vpop.f32.mrf.mxu0
      %1837 = vmatprep.mubr.bf16.mxu0 0
      %1838 = vmatmul.mubr.bf16.gmra.mxu0 %v1632
      %v1839 = vpop.f32.mrf.mxu0
      %v1840 = vadd.f32 0.0, %v1839
      %v1841 = vpop.f32.mrf.mxu0
      %v1842 = vpop.f32.mrf.mxu0
      %v1843 = vadd.f32 0.0, %v1842
      %v1844 = vpop.f32.mrf.mxu0
      %1845 = vmatprep.mubr.bf16.mxu0 0
      %1846 = vmatmul.mubr.bf16.gmra.mxu0 %v1635
      %v1847 = vpop.f32.mrf.mxu0
      %v1848 = vadd.f32 0.0, %v1847
      %v1849 = vpop.f32.mrf.mxu0
      %v1850 = vpop.f32.mrf.mxu0
      %v1851 = vadd.f32 0.0, %v1850
      %v1852 = vpop.f32.mrf.mxu0
      %1853 = vmatprep.mubr.bf16.mxu0 0
      %1854 = vmatmul.mubr.bf16.gmra.mxu0 %v1638
      %v1855 = vpop.f32.mrf.mxu0
      %v1856 = vadd.f32 0.0, %v1855
      %v1857 = vpop.f32.mrf.mxu0
      %v1858 = vpop.f32.mrf.mxu0
      %v1859 = vadd.f32 0.0, %v1858
      %v1860 = vpop.f32.mrf.mxu0
      %1861 = vmatprep.mubr.bf16.mxu0 0
      %1862 = vmatmul.mubr.bf16.gmra.mxu0 %v1641
      %v1863 = vpop.f32.mrf.mxu0
      %v1864 = vadd.f32 0.0, %v1863
      %v1865 = vpop.f32.mrf.mxu0
      %v1866 = vpop.f32.mrf.mxu0
      %v1867 = vadd.f32 0.0, %v1866
      %v1868 = vpop.f32.mrf.mxu0
      %1869 = vmatprep.mubr.bf16.mxu0 0
      %1870 = vmatmul.mubr.bf16.gmra.mxu0 %v1644
      %v1871 = vpop.f32.mrf.mxu0
      %v1872 = vadd.f32 0.0, %v1871
      %v1873 = vpop.f32.mrf.mxu0
      %v1874 = vpop.f32.mrf.mxu0
      %v1875 = vadd.f32 0.0, %v1874
      %v1876 = vpop.f32.mrf.mxu0
      %1877 = vmatprep.mubr.bf16.mxu0 0
      %1878 = vmatmul.mubr.bf16.gmra.mxu0 %v1647
      %v1879 = vpop.f32.mrf.mxu0
      %v1880 = vadd.f32 0.0, %v1879
      %v1881 = vpop.f32.mrf.mxu0
      %v1882 = vpop.f32.mrf.mxu0
      %v1883 = vadd.f32 0.0, %v1882
      %v1884 = vpop.f32.mrf.mxu0
      %1885 = vmatprep.mubr.bf16.mxu0 0
      %1886 = vmatmul.mubr.bf16.gmra.mxu0 %v1650
      %v1887 = vpop.f32.mrf.mxu0
      %v1888 = vadd.f32 0.0, %v1887
      %v1889 = vpop.f32.mrf.mxu0
      %v1890 = vpop.f32.mrf.mxu0
      %v1891 = vadd.f32 0.0, %v1890
      %v1892 = vpop.f32.mrf.mxu0
      %1893 = vmatprep.mubr.bf16.mxu0 0
      %1894 = vmatmul.mubr.bf16.gmra.mxu0 %v1653
      %v1895 = vpop.f32.mrf.mxu0
      %v1896 = vadd.f32 0.0, %v1895
      %v1897 = vpop.f32.mrf.mxu0
      %v1898 = vpop.f32.mrf.mxu0
      %v1899 = vadd.f32 0.0, %v1898
      %v1900 = vpop.f32.mrf.mxu0
      %1901 = vmatprep.mubr.bf16.mxu0 0
      %1902 = vmatmul.mubr.bf16.gmra.mxu0 %v1656
      %v1903 = vpop.f32.mrf.mxu0
      %v1904 = vadd.f32 0.0, %v1903
      %v1905 = vpop.f32.mrf.mxu0
      %v1906 = vpop.f32.mrf.mxu0
      %v1907 = vadd.f32 0.0, %v1906
      %v1908 = vpop.f32.mrf.mxu0
      %1909 = vdwg.mxu0
      %v1910 = vadd.f32 %v1165, %v1696
      %v1911 = vadd.f32 %v1168, %v1699
      %v1912 = vadd.f32 %v1173, %v1704
      %v1913 = vadd.f32 %v1176, %v1707
      %v1914 = vadd.f32 %v1181, %v1712
      %v1915 = vadd.f32 %v1184, %v1715
      %v1916 = vadd.f32 %v1189, %v1720
      %v1917 = vadd.f32 %v1192, %v1723
      %v1918 = vadd.f32 %v1197, %v1728
      %v1919 = vadd.f32 %v1200, %v1731
      %v1920 = vadd.f32 %v1205, %v1736
      %v1921 = vadd.f32 %v1208, %v1739
      %v1922 = vadd.f32 %v1213, %v1744
      %v1923 = vadd.f32 %v1216, %v1747
      %v1924 = vadd.f32 %v1221, %v1752
      %v1925 = vadd.f32 %v1224, %v1755
      %v1926 = vadd.f32 %v1229, %v1760
      %v1927 = vadd.f32 %v1232, %v1763
      %v1928 = vadd.f32 %v1237, %v1768
      %v1929 = vadd.f32 %v1240, %v1771
      %v1930 = vadd.f32 %v1245, %v1776
      %v1931 = vadd.f32 %v1248, %v1779
      %v1932 = vadd.f32 %v1253, %v1784
      %v1933 = vadd.f32 %v1256, %v1787
      %v1934 = vadd.f32 %v1261, %v1792
      %v1935 = vadd.f32 %v1264, %v1795
      %v1936 = vadd.f32 %v1269, %v1800
      %v1937 = vadd.f32 %v1272, %v1803
      %v1938 = vadd.f32 %v1277, %v1808
      %v1939 = vadd.f32 %v1280, %v1811
      %v1940 = vadd.f32 %v1285, %v1816
      %v1941 = vadd.f32 %v1288, %v1819
      %v1942 = vadd.f32 %v1293, %v1824
      %v1943 = vadd.f32 %v1296, %v1827
      %v1944 = vadd.f32 %v1301, %v1832
      %v1945 = vadd.f32 %v1304, %v1835
      %v1946 = vadd.f32 %v1309, %v1840
      %v1947 = vadd.f32 %v1312, %v1843
      %v1948 = vadd.f32 %v1317, %v1848
      %v1949 = vadd.f32 %v1320, %v1851
      %v1950 = vadd.f32 %v1325, %v1856
      %v1951 = vadd.f32 %v1328, %v1859
      %v1952 = vadd.f32 %v1333, %v1864
      %v1953 = vadd.f32 %v1336, %v1867
      %v1954 = vadd.f32 %v1341, %v1872
      %v1955 = vadd.f32 %v1344, %v1875
      %v1956 = vadd.f32 %v1349, %v1880
      %v1957 = vadd.f32 %v1352, %v1883
      %v1958 = vadd.f32 %v1357, %v1888
      %v1959 = vadd.f32 %v1360, %v1891
      %v1960 = vadd.f32 %v1365, %v1896
      %v1961 = vadd.f32 %v1368, %v1899
      %v1962 = vadd.f32 %v1373, %v1904
      %v1963 = vadd.f32 %v1376, %v1907
      %v1964 = vld [vmem:[%s3] sm:$0x1]
      %v1966 = vlaneseq
      %v1967 = vshrl.u32 %v1966, 7
      %v1968 = vsub.s32 0, %v1967
      %v1969 = vrot.slane %v1964, %v1968
      %v1971 = vmul.f32 %v1910, %v1969
      %v1972 = vmul.f32 %v1911, %v1969
      %v1973 = vmul.f32 %v1912, %v1969
      %v1974 = vmul.f32 %v1913, %v1969
      %v1975 = vmul.f32 %v1914, %v1969
      %v1976 = vmul.f32 %v1915, %v1969
      %v1977 = vmul.f32 %v1916, %v1969
      %v1978 = vmul.f32 %v1917, %v1969
      %v1979 = vmul.f32 %v1918, %v1969
      %v1980 = vmul.f32 %v1919, %v1969
      %v1981 = vmul.f32 %v1920, %v1969
      %v1982 = vmul.f32 %v1921, %v1969
      %v1983 = vmul.f32 %v1922, %v1969
      %v1984 = vmul.f32 %v1923, %v1969
      %v1985 = vmul.f32 %v1924, %v1969
      %v1986 = vmul.f32 %v1925, %v1969
      %v1987 = vmul.f32 %v1926, %v1969
      %v1988 = vmul.f32 %v1927, %v1969
      %v1989 = vmul.f32 %v1928, %v1969
      %v1990 = vmul.f32 %v1929, %v1969
      %v1991 = vmul.f32 %v1930, %v1969
      %v1992 = vmul.f32 %v1931, %v1969
      %v1993 = vmul.f32 %v1932, %v1969
      %v1994 = vmul.f32 %v1933, %v1969
      %v1995 = vmul.f32 %v1934, %v1969
      %v1996 = vmul.f32 %v1935, %v1969
      %v1997 = vmul.f32 %v1936, %v1969
      %v1998 = vmul.f32 %v1937, %v1969
      %v1999 = vmul.f32 %v1938, %v1969
      %v2000 = vmul.f32 %v1939, %v1969
      %v2001 = vmul.f32 %v1940, %v1969
      %v2002 = vmul.f32 %v1941, %v1969
      %v2003 = vmul.f32 %v1942, %v1969
      %v2004 = vmul.f32 %v1943, %v1969
      %v2005 = vmul.f32 %v1944, %v1969
      %v2006 = vmul.f32 %v1945, %v1969
      %v2007 = vmul.f32 %v1946, %v1969
      %v2008 = vmul.f32 %v1947, %v1969
      %v2009 = vmul.f32 %v1948, %v1969
      %v2010 = vmul.f32 %v1949, %v1969
      %v2011 = vmul.f32 %v1950, %v1969
      %v2012 = vmul.f32 %v1951, %v1969
      %v2013 = vmul.f32 %v1952, %v1969
      %v2014 = vmul.f32 %v1953, %v1969
      %v2015 = vmul.f32 %v1954, %v1969
      %v2016 = vmul.f32 %v1955, %v1969
      %v2017 = vmul.f32 %v1956, %v1969
      %v2018 = vmul.f32 %v1957, %v1969
      %v2019 = vmul.f32 %v1958, %v1969
      %v2020 = vmul.f32 %v1959, %v1969
      %v2021 = vmul.f32 %v1960, %v1969
      %v2022 = vmul.f32 %v1961, %v1969
      %v2023 = vmul.f32 %v1962, %v1969
      %v2024 = vmul.f32 %v1963, %v1969
      %v2025 = vld [vmem:[%s4] sm:$0x1]
      %v2027 = vlaneseq
      %v2028 = vshrl.u32 %v2027, 7
      %v2029 = vsub.s32 0, %v2028
      %v2030 = vrot.slane %v2025, %v2029
      %v2032 = vadd.f32 %v1971, %v2030
      %v2033 = vadd.f32 %v1972, %v2030
      %v2034 = vadd.f32 %v1973, %v2030
      %v2035 = vadd.f32 %v1974, %v2030
      %v2036 = vadd.f32 %v1975, %v2030
      %v2037 = vadd.f32 %v1976, %v2030
      %v2038 = vadd.f32 %v1977, %v2030
      %v2039 = vadd.f32 %v1978, %v2030
      %v2040 = vadd.f32 %v1979, %v2030
      %v2041 = vadd.f32 %v1980, %v2030
      %v2042 = vadd.f32 %v1981, %v2030
      %v2043 = vadd.f32 %v1982, %v2030
      %v2044 = vadd.f32 %v1983, %v2030
      %v2045 = vadd.f32 %v1984, %v2030
      %v2046 = vadd.f32 %v1985, %v2030
      %v2047 = vadd.f32 %v1986, %v2030
      %v2048 = vadd.f32 %v1987, %v2030
      %v2049 = vadd.f32 %v1988, %v2030
      %v2050 = vadd.f32 %v1989, %v2030
      %v2051 = vadd.f32 %v1990, %v2030
      %v2052 = vadd.f32 %v1991, %v2030
      %v2053 = vadd.f32 %v1992, %v2030
      %v2054 = vadd.f32 %v1993, %v2030
      %v2055 = vadd.f32 %v1994, %v2030
      %v2056 = vadd.f32 %v1995, %v2030
      %v2057 = vadd.f32 %v1996, %v2030
      %v2058 = vadd.f32 %v1997, %v2030
      %v2059 = vadd.f32 %v1998, %v2030
      %v2060 = vadd.f32 %v1999, %v2030
      %v2061 = vadd.f32 %v2000, %v2030
      %v2062 = vadd.f32 %v2001, %v2030
      %v2063 = vadd.f32 %v2002, %v2030
      %v2064 = vadd.f32 %v2003, %v2030
      %v2065 = vadd.f32 %v2004, %v2030
      %v2066 = vadd.f32 %v2005, %v2030
      %v2067 = vadd.f32 %v2006, %v2030
      %v2068 = vadd.f32 %v2007, %v2030
      %v2069 = vadd.f32 %v2008, %v2030
      %v2070 = vadd.f32 %v2009, %v2030
      %v2071 = vadd.f32 %v2010, %v2030
      %v2072 = vadd.f32 %v2011, %v2030
      %v2073 = vadd.f32 %v2012, %v2030
      %v2074 = vadd.f32 %v2013, %v2030
      %v2075 = vadd.f32 %v2014, %v2030
      %v2076 = vadd.f32 %v2015, %v2030
      %v2077 = vadd.f32 %v2016, %v2030
      %v2078 = vadd.f32 %v2017, %v2030
      %v2079 = vadd.f32 %v2018, %v2030
      %v2080 = vadd.f32 %v2019, %v2030
      %v2081 = vadd.f32 %v2020, %v2030
      %v2082 = vadd.f32 %v2021, %v2030
      %v2083 = vadd.f32 %v2022, %v2030
      %v2084 = vadd.f32 %v2023, %v2030
      %v2085 = vadd.f32 %v2024, %v2030
      %v2086 = vmax.f32 %v2032, 0.0
      %v2087 = vmax.f32 %v2033, 0.0
      %v2088 = vmax.f32 %v2034, 0.0
      %v2089 = vmax.f32 %v2035, 0.0
      %v2090 = vmax.f32 %v2036, 0.0
      %v2091 = vmax.f32 %v2037, 0.0
      %v2092 = vmax.f32 %v2038, 0.0
      %v2093 = vmax.f32 %v2039, 0.0
      %v2094 = vmax.f32 %v2040, 0.0
      %v2095 = vmax.f32 %v2041, 0.0
      %v2096 = vmax.f32 %v2042, 0.0
      %v2097 = vmax.f32 %v2043, 0.0
      %v2098 = vmax.f32 %v2044, 0.0
      %v2099 = vmax.f32 %v2045, 0.0
      %v2100 = vmax.f32 %v2046, 0.0
      %v2101 = vmax.f32 %v2047, 0.0
      %v2102 = vmax.f32 %v2048, 0.0
      %v2103 = vmax.f32 %v2049, 0.0
      %v2104 = vmax.f32 %v2050, 0.0
      %v2105 = vmax.f32 %v2051, 0.0
      %v2106 = vmax.f32 %v2052, 0.0
      %v2107 = vmax.f32 %v2053, 0.0
      %v2108 = vmax.f32 %v2054, 0.0
      %v2109 = vmax.f32 %v2055, 0.0
      %v2110 = vmax.f32 %v2056, 0.0
      %v2111 = vmax.f32 %v2057, 0.0
      %v2112 = vmax.f32 %v2058, 0.0
      %v2113 = vmax.f32 %v2059, 0.0
      %v2114 = vmax.f32 %v2060, 0.0
      %v2115 = vmax.f32 %v2061, 0.0
      %v2116 = vmax.f32 %v2062, 0.0
      %v2117 = vmax.f32 %v2063, 0.0
      %v2118 = vmax.f32 %v2064, 0.0
      %v2119 = vmax.f32 %v2065, 0.0
      %v2120 = vmax.f32 %v2066, 0.0
      %v2121 = vmax.f32 %v2067, 0.0
      %v2122 = vmax.f32 %v2068, 0.0
      %v2123 = vmax.f32 %v2069, 0.0
      %v2124 = vmax.f32 %v2070, 0.0
      %v2125 = vmax.f32 %v2071, 0.0
      %v2126 = vmax.f32 %v2072, 0.0
      %v2127 = vmax.f32 %v2073, 0.0
      %v2128 = vmax.f32 %v2074, 0.0
      %v2129 = vmax.f32 %v2075, 0.0
      %v2130 = vmax.f32 %v2076, 0.0
      %v2131 = vmax.f32 %v2077, 0.0
      %v2132 = vmax.f32 %v2078, 0.0
      %v2133 = vmax.f32 %v2079, 0.0
      %v2134 = vmax.f32 %v2080, 0.0
      %v2135 = vmax.f32 %v2081, 0.0
      %v2136 = vmax.f32 %v2082, 0.0
      %v2137 = vmax.f32 %v2083, 0.0
      %v2138 = vmax.f32 %v2084, 0.0
      %v2139 = vmax.f32 %v2085, 0.0
      %v2140 = vpack.c.bf16 %v2087, %v2086
      %v2141 = vpack.c.bf16 %v2088, %v2088
      %v2142 = vpack.c.bf16 %v2090, %v2089
      %v2143 = vpack.c.bf16 %v2091, %v2091
      %v2144 = vpack.c.bf16 %v2093, %v2092
      %v2145 = vpack.c.bf16 %v2094, %v2094
      %v2146 = vpack.c.bf16 %v2096, %v2095
      %v2147 = vpack.c.bf16 %v2097, %v2097
      %v2148 = vpack.c.bf16 %v2099, %v2098
      %v2149 = vpack.c.bf16 %v2100, %v2100
      %v2150 = vpack.c.bf16 %v2102, %v2101
      %v2151 = vpack.c.bf16 %v2103, %v2103
      %v2152 = vpack.c.bf16 %v2105, %v2104
      %v2153 = vpack.c.bf16 %v2106, %v2106
      %v2154 = vpack.c.bf16 %v2108, %v2107
      %v2155 = vpack.c.bf16 %v2109, %v2109
      %v2156 = vpack.c.bf16 %v2111, %v2110
      %v2157 = vpack.c.bf16 %v2112, %v2112
      %v2158 = vpack.c.bf16 %v2114, %v2113
      %v2159 = vpack.c.bf16 %v2115, %v2115
      %v2160 = vpack.c.bf16 %v2117, %v2116
      %v2161 = vpack.c.bf16 %v2118, %v2118
      %v2162 = vpack.c.bf16 %v2120, %v2119
      %v2163 = vpack.c.bf16 %v2121, %v2121
      %v2164 = vpack.c.bf16 %v2123, %v2122
      %v2165 = vpack.c.bf16 %v2124, %v2124
      %v2166 = vpack.c.bf16 %v2126, %v2125
      %v2167 = vpack.c.bf16 %v2127, %v2127
      %v2168 = vpack.c.bf16 %v2129, %v2128
      %v2169 = vpack.c.bf16 %v2130, %v2130
      %v2170 = vpack.c.bf16 %v2132, %v2131
      %v2171 = vpack.c.bf16 %v2133, %v2133
      %v2172 = vpack.c.bf16 %v2135, %v2134
      %v2173 = vpack.c.bf16 %v2136, %v2136
      %v2174 = vpack.c.bf16 %v2138, %v2137
      %v2175 = vpack.c.bf16 %v2139, %v2139
      %v2212 = vunpack.c.l.b16 %v2140
      %v2213 = vunpack.c.h.b16 %v2140
      %v2214 = vunpack.c.l.b16 %v2141
      %v2215 = vunpack.c.l.b16 %v2142
      %v2216 = vunpack.c.h.b16 %v2142
      %v2217 = vunpack.c.l.b16 %v2143
      %v2218 = vunpack.c.l.b16 %v2144
      %v2219 = vunpack.c.h.b16 %v2144
      %v2220 = vunpack.c.l.b16 %v2145
      %v2221 = vunpack.c.l.b16 %v2146
      %v2222 = vunpack.c.h.b16 %v2146
      %v2223 = vunpack.c.l.b16 %v2147
      %v2224 = vunpack.c.l.b16 %v2148
      %v2225 = vunpack.c.h.b16 %v2148
      %v2226 = vunpack.c.l.b16 %v2149
      %v2227 = vunpack.c.l.b16 %v2150
      %v2228 = vunpack.c.h.b16 %v2150
      %v2229 = vunpack.c.l.b16 %v2151
      %v2230 = vunpack.c.l.b16 %v2152
      %v2231 = vunpack.c.h.b16 %v2152
      %v2232 = vunpack.c.l.b16 %v2153
      %v2233 = vunpack.c.l.b16 %v2154
      %v2234 = vunpack.c.h.b16 %v2154
      %v2235 = vunpack.c.l.b16 %v2155
      %v2236 = vunpack.c.l.b16 %v2156
      %v2237 = vunpack.c.h.b16 %v2156
      %v2238 = vunpack.c.l.b16 %v2157
      %v2239 = vunpack.c.l.b16 %v2158
      %v2240 = vunpack.c.h.b16 %v2158
      %v2241 = vunpack.c.l.b16 %v2159
      %v2242 = vunpack.c.l.b16 %v2160
      %v2243 = vunpack.c.h.b16 %v2160
      %v2244 = vunpack.c.l.b16 %v2161
      %v2245 = vunpack.c.l.b16 %v2162
      %v2246 = vunpack.c.h.b16 %v2162
      %v2247 = vunpack.c.l.b16 %v2163
      %v2248 = vunpack.c.l.b16 %v2164
      %v2249 = vunpack.c.h.b16 %v2164
      %v2250 = vunpack.c.l.b16 %v2165
      %v2251 = vunpack.c.l.b16 %v2166
      %v2252 = vunpack.c.h.b16 %v2166
      %v2253 = vunpack.c.l.b16 %v2167
      %v2254 = vunpack.c.l.b16 %v2168
      %v2255 = vunpack.c.h.b16 %v2168
      %v2256 = vunpack.c.l.b16 %v2169
      %v2257 = vunpack.c.l.b16 %v2170
      %v2258 = vunpack.c.h.b16 %v2170
      %v2259 = vunpack.c.l.b16 %v2171
      %v2260 = vunpack.c.l.b16 %v2172
      %v2261 = vunpack.c.h.b16 %v2172
      %v2262 = vunpack.c.l.b16 %v2173
      %v2263 = vunpack.c.l.b16 %v2174
      %v2264 = vunpack.c.h.b16 %v2174
      %v2265 = vunpack.c.l.b16 %v2175
      %v2266 = vpack.c.b16 %v2212, %v2212
      %v2267 = vpack.c.b16 %v2213, %v2213
      %v2268 = vpack.c.b16 %v2214, %v2214
      %v2269 = vpack.c.b16 %v2215, %v2215
      %v2270 = vpack.c.b16 %v2216, %v2216
      %v2271 = vpack.c.b16 %v2217, %v2217
      %v2272 = vpack.c.b16 %v2218, %v2218
      %v2273 = vpack.c.b16 %v2219, %v2219
      %v2274 = vpack.c.b16 %v2220, %v2220
      %v2275 = vpack.c.b16 %v2221, %v2221
      %v2276 = vpack.c.b16 %v2222, %v2222
      %v2277 = vpack.c.b16 %v2223, %v2223
      %v2278 = vpack.c.b16 %v2224, %v2224
      %v2279 = vpack.c.b16 %v2225, %v2225
      %v2280 = vpack.c.b16 %v2226, %v2226
      %v2281 = vpack.c.b16 %v2227, %v2227
      %v2282 = vpack.c.b16 %v2228, %v2228
      %v2283 = vpack.c.b16 %v2229, %v2229
      %v2284 = vpack.c.b16 %v2230, %v2230
      %v2285 = vpack.c.b16 %v2231, %v2231
      %v2286 = vpack.c.b16 %v2232, %v2232
      %v2287 = vpack.c.b16 %v2233, %v2233
      %v2288 = vpack.c.b16 %v2234, %v2234
      %v2289 = vpack.c.b16 %v2235, %v2235
      %v2290 = vpack.c.b16 %v2236, %v2236
      %v2291 = vpack.c.b16 %v2237, %v2237
      %v2292 = vpack.c.b16 %v2238, %v2238
      %v2293 = vpack.c.b16 %v2239, %v2239
      %v2294 = vpack.c.b16 %v2240, %v2240
      %v2295 = vpack.c.b16 %v2241, %v2241
      %v2296 = vpack.c.b16 %v2242, %v2242
      %v2297 = vpack.c.b16 %v2243, %v2243
      %v2298 = vpack.c.b16 %v2244, %v2244
      %v2299 = vpack.c.b16 %v2245, %v2245
      %v2300 = vpack.c.b16 %v2246, %v2246
      %v2301 = vpack.c.b16 %v2247, %v2247
      %v2302 = vpack.c.b16 %v2248, %v2248
      %v2303 = vpack.c.b16 %v2249, %v2249
      %v2304 = vpack.c.b16 %v2250, %v2250
      %v2305 = vpack.c.b16 %v2251, %v2251
      %v2306 = vpack.c.b16 %v2252, %v2252
      %v2307 = vpack.c.b16 %v2253, %v2253
      %v2308 = vpack.c.b16 %v2254, %v2254
      %v2309 = vpack.c.b16 %v2255, %v2255
      %v2310 = vpack.c.b16 %v2256, %v2256
      %v2311 = vpack.c.b16 %v2257, %v2257
      %v2312 = vpack.c.b16 %v2258, %v2258
      %v2313 = vpack.c.b16 %v2259, %v2259
      %v2314 = vpack.c.b16 %v2260, %v2260
      %v2315 = vpack.c.b16 %v2261, %v2261
      %v2316 = vpack.c.b16 %v2262, %v2262
      %v2317 = vpack.c.b16 %v2263, %v2263
      %v2318 = vpack.c.b16 %v2264, %v2264
      %v2319 = vpack.c.b16 %v2265, %v2265
      %2374 = vst [vmem:[#allocation2] sm:$0xf] %v2266
      %2375 = vst [vmem:[#allocation2 + $0x4] sm:$0xf] %v2267
      %2376 = vst [vmem:[#allocation2 + $0x8] sm:$0xf] %v2268
      %2377 = vst [vmem:[#allocation2 + $0xc] sm:$0xf] %v2269
      %2378 = vst [vmem:[#allocation2 + $0x10] sm:$0xf] %v2270
      %2379 = vst [vmem:[#allocation2 + $0x14] sm:$0xf] %v2271
      %2380 = vst [vmem:[#allocation2 + $0x18] sm:$0xf] %v2272
      %2381 = vst [vmem:[#allocation2 + $0x1c] sm:$0xf] %v2273
      %2382 = vst [vmem:[#allocation2 + $0x20] sm:$0xf] %v2274
      %2383 = vst [vmem:[#allocation2 + $0x24] sm:$0xf] %v2275
      %2384 = vst [vmem:[#allocation2 + $0x28] sm:$0xf] %v2276
      %2385 = vst [vmem:[#allocation2 + $0x2c] sm:$0xf] %v2277
      %2386 = vst [vmem:[#allocation2 + $0x30] sm:$0xf] %v2278
      %2387 = vst [vmem:[#allocation2 + $0x34] sm:$0xf] %v2279
      %2388 = vst [vmem:[#allocation2 + $0x38] sm:$0xf] %v2280
      %2389 = vst [vmem:[#allocation2 + $0x3c] sm:$0xf] %v2281
      %2390 = vst [vmem:[#allocation2 + $0x40] sm:$0xf] %v2282
      %2391 = vst [vmem:[#allocation2 + $0x44] sm:$0xf] %v2283
      %2392 = vst [vmem:[#allocation2 + $0x48] sm:$0xf] %v2284
      %2393 = vst [vmem:[#allocation2 + $0x4c] sm:$0xf] %v2285
      %2394 = vst [vmem:[#allocation2 + $0x50] sm:$0xf] %v2286
      %2395 = vst [vmem:[#allocation2 + $0x54] sm:$0xf] %v2287
      %2396 = vst [vmem:[#allocation2 + $0x58] sm:$0xf] %v2288
      %2397 = vst [vmem:[#allocation2 + $0x5c] sm:$0xf] %v2289
      %2398 = vst [vmem:[#allocation2 + $0x60] sm:$0xf] %v2290
      %2399 = vst [vmem:[#allocation2 + $0x64] sm:$0xf] %v2291
      %2400 = vst [vmem:[#allocation2 + $0x68] sm:$0xf] %v2292
      %2401 = vst [vmem:[#allocation2 + $0x6c] sm:$0xf] %v2293
      %2402 = vst [vmem:[#allocation2 + $0x70] sm:$0xf] %v2294
      %2403 = vst [vmem:[#allocation2 + $0x74] sm:$0xf] %v2295
      %2404 = vst [vmem:[#allocation2 + $0x78] sm:$0xf] %v2296
      %2405 = vst [vmem:[#allocation2 + $0x7c] sm:$0xf] %v2297
      %2406 = vst [vmem:[#allocation2 + $0x80] sm:$0xf] %v2298
      %2407 = vst [vmem:[#allocation2 + $0x84] sm:$0xf] %v2299
      %2408 = vst [vmem:[#allocation2 + $0x88] sm:$0xf] %v2300
      %2409 = vst [vmem:[#allocation2 + $0x8c] sm:$0xf] %v2301
      %2410 = vst [vmem:[#allocation2 + $0x90] sm:$0xf] %v2302
      %2411 = vst [vmem:[#allocation2 + $0x94] sm:$0xf] %v2303
      %2412 = vst [vmem:[#allocation2 + $0x98] sm:$0xf] %v2304
      %2413 = vst [vmem:[#allocation2 + $0x9c] sm:$0xf] %v2305
      %2414 = vst [vmem:[#allocation2 + $0xa0] sm:$0xf] %v2306
      %2415 = vst [vmem:[#allocation2 + $0xa4] sm:$0xf] %v2307
      %2416 = vst [vmem:[#allocation2 + $0xa8] sm:$0xf] %v2308
      %2417 = vst [vmem:[#allocation2 + $0xac] sm:$0xf] %v2309
      %2418 = vst [vmem:[#allocation2 + $0xb0] sm:$0xf] %v2310
      %2419 = vst [vmem:[#allocation2 + $0xb4] sm:$0xf] %v2311
      %2420 = vst [vmem:[#allocation2 + $0xb8] sm:$0xf] %v2312
      %2421 = vst [vmem:[#allocation2 + $0xbc] sm:$0xf] %v2313
      %2422 = vst [vmem:[#allocation2 + $0xc0] sm:$0xf] %v2314
      %2423 = vst [vmem:[#allocation2 + $0xc4] sm:$0xf] %v2315
      %2424 = vst [vmem:[#allocation2 + $0xc8] sm:$0xf] %v2316
      %2425 = vst [vmem:[#allocation2 + $0xcc] sm:$0xf] %v2317
      %2426 = vst [vmem:[#allocation2 + $0xd0] sm:$0xf] %v2318
      %2427 = vst [vmem:[#allocation2 + $0xd4] sm:$0xf] %v2319
      %vm2428 = vcmask 1040384
      %vm2429 = vsmask.f32 256
      %vm2430 = vmand %vm2428, %vm2429
      %v2431 = vld [vmem:[#allocation2] sm:$0x1]
      %v2432 = vsel %vm2430, 0, %v2431
      %2433 = vst [vmem:[#allocation2] sm:$0x1] %v2432
      %v2434 = vld [vmem:[#allocation2 + $0xc] sm:$0x1]
      %v2435 = vsel %vm2430, 0, %v2434
      %2436 = vst [vmem:[#allocation2 + $0xc] sm:$0x1] %v2435
      %v2437 = vld [vmem:[#allocation2 + $0x18] sm:$0x1]
      %v2438 = vsel %vm2430, 0, %v2437
      %2439 = vst [vmem:[#allocation2 + $0x18] sm:$0x1] %v2438
      %v2440 = vld [vmem:[#allocation2 + $0x24] sm:$0x1]
      %v2441 = vsel %vm2430, 0, %v2440
      %2442 = vst [vmem:[#allocation2 + $0x24] sm:$0x1] %v2441
      %v2443 = vld [vmem:[#allocation2 + $0x30] sm:$0x1]
      %v2444 = vsel %vm2430, 0, %v2443
      %2445 = vst [vmem:[#allocation2 + $0x30] sm:$0x1] %v2444
      %v2446 = vld [vmem:[#allocation2 + $0x3c] sm:$0x1]
      %v2447 = vsel %vm2430, 0, %v2446
      %2448 = vst [vmem:[#allocation2 + $0x3c] sm:$0x1] %v2447
      %v2449 = vld [vmem:[#allocation2 + $0x48] sm:$0x1]
      %v2450 = vsel %vm2430, 0, %v2449
      %2451 = vst [vmem:[#allocation2 + $0x48] sm:$0x1] %v2450
      %v2452 = vld [vmem:[#allocation2 + $0x54] sm:$0x1]
      %v2453 = vsel %vm2430, 0, %v2452
      %2454 = vst [vmem:[#allocation2 + $0x54] sm:$0x1] %v2453
      %v2455 = vld [vmem:[#allocation2 + $0x60] sm:$0x1]
      %v2456 = vsel %vm2430, 0, %v2455
      %2457 = vst [vmem:[#allocation2 + $0x60] sm:$0x1] %v2456
      %v2458 = vld [vmem:[#allocation2 + $0x6c] sm:$0x1]
      %v2459 = vsel %vm2430, 0, %v2458
      %2460 = vst [vmem:[#allocation2 + $0x6c] sm:$0x1] %v2459
      %v2461 = vld [vmem:[#allocation2 + $0x78] sm:$0x1]
      %v2462 = vsel %vm2430, 0, %v2461
      %2463 = vst [vmem:[#allocation2 + $0x78] sm:$0x1] %v2462
      %v2464 = vld [vmem:[#allocation2 + $0x84] sm:$0x1]
      %v2465 = vsel %vm2430, 0, %v2464
      %2466 = vst [vmem:[#allocation2 + $0x84] sm:$0x1] %v2465
      %v2467 = vld [vmem:[#allocation2 + $0x90] sm:$0x1]
      %v2468 = vsel %vm2430, 0, %v2467
      %2469 = vst [vmem:[#allocation2 + $0x90] sm:$0x1] %v2468
      %v2470 = vld [vmem:[#allocation2 + $0x9c] sm:$0x1]
      %v2471 = vsel %vm2430, 0, %v2470
      %2472 = vst [vmem:[#allocation2 + $0x9c] sm:$0x1] %v2471
      %v2473 = vld [vmem:[#allocation2 + $0xa8] sm:$0x1]
      %v2474 = vsel %vm2430, 0, %v2473
      %2475 = vst [vmem:[#allocation2 + $0xa8] sm:$0x1] %v2474
      %v2476 = vld [vmem:[#allocation2 + $0xb4] sm:$0x1]
      %v2477 = vsel %vm2430, 0, %v2476
      %2478 = vst [vmem:[#allocation2 + $0xb4] sm:$0x1] %v2477
      %v2479 = vld [vmem:[#allocation2 + $0xc0] sm:$0x1]
      %v2480 = vsel %vm2430, 0, %v2479
      %2481 = vst [vmem:[#allocation2 + $0xc0] sm:$0x1] %v2480
      %v2482 = vld [vmem:[#allocation2 + $0xcc] sm:$0x1]
      %v2483 = vsel %vm2430, 0, %v2482
      %2484 = vst [vmem:[#allocation2 + $0xcc] sm:$0x1] %v2483
      %vm2485 = vcmask 1043456
      %vm2486 = vsmask.f32 7938
      %vm2487 = vmand %vm2485, %vm2486
      %v2488 = vld [vmem:[#allocation2 + $0x8] sm:$0xf]
      %v2489 = vsel %vm2487, 0, %v2488
      %2490 = vst [vmem:[#allocation2 + $0x8] sm:$0xf] %v2489
      %v2491 = vld [vmem:[#allocation2 + $0x14] sm:$0xf]
      %v2492 = vsel %vm2487, 0, %v2491
      %2493 = vst [vmem:[#allocation2 + $0x14] sm:$0xf] %v2492
      %v2494 = vld [vmem:[#allocation2 + $0x20] sm:$0xf]
      %v2495 = vsel %vm2487, 0, %v2494
      %2496 = vst [vmem:[#allocation2 + $0x20] sm:$0xf] %v2495
      %v2497 = vld [vmem:[#allocation2 + $0x2c] sm:$0xf]
      %v2498 = vsel %vm2487, 0, %v2497
      %2499 = vst [vmem:[#allocation2 + $0x2c] sm:$0xf] %v2498
      %v2500 = vld [vmem:[#allocation2 + $0x38] sm:$0xf]
      %v2501 = vsel %vm2487, 0, %v2500
      %2502 = vst [vmem:[#allocation2 + $0x38] sm:$0xf] %v2501
      %v2503 = vld [vmem:[#allocation2 + $0x44] sm:$0xf]
      %v2504 = vsel %vm2487, 0, %v2503
      %2505 = vst [vmem:[#allocation2 + $0x44] sm:$0xf] %v2504
      %v2506 = vld [vmem:[#allocation2 + $0x50] sm:$0xf]
      %v2507 = vsel %vm2487, 0, %v2506
      %2508 = vst [vmem:[#allocation2 + $0x50] sm:$0xf] %v2507
      %v2509 = vld [vmem:[#allocation2 + $0x5c] sm:$0xf]
      %v2510 = vsel %vm2487, 0, %v2509
      %2511 = vst [vmem:[#allocation2 + $0x5c] sm:$0xf] %v2510
      %v2512 = vld [vmem:[#allocation2 + $0x68] sm:$0xf]
      %v2513 = vsel %vm2487, 0, %v2512
      %2514 = vst [vmem:[#allocation2 + $0x68] sm:$0xf] %v2513
      %v2515 = vld [vmem:[#allocation2 + $0x74] sm:$0xf]
      %v2516 = vsel %vm2487, 0, %v2515
      %2517 = vst [vmem:[#allocation2 + $0x74] sm:$0xf] %v2516
      %v2518 = vld [vmem:[#allocation2 + $0x80] sm:$0xf]
      %v2519 = vsel %vm2487, 0, %v2518
      %2520 = vst [vmem:[#allocation2 + $0x80] sm:$0xf] %v2519
      %v2521 = vld [vmem:[#allocation2 + $0x8c] sm:$0xf]
      %v2522 = vsel %vm2487, 0, %v2521
      %2523 = vst [vmem:[#allocation2 + $0x8c] sm:$0xf] %v2522
      %v2524 = vld [vmem:[#allocation2 + $0x98] sm:$0xf]
      %v2525 = vsel %vm2487, 0, %v2524
      %2526 = vst [vmem:[#allocation2 + $0x98] sm:$0xf] %v2525
      %v2527 = vld [vmem:[#allocation2 + $0xa4] sm:$0xf]
      %v2528 = vsel %vm2487, 0, %v2527
      %2529 = vst [vmem:[#allocation2 + $0xa4] sm:$0xf] %v2528
      %v2530 = vld [vmem:[#allocation2 + $0xb0] sm:$0xf]
      %v2531 = vsel %vm2487, 0, %v2530
      %2532 = vst [vmem:[#allocation2 + $0xb0] sm:$0xf] %v2531
      %v2533 = vld [vmem:[#allocation2 + $0xbc] sm:$0xf]
      %v2534 = vsel %vm2487, 0, %v2533
      %2535 = vst [vmem:[#allocation2 + $0xbc] sm:$0xf] %v2534
      %v2536 = vld [vmem:[#allocation2 + $0xc8] sm:$0xf]
      %v2537 = vsel %vm2487, 0, %v2536
      %2538 = vst [vmem:[#allocation2 + $0xc8] sm:$0xf] %v2537
      %v2539 = vld [vmem:[#allocation2 + $0xd4] sm:$0xf]
      %v2540 = vsel %vm2487, 0, %v2539
      %2541 = vst [vmem:[#allocation2 + $0xd4] sm:$0xf] %v2540
      %p2542 = scmp.eq.s32.totalorder %s23, 0
      // Predicated region
      $region49: #{conv_block_forward.1} parent=47 // pred_check
        %p2543 = pneg %p2542
      $region50: #{conv_block_forward.1} parent=47 // pred_check_branch
        %2545 = sbr.rel (%p2543) target = $region52
      $region51: #{conv_block_forward.1} parent=47 // pred_region
        %2546 = vst [vmem:[#allocation2] sm:$0xf] 0
        %2547 = vst [vmem:[#allocation2 + $0x4] sm:$0xf] 0
        %2548 = vst [vmem:[#allocation2 + $0x8] sm:$0xf] 0
        %s2549 = scalar_lea.vmem [#allocation2], 204
        %2550 = vst [vmem:[%s2549] sm:$0xf] 0
        %2551 = vst [vmem:[%s2549 + $0x4] sm:$0xf] 0
        %2552 = vst [vmem:[%s2549 + $0x8] sm:$0xf] 0
      $region52: #{conv_block_forward.1} parent=47 // pred_fallthru
        _
      %v2553 = vld [vmem:[#allocation2] sm:$0xf]
      %v2554 = vld [vmem:[#allocation2 + $0x4] sm:$0xf]
      %v2555 = vld [vmem:[#allocation2 + $0xc] sm:$0xf]
      %v2556 = vld [vmem:[#allocation2 + $0x10] sm:$0xf]
      %v2557 = vld [vmem:[#allocation2 + $0x18] sm:$0xf]
      %v2558 = vld [vmem:[#allocation2 + $0x1c] sm:$0xf]
      %v2559 = vld [vmem:[#allocation2 + $0x24] sm:$0xf]
      %v2560 = vld [vmem:[#allocation2 + $0x28] sm:$0xf]
      %v2561 = vld [vmem:[#allocation2 + $0x30] sm:$0xf]
      %v2562 = vld [vmem:[#allocation2 + $0x34] sm:$0xf]
      %v2563 = vld [vmem:[#allocation2 + $0x3c] sm:$0xf]
      %v2564 = vld [vmem:[#allocation2 + $0x40] sm:$0xf]
      %v2565 = vld [vmem:[#allocation2 + $0x48] sm:$0xf]
      %v2566 = vld [vmem:[#allocation2 + $0x4c] sm:$0xf]
      %v2567 = vld [vmem:[#allocation2 + $0x54] sm:$0xf]
      %v2568 = vld [vmem:[#allocation2 + $0x58] sm:$0xf]
      %v2569 = vld [vmem:[#allocation2 + $0x60] sm:$0xf]
      %v2570 = vld [vmem:[#allocation2 + $0x64] sm:$0xf]
      %v2571 = vld [vmem:[#allocation2 + $0x6c] sm:$0xf]
      %v2572 = vld [vmem:[#allocation2 + $0x70] sm:$0xf]
      %v2573 = vld [vmem:[#allocation2 + $0x78] sm:$0xf]
      %v2574 = vld [vmem:[#allocation2 + $0x7c] sm:$0xf]
      %v2575 = vld [vmem:[#allocation2 + $0x84] sm:$0xf]
      %v2576 = vld [vmem:[#allocation2 + $0x88] sm:$0xf]
      %v2577 = vld [vmem:[#allocation2 + $0x90] sm:$0xf]
      %v2578 = vld [vmem:[#allocation2 + $0x94] sm:$0xf]
      %v2579 = vld [vmem:[#allocation2 + $0x9c] sm:$0xf]
      %v2580 = vld [vmem:[#allocation2 + $0xa0] sm:$0xf]
      %v2581 = vld [vmem:[#allocation2 + $0xa8] sm:$0xf]
      %v2582 = vld [vmem:[#allocation2 + $0xac] sm:$0xf]
      %v2583 = vld [vmem:[#allocation2 + $0xb4] sm:$0xf]
      %v2584 = vld [vmem:[#allocation2 + $0xb8] sm:$0xf]
      %v2585 = vld [vmem:[%s2] sm:$0xf]
      %v2586 = vld [vmem:[%s2 + $0x4] sm:$0xf]
      %v2587 = vld [vmem:[%s2 + $0x8] sm:$0xf]
      %v2588 = vld [vmem:[%s2 + $0xc] sm:$0xf]
      %v2589 = vld [vmem:[%s2 + $0x10] sm:$0xf]
      %v2590 = vld [vmem:[%s2 + $0x14] sm:$0xf]
      %v2591 = vld [vmem:[%s2 + $0x18] sm:$0xf]
      %v2592 = vld [vmem:[%s2 + $0x1c] sm:$0xf]
      %v2593 = vld [vmem:[%s2 + $0x20] sm:$0xf]
      %v2594 = vld [vmem:[%s2 + $0x24] sm:$0xf]
      %v2595 = vld [vmem:[%s2 + $0x28] sm:$0xf]
      %v2596 = vld [vmem:[%s2 + $0x2c] sm:$0xf]
      %v2597 = vld [vmem:[%s2 + $0x30] sm:$0xf]
      %v2598 = vld [vmem:[%s2 + $0x34] sm:$0xf]
      %v2599 = vld [vmem:[%s2 + $0x38] sm:$0xf]
      %v2600 = vld [vmem:[%s2 + $0x3c] sm:$0xf]
      %v2601 = vld [vmem:[#allocation2 + $0x8] sm:$0x1]
      %v2602 = vld [vmem:[#allocation2 + $0x14] sm:$0x1]
      %v2603 = vld [vmem:[#allocation2 + $0x20] sm:$0x1]
      %v2604 = vld [vmem:[#allocation2 + $0x2c] sm:$0x1]
      %v2605 = vld [vmem:[#allocation2 + $0x38] sm:$0x1]
      %v2606 = vld [vmem:[#allocation2 + $0x44] sm:$0x1]
      %v2607 = vld [vmem:[#allocation2 + $0x50] sm:$0x1]
      %v2608 = vld [vmem:[#allocation2 + $0x5c] sm:$0x1]
      %v2609 = vld [vmem:[#allocation2 + $0x68] sm:$0x1]
      %v2610 = vld [vmem:[#allocation2 + $0x74] sm:$0x1]
      %v2611 = vld [vmem:[#allocation2 + $0x80] sm:$0x1]
      %v2612 = vld [vmem:[#allocation2 + $0x8c] sm:$0x1]
      %v2613 = vld [vmem:[#allocation2 + $0x98] sm:$0x1]
      %v2614 = vld [vmem:[#allocation2 + $0xa4] sm:$0x1]
      %v2615 = vld [vmem:[#allocation2 + $0xb0] sm:$0x1]
      %v2616 = vld [vmem:[#allocation2 + $0xbc] sm:$0x1]
      %vm2617 = vsmask.f32 3328
      %vm2618 = vsmask.f32 7440
      %vm2619 = vmor %vm2617, %vm2618
      %v2621 = vshrl.u32 %v2553, 16
      %v2623 = vrot.slane %v2621, 4
      %v2624 = vshll.u32 %v2553, 16
      %v2626 = vrot.slane %v2624, 5
      %v2627 = vor.u32 %v2623, %v2626
      %v2628 = vrot.slane %v2627, 4
      %v2630 = vshll.u32 %v2554, 16
      %v2632 = vrot.slane %v2630, 5
      %v2633 = vsel %vm2619, %v2628, %v2632
      %v2634 = vshrl.u32 %v2554, 16
      %v2636 = vrot.slane %v2634, 4
      %v2637 = vor.u32 %v2636, %v2632
      %v2638 = vrot.slane %v2637, 4
      %v2640 = vshll.u32 %v2601, 16
      %v2642 = vrot.slane %v2640, 5
      %v2643 = vsel %vm2619, %v2638, %v2642
      %v2645 = vshrl.u32 %v2555, 16
      %v2647 = vrot.slane %v2645, 4
      %v2648 = vshll.u32 %v2555, 16
      %v2650 = vrot.slane %v2648, 5
      %v2651 = vor.u32 %v2647, %v2650
      %v2652 = vrot.slane %v2651, 4
      %v2654 = vshll.u32 %v2556, 16
      %v2656 = vrot.slane %v2654, 5
      %v2657 = vsel %vm2619, %v2652, %v2656
      %v2658 = vshrl.u32 %v2556, 16
      %v2660 = vrot.slane %v2658, 4
      %v2661 = vor.u32 %v2660, %v2656
      %v2662 = vrot.slane %v2661, 4
      %v2664 = vshll.u32 %v2602, 16
      %v2666 = vrot.slane %v2664, 5
      %v2667 = vsel %vm2619, %v2662, %v2666
      %v2669 = vshrl.u32 %v2557, 16
      %v2671 = vrot.slane %v2669, 4
      %v2672 = vshll.u32 %v2557, 16
      %v2674 = vrot.slane %v2672, 5
      %v2675 = vor.u32 %v2671, %v2674
      %v2676 = vrot.slane %v2675, 4
      %v2678 = vshll.u32 %v2558, 16
      %v2680 = vrot.slane %v2678, 5
      %v2681 = vsel %vm2619, %v2676, %v2680
      %v2682 = vshrl.u32 %v2558, 16
      %v2684 = vrot.slane %v2682, 4
      %v2685 = vor.u32 %v2684, %v2680
      %v2686 = vrot.slane %v2685, 4
      %v2688 = vshll.u32 %v2603, 16
      %v2690 = vrot.slane %v2688, 5
      %v2691 = vsel %vm2619, %v2686, %v2690
      %v2693 = vshrl.u32 %v2559, 16
      %v2695 = vrot.slane %v2693, 4
      %v2696 = vshll.u32 %v2559, 16
      %v2698 = vrot.slane %v2696, 5
      %v2699 = vor.u32 %v2695, %v2698
      %v2700 = vrot.slane %v2699, 4
      %v2702 = vshll.u32 %v2560, 16
      %v2704 = vrot.slane %v2702, 5
      %v2705 = vsel %vm2619, %v2700, %v2704
      %v2706 = vshrl.u32 %v2560, 16
      %v2708 = vrot.slane %v2706, 4
      %v2709 = vor.u32 %v2708, %v2704
      %v2710 = vrot.slane %v2709, 4
      %v2712 = vshll.u32 %v2604, 16
      %v2714 = vrot.slane %v2712, 5
      %v2715 = vsel %vm2619, %v2710, %v2714
      %v2717 = vshrl.u32 %v2561, 16
      %v2719 = vrot.slane %v2717, 4
      %v2720 = vshll.u32 %v2561, 16
      %v2722 = vrot.slane %v2720, 5
      %v2723 = vor.u32 %v2719, %v2722
      %v2724 = vrot.slane %v2723, 4
      %v2726 = vshll.u32 %v2562, 16
      %v2728 = vrot.slane %v2726, 5
      %v2729 = vsel %vm2619, %v2724, %v2728
      %v2730 = vshrl.u32 %v2562, 16
      %v2732 = vrot.slane %v2730, 4
      %v2733 = vor.u32 %v2732, %v2728
      %v2734 = vrot.slane %v2733, 4
      %v2736 = vshll.u32 %v2605, 16
      %v2738 = vrot.slane %v2736, 5
      %v2739 = vsel %vm2619, %v2734, %v2738
      %v2741 = vshrl.u32 %v2563, 16
      %v2743 = vrot.slane %v2741, 4
      %v2744 = vshll.u32 %v2563, 16
      %v2746 = vrot.slane %v2744, 5
      %v2747 = vor.u32 %v2743, %v2746
      %v2748 = vrot.slane %v2747, 4
      %v2750 = vshll.u32 %v2564, 16
      %v2752 = vrot.slane %v2750, 5
      %v2753 = vsel %vm2619, %v2748, %v2752
      %v2754 = vshrl.u32 %v2564, 16
      %v2756 = vrot.slane %v2754, 4
      %v2757 = vor.u32 %v2756, %v2752
      %v2758 = vrot.slane %v2757, 4
      %v2760 = vshll.u32 %v2606, 16
      %v2762 = vrot.slane %v2760, 5
      %v2763 = vsel %vm2619, %v2758, %v2762
      %v2765 = vshrl.u32 %v2565, 16
      %v2767 = vrot.slane %v2765, 4
      %v2768 = vshll.u32 %v2565, 16
      %v2770 = vrot.slane %v2768, 5
      %v2771 = vor.u32 %v2767, %v2770
      %v2772 = vrot.slane %v2771, 4
      %v2774 = vshll.u32 %v2566, 16
      %v2776 = vrot.slane %v2774, 5
      %v2777 = vsel %vm2619, %v2772, %v2776
      %v2778 = vshrl.u32 %v2566, 16
      %v2780 = vrot.slane %v2778, 4
      %v2781 = vor.u32 %v2780, %v2776
      %v2782 = vrot.slane %v2781, 4
      %v2784 = vshll.u32 %v2607, 16
      %v2786 = vrot.slane %v2784, 5
      %v2787 = vsel %vm2619, %v2782, %v2786
      %v2789 = vshrl.u32 %v2567, 16
      %v2791 = vrot.slane %v2789, 4
      %v2792 = vshll.u32 %v2567, 16
      %v2794 = vrot.slane %v2792, 5
      %v2795 = vor.u32 %v2791, %v2794
      %v2796 = vrot.slane %v2795, 4
      %v2798 = vshll.u32 %v2568, 16
      %v2800 = vrot.slane %v2798, 5
      %v2801 = vsel %vm2619, %v2796, %v2800
      %v2802 = vshrl.u32 %v2568, 16
      %v2804 = vrot.slane %v2802, 4
      %v2805 = vor.u32 %v2804, %v2800
      %v2806 = vrot.slane %v2805, 4
      %v2808 = vshll.u32 %v2608, 16
      %v2810 = vrot.slane %v2808, 5
      %v2811 = vsel %vm2619, %v2806, %v2810
      %v2813 = vshrl.u32 %v2569, 16
      %v2815 = vrot.slane %v2813, 4
      %v2816 = vshll.u32 %v2569, 16
      %v2818 = vrot.slane %v2816, 5
      %v2819 = vor.u32 %v2815, %v2818
      %v2820 = vrot.slane %v2819, 4
      %v2822 = vshll.u32 %v2570, 16
      %v2824 = vrot.slane %v2822, 5
      %v2825 = vsel %vm2619, %v2820, %v2824
      %v2826 = vshrl.u32 %v2570, 16
      %v2828 = vrot.slane %v2826, 4
      %v2829 = vor.u32 %v2828, %v2824
      %v2830 = vrot.slane %v2829, 4
      %v2832 = vshll.u32 %v2609, 16
      %v2834 = vrot.slane %v2832, 5
      %v2835 = vsel %vm2619, %v2830, %v2834
      %v2837 = vshrl.u32 %v2571, 16
      %v2839 = vrot.slane %v2837, 4
      %v2840 = vshll.u32 %v2571, 16
      %v2842 = vrot.slane %v2840, 5
      %v2843 = vor.u32 %v2839, %v2842
      %v2844 = vrot.slane %v2843, 4
      %v2846 = vshll.u32 %v2572, 16
      %v2848 = vrot.slane %v2846, 5
      %v2849 = vsel %vm2619, %v2844, %v2848
      %v2850 = vshrl.u32 %v2572, 16
      %v2852 = vrot.slane %v2850, 4
      %v2853 = vor.u32 %v2852, %v2848
      %v2854 = vrot.slane %v2853, 4
      %v2856 = vshll.u32 %v2610, 16
      %v2858 = vrot.slane %v2856, 5
      %v2859 = vsel %vm2619, %v2854, %v2858
      %v2861 = vshrl.u32 %v2573, 16
      %v2863 = vrot.slane %v2861, 4
      %v2864 = vshll.u32 %v2573, 16
      %v2866 = vrot.slane %v2864, 5
      %v2867 = vor.u32 %v2863, %v2866
      %v2868 = vrot.slane %v2867, 4
      %v2870 = vshll.u32 %v2574, 16
      %v2872 = vrot.slane %v2870, 5
      %v2873 = vsel %vm2619, %v2868, %v2872
      %v2874 = vshrl.u32 %v2574, 16
      %v2876 = vrot.slane %v2874, 4
      %v2877 = vor.u32 %v2876, %v2872
      %v2878 = vrot.slane %v2877, 4
      %v2880 = vshll.u32 %v2611, 16
      %v2882 = vrot.slane %v2880, 5
      %v2883 = vsel %vm2619, %v2878, %v2882
      %v2885 = vshrl.u32 %v2575, 16
      %v2887 = vrot.slane %v2885, 4
      %v2888 = vshll.u32 %v2575, 16
      %v2890 = vrot.slane %v2888, 5
      %v2891 = vor.u32 %v2887, %v2890
      %v2892 = vrot.slane %v2891, 4
      %v2894 = vshll.u32 %v2576, 16
      %v2896 = vrot.slane %v2894, 5
      %v2897 = vsel %vm2619, %v2892, %v2896
      %v2898 = vshrl.u32 %v2576, 16
      %v2900 = vrot.slane %v2898, 4
      %v2901 = vor.u32 %v2900, %v2896
      %v2902 = vrot.slane %v2901, 4
      %v2904 = vshll.u32 %v2612, 16
      %v2906 = vrot.slane %v2904, 5
      %v2907 = vsel %vm2619, %v2902, %v2906
      %v2909 = vshrl.u32 %v2577, 16
      %v2911 = vrot.slane %v2909, 4
      %v2912 = vshll.u32 %v2577, 16
      %v2914 = vrot.slane %v2912, 5
      %v2915 = vor.u32 %v2911, %v2914
      %v2916 = vrot.slane %v2915, 4
      %v2918 = vshll.u32 %v2578, 16
      %v2920 = vrot.slane %v2918, 5
      %v2921 = vsel %vm2619, %v2916, %v2920
      %v2922 = vshrl.u32 %v2578, 16
      %v2924 = vrot.slane %v2922, 4
      %v2925 = vor.u32 %v2924, %v2920
      %v2926 = vrot.slane %v2925, 4
      %v2928 = vshll.u32 %v2613, 16
      %v2930 = vrot.slane %v2928, 5
      %v2931 = vsel %vm2619, %v2926, %v2930
      %v2933 = vshrl.u32 %v2579, 16
      %v2935 = vrot.slane %v2933, 4
      %v2936 = vshll.u32 %v2579, 16
      %v2938 = vrot.slane %v2936, 5
      %v2939 = vor.u32 %v2935, %v2938
      %v2940 = vrot.slane %v2939, 4
      %v2942 = vshll.u32 %v2580, 16
      %v2944 = vrot.slane %v2942, 5
      %v2945 = vsel %vm2619, %v2940, %v2944
      %v2946 = vshrl.u32 %v2580, 16
      %v2948 = vrot.slane %v2946, 4
      %v2949 = vor.u32 %v2948, %v2944
      %v2950 = vrot.slane %v2949, 4
      %v2952 = vshll.u32 %v2614, 16
      %v2954 = vrot.slane %v2952, 5
      %v2955 = vsel %vm2619, %v2950, %v2954
      %v2957 = vshrl.u32 %v2581, 16
      %v2959 = vrot.slane %v2957, 4
      %v2960 = vshll.u32 %v2581, 16
      %v2962 = vrot.slane %v2960, 5
      %v2963 = vor.u32 %v2959, %v2962
      %v2964 = vrot.slane %v2963, 4
      %v2966 = vshll.u32 %v2582, 16
      %v2968 = vrot.slane %v2966, 5
      %v2969 = vsel %vm2619, %v2964, %v2968
      %v2970 = vshrl.u32 %v2582, 16
      %v2972 = vrot.slane %v2970, 4
      %v2973 = vor.u32 %v2972, %v2968
      %v2974 = vrot.slane %v2973, 4
      %v2976 = vshll.u32 %v2615, 16
      %v2978 = vrot.slane %v2976, 5
      %v2979 = vsel %vm2619, %v2974, %v2978
      %v2981 = vshrl.u32 %v2583, 16
      %v2983 = vrot.slane %v2981, 4
      %v2984 = vshll.u32 %v2583, 16
      %v2986 = vrot.slane %v2984, 5
      %v2987 = vor.u32 %v2983, %v2986
      %v2988 = vrot.slane %v2987, 4
      %v2990 = vshll.u32 %v2584, 16
      %v2992 = vrot.slane %v2990, 5
      %v2993 = vsel %vm2619, %v2988, %v2992
      %v2994 = vshrl.u32 %v2584, 16
      %v2996 = vrot.slane %v2994, 4
      %v2997 = vor.u32 %v2996, %v2992
      %v2998 = vrot.slane %v2997, 4
      %v3000 = vshll.u32 %v2616, 16
      %v3002 = vrot.slane %v3000, 5
      %v3003 = vsel %vm2619, %v2998, %v3002
      %s3004 = scalar_lea.vmem %s2, 64
      %v3005 = vld [vmem:[%s3004] sm:$0xf]
      %v3006 = vld [vmem:[%s3004 + $0x4] sm:$0xf]
      %v3007 = vld [vmem:[%s3004 + $0x8] sm:$0xf]
      %v3008 = vld [vmem:[%s3004 + $0xc] sm:$0xf]
      %v3009 = vld [vmem:[%s3004 + $0x10] sm:$0xf]
      %v3010 = vld [vmem:[%s3004 + $0x14] sm:$0xf]
      %v3011 = vld [vmem:[%s3004 + $0x18] sm:$0xf]
      %v3012 = vld [vmem:[%s3004 + $0x1c] sm:$0xf]
      %v3013 = vld [vmem:[%s3004 + $0x20] sm:$0xf]
      %v3014 = vld [vmem:[%s3004 + $0x24] sm:$0xf]
      %v3015 = vld [vmem:[%s3004 + $0x28] sm:$0xf]
      %v3016 = vld [vmem:[%s3004 + $0x2c] sm:$0xf]
      %v3017 = vld [vmem:[%s3004 + $0x30] sm:$0xf]
      %v3018 = vld [vmem:[%s3004 + $0x34] sm:$0xf]
      %v3019 = vld [vmem:[%s3004 + $0x38] sm:$0xf]
      %v3020 = vld [vmem:[%s3004 + $0x3c] sm:$0xf]
      %v3021 = vunpack.c.l.b16 %v2633
      %v3022 = vunpack.c.l.b16 %v2643
      %v3023 = vunpack.c.l.b16 %v2657
      %v3024 = vunpack.c.l.b16 %v2667
      %v3025 = vunpack.c.l.b16 %v2681
      %v3026 = vunpack.c.l.b16 %v2691
      %v3027 = vunpack.c.l.b16 %v2705
      %v3028 = vunpack.c.l.b16 %v2715
      %v3029 = vunpack.c.l.b16 %v2729
      %v3030 = vunpack.c.l.b16 %v2739
      %v3031 = vunpack.c.l.b16 %v2753
      %v3032 = vunpack.c.l.b16 %v2763
      %v3033 = vunpack.c.l.b16 %v2777
      %v3034 = vunpack.c.l.b16 %v2787
      %v3035 = vunpack.c.l.b16 %v2801
      %v3036 = vunpack.c.l.b16 %v2811
      %v3037 = vunpack.c.l.b16 %v2825
      %v3038 = vunpack.c.l.b16 %v2835
      %v3039 = vunpack.c.l.b16 %v2849
      %v3040 = vunpack.c.l.b16 %v2859
      %v3041 = vunpack.c.l.b16 %v2873
      %v3042 = vunpack.c.l.b16 %v2883
      %v3043 = vunpack.c.l.b16 %v2897
      %v3044 = vunpack.c.l.b16 %v2907
      %v3045 = vunpack.c.l.b16 %v2921
      %v3046 = vunpack.c.l.b16 %v2931
      %v3047 = vunpack.c.l.b16 %v2945
      %v3048 = vunpack.c.l.b16 %v2955
      %v3049 = vunpack.c.l.b16 %v2969
      %v3050 = vunpack.c.l.b16 %v2979
      %v3051 = vunpack.c.l.b16 %v2993
      %v3052 = vunpack.c.l.b16 %v3003
      %v3053 = vpack.c.b16 %v3022, %v3021
      %v3054 = vpack.c.b16 %v3024, %v3023
      %v3055 = vpack.c.b16 %v3026, %v3025
      %v3056 = vpack.c.b16 %v3028, %v3027
      %v3057 = vpack.c.b16 %v3030, %v3029
      %v3058 = vpack.c.b16 %v3032, %v3031
      %v3059 = vpack.c.b16 %v3034, %v3033
      %v3060 = vpack.c.b16 %v3036, %v3035
      %v3061 = vpack.c.b16 %v3038, %v3037
      %v3062 = vpack.c.b16 %v3040, %v3039
      %v3063 = vpack.c.b16 %v3042, %v3041
      %v3064 = vpack.c.b16 %v3044, %v3043
      %v3065 = vpack.c.b16 %v3046, %v3045
      %v3066 = vpack.c.b16 %v3048, %v3047
      %v3067 = vpack.c.b16 %v3050, %v3049
      %v3068 = vpack.c.b16 %v3052, %v3051
      %v3101 = vunpack.c.l.b16 %v3005
      %v3102 = vunpack.c.l.b16 %v3006
      %v3103 = vunpack.c.l.b16 %v3007
      %v3104 = vunpack.c.l.b16 %v3008
      %v3105 = vunpack.c.l.b16 %v3009
      %v3106 = vunpack.c.l.b16 %v3010
      %v3107 = vunpack.c.l.b16 %v3011
      %v3108 = vunpack.c.l.b16 %v3012
      %v3109 = vunpack.c.l.b16 %v3013
      %v3110 = vunpack.c.l.b16 %v3014
      %v3111 = vunpack.c.l.b16 %v3015
      %v3112 = vunpack.c.l.b16 %v3016
      %v3113 = vunpack.c.l.b16 %v3017
      %v3114 = vunpack.c.l.b16 %v3018
      %v3115 = vunpack.c.l.b16 %v3019
      %v3116 = vunpack.c.l.b16 %v3020
      %v3117 = vpack.c.b16 %v3102, %v3101
      %v3118 = vpack.c.b16 %v3104, %v3103
      %v3119 = vpack.c.b16 %v3106, %v3105
      %v3120 = vpack.c.b16 %v3108, %v3107
      %v3121 = vpack.c.b16 %v3110, %v3109
      %v3122 = vpack.c.b16 %v3112, %v3111
      %v3123 = vpack.c.b16 %v3114, %v3113
      %v3124 = vpack.c.b16 %v3116, %v3115
      %3133 = vmatprep.subr.bf16.mxu0 0
      %3134 = vmatpush1.bf16.msra.mxu0 %v3124
      %3135 = vmatprep.subr.bf16.mxu0 0
      %3136 = vmatpush1.bf16.msra.mxu0 %v3123
      %3137 = vmatprep.subr.bf16.mxu0 0
      %3138 = vmatpush1.bf16.msra.mxu0 %v3122
      %3139 = vmatprep.subr.bf16.mxu0 0
      %3140 = vmatpush1.bf16.msra.mxu0 %v3121
      %3141 = vmatprep.subr.bf16.mxu0 0
      %3142 = vmatpush1.bf16.msra.mxu0 %v3120
      %3143 = vmatprep.subr.bf16.mxu0 0
      %3144 = vmatpush1.bf16.msra.mxu0 %v3119
      %3145 = vmatprep.subr.bf16.mxu0 0
      %3146 = vmatpush1.bf16.msra.mxu0 %v3118
      %3147 = vmatprep.subr.bf16.mxu0 0
      %3148 = vmatpush1.bf16.msra.mxu0 %v3117
      %3149 = vmatprep.subr.bf16.mxu0 0
      %3150 = vmatpush2.bf16.msra.mxu0 0
      %3151 = vmatprep.subr.bf16.mxu0 0
      %3152 = vmatpush2.bf16.msra.mxu0 0
      %3153 = vmatprep.subr.bf16.mxu0 0
      %3154 = vmatpush2.bf16.msra.mxu0 0
      %3155 = vmatprep.subr.bf16.mxu0 0
      %3156 = vmatpush2.bf16.msra.mxu0 0
      %3157 = vmatprep.subr.bf16.mxu0 0
      %3158 = vmatpush2.bf16.msra.mxu0 0
      %3159 = vmatprep.subr.bf16.mxu0 0
      %3160 = vmatpush2.bf16.msra.mxu0 0
      %3161 = vmatprep.subr.bf16.mxu0 0
      %3162 = vmatpush2.bf16.msra.mxu0 0
      %3163 = vmatprep.subr.bf16.mxu0 0
      %3164 = vmatpush2.bf16.msra.mxu0 0
      %3165 = vmatprep.mubr.bf16.mxu0 0
      %3166 = vmatmul.mubr.bf16.gmra.mxu0 %v3053
      %v3167 = vpop.f32.mrf.mxu0
      %v3168 = vadd.f32 0.0, %v3167
      %v3169 = vpop.f32.mrf.mxu0
      %v3170 = vpop.f32.mrf.mxu0
      %v3171 = vadd.f32 0.0, %v3170
      %v3172 = vpop.f32.mrf.mxu0
      %3173 = vmatprep.mubr.bf16.mxu0 0
      %3174 = vmatmul.mubr.bf16.gmra.mxu0 %v3054
      %v3175 = vpop.f32.mrf.mxu0
      %v3176 = vadd.f32 0.0, %v3175
      %v3177 = vpop.f32.mrf.mxu0
      %v3178 = vpop.f32.mrf.mxu0
      %v3179 = vadd.f32 0.0, %v3178
      %v3180 = vpop.f32.mrf.mxu0
      %3181 = vmatprep.mubr.bf16.mxu0 0
      %3182 = vmatmul.mubr.bf16.gmra.mxu0 %v3055
      %v3183 = vpop.f32.mrf.mxu0
      %v3184 = vadd.f32 0.0, %v3183
      %v3185 = vpop.f32.mrf.mxu0
      %v3186 = vpop.f32.mrf.mxu0
      %v3187 = vadd.f32 0.0, %v3186
      %v3188 = vpop.f32.mrf.mxu0
      %3189 = vmatprep.mubr.bf16.mxu0 0
      %3190 = vmatmul.mubr.bf16.gmra.mxu0 %v3056
      %v3191 = vpop.f32.mrf.mxu0
      %v3192 = vadd.f32 0.0, %v3191
      %v3193 = vpop.f32.mrf.mxu0
      %v3194 = vpop.f32.mrf.mxu0
      %v3195 = vadd.f32 0.0, %v3194
      %v3196 = vpop.f32.mrf.mxu0
      %3197 = vmatprep.mubr.bf16.mxu0 0
      %3198 = vmatmul.mubr.bf16.gmra.mxu0 %v3057
      %v3199 = vpop.f32.mrf.mxu0
      %v3200 = vadd.f32 0.0, %v3199
      %v3201 = vpop.f32.mrf.mxu0
      %v3202 = vpop.f32.mrf.mxu0
      %v3203 = vadd.f32 0.0, %v3202
      %v3204 = vpop.f32.mrf.mxu0
      %3205 = vmatprep.mubr.bf16.mxu0 0
      %3206 = vmatmul.mubr.bf16.gmra.mxu0 %v3058
      %v3207 = vpop.f32.mrf.mxu0
      %v3208 = vadd.f32 0.0, %v3207
      %v3209 = vpop.f32.mrf.mxu0
      %v3210 = vpop.f32.mrf.mxu0
      %v3211 = vadd.f32 0.0, %v3210
      %v3212 = vpop.f32.mrf.mxu0
      %3213 = vmatprep.mubr.bf16.mxu0 0
      %3214 = vmatmul.mubr.bf16.gmra.mxu0 %v3059
      %v3215 = vpop.f32.mrf.mxu0
      %v3216 = vadd.f32 0.0, %v3215
      %v3217 = vpop.f32.mrf.mxu0
      %v3218 = vpop.f32.mrf.mxu0
      %v3219 = vadd.f32 0.0, %v3218
      %v3220 = vpop.f32.mrf.mxu0
      %3221 = vmatprep.mubr.bf16.mxu0 0
      %3222 = vmatmul.mubr.bf16.gmra.mxu0 %v3060
      %v3223 = vpop.f32.mrf.mxu0
      %v3224 = vadd.f32 0.0, %v3223
      %v3225 = vpop.f32.mrf.mxu0
      %v3226 = vpop.f32.mrf.mxu0
      %v3227 = vadd.f32 0.0, %v3226
      %v3228 = vpop.f32.mrf.mxu0
      %3229 = vmatprep.mubr.bf16.mxu0 0
      %3230 = vmatmul.mubr.bf16.gmra.mxu0 %v3061
      %v3231 = vpop.f32.mrf.mxu0
      %v3232 = vadd.f32 0.0, %v3231
      %v3233 = vpop.f32.mrf.mxu0
      %v3234 = vpop.f32.mrf.mxu0
      %v3235 = vadd.f32 0.0, %v3234
      %v3236 = vpop.f32.mrf.mxu0
      %3237 = vmatprep.mubr.bf16.mxu0 0
      %3238 = vmatmul.mubr.bf16.gmra.mxu0 %v3062
      %v3239 = vpop.f32.mrf.mxu0
      %v3240 = vadd.f32 0.0, %v3239
      %v3241 = vpop.f32.mrf.mxu0
      %v3242 = vpop.f32.mrf.mxu0
      %v3243 = vadd.f32 0.0, %v3242
      %v3244 = vpop.f32.mrf.mxu0
      %3245 = vmatprep.mubr.bf16.mxu0 0
      %3246 = vmatmul.mubr.bf16.gmra.mxu0 %v3063
      %v3247 = vpop.f32.mrf.mxu0
      %v3248 = vadd.f32 0.0, %v3247
      %v3249 = vpop.f32.mrf.mxu0
      %v3250 = vpop.f32.mrf.mxu0
      %v3251 = vadd.f32 0.0, %v3250
      %v3252 = vpop.f32.mrf.mxu0
      %3253 = vmatprep.mubr.bf16.mxu0 0
      %3254 = vmatmul.mubr.bf16.gmra.mxu0 %v3064
      %v3255 = vpop.f32.mrf.mxu0
      %v3256 = vadd.f32 0.0, %v3255
      %v3257 = vpop.f32.mrf.mxu0
      %v3258 = vpop.f32.mrf.mxu0
      %v3259 = vadd.f32 0.0, %v3258
      %v3260 = vpop.f32.mrf.mxu0
      %3261 = vmatprep.mubr.bf16.mxu0 0
      %3262 = vmatmul.mubr.bf16.gmra.mxu0 %v3065
      %v3263 = vpop.f32.mrf.mxu0
      %v3264 = vadd.f32 0.0, %v3263
      %v3265 = vpop.f32.mrf.mxu0
      %v3266 = vpop.f32.mrf.mxu0
      %v3267 = vadd.f32 0.0, %v3266
      %v3268 = vpop.f32.mrf.mxu0
      %3269 = vmatprep.mubr.bf16.mxu0 0
      %3270 = vmatmul.mubr.bf16.gmra.mxu0 %v3066
      %v3271 = vpop.f32.mrf.mxu0
      %v3272 = vadd.f32 0.0, %v3271
      %v3273 = vpop.f32.mrf.mxu0
      %v3274 = vpop.f32.mrf.mxu0
      %v3275 = vadd.f32 0.0, %v3274
      %v3276 = vpop.f32.mrf.mxu0
      %3277 = vmatprep.mubr.bf16.mxu0 0
      %3278 = vmatmul.mubr.bf16.gmra.mxu0 %v3067
      %v3279 = vpop.f32.mrf.mxu0
      %v3280 = vadd.f32 0.0, %v3279
      %v3281 = vpop.f32.mrf.mxu0
      %v3282 = vpop.f32.mrf.mxu0
      %v3283 = vadd.f32 0.0, %v3282
      %v3284 = vpop.f32.mrf.mxu0
      %3285 = vmatprep.mubr.bf16.mxu0 0
      %3286 = vmatmul.mubr.bf16.gmra.mxu0 %v3068
      %v3287 = vpop.f32.mrf.mxu0
      %v3288 = vadd.f32 0.0, %v3287
      %v3289 = vpop.f32.mrf.mxu0
      %v3290 = vpop.f32.mrf.mxu0
      %v3291 = vadd.f32 0.0, %v3290
      %v3292 = vpop.f32.mrf.mxu0
      %3293 = vdwg.mxu0
      %v3326 = vunpack.c.l.b16 %v2553
      %v3327 = vunpack.c.l.b16 %v2554
      %v3328 = vunpack.c.l.b16 %v2555
      %v3329 = vunpack.c.l.b16 %v2556
      %v3330 = vunpack.c.l.b16 %v2557
      %v3331 = vunpack.c.l.b16 %v2558
      %v3332 = vunpack.c.l.b16 %v2559
      %v3333 = vunpack.c.l.b16 %v2560
      %v3334 = vunpack.c.l.b16 %v2561
      %v3335 = vunpack.c.l.b16 %v2562
      %v3336 = vunpack.c.l.b16 %v2563
      %v3337 = vunpack.c.l.b16 %v2564
      %v3338 = vunpack.c.l.b16 %v2565
      %v3339 = vunpack.c.l.b16 %v2566
      %v3340 = vunpack.c.l.b16 %v2567
      %v3341 = vunpack.c.l.b16 %v2568
      %v3342 = vunpack.c.l.b16 %v2569
      %v3343 = vunpack.c.l.b16 %v2570
      %v3344 = vunpack.c.l.b16 %v2571
      %v3345 = vunpack.c.l.b16 %v2572
      %v3346 = vunpack.c.l.b16 %v2573
      %v3347 = vunpack.c.l.b16 %v2574
      %v3348 = vunpack.c.l.b16 %v2575
      %v3349 = vunpack.c.l.b16 %v2576
      %v3350 = vunpack.c.l.b16 %v2577
      %v3351 = vunpack.c.l.b16 %v2578
      %v3352 = vunpack.c.l.b16 %v2579
      %v3353 = vunpack.c.l.b16 %v2580
      %v3354 = vunpack.c.l.b16 %v2581
      %v3355 = vunpack.c.l.b16 %v2582
      %v3356 = vunpack.c.l.b16 %v2583
      %v3357 = vunpack.c.l.b16 %v2584
      %v3358 = vpack.c.b16 %v3327, %v3326
      %v3359 = vpack.c.b16 %v3329, %v3328
      %v3360 = vpack.c.b16 %v3331, %v3330
      %v3361 = vpack.c.b16 %v3333, %v3332
      %v3362 = vpack.c.b16 %v3335, %v3334
      %v3363 = vpack.c.b16 %v3337, %v3336
      %v3364 = vpack.c.b16 %v3339, %v3338
      %v3365 = vpack.c.b16 %v3341, %v3340
      %v3366 = vpack.c.b16 %v3343, %v3342
      %v3367 = vpack.c.b16 %v3345, %v3344
      %v3368 = vpack.c.b16 %v3347, %v3346
      %v3369 = vpack.c.b16 %v3349, %v3348
      %v3370 = vpack.c.b16 %v3351, %v3350
      %v3371 = vpack.c.b16 %v3353, %v3352
      %v3372 = vpack.c.b16 %v3355, %v3354
      %v3373 = vpack.c.b16 %v3357, %v3356
      %v3406 = vunpack.c.l.b16 %v2585
      %v3407 = vunpack.c.l.b16 %v2586
      %v3408 = vunpack.c.l.b16 %v2587
      %v3409 = vunpack.c.l.b16 %v2588
      %v3410 = vunpack.c.l.b16 %v2589
      %v3411 = vunpack.c.l.b16 %v2590
      %v3412 = vunpack.c.l.b16 %v2591
      %v3413 = vunpack.c.l.b16 %v2592
      %v3414 = vunpack.c.l.b16 %v2593
      %v3415 = vunpack.c.l.b16 %v2594
      %v3416 = vunpack.c.l.b16 %v2595
      %v3417 = vunpack.c.l.b16 %v2596
      %v3418 = vunpack.c.l.b16 %v2597
      %v3419 = vunpack.c.l.b16 %v2598
      %v3420 = vunpack.c.l.b16 %v2599
      %v3421 = vunpack.c.l.b16 %v2600
      %v3422 = vpack.c.b16 %v3407, %v3406
      %v3423 = vpack.c.b16 %v3409, %v3408
      %v3424 = vpack.c.b16 %v3411, %v3410
      %v3425 = vpack.c.b16 %v3413, %v3412
      %v3426 = vpack.c.b16 %v3415, %v3414
      %v3427 = vpack.c.b16 %v3417, %v3416
      %v3428 = vpack.c.b16 %v3419, %v3418
      %v3429 = vpack.c.b16 %v3421, %v3420
      %3438 = vmatprep.subr.bf16.mxu0 0
      %3439 = vmatpush1.bf16.msra.mxu0 %v3429
      %3440 = vmatprep.subr.bf16.mxu0 0
      %3441 = vmatpush1.bf16.msra.mxu0 %v3428
      %3442 = vmatprep.subr.bf16.mxu0 0
      %3443 = vmatpush1.bf16.msra.mxu0 %v3427
      %3444 = vmatprep.subr.bf16.mxu0 0
      %3445 = vmatpush1.bf16.msra.mxu0 %v3426
      %3446 = vmatprep.subr.bf16.mxu0 0
      %3447 = vmatpush1.bf16.msra.mxu0 %v3425
      %3448 = vmatprep.subr.bf16.mxu0 0
      %3449 = vmatpush1.bf16.msra.mxu0 %v3424
      %3450 = vmatprep.subr.bf16.mxu0 0
      %3451 = vmatpush1.bf16.msra.mxu0 %v3423
      %3452 = vmatprep.subr.bf16.mxu0 0
      %3453 = vmatpush1.bf16.msra.mxu0 %v3422
      %3454 = vmatprep.subr.bf16.mxu0 0
      %3455 = vmatpush2.bf16.msra.mxu0 0
      %3456 = vmatprep.subr.bf16.mxu0 0
      %3457 = vmatpush2.bf16.msra.mxu0 0
      %3458 = vmatprep.subr.bf16.mxu0 0
      %3459 = vmatpush2.bf16.msra.mxu0 0
      %3460 = vmatprep.subr.bf16.mxu0 0
      %3461 = vmatpush2.bf16.msra.mxu0 0
      %3462 = vmatprep.subr.bf16.mxu0 0
      %3463 = vmatpush2.bf16.msra.mxu0 0
      %3464 = vmatprep.subr.bf16.mxu0 0
      %3465 = vmatpush2.bf16.msra.mxu0 0
      %3466 = vmatprep.subr.bf16.mxu0 0
      %3467 = vmatpush2.bf16.msra.mxu0 0
      %3468 = vmatprep.subr.bf16.mxu0 0
      %3469 = vmatpush2.bf16.msra.mxu0 0
      %3470 = vmatprep.mubr.bf16.mxu0 0
      %3471 = vmatmul.mubr.bf16.gmra.mxu0 %v3358
      %v3472 = vpop.f32.mrf.mxu0
      %v3473 = vadd.f32 %v3168, %v3472
      %v3474 = vpop.f32.mrf.mxu0
      %v3475 = vpop.f32.mrf.mxu0
      %v3476 = vadd.f32 %v3171, %v3475
      %v3477 = vpop.f32.mrf.mxu0
      %3478 = vmatprep.mubr.bf16.mxu0 0
      %3479 = vmatmul.mubr.bf16.gmra.mxu0 %v3359
      %v3480 = vpop.f32.mrf.mxu0
      %v3481 = vadd.f32 %v3176, %v3480
      %v3482 = vpop.f32.mrf.mxu0
      %v3483 = vpop.f32.mrf.mxu0
      %v3484 = vadd.f32 %v3179, %v3483
      %v3485 = vpop.f32.mrf.mxu0
      %3486 = vmatprep.mubr.bf16.mxu0 0
      %3487 = vmatmul.mubr.bf16.gmra.mxu0 %v3360
      %v3488 = vpop.f32.mrf.mxu0
      %v3489 = vadd.f32 %v3184, %v3488
      %v3490 = vpop.f32.mrf.mxu0
      %v3491 = vpop.f32.mrf.mxu0
      %v3492 = vadd.f32 %v3187, %v3491
      %v3493 = vpop.f32.mrf.mxu0
      %3494 = vmatprep.mubr.bf16.mxu0 0
      %3495 = vmatmul.mubr.bf16.gmra.mxu0 %v3361
      %v3496 = vpop.f32.mrf.mxu0
      %v3497 = vadd.f32 %v3192, %v3496
      %v3498 = vpop.f32.mrf.mxu0
      %v3499 = vpop.f32.mrf.mxu0
      %v3500 = vadd.f32 %v3195, %v3499
      %v3501 = vpop.f32.mrf.mxu0
      %3502 = vmatprep.mubr.bf16.mxu0 0
      %3503 = vmatmul.mubr.bf16.gmra.mxu0 %v3362
      %v3504 = vpop.f32.mrf.mxu0
      %v3505 = vadd.f32 %v3200, %v3504
      %v3506 = vpop.f32.mrf.mxu0
      %v3507 = vpop.f32.mrf.mxu0
      %v3508 = vadd.f32 %v3203, %v3507
      %v3509 = vpop.f32.mrf.mxu0
      %3510 = vmatprep.mubr.bf16.mxu0 0
      %3511 = vmatmul.mubr.bf16.gmra.mxu0 %v3363
      %v3512 = vpop.f32.mrf.mxu0
      %v3513 = vadd.f32 %v3208, %v3512
      %v3514 = vpop.f32.mrf.mxu0
      %v3515 = vpop.f32.mrf.mxu0
      %v3516 = vadd.f32 %v3211, %v3515
      %v3517 = vpop.f32.mrf.mxu0
      %3518 = vmatprep.mubr.bf16.mxu0 0
      %3519 = vmatmul.mubr.bf16.gmra.mxu0 %v3364
      %v3520 = vpop.f32.mrf.mxu0
      %v3521 = vadd.f32 %v3216, %v3520
      %v3522 = vpop.f32.mrf.mxu0
      %v3523 = vpop.f32.mrf.mxu0
      %v3524 = vadd.f32 %v3219, %v3523
      %v3525 = vpop.f32.mrf.mxu0
      %3526 = vmatprep.mubr.bf16.mxu0 0
      %3527 = vmatmul.mubr.bf16.gmra.mxu0 %v3365
      %v3528 = vpop.f32.mrf.mxu0
      %v3529 = vadd.f32 %v3224, %v3528
      %v3530 = vpop.f32.mrf.mxu0
      %v3531 = vpop.f32.mrf.mxu0
      %v3532 = vadd.f32 %v3227, %v3531
      %v3533 = vpop.f32.mrf.mxu0
      %3534 = vmatprep.mubr.bf16.mxu0 0
      %3535 = vmatmul.mubr.bf16.gmra.mxu0 %v3366
      %v3536 = vpop.f32.mrf.mxu0
      %v3537 = vadd.f32 %v3232, %v3536
      %v3538 = vpop.f32.mrf.mxu0
      %v3539 = vpop.f32.mrf.mxu0
      %v3540 = vadd.f32 %v3235, %v3539
      %v3541 = vpop.f32.mrf.mxu0
      %3542 = vmatprep.mubr.bf16.mxu0 0
      %3543 = vmatmul.mubr.bf16.gmra.mxu0 %v3367
      %v3544 = vpop.f32.mrf.mxu0
      %v3545 = vadd.f32 %v3240, %v3544
      %v3546 = vpop.f32.mrf.mxu0
      %v3547 = vpop.f32.mrf.mxu0
      %v3548 = vadd.f32 %v3243, %v3547
      %v3549 = vpop.f32.mrf.mxu0
      %3550 = vmatprep.mubr.bf16.mxu0 0
      %3551 = vmatmul.mubr.bf16.gmra.mxu0 %v3368
      %v3552 = vpop.f32.mrf.mxu0
      %v3553 = vadd.f32 %v3248, %v3552
      %v3554 = vpop.f32.mrf.mxu0
      %v3555 = vpop.f32.mrf.mxu0
      %v3556 = vadd.f32 %v3251, %v3555
      %v3557 = vpop.f32.mrf.mxu0
      %3558 = vmatprep.mubr.bf16.mxu0 0
      %3559 = vmatmul.mubr.bf16.gmra.mxu0 %v3369
      %v3560 = vpop.f32.mrf.mxu0
      %v3561 = vadd.f32 %v3256, %v3560
      %v3562 = vpop.f32.mrf.mxu0
      %v3563 = vpop.f32.mrf.mxu0
      %v3564 = vadd.f32 %v3259, %v3563
      %v3565 = vpop.f32.mrf.mxu0
      %3566 = vmatprep.mubr.bf16.mxu0 0
      %3567 = vmatmul.mubr.bf16.gmra.mxu0 %v3370
      %v3568 = vpop.f32.mrf.mxu0
      %v3569 = vadd.f32 %v3264, %v3568
      %v3570 = vpop.f32.mrf.mxu0
      %v3571 = vpop.f32.mrf.mxu0
      %v3572 = vadd.f32 %v3267, %v3571
      %v3573 = vpop.f32.mrf.mxu0
      %3574 = vmatprep.mubr.bf16.mxu0 0
      %3575 = vmatmul.mubr.bf16.gmra.mxu0 %v3371
      %v3576 = vpop.f32.mrf.mxu0
      %v3577 = vadd.f32 %v3272, %v3576
      %v3578 = vpop.f32.mrf.mxu0
      %v3579 = vpop.f32.mrf.mxu0
      %v3580 = vadd.f32 %v3275, %v3579
      %v3581 = vpop.f32.mrf.mxu0
      %3582 = vmatprep.mubr.bf16.mxu0 0
      %3583 = vmatmul.mubr.bf16.gmra.mxu0 %v3372
      %v3584 = vpop.f32.mrf.mxu0
      %v3585 = vadd.f32 %v3280, %v3584
      %v3586 = vpop.f32.mrf.mxu0
      %v3587 = vpop.f32.mrf.mxu0
      %v3588 = vadd.f32 %v3283, %v3587
      %v3589 = vpop.f32.mrf.mxu0
      %3590 = vmatprep.mubr.bf16.mxu0 0
      %3591 = vmatmul.mubr.bf16.gmra.mxu0 %v3373
      %v3592 = vpop.f32.mrf.mxu0
      %v3593 = vadd.f32 %v3288, %v3592
      %v3594 = vpop.f32.mrf.mxu0
      %v3595 = vpop.f32.mrf.mxu0
      %v3596 = vadd.f32 %v3291, %v3595
      %v3597 = vpop.f32.mrf.mxu0
      %3598 = vdwg.mxu0
      %v3599 = vld [vmem:[#allocation2] sm:$0xe]
      %v3600 = vld [vmem:[#allocation2 + $0xc] sm:$0xe]
      %v3601 = vld [vmem:[#allocation2 + $0x18] sm:$0xe]
      %v3602 = vld [vmem:[#allocation2 + $0x24] sm:$0xe]
      %v3603 = vld [vmem:[#allocation2 + $0x30] sm:$0xe]
      %v3604 = vld [vmem:[#allocation2 + $0x3c] sm:$0xe]
      %v3605 = vld [vmem:[#allocation2 + $0x48] sm:$0xe]
      %v3606 = vld [vmem:[#allocation2 + $0x54] sm:$0xe]
      %v3607 = vld [vmem:[#allocation2 + $0x60] sm:$0xe]
      %v3608 = vld [vmem:[#allocation2 + $0x6c] sm:$0xe]
      %v3609 = vld [vmem:[#allocation2 + $0x78] sm:$0xe]
      %v3610 = vld [vmem:[#allocation2 + $0x84] sm:$0xe]
      %v3611 = vld [vmem:[#allocation2 + $0x90] sm:$0xe]
      %v3612 = vld [vmem:[#allocation2 + $0x9c] sm:$0xe]
      %v3613 = vld [vmem:[#allocation2 + $0xa8] sm:$0xe]
      %v3614 = vld [vmem:[#allocation2 + $0xb4] sm:$0xe]
      %vm3647 = vcmask 1042432
      %vm3648 = vcmask 1046532
      %vm3649 = vmor %vm3647, %vm3648
      %v3650 = vrot.slane %v3599, 5
      %v3651 = vrot.slane %v3650, 4
      %v3652 = vrot.slane %v2554, 5
      %v3653 = vsel %vm3649, %v3651, %v3652
      %v3654 = vrot.slane %v3652, 4
      %v3655 = vrot.slane %v2601, 5
      %v3656 = vsel %vm3649, %v3654, %v3655
      %v3657 = vrot.slane %v3600, 5
      %v3658 = vrot.slane %v3657, 4
      %v3659 = vrot.slane %v2556, 5
      %v3660 = vsel %vm3649, %v3658, %v3659
      %v3661 = vrot.slane %v3659, 4
      %v3662 = vrot.slane %v2602, 5
      %v3663 = vsel %vm3649, %v3661, %v3662
      %v3664 = vrot.slane %v3601, 5
      %v3665 = vrot.slane %v3664, 4
      %v3666 = vrot.slane %v2558, 5
      %v3667 = vsel %vm3649, %v3665, %v3666
      %v3668 = vrot.slane %v3666, 4
      %v3669 = vrot.slane %v2603, 5
      %v3670 = vsel %vm3649, %v3668, %v3669
      %v3671 = vrot.slane %v3602, 5
      %v3672 = vrot.slane %v3671, 4
      %v3673 = vrot.slane %v2560, 5
      %v3674 = vsel %vm3649, %v3672, %v3673
      %v3675 = vrot.slane %v3673, 4
      %v3676 = vrot.slane %v2604, 5
      %v3677 = vsel %vm3649, %v3675, %v3676
      %v3678 = vrot.slane %v3603, 5
      %v3679 = vrot.slane %v3678, 4
      %v3680 = vrot.slane %v2562, 5
      %v3681 = vsel %vm3649, %v3679, %v3680
      %v3682 = vrot.slane %v3680, 4
      %v3683 = vrot.slane %v2605, 5
      %v3684 = vsel %vm3649, %v3682, %v3683
      %v3685 = vrot.slane %v3604, 5
      %v3686 = vrot.slane %v3685, 4
      %v3687 = vrot.slane %v2564, 5
      %v3688 = vsel %vm3649, %v3686, %v3687
      %v3689 = vrot.slane %v3687, 4
      %v3690 = vrot.slane %v2606, 5
      %v3691 = vsel %vm3649, %v3689, %v3690
      %v3692 = vrot.slane %v3605, 5
      %v3693 = vrot.slane %v3692, 4
      %v3694 = vrot.slane %v2566, 5
      %v3695 = vsel %vm3649, %v3693, %v3694
      %v3696 = vrot.slane %v3694, 4
      %v3697 = vrot.slane %v2607, 5
      %v3698 = vsel %vm3649, %v3696, %v3697
      %v3699 = vrot.slane %v3606, 5
      %v3700 = vrot.slane %v3699, 4
      %v3701 = vrot.slane %v2568, 5
      %v3702 = vsel %vm3649, %v3700, %v3701
      %v3703 = vrot.slane %v3701, 4
      %v3704 = vrot.slane %v2608, 5
      %v3705 = vsel %vm3649, %v3703, %v3704
      %v3706 = vrot.slane %v3607, 5
      %v3707 = vrot.slane %v3706, 4
      %v3708 = vrot.slane %v2570, 5
      %v3709 = vsel %vm3649, %v3707, %v3708
      %v3710 = vrot.slane %v3708, 4
      %v3711 = vrot.slane %v2609, 5
      %v3712 = vsel %vm3649, %v3710, %v3711
      %v3713 = vrot.slane %v3608, 5
      %v3714 = vrot.slane %v3713, 4
      %v3715 = vrot.slane %v2572, 5
      %v3716 = vsel %vm3649, %v3714, %v3715
      %v3717 = vrot.slane %v3715, 4
      %v3718 = vrot.slane %v2610, 5
      %v3719 = vsel %vm3649, %v3717, %v3718
      %v3720 = vrot.slane %v3609, 5
      %v3721 = vrot.slane %v3720, 4
      %v3722 = vrot.slane %v2574, 5
      %v3723 = vsel %vm3649, %v3721, %v3722
      %v3724 = vrot.slane %v3722, 4
      %v3725 = vrot.slane %v2611, 5
      %v3726 = vsel %vm3649, %v3724, %v3725
      %v3727 = vrot.slane %v3610, 5
      %v3728 = vrot.slane %v3727, 4
      %v3729 = vrot.slane %v2576, 5
      %v3730 = vsel %vm3649, %v3728, %v3729
      %v3731 = vrot.slane %v3729, 4
      %v3732 = vrot.slane %v2612, 5
      %v3733 = vsel %vm3649, %v3731, %v3732
      %v3734 = vrot.slane %v3611, 5
      %v3735 = vrot.slane %v3734, 4
      %v3736 = vrot.slane %v2578, 5
      %v3737 = vsel %vm3649, %v3735, %v3736
      %v3738 = vrot.slane %v3736, 4
      %v3739 = vrot.slane %v2613, 5
      %v3740 = vsel %vm3649, %v3738, %v3739
      %v3741 = vrot.slane %v3612, 5
      %v3742 = vrot.slane %v3741, 4
      %v3743 = vrot.slane %v2580, 5
      %v3744 = vsel %vm3649, %v3742, %v3743
      %v3745 = vrot.slane %v3743, 4
      %v3746 = vrot.slane %v2614, 5
      %v3747 = vsel %vm3649, %v3745, %v3746
      %v3748 = vrot.slane %v3613, 5
      %v3749 = vrot.slane %v3748, 4
      %v3750 = vrot.slane %v2582, 5
      %v3751 = vsel %vm3649, %v3749, %v3750
      %v3752 = vrot.slane %v3750, 4
      %v3753 = vrot.slane %v2615, 5
      %v3754 = vsel %vm3649, %v3752, %v3753
      %v3755 = vrot.slane %v3614, 5
      %v3756 = vrot.slane %v3755, 4
      %v3757 = vrot.slane %v2584, 5
      %v3758 = vsel %vm3649, %v3756, %v3757
      %v3759 = vrot.slane %v3757, 4
      %v3760 = vrot.slane %v2616, 5
      %v3761 = vsel %vm3649, %v3759, %v3760
      %s3762 = scalar_lea.vmem %s2, 128
      %v3763 = vld [vmem:[%s3762] sm:$0xf]
      %v3764 = vld [vmem:[%s3762 + $0x4] sm:$0xf]
      %v3765 = vld [vmem:[%s3762 + $0x8] sm:$0xf]
      %v3766 = vld [vmem:[%s3762 + $0xc] sm:$0xf]
      %v3767 = vld [vmem:[%s3762 + $0x10] sm:$0xf]
      %v3768 = vld [vmem:[%s3762 + $0x14] sm:$0xf]
      %v3769 = vld [vmem:[%s3762 + $0x18] sm:$0xf]
      %v3770 = vld [vmem:[%s3762 + $0x1c] sm:$0xf]
      %v3771 = vld [vmem:[%s3762 + $0x20] sm:$0xf]
      %v3772 = vld [vmem:[%s3762 + $0x24] sm:$0xf]
      %v3773 = vld [vmem:[%s3762 + $0x28] sm:$0xf]
      %v3774 = vld [vmem:[%s3762 + $0x2c] sm:$0xf]
      %v3775 = vld [vmem:[%s3762 + $0x30] sm:$0xf]
      %v3776 = vld [vmem:[%s3762 + $0x34] sm:$0xf]
      %v3777 = vld [vmem:[%s3762 + $0x38] sm:$0xf]
      %v3778 = vld [vmem:[%s3762 + $0x3c] sm:$0xf]
      %v3779 = vunpack.c.l.b16 %v3653
      %v3780 = vunpack.c.l.b16 %v3656
      %v3781 = vunpack.c.l.b16 %v3660
      %v3782 = vunpack.c.l.b16 %v3663
      %v3783 = vunpack.c.l.b16 %v3667
      %v3784 = vunpack.c.l.b16 %v3670
      %v3785 = vunpack.c.l.b16 %v3674
      %v3786 = vunpack.c.l.b16 %v3677
      %v3787 = vunpack.c.l.b16 %v3681
      %v3788 = vunpack.c.l.b16 %v3684
      %v3789 = vunpack.c.l.b16 %v3688
      %v3790 = vunpack.c.l.b16 %v3691
      %v3791 = vunpack.c.l.b16 %v3695
      %v3792 = vunpack.c.l.b16 %v3698
      %v3793 = vunpack.c.l.b16 %v3702
      %v3794 = vunpack.c.l.b16 %v3705
      %v3795 = vunpack.c.l.b16 %v3709
      %v3796 = vunpack.c.l.b16 %v3712
      %v3797 = vunpack.c.l.b16 %v3716
      %v3798 = vunpack.c.l.b16 %v3719
      %v3799 = vunpack.c.l.b16 %v3723
      %v3800 = vunpack.c.l.b16 %v3726
      %v3801 = vunpack.c.l.b16 %v3730
      %v3802 = vunpack.c.l.b16 %v3733
      %v3803 = vunpack.c.l.b16 %v3737
      %v3804 = vunpack.c.l.b16 %v3740
      %v3805 = vunpack.c.l.b16 %v3744
      %v3806 = vunpack.c.l.b16 %v3747
      %v3807 = vunpack.c.l.b16 %v3751
      %v3808 = vunpack.c.l.b16 %v3754
      %v3809 = vunpack.c.l.b16 %v3758
      %v3810 = vunpack.c.l.b16 %v3761
      %v3811 = vpack.c.b16 %v3780, %v3779
      %v3812 = vpack.c.b16 %v3782, %v3781
      %v3813 = vpack.c.b16 %v3784, %v3783
      %v3814 = vpack.c.b16 %v3786, %v3785
      %v3815 = vpack.c.b16 %v3788, %v3787
      %v3816 = vpack.c.b16 %v3790, %v3789
      %v3817 = vpack.c.b16 %v3792, %v3791
      %v3818 = vpack.c.b16 %v3794, %v3793
      %v3819 = vpack.c.b16 %v3796, %v3795
      %v3820 = vpack.c.b16 %v3798, %v3797
      %v3821 = vpack.c.b16 %v3800, %v3799
      %v3822 = vpack.c.b16 %v3802, %v3801
      %v3823 = vpack.c.b16 %v3804, %v3803
      %v3824 = vpack.c.b16 %v3806, %v3805
      %v3825 = vpack.c.b16 %v3808, %v3807
      %v3826 = vpack.c.b16 %v3810, %v3809
      %v3859 = vunpack.c.l.b16 %v3763
      %v3860 = vunpack.c.l.b16 %v3764
      %v3861 = vunpack.c.l.b16 %v3765
      %v3862 = vunpack.c.l.b16 %v3766
      %v3863 = vunpack.c.l.b16 %v3767
      %v3864 = vunpack.c.l.b16 %v3768
      %v3865 = vunpack.c.l.b16 %v3769
      %v3866 = vunpack.c.l.b16 %v3770
      %v3867 = vunpack.c.l.b16 %v3771
      %v3868 = vunpack.c.l.b16 %v3772
      %v3869 = vunpack.c.l.b16 %v3773
      %v3870 = vunpack.c.l.b16 %v3774
      %v3871 = vunpack.c.l.b16 %v3775
      %v3872 = vunpack.c.l.b16 %v3776
      %v3873 = vunpack.c.l.b16 %v3777
      %v3874 = vunpack.c.l.b16 %v3778
      %v3875 = vpack.c.b16 %v3860, %v3859
      %v3876 = vpack.c.b16 %v3862, %v3861
      %v3877 = vpack.c.b16 %v3864, %v3863
      %v3878 = vpack.c.b16 %v3866, %v3865
      %v3879 = vpack.c.b16 %v3868, %v3867
      %v3880 = vpack.c.b16 %v3870, %v3869
      %v3881 = vpack.c.b16 %v3872, %v3871
      %v3882 = vpack.c.b16 %v3874, %v3873
      %3891 = vmatprep.subr.bf16.mxu0 0
      %3892 = vmatpush1.bf16.msra.mxu0 %v3882
      %3893 = vmatprep.subr.bf16.mxu0 0
      %3894 = vmatpush1.bf16.msra.mxu0 %v3881
      %3895 = vmatprep.subr.bf16.mxu0 0
      %3896 = vmatpush1.bf16.msra.mxu0 %v3880
      %3897 = vmatprep.subr.bf16.mxu0 0
      %3898 = vmatpush1.bf16.msra.mxu0 %v3879
      %3899 = vmatprep.subr.bf16.mxu0 0
      %3900 = vmatpush1.bf16.msra.mxu0 %v3878
      %3901 = vmatprep.subr.bf16.mxu0 0
      %3902 = vmatpush1.bf16.msra.mxu0 %v3877
      %3903 = vmatprep.subr.bf16.mxu0 0
      %3904 = vmatpush1.bf16.msra.mxu0 %v3876
      %3905 = vmatprep.subr.bf16.mxu0 0
      %3906 = vmatpush1.bf16.msra.mxu0 %v3875
      %3907 = vmatprep.subr.bf16.mxu0 0
      %3908 = vmatpush2.bf16.msra.mxu0 0
      %3909 = vmatprep.subr.bf16.mxu0 0
      %3910 = vmatpush2.bf16.msra.mxu0 0
      %3911 = vmatprep.subr.bf16.mxu0 0
      %3912 = vmatpush2.bf16.msra.mxu0 0
      %3913 = vmatprep.subr.bf16.mxu0 0
      %3914 = vmatpush2.bf16.msra.mxu0 0
      %3915 = vmatprep.subr.bf16.mxu0 0
      %3916 = vmatpush2.bf16.msra.mxu0 0
      %3917 = vmatprep.subr.bf16.mxu0 0
      %3918 = vmatpush2.bf16.msra.mxu0 0
      %3919 = vmatprep.subr.bf16.mxu0 0
      %3920 = vmatpush2.bf16.msra.mxu0 0
      %3921 = vmatprep.subr.bf16.mxu0 0
      %3922 = vmatpush2.bf16.msra.mxu0 0
      %3923 = vmatprep.mubr.bf16.mxu0 0
      %3924 = vmatmul.mubr.bf16.gmra.mxu0 %v3811
      %v3925 = vpop.f32.mrf.mxu0
      %v3926 = vadd.f32 0.0, %v3925
      %v3927 = vpop.f32.mrf.mxu0
      %v3928 = vpop.f32.mrf.mxu0
      %v3929 = vadd.f32 0.0, %v3928
      %v3930 = vpop.f32.mrf.mxu0
      %3931 = vmatprep.mubr.bf16.mxu0 0
      %3932 = vmatmul.mubr.bf16.gmra.mxu0 %v3812
      %v3933 = vpop.f32.mrf.mxu0
      %v3934 = vadd.f32 0.0, %v3933
      %v3935 = vpop.f32.mrf.mxu0
      %v3936 = vpop.f32.mrf.mxu0
      %v3937 = vadd.f32 0.0, %v3936
      %v3938 = vpop.f32.mrf.mxu0
      %3939 = vmatprep.mubr.bf16.mxu0 0
      %3940 = vmatmul.mubr.bf16.gmra.mxu0 %v3813
      %v3941 = vpop.f32.mrf.mxu0
      %v3942 = vadd.f32 0.0, %v3941
      %v3943 = vpop.f32.mrf.mxu0
      %v3944 = vpop.f32.mrf.mxu0
      %v3945 = vadd.f32 0.0, %v3944
      %v3946 = vpop.f32.mrf.mxu0
      %3947 = vmatprep.mubr.bf16.mxu0 0
      %3948 = vmatmul.mubr.bf16.gmra.mxu0 %v3814
      %v3949 = vpop.f32.mrf.mxu0
      %v3950 = vadd.f32 0.0, %v3949
      %v3951 = vpop.f32.mrf.mxu0
      %v3952 = vpop.f32.mrf.mxu0
      %v3953 = vadd.f32 0.0, %v3952
      %v3954 = vpop.f32.mrf.mxu0
      %3955 = vmatprep.mubr.bf16.mxu0 0
      %3956 = vmatmul.mubr.bf16.gmra.mxu0 %v3815
      %v3957 = vpop.f32.mrf.mxu0
      %v3958 = vadd.f32 0.0, %v3957
      %v3959 = vpop.f32.mrf.mxu0
      %v3960 = vpop.f32.mrf.mxu0
      %v3961 = vadd.f32 0.0, %v3960
      %v3962 = vpop.f32.mrf.mxu0
      %3963 = vmatprep.mubr.bf16.mxu0 0
      %3964 = vmatmul.mubr.bf16.gmra.mxu0 %v3816
      %v3965 = vpop.f32.mrf.mxu0
      %v3966 = vadd.f32 0.0, %v3965
      %v3967 = vpop.f32.mrf.mxu0
      %v3968 = vpop.f32.mrf.mxu0
      %v3969 = vadd.f32 0.0, %v3968
      %v3970 = vpop.f32.mrf.mxu0
      %3971 = vmatprep.mubr.bf16.mxu0 0
      %3972 = vmatmul.mubr.bf16.gmra.mxu0 %v3817
      %v3973 = vpop.f32.mrf.mxu0
      %v3974 = vadd.f32 0.0, %v3973
      %v3975 = vpop.f32.mrf.mxu0
      %v3976 = vpop.f32.mrf.mxu0
      %v3977 = vadd.f32 0.0, %v3976
      %v3978 = vpop.f32.mrf.mxu0
      %3979 = vmatprep.mubr.bf16.mxu0 0
      %3980 = vmatmul.mubr.bf16.gmra.mxu0 %v3818
      %v3981 = vpop.f32.mrf.mxu0
      %v3982 = vadd.f32 0.0, %v3981
      %v3983 = vpop.f32.mrf.mxu0
      %v3984 = vpop.f32.mrf.mxu0
      %v3985 = vadd.f32 0.0, %v3984
      %v3986 = vpop.f32.mrf.mxu0
      %3987 = vmatprep.mubr.bf16.mxu0 0
      %3988 = vmatmul.mubr.bf16.gmra.mxu0 %v3819
      %v3989 = vpop.f32.mrf.mxu0
      %v3990 = vadd.f32 0.0, %v3989
      %v3991 = vpop.f32.mrf.mxu0
      %v3992 = vpop.f32.mrf.mxu0
      %v3993 = vadd.f32 0.0, %v3992
      %v3994 = vpop.f32.mrf.mxu0
      %3995 = vmatprep.mubr.bf16.mxu0 0
      %3996 = vmatmul.mubr.bf16.gmra.mxu0 %v3820
      %v3997 = vpop.f32.mrf.mxu0
      %v3998 = vadd.f32 0.0, %v3997
      %v3999 = vpop.f32.mrf.mxu0
      %v4000 = vpop.f32.mrf.mxu0
      %v4001 = vadd.f32 0.0, %v4000
      %v4002 = vpop.f32.mrf.mxu0
      %4003 = vmatprep.mubr.bf16.mxu0 0
      %4004 = vmatmul.mubr.bf16.gmra.mxu0 %v3821
      %v4005 = vpop.f32.mrf.mxu0
      %v4006 = vadd.f32 0.0, %v4005
      %v4007 = vpop.f32.mrf.mxu0
      %v4008 = vpop.f32.mrf.mxu0
      %v4009 = vadd.f32 0.0, %v4008
      %v4010 = vpop.f32.mrf.mxu0
      %4011 = vmatprep.mubr.bf16.mxu0 0
      %4012 = vmatmul.mubr.bf16.gmra.mxu0 %v3822
      %v4013 = vpop.f32.mrf.mxu0
      %v4014 = vadd.f32 0.0, %v4013
      %v4015 = vpop.f32.mrf.mxu0
      %v4016 = vpop.f32.mrf.mxu0
      %v4017 = vadd.f32 0.0, %v4016
      %v4018 = vpop.f32.mrf.mxu0
      %4019 = vmatprep.mubr.bf16.mxu0 0
      %4020 = vmatmul.mubr.bf16.gmra.mxu0 %v3823
      %v4021 = vpop.f32.mrf.mxu0
      %v4022 = vadd.f32 0.0, %v4021
      %v4023 = vpop.f32.mrf.mxu0
      %v4024 = vpop.f32.mrf.mxu0
      %v4025 = vadd.f32 0.0, %v4024
      %v4026 = vpop.f32.mrf.mxu0
      %4027 = vmatprep.mubr.bf16.mxu0 0
      %4028 = vmatmul.mubr.bf16.gmra.mxu0 %v3824
      %v4029 = vpop.f32.mrf.mxu0
      %v4030 = vadd.f32 0.0, %v4029
      %v4031 = vpop.f32.mrf.mxu0
      %v4032 = vpop.f32.mrf.mxu0
      %v4033 = vadd.f32 0.0, %v4032
      %v4034 = vpop.f32.mrf.mxu0
      %4035 = vmatprep.mubr.bf16.mxu0 0
      %4036 = vmatmul.mubr.bf16.gmra.mxu0 %v3825
      %v4037 = vpop.f32.mrf.mxu0
      %v4038 = vadd.f32 0.0, %v4037
      %v4039 = vpop.f32.mrf.mxu0
      %v4040 = vpop.f32.mrf.mxu0
      %v4041 = vadd.f32 0.0, %v4040
      %v4042 = vpop.f32.mrf.mxu0
      %4043 = vmatprep.mubr.bf16.mxu0 0
      %4044 = vmatmul.mubr.bf16.gmra.mxu0 %v3826
      %v4045 = vpop.f32.mrf.mxu0
      %v4046 = vadd.f32 0.0, %v4045
      %v4047 = vpop.f32.mrf.mxu0
      %v4048 = vpop.f32.mrf.mxu0
      %v4049 = vadd.f32 0.0, %v4048
      %v4050 = vpop.f32.mrf.mxu0
      %4051 = vdwg.mxu0
      %v4052 = vadd.f32 %v3473, %v3926
      %v4053 = vadd.f32 %v3476, %v3929
      %v4054 = vadd.f32 %v3481, %v3934
      %v4055 = vadd.f32 %v3484, %v3937
      %v4056 = vadd.f32 %v3489, %v3942
      %v4057 = vadd.f32 %v3492, %v3945
      %v4058 = vadd.f32 %v3497, %v3950
      %v4059 = vadd.f32 %v3500, %v3953
      %v4060 = vadd.f32 %v3505, %v3958
      %v4061 = vadd.f32 %v3508, %v3961
      %v4062 = vadd.f32 %v3513, %v3966
      %v4063 = vadd.f32 %v3516, %v3969
      %v4064 = vadd.f32 %v3521, %v3974
      %v4065 = vadd.f32 %v3524, %v3977
      %v4066 = vadd.f32 %v3529, %v3982
      %v4067 = vadd.f32 %v3532, %v3985
      %v4068 = vadd.f32 %v3537, %v3990
      %v4069 = vadd.f32 %v3540, %v3993
      %v4070 = vadd.f32 %v3545, %v3998
      %v4071 = vadd.f32 %v3548, %v4001
      %v4072 = vadd.f32 %v3553, %v4006
      %v4073 = vadd.f32 %v3556, %v4009
      %v4074 = vadd.f32 %v3561, %v4014
      %v4075 = vadd.f32 %v3564, %v4017
      %v4076 = vadd.f32 %v3569, %v4022
      %v4077 = vadd.f32 %v3572, %v4025
      %v4078 = vadd.f32 %v3577, %v4030
      %v4079 = vadd.f32 %v3580, %v4033
      %v4080 = vadd.f32 %v3585, %v4038
      %v4081 = vadd.f32 %v3588, %v4041
      %v4082 = vadd.f32 %v3593, %v4046
      %v4083 = vadd.f32 %v3596, %v4049
      %s4084 = scalar_lea.vmem [#allocation2], 12
      %v4085 = vld [vmem:[%s4084] sm:$0xf]
      %v4086 = vld [vmem:[%s4084 + $0x4] sm:$0xf]
      %v4087 = vld [vmem:[%s4084 + $0xc] sm:$0xf]
      %v4088 = vld [vmem:[%s4084 + $0x10] sm:$0xf]
      %v4089 = vld [vmem:[%s4084 + $0x18] sm:$0xf]
      %v4090 = vld [vmem:[%s4084 + $0x1c] sm:$0xf]
      %v4091 = vld [vmem:[%s4084 + $0x24] sm:$0xf]
      %v4092 = vld [vmem:[%s4084 + $0x28] sm:$0xf]
      %v4093 = vld [vmem:[%s4084 + $0x30] sm:$0xf]
      %v4094 = vld [vmem:[%s4084 + $0x34] sm:$0xf]
      %v4095 = vld [vmem:[%s4084 + $0x3c] sm:$0xf]
      %v4096 = vld [vmem:[%s4084 + $0x40] sm:$0xf]
      %v4097 = vld [vmem:[%s4084 + $0x48] sm:$0xf]
      %v4098 = vld [vmem:[%s4084 + $0x4c] sm:$0xf]
      %v4099 = vld [vmem:[%s4084 + $0x54] sm:$0xf]
      %v4100 = vld [vmem:[%s4084 + $0x58] sm:$0xf]
      %v4101 = vld [vmem:[%s4084 + $0x60] sm:$0xf]
      %v4102 = vld [vmem:[%s4084 + $0x64] sm:$0xf]
      %v4103 = vld [vmem:[%s4084 + $0x6c] sm:$0xf]
      %v4104 = vld [vmem:[%s4084 + $0x70] sm:$0xf]
      %v4105 = vld [vmem:[%s4084 + $0x78] sm:$0xf]
      %v4106 = vld [vmem:[%s4084 + $0x7c] sm:$0xf]
      %v4107 = vld [vmem:[%s4084 + $0x84] sm:$0xf]
      %v4108 = vld [vmem:[%s4084 + $0x88] sm:$0xf]
      %v4109 = vld [vmem:[%s4084 + $0x90] sm:$0xf]
      %v4110 = vld [vmem:[%s4084 + $0x94] sm:$0xf]
      %v4111 = vld [vmem:[%s4084 + $0x9c] sm:$0xf]
      %v4112 = vld [vmem:[%s4084 + $0xa0] sm:$0xf]
      %v4113 = vld [vmem:[%s4084 + $0xa8] sm:$0xf]
      %v4114 = vld [vmem:[%s4084 + $0xac] sm:$0xf]
      %v4115 = vld [vmem:[%s4084 + $0xb4] sm:$0xf]
      %v4116 = vld [vmem:[%s4084 + $0xb8] sm:$0xf]
      %s4117 = scalar_lea.vmem %s2, 192
      %v4118 = vld [vmem:[%s4117] sm:$0xf]
      %v4119 = vld [vmem:[%s4117 + $0x4] sm:$0xf]
      %v4120 = vld [vmem:[%s4117 + $0x8] sm:$0xf]
      %v4121 = vld [vmem:[%s4117 + $0xc] sm:$0xf]
      %v4122 = vld [vmem:[%s4117 + $0x10] sm:$0xf]
      %v4123 = vld [vmem:[%s4117 + $0x14] sm:$0xf]
      %v4124 = vld [vmem:[%s4117 + $0x18] sm:$0xf]
      %v4125 = vld [vmem:[%s4117 + $0x1c] sm:$0xf]
      %v4126 = vld [vmem:[%s4117 + $0x20] sm:$0xf]
      %v4127 = vld [vmem:[%s4117 + $0x24] sm:$0xf]
      %v4128 = vld [vmem:[%s4117 + $0x28] sm:$0xf]
      %v4129 = vld [vmem:[%s4117 + $0x2c] sm:$0xf]
      %v4130 = vld [vmem:[%s4117 + $0x30] sm:$0xf]
      %v4131 = vld [vmem:[%s4117 + $0x34] sm:$0xf]
      %v4132 = vld [vmem:[%s4117 + $0x38] sm:$0xf]
      %v4133 = vld [vmem:[%s4117 + $0x3c] sm:$0xf]
      %v4166 = vunpack.c.l.b16 %v4085
      %v4167 = vunpack.c.l.b16 %v4086
      %v4168 = vunpack.c.l.b16 %v4087
      %v4169 = vunpack.c.l.b16 %v4088
      %v4170 = vunpack.c.l.b16 %v4089
      %v4171 = vunpack.c.l.b16 %v4090
      %v4172 = vunpack.c.l.b16 %v4091
      %v4173 = vunpack.c.l.b16 %v4092
      %v4174 = vunpack.c.l.b16 %v4093
      %v4175 = vunpack.c.l.b16 %v4094
      %v4176 = vunpack.c.l.b16 %v4095
      %v4177 = vunpack.c.l.b16 %v4096
      %v4178 = vunpack.c.l.b16 %v4097
      %v4179 = vunpack.c.l.b16 %v4098
      %v4180 = vunpack.c.l.b16 %v4099
      %v4181 = vunpack.c.l.b16 %v4100
      %v4182 = vunpack.c.l.b16 %v4101
      %v4183 = vunpack.c.l.b16 %v4102
      %v4184 = vunpack.c.l.b16 %v4103
      %v4185 = vunpack.c.l.b16 %v4104
      %v4186 = vunpack.c.l.b16 %v4105
      %v4187 = vunpack.c.l.b16 %v4106
      %v4188 = vunpack.c.l.b16 %v4107
      %v4189 = vunpack.c.l.b16 %v4108
      %v4190 = vunpack.c.l.b16 %v4109
      %v4191 = vunpack.c.l.b16 %v4110
      %v4192 = vunpack.c.l.b16 %v4111
      %v4193 = vunpack.c.l.b16 %v4112
      %v4194 = vunpack.c.l.b16 %v4113
      %v4195 = vunpack.c.l.b16 %v4114
      %v4196 = vunpack.c.l.b16 %v4115
      %v4197 = vunpack.c.l.b16 %v4116
      %v4198 = vpack.c.b16 %v4167, %v4166
      %v4199 = vpack.c.b16 %v4169, %v4168
      %v4200 = vpack.c.b16 %v4171, %v4170
      %v4201 = vpack.c.b16 %v4173, %v4172
      %v4202 = vpack.c.b16 %v4175, %v4174
      %v4203 = vpack.c.b16 %v4177, %v4176
      %v4204 = vpack.c.b16 %v4179, %v4178
      %v4205 = vpack.c.b16 %v4181, %v4180
      %v4206 = vpack.c.b16 %v4183, %v4182
      %v4207 = vpack.c.b16 %v4185, %v4184
      %v4208 = vpack.c.b16 %v4187, %v4186
      %v4209 = vpack.c.b16 %v4189, %v4188
      %v4210 = vpack.c.b16 %v4191, %v4190
      %v4211 = vpack.c.b16 %v4193, %v4192
      %v4212 = vpack.c.b16 %v4195, %v4194
      %v4213 = vpack.c.b16 %v4197, %v4196
      %v4246 = vunpack.c.l.b16 %v4118
      %v4247 = vunpack.c.l.b16 %v4119
      %v4248 = vunpack.c.l.b16 %v4120
      %v4249 = vunpack.c.l.b16 %v4121
      %v4250 = vunpack.c.l.b16 %v4122
      %v4251 = vunpack.c.l.b16 %v4123
      %v4252 = vunpack.c.l.b16 %v4124
      %v4253 = vunpack.c.l.b16 %v4125
      %v4254 = vunpack.c.l.b16 %v4126
      %v4255 = vunpack.c.l.b16 %v4127
      %v4256 = vunpack.c.l.b16 %v4128
      %v4257 = vunpack.c.l.b16 %v4129
      %v4258 = vunpack.c.l.b16 %v4130
      %v4259 = vunpack.c.l.b16 %v4131
      %v4260 = vunpack.c.l.b16 %v4132
      %v4261 = vunpack.c.l.b16 %v4133
      %v4262 = vpack.c.b16 %v4247, %v4246
      %v4263 = vpack.c.b16 %v4249, %v4248
      %v4264 = vpack.c.b16 %v4251, %v4250
      %v4265 = vpack.c.b16 %v4253, %v4252
      %v4266 = vpack.c.b16 %v4255, %v4254
      %v4267 = vpack.c.b16 %v4257, %v4256
      %v4268 = vpack.c.b16 %v4259, %v4258
      %v4269 = vpack.c.b16 %v4261, %v4260
      %4278 = vmatprep.subr.bf16.mxu0 0
      %4279 = vmatpush1.bf16.msra.mxu0 %v4269
      %4280 = vmatprep.subr.bf16.mxu0 0
      %4281 = vmatpush1.bf16.msra.mxu0 %v4268
      %4282 = vmatprep.subr.bf16.mxu0 0
      %4283 = vmatpush1.bf16.msra.mxu0 %v4267
      %4284 = vmatprep.subr.bf16.mxu0 0
      %4285 = vmatpush1.bf16.msra.mxu0 %v4266
      %4286 = vmatprep.subr.bf16.mxu0 0
      %4287 = vmatpush1.bf16.msra.mxu0 %v4265
      %4288 = vmatprep.subr.bf16.mxu0 0
      %4289 = vmatpush1.bf16.msra.mxu0 %v4264
      %4290 = vmatprep.subr.bf16.mxu0 0
      %4291 = vmatpush1.bf16.msra.mxu0 %v4263
      %4292 = vmatprep.subr.bf16.mxu0 0
      %4293 = vmatpush1.bf16.msra.mxu0 %v4262
      %4294 = vmatprep.subr.bf16.mxu0 0
      %4295 = vmatpush2.bf16.msra.mxu0 0
      %4296 = vmatprep.subr.bf16.mxu0 0
      %4297 = vmatpush2.bf16.msra.mxu0 0
      %4298 = vmatprep.subr.bf16.mxu0 0
      %4299 = vmatpush2.bf16.msra.mxu0 0
      %4300 = vmatprep.subr.bf16.mxu0 0
      %4301 = vmatpush2.bf16.msra.mxu0 0
      %4302 = vmatprep.subr.bf16.mxu0 0
      %4303 = vmatpush2.bf16.msra.mxu0 0
      %4304 = vmatprep.subr.bf16.mxu0 0
      %4305 = vmatpush2.bf16.msra.mxu0 0
      %4306 = vmatprep.subr.bf16.mxu0 0
      %4307 = vmatpush2.bf16.msra.mxu0 0
      %4308 = vmatprep.subr.bf16.mxu0 0
      %4309 = vmatpush2.bf16.msra.mxu0 0
      %4310 = vmatprep.mubr.bf16.mxu0 0
      %4311 = vmatmul.mubr.bf16.gmra.mxu0 %v4198
      %v4312 = vpop.f32.mrf.mxu0
      %v4313 = vadd.f32 0.0, %v4312
      %v4314 = vpop.f32.mrf.mxu0
      %v4315 = vpop.f32.mrf.mxu0
      %v4316 = vadd.f32 0.0, %v4315
      %v4317 = vpop.f32.mrf.mxu0
      %4318 = vmatprep.mubr.bf16.mxu0 0
      %4319 = vmatmul.mubr.bf16.gmra.mxu0 %v4199
      %v4320 = vpop.f32.mrf.mxu0
      %v4321 = vadd.f32 0.0, %v4320
      %v4322 = vpop.f32.mrf.mxu0
      %v4323 = vpop.f32.mrf.mxu0
      %v4324 = vadd.f32 0.0, %v4323
      %v4325 = vpop.f32.mrf.mxu0
      %4326 = vmatprep.mubr.bf16.mxu0 0
      %4327 = vmatmul.mubr.bf16.gmra.mxu0 %v4200
      %v4328 = vpop.f32.mrf.mxu0
      %v4329 = vadd.f32 0.0, %v4328
      %v4330 = vpop.f32.mrf.mxu0
      %v4331 = vpop.f32.mrf.mxu0
      %v4332 = vadd.f32 0.0, %v4331
      %v4333 = vpop.f32.mrf.mxu0
      %4334 = vmatprep.mubr.bf16.mxu0 0
      %4335 = vmatmul.mubr.bf16.gmra.mxu0 %v4201
      %v4336 = vpop.f32.mrf.mxu0
      %v4337 = vadd.f32 0.0, %v4336
      %v4338 = vpop.f32.mrf.mxu0
      %v4339 = vpop.f32.mrf.mxu0
      %v4340 = vadd.f32 0.0, %v4339
      %v4341 = vpop.f32.mrf.mxu0
      %4342 = vmatprep.mubr.bf16.mxu0 0
      %4343 = vmatmul.mubr.bf16.gmra.mxu0 %v4202
      %v4344 = vpop.f32.mrf.mxu0
      %v4345 = vadd.f32 0.0, %v4344
      %v4346 = vpop.f32.mrf.mxu0
      %v4347 = vpop.f32.mrf.mxu0
      %v4348 = vadd.f32 0.0, %v4347
      %v4349 = vpop.f32.mrf.mxu0
      %4350 = vmatprep.mubr.bf16.mxu0 0
      %4351 = vmatmul.mubr.bf16.gmra.mxu0 %v4203
      %v4352 = vpop.f32.mrf.mxu0
      %v4353 = vadd.f32 0.0, %v4352
      %v4354 = vpop.f32.mrf.mxu0
      %v4355 = vpop.f32.mrf.mxu0
      %v4356 = vadd.f32 0.0, %v4355
      %v4357 = vpop.f32.mrf.mxu0
      %4358 = vmatprep.mubr.bf16.mxu0 0
      %4359 = vmatmul.mubr.bf16.gmra.mxu0 %v4204
      %v4360 = vpop.f32.mrf.mxu0
      %v4361 = vadd.f32 0.0, %v4360
      %v4362 = vpop.f32.mrf.mxu0
      %v4363 = vpop.f32.mrf.mxu0
      %v4364 = vadd.f32 0.0, %v4363
      %v4365 = vpop.f32.mrf.mxu0
      %4366 = vmatprep.mubr.bf16.mxu0 0
      %4367 = vmatmul.mubr.bf16.gmra.mxu0 %v4205
      %v4368 = vpop.f32.mrf.mxu0
      %v4369 = vadd.f32 0.0, %v4368
      %v4370 = vpop.f32.mrf.mxu0
      %v4371 = vpop.f32.mrf.mxu0
      %v4372 = vadd.f32 0.0, %v4371
      %v4373 = vpop.f32.mrf.mxu0
      %4374 = vmatprep.mubr.bf16.mxu0 0
      %4375 = vmatmul.mubr.bf16.gmra.mxu0 %v4206
      %v4376 = vpop.f32.mrf.mxu0
      %v4377 = vadd.f32 0.0, %v4376
      %v4378 = vpop.f32.mrf.mxu0
      %v4379 = vpop.f32.mrf.mxu0
      %v4380 = vadd.f32 0.0, %v4379
      %v4381 = vpop.f32.mrf.mxu0
      %4382 = vmatprep.mubr.bf16.mxu0 0
      %4383 = vmatmul.mubr.bf16.gmra.mxu0 %v4207
      %v4384 = vpop.f32.mrf.mxu0
      %v4385 = vadd.f32 0.0, %v4384
      %v4386 = vpop.f32.mrf.mxu0
      %v4387 = vpop.f32.mrf.mxu0
      %v4388 = vadd.f32 0.0, %v4387
      %v4389 = vpop.f32.mrf.mxu0
      %4390 = vmatprep.mubr.bf16.mxu0 0
      %4391 = vmatmul.mubr.bf16.gmra.mxu0 %v4208
      %v4392 = vpop.f32.mrf.mxu0
      %v4393 = vadd.f32 0.0, %v4392
      %v4394 = vpop.f32.mrf.mxu0
      %v4395 = vpop.f32.mrf.mxu0
      %v4396 = vadd.f32 0.0, %v4395
      %v4397 = vpop.f32.mrf.mxu0
      %4398 = vmatprep.mubr.bf16.mxu0 0
      %4399 = vmatmul.mubr.bf16.gmra.mxu0 %v4209
      %v4400 = vpop.f32.mrf.mxu0
      %v4401 = vadd.f32 0.0, %v4400
      %v4402 = vpop.f32.mrf.mxu0
      %v4403 = vpop.f32.mrf.mxu0
      %v4404 = vadd.f32 0.0, %v4403
      %v4405 = vpop.f32.mrf.mxu0
      %4406 = vmatprep.mubr.bf16.mxu0 0
      %4407 = vmatmul.mubr.bf16.gmra.mxu0 %v4210
      %v4408 = vpop.f32.mrf.mxu0
      %v4409 = vadd.f32 0.0, %v4408
      %v4410 = vpop.f32.mrf.mxu0
      %v4411 = vpop.f32.mrf.mxu0
      %v4412 = vadd.f32 0.0, %v4411
      %v4413 = vpop.f32.mrf.mxu0
      %4414 = vmatprep.mubr.bf16.mxu0 0
      %4415 = vmatmul.mubr.bf16.gmra.mxu0 %v4211
      %v4416 = vpop.f32.mrf.mxu0
      %v4417 = vadd.f32 0.0, %v4416
      %v4418 = vpop.f32.mrf.mxu0
      %v4419 = vpop.f32.mrf.mxu0
      %v4420 = vadd.f32 0.0, %v4419
      %v4421 = vpop.f32.mrf.mxu0
      %4422 = vmatprep.mubr.bf16.mxu0 0
      %4423 = vmatmul.mubr.bf16.gmra.mxu0 %v4212
      %v4424 = vpop.f32.mrf.mxu0
      %v4425 = vadd.f32 0.0, %v4424
      %v4426 = vpop.f32.mrf.mxu0
      %v4427 = vpop.f32.mrf.mxu0
      %v4428 = vadd.f32 0.0, %v4427
      %v4429 = vpop.f32.mrf.mxu0
      %4430 = vmatprep.mubr.bf16.mxu0 0
      %4431 = vmatmul.mubr.bf16.gmra.mxu0 %v4213
      %v4432 = vpop.f32.mrf.mxu0
      %v4433 = vadd.f32 0.0, %v4432
      %v4434 = vpop.f32.mrf.mxu0
      %v4435 = vpop.f32.mrf.mxu0
      %v4436 = vadd.f32 0.0, %v4435
      %v4437 = vpop.f32.mrf.mxu0
      %4438 = vdwg.mxu0
      %v4439 = vadd.f32 %v4052, %v4313
      %v4440 = vadd.f32 %v4053, %v4316
      %v4441 = vadd.f32 %v4054, %v4321
      %v4442 = vadd.f32 %v4055, %v4324
      %v4443 = vadd.f32 %v4056, %v4329
      %v4444 = vadd.f32 %v4057, %v4332
      %v4445 = vadd.f32 %v4058, %v4337
      %v4446 = vadd.f32 %v4059, %v4340
      %v4447 = vadd.f32 %v4060, %v4345
      %v4448 = vadd.f32 %v4061, %v4348
      %v4449 = vadd.f32 %v4062, %v4353
      %v4450 = vadd.f32 %v4063, %v4356
      %v4451 = vadd.f32 %v4064, %v4361
      %v4452 = vadd.f32 %v4065, %v4364
      %v4453 = vadd.f32 %v4066, %v4369
      %v4454 = vadd.f32 %v4067, %v4372
      %v4455 = vadd.f32 %v4068, %v4377
      %v4456 = vadd.f32 %v4069, %v4380
      %v4457 = vadd.f32 %v4070, %v4385
      %v4458 = vadd.f32 %v4071, %v4388
      %v4459 = vadd.f32 %v4072, %v4393
      %v4460 = vadd.f32 %v4073, %v4396
      %v4461 = vadd.f32 %v4074, %v4401
      %v4462 = vadd.f32 %v4075, %v4404
      %v4463 = vadd.f32 %v4076, %v4409
      %v4464 = vadd.f32 %v4077, %v4412
      %v4465 = vadd.f32 %v4078, %v4417
      %v4466 = vadd.f32 %v4079, %v4420
      %v4467 = vadd.f32 %v4080, %v4425
      %v4468 = vadd.f32 %v4081, %v4428
      %v4469 = vadd.f32 %v4082, %v4433
      %v4470 = vadd.f32 %v4083, %v4436
      %v4471 = vld [vmem:[%s4084] sm:$0xf]
      %v4472 = vld [vmem:[%s4084 + $0x4] sm:$0xf]
      %v4473 = vld [vmem:[%s4084 + $0x8] sm:$0x1]
      %v4474 = vld [vmem:[%s4084 + $0xc] sm:$0xf]
      %v4475 = vld [vmem:[%s4084 + $0x10] sm:$0xf]
      %v4476 = vld [vmem:[%s4084 + $0x14] sm:$0x1]
      %v4477 = vld [vmem:[%s4084 + $0x18] sm:$0xf]
      %v4478 = vld [vmem:[%s4084 + $0x1c] sm:$0xf]
      %v4479 = vld [vmem:[%s4084 + $0x20] sm:$0x1]
      %v4480 = vld [vmem:[%s4084 + $0x24] sm:$0xf]
      %v4481 = vld [vmem:[%s4084 + $0x28] sm:$0xf]
      %v4482 = vld [vmem:[%s4084 + $0x2c] sm:$0x1]
      %v4483 = vld [vmem:[%s4084 + $0x30] sm:$0xf]
      %v4484 = vld [vmem:[%s4084 + $0x34] sm:$0xf]
      %v4485 = vld [vmem:[%s4084 + $0x38] sm:$0x1]
      %v4486 = vld [vmem:[%s4084 + $0x3c] sm:$0xf]
      %v4487 = vld [vmem:[%s4084 + $0x40] sm:$0xf]
      %v4488 = vld [vmem:[%s4084 + $0x44] sm:$0x1]
      %v4489 = vld [vmem:[%s4084 + $0x48] sm:$0xf]
      %v4490 = vld [vmem:[%s4084 + $0x4c] sm:$0xf]
      %v4491 = vld [vmem:[%s4084 + $0x50] sm:$0x1]
      %v4492 = vld [vmem:[%s4084 + $0x54] sm:$0xf]
      %v4493 = vld [vmem:[%s4084 + $0x58] sm:$0xf]
      %v4494 = vld [vmem:[%s4084 + $0x5c] sm:$0x1]
      %v4495 = vld [vmem:[%s4084 + $0x60] sm:$0xf]
      %v4496 = vld [vmem:[%s4084 + $0x64] sm:$0xf]
      %v4497 = vld [vmem:[%s4084 + $0x68] sm:$0x1]
      %v4498 = vld [vmem:[%s4084 + $0x6c] sm:$0xf]
      %v4499 = vld [vmem:[%s4084 + $0x70] sm:$0xf]
      %v4500 = vld [vmem:[%s4084 + $0x74] sm:$0x1]
      %v4501 = vld [vmem:[%s4084 + $0x78] sm:$0xf]
      %v4502 = vld [vmem:[%s4084 + $0x7c] sm:$0xf]
      %v4503 = vld [vmem:[%s4084 + $0x80] sm:$0x1]
      %v4504 = vld [vmem:[%s4084 + $0x84] sm:$0xf]
      %v4505 = vld [vmem:[%s4084 + $0x88] sm:$0xf]
      %v4506 = vld [vmem:[%s4084 + $0x8c] sm:$0x1]
      %v4507 = vld [vmem:[%s4084 + $0x90] sm:$0xf]
      %v4508 = vld [vmem:[%s4084 + $0x94] sm:$0xf]
      %v4509 = vld [vmem:[%s4084 + $0x98] sm:$0x1]
      %v4510 = vld [vmem:[%s4084 + $0x9c] sm:$0xf]
      %v4511 = vld [vmem:[%s4084 + $0xa0] sm:$0xf]
      %v4512 = vld [vmem:[%s4084 + $0xa4] sm:$0x1]
      %v4513 = vld [vmem:[%s4084 + $0xa8] sm:$0xf]
      %v4514 = vld [vmem:[%s4084 + $0xac] sm:$0xf]
      %v4515 = vld [vmem:[%s4084 + $0xb0] sm:$0x1]
      %v4516 = vld [vmem:[%s4084 + $0xb4] sm:$0xf]
      %v4517 = vld [vmem:[%s4084 + $0xb8] sm:$0xf]
      %v4518 = vld [vmem:[%s4084 + $0xbc] sm:$0x1]
      %v4520 = vshrl.u32 %v4471, 16
      %v4522 = vrot.slane %v4520, 4
      %v4523 = vshll.u32 %v4471, 16
      %v4525 = vrot.slane %v4523, 5
      %v4526 = vor.u32 %v4522, %v4525
      %v4527 = vrot.slane %v4526, 4
      %v4529 = vshll.u32 %v4472, 16
      %v4531 = vrot.slane %v4529, 5
      %v4532 = vsel %vm2619, %v4527, %v4531
      %v4533 = vshrl.u32 %v4472, 16
      %v4535 = vrot.slane %v4533, 4
      %v4536 = vor.u32 %v4535, %v4531
      %v4537 = vrot.slane %v4536, 4
      %v4539 = vshll.u32 %v4473, 16
      %v4541 = vrot.slane %v4539, 5
      %v4542 = vsel %vm2619, %v4537, %v4541
      %v4544 = vshrl.u32 %v4474, 16
      %v4546 = vrot.slane %v4544, 4
      %v4547 = vshll.u32 %v4474, 16
      %v4549 = vrot.slane %v4547, 5
      %v4550 = vor.u32 %v4546, %v4549
      %v4551 = vrot.slane %v4550, 4
      %v4553 = vshll.u32 %v4475, 16
      %v4555 = vrot.slane %v4553, 5
      %v4556 = vsel %vm2619, %v4551, %v4555
      %v4557 = vshrl.u32 %v4475, 16
      %v4559 = vrot.slane %v4557, 4
      %v4560 = vor.u32 %v4559, %v4555
      %v4561 = vrot.slane %v4560, 4
      %v4563 = vshll.u32 %v4476, 16
      %v4565 = vrot.slane %v4563, 5
      %v4566 = vsel %vm2619, %v4561, %v4565
      %v4568 = vshrl.u32 %v4477, 16
      %v4570 = vrot.slane %v4568, 4
      %v4571 = vshll.u32 %v4477, 16
      %v4573 = vrot.slane %v4571, 5
      %v4574 = vor.u32 %v4570, %v4573
      %v4575 = vrot.slane %v4574, 4
      %v4577 = vshll.u32 %v4478, 16
      %v4579 = vrot.slane %v4577, 5
      %v4580 = vsel %vm2619, %v4575, %v4579
      %v4581 = vshrl.u32 %v4478, 16
      %v4583 = vrot.slane %v4581, 4
      %v4584 = vor.u32 %v4583, %v4579
      %v4585 = vrot.slane %v4584, 4
      %v4587 = vshll.u32 %v4479, 16
      %v4589 = vrot.slane %v4587, 5
      %v4590 = vsel %vm2619, %v4585, %v4589
      %v4592 = vshrl.u32 %v4480, 16
      %v4594 = vrot.slane %v4592, 4
      %v4595 = vshll.u32 %v4480, 16
      %v4597 = vrot.slane %v4595, 5
      %v4598 = vor.u32 %v4594, %v4597
      %v4599 = vrot.slane %v4598, 4
      %v4601 = vshll.u32 %v4481, 16
      %v4603 = vrot.slane %v4601, 5
      %v4604 = vsel %vm2619, %v4599, %v4603
      %v4605 = vshrl.u32 %v4481, 16
      %v4607 = vrot.slane %v4605, 4
      %v4608 = vor.u32 %v4607, %v4603
      %v4609 = vrot.slane %v4608, 4
      %v4611 = vshll.u32 %v4482, 16
      %v4613 = vrot.slane %v4611, 5
      %v4614 = vsel %vm2619, %v4609, %v4613
      %v4616 = vshrl.u32 %v4483, 16
      %v4618 = vrot.slane %v4616, 4
      %v4619 = vshll.u32 %v4483, 16
      %v4621 = vrot.slane %v4619, 5
      %v4622 = vor.u32 %v4618, %v4621
      %v4623 = vrot.slane %v4622, 4
      %v4625 = vshll.u32 %v4484, 16
      %v4627 = vrot.slane %v4625, 5
      %v4628 = vsel %vm2619, %v4623, %v4627
      %v4629 = vshrl.u32 %v4484, 16
      %v4631 = vrot.slane %v4629, 4
      %v4632 = vor.u32 %v4631, %v4627
      %v4633 = vrot.slane %v4632, 4
      %v4635 = vshll.u32 %v4485, 16
      %v4637 = vrot.slane %v4635, 5
      %v4638 = vsel %vm2619, %v4633, %v4637
      %v4640 = vshrl.u32 %v4486, 16
      %v4642 = vrot.slane %v4640, 4
      %v4643 = vshll.u32 %v4486, 16
      %v4645 = vrot.slane %v4643, 5
      %v4646 = vor.u32 %v4642, %v4645
      %v4647 = vrot.slane %v4646, 4
      %v4649 = vshll.u32 %v4487, 16
      %v4651 = vrot.slane %v4649, 5
      %v4652 = vsel %vm2619, %v4647, %v4651
      %v4653 = vshrl.u32 %v4487, 16
      %v4655 = vrot.slane %v4653, 4
      %v4656 = vor.u32 %v4655, %v4651
      %v4657 = vrot.slane %v4656, 4
      %v4659 = vshll.u32 %v4488, 16
      %v4661 = vrot.slane %v4659, 5
      %v4662 = vsel %vm2619, %v4657, %v4661
      %v4664 = vshrl.u32 %v4489, 16
      %v4666 = vrot.slane %v4664, 4
      %v4667 = vshll.u32 %v4489, 16
      %v4669 = vrot.slane %v4667, 5
      %v4670 = vor.u32 %v4666, %v4669
      %v4671 = vrot.slane %v4670, 4
      %v4673 = vshll.u32 %v4490, 16
      %v4675 = vrot.slane %v4673, 5
      %v4676 = vsel %vm2619, %v4671, %v4675
      %v4677 = vshrl.u32 %v4490, 16
      %v4679 = vrot.slane %v4677, 4
      %v4680 = vor.u32 %v4679, %v4675
      %v4681 = vrot.slane %v4680, 4
      %v4683 = vshll.u32 %v4491, 16
      %v4685 = vrot.slane %v4683, 5
      %v4686 = vsel %vm2619, %v4681, %v4685
      %v4688 = vshrl.u32 %v4492, 16
      %v4690 = vrot.slane %v4688, 4
      %v4691 = vshll.u32 %v4492, 16
      %v4693 = vrot.slane %v4691, 5
      %v4694 = vor.u32 %v4690, %v4693
      %v4695 = vrot.slane %v4694, 4
      %v4697 = vshll.u32 %v4493, 16
      %v4699 = vrot.slane %v4697, 5
      %v4700 = vsel %vm2619, %v4695, %v4699
      %v4701 = vshrl.u32 %v4493, 16
      %v4703 = vrot.slane %v4701, 4
      %v4704 = vor.u32 %v4703, %v4699
      %v4705 = vrot.slane %v4704, 4
      %v4707 = vshll.u32 %v4494, 16
      %v4709 = vrot.slane %v4707, 5
      %v4710 = vsel %vm2619, %v4705, %v4709
      %v4712 = vshrl.u32 %v4495, 16
      %v4714 = vrot.slane %v4712, 4
      %v4715 = vshll.u32 %v4495, 16
      %v4717 = vrot.slane %v4715, 5
      %v4718 = vor.u32 %v4714, %v4717
      %v4719 = vrot.slane %v4718, 4
      %v4721 = vshll.u32 %v4496, 16
      %v4723 = vrot.slane %v4721, 5
      %v4724 = vsel %vm2619, %v4719, %v4723
      %v4725 = vshrl.u32 %v4496, 16
      %v4727 = vrot.slane %v4725, 4
      %v4728 = vor.u32 %v4727, %v4723
      %v4729 = vrot.slane %v4728, 4
      %v4731 = vshll.u32 %v4497, 16
      %v4733 = vrot.slane %v4731, 5
      %v4734 = vsel %vm2619, %v4729, %v4733
      %v4736 = vshrl.u32 %v4498, 16
      %v4738 = vrot.slane %v4736, 4
      %v4739 = vshll.u32 %v4498, 16
      %v4741 = vrot.slane %v4739, 5
      %v4742 = vor.u32 %v4738, %v4741
      %v4743 = vrot.slane %v4742, 4
      %v4745 = vshll.u32 %v4499, 16
      %v4747 = vrot.slane %v4745, 5
      %v4748 = vsel %vm2619, %v4743, %v4747
      %v4749 = vshrl.u32 %v4499, 16
      %v4751 = vrot.slane %v4749, 4
      %v4752 = vor.u32 %v4751, %v4747
      %v4753 = vrot.slane %v4752, 4
      %v4755 = vshll.u32 %v4500, 16
      %v4757 = vrot.slane %v4755, 5
      %v4758 = vsel %vm2619, %v4753, %v4757
      %v4760 = vshrl.u32 %v4501, 16
      %v4762 = vrot.slane %v4760, 4
      %v4763 = vshll.u32 %v4501, 16
      %v4765 = vrot.slane %v4763, 5
      %v4766 = vor.u32 %v4762, %v4765
      %v4767 = vrot.slane %v4766, 4
      %v4769 = vshll.u32 %v4502, 16
      %v4771 = vrot.slane %v4769, 5
      %v4772 = vsel %vm2619, %v4767, %v4771
      %v4773 = vshrl.u32 %v4502, 16
      %v4775 = vrot.slane %v4773, 4
      %v4776 = vor.u32 %v4775, %v4771
      %v4777 = vrot.slane %v4776, 4
      %v4779 = vshll.u32 %v4503, 16
      %v4781 = vrot.slane %v4779, 5
      %v4782 = vsel %vm2619, %v4777, %v4781
      %v4784 = vshrl.u32 %v4504, 16
      %v4786 = vrot.slane %v4784, 4
      %v4787 = vshll.u32 %v4504, 16
      %v4789 = vrot.slane %v4787, 5
      %v4790 = vor.u32 %v4786, %v4789
      %v4791 = vrot.slane %v4790, 4
      %v4793 = vshll.u32 %v4505, 16
      %v4795 = vrot.slane %v4793, 5
      %v4796 = vsel %vm2619, %v4791, %v4795
      %v4797 = vshrl.u32 %v4505, 16
      %v4799 = vrot.slane %v4797, 4
      %v4800 = vor.u32 %v4799, %v4795
      %v4801 = vrot.slane %v4800, 4
      %v4803 = vshll.u32 %v4506, 16
      %v4805 = vrot.slane %v4803, 5
      %v4806 = vsel %vm2619, %v4801, %v4805
      %v4808 = vshrl.u32 %v4507, 16
      %v4810 = vrot.slane %v4808, 4
      %v4811 = vshll.u32 %v4507, 16
      %v4813 = vrot.slane %v4811, 5
      %v4814 = vor.u32 %v4810, %v4813
      %v4815 = vrot.slane %v4814, 4
      %v4817 = vshll.u32 %v4508, 16
      %v4819 = vrot.slane %v4817, 5
      %v4820 = vsel %vm2619, %v4815, %v4819
      %v4821 = vshrl.u32 %v4508, 16
      %v4823 = vrot.slane %v4821, 4
      %v4824 = vor.u32 %v4823, %v4819
      %v4825 = vrot.slane %v4824, 4
      %v4827 = vshll.u32 %v4509, 16
      %v4829 = vrot.slane %v4827, 5
      %v4830 = vsel %vm2619, %v4825, %v4829
      %v4832 = vshrl.u32 %v4510, 16
      %v4834 = vrot.slane %v4832, 4
      %v4835 = vshll.u32 %v4510, 16
      %v4837 = vrot.slane %v4835, 5
      %v4838 = vor.u32 %v4834, %v4837
      %v4839 = vrot.slane %v4838, 4
      %v4841 = vshll.u32 %v4511, 16
      %v4843 = vrot.slane %v4841, 5
      %v4844 = vsel %vm2619, %v4839, %v4843
      %v4845 = vshrl.u32 %v4511, 16
      %v4847 = vrot.slane %v4845, 4
      %v4848 = vor.u32 %v4847, %v4843
      %v4849 = vrot.slane %v4848, 4
      %v4851 = vshll.u32 %v4512, 16
      %v4853 = vrot.slane %v4851, 5
      %v4854 = vsel %vm2619, %v4849, %v4853
      %v4856 = vshrl.u32 %v4513, 16
      %v4858 = vrot.slane %v4856, 4
      %v4859 = vshll.u32 %v4513, 16
      %v4861 = vrot.slane %v4859, 5
      %v4862 = vor.u32 %v4858, %v4861
      %v4863 = vrot.slane %v4862, 4
      %v4865 = vshll.u32 %v4514, 16
      %v4867 = vrot.slane %v4865, 5
      %v4868 = vsel %vm2619, %v4863, %v4867
      %v4869 = vshrl.u32 %v4514, 16
      %v4871 = vrot.slane %v4869, 4
      %v4872 = vor.u32 %v4871, %v4867
      %v4873 = vrot.slane %v4872, 4
      %v4875 = vshll.u32 %v4515, 16
      %v4877 = vrot.slane %v4875, 5
      %v4878 = vsel %vm2619, %v4873, %v4877
      %v4880 = vshrl.u32 %v4516, 16
      %v4882 = vrot.slane %v4880, 4
      %v4883 = vshll.u32 %v4516, 16
      %v4885 = vrot.slane %v4883, 5
      %v4886 = vor.u32 %v4882, %v4885
      %v4887 = vrot.slane %v4886, 4
      %v4889 = vshll.u32 %v4517, 16
      %v4891 = vrot.slane %v4889, 5
      %v4892 = vsel %vm2619, %v4887, %v4891
      %v4893 = vshrl.u32 %v4517, 16
      %v4895 = vrot.slane %v4893, 4
      %v4896 = vor.u32 %v4895, %v4891
      %v4897 = vrot.slane %v4896, 4
      %v4899 = vshll.u32 %v4518, 16
      %v4901 = vrot.slane %v4899, 5
      %v4902 = vsel %vm2619, %v4897, %v4901
      %s4903 = scalar_lea.vmem %s2, 256
      %v4904 = vld [vmem:[%s4903] sm:$0xf]
      %v4905 = vld [vmem:[%s4903 + $0x4] sm:$0xf]
      %v4906 = vld [vmem:[%s4903 + $0x8] sm:$0xf]
      %v4907 = vld [vmem:[%s4903 + $0xc] sm:$0xf]
      %v4908 = vld [vmem:[%s4903 + $0x10] sm:$0xf]
      %v4909 = vld [vmem:[%s4903 + $0x14] sm:$0xf]
      %v4910 = vld [vmem:[%s4903 + $0x18] sm:$0xf]
      %v4911 = vld [vmem:[%s4903 + $0x1c] sm:$0xf]
      %v4912 = vld [vmem:[%s4903 + $0x20] sm:$0xf]
      %v4913 = vld [vmem:[%s4903 + $0x24] sm:$0xf]
      %v4914 = vld [vmem:[%s4903 + $0x28] sm:$0xf]
      %v4915 = vld [vmem:[%s4903 + $0x2c] sm:$0xf]
      %v4916 = vld [vmem:[%s4903 + $0x30] sm:$0xf]
      %v4917 = vld [vmem:[%s4903 + $0x34] sm:$0xf]
      %v4918 = vld [vmem:[%s4903 + $0x38] sm:$0xf]
      %v4919 = vld [vmem:[%s4903 + $0x3c] sm:$0xf]
      %v4920 = vunpack.c.l.b16 %v4532
      %v4921 = vunpack.c.l.b16 %v4542
      %v4922 = vunpack.c.l.b16 %v4556
      %v4923 = vunpack.c.l.b16 %v4566
      %v4924 = vunpack.c.l.b16 %v4580
      %v4925 = vunpack.c.l.b16 %v4590
      %v4926 = vunpack.c.l.b16 %v4604
      %v4927 = vunpack.c.l.b16 %v4614
      %v4928 = vunpack.c.l.b16 %v4628
      %v4929 = vunpack.c.l.b16 %v4638
      %v4930 = vunpack.c.l.b16 %v4652
      %v4931 = vunpack.c.l.b16 %v4662
      %v4932 = vunpack.c.l.b16 %v4676
      %v4933 = vunpack.c.l.b16 %v4686
      %v4934 = vunpack.c.l.b16 %v4700
      %v4935 = vunpack.c.l.b16 %v4710
      %v4936 = vunpack.c.l.b16 %v4724
      %v4937 = vunpack.c.l.b16 %v4734
      %v4938 = vunpack.c.l.b16 %v4748
      %v4939 = vunpack.c.l.b16 %v4758
      %v4940 = vunpack.c.l.b16 %v4772
      %v4941 = vunpack.c.l.b16 %v4782
      %v4942 = vunpack.c.l.b16 %v4796
      %v4943 = vunpack.c.l.b16 %v4806
      %v4944 = vunpack.c.l.b16 %v4820
      %v4945 = vunpack.c.l.b16 %v4830
      %v4946 = vunpack.c.l.b16 %v4844
      %v4947 = vunpack.c.l.b16 %v4854
      %v4948 = vunpack.c.l.b16 %v4868
      %v4949 = vunpack.c.l.b16 %v4878
      %v4950 = vunpack.c.l.b16 %v4892
      %v4951 = vunpack.c.l.b16 %v4902
      %v4952 = vpack.c.b16 %v4921, %v4920
      %v4953 = vpack.c.b16 %v4923, %v4922
      %v4954 = vpack.c.b16 %v4925, %v4924
      %v4955 = vpack.c.b16 %v4927, %v4926
      %v4956 = vpack.c.b16 %v4929, %v4928
      %v4957 = vpack.c.b16 %v4931, %v4930
      %v4958 = vpack.c.b16 %v4933, %v4932
      %v4959 = vpack.c.b16 %v4935, %v4934
      %v4960 = vpack.c.b16 %v4937, %v4936
      %v4961 = vpack.c.b16 %v4939, %v4938
      %v4962 = vpack.c.b16 %v4941, %v4940
      %v4963 = vpack.c.b16 %v4943, %v4942
      %v4964 = vpack.c.b16 %v4945, %v4944
      %v4965 = vpack.c.b16 %v4947, %v4946
      %v4966 = vpack.c.b16 %v4949, %v4948
      %v4967 = vpack.c.b16 %v4951, %v4950
      %v5000 = vunpack.c.l.b16 %v4904
      %v5001 = vunpack.c.l.b16 %v4905
      %v5002 = vunpack.c.l.b16 %v4906
      %v5003 = vunpack.c.l.b16 %v4907
      %v5004 = vunpack.c.l.b16 %v4908
      %v5005 = vunpack.c.l.b16 %v4909
      %v5006 = vunpack.c.l.b16 %v4910
      %v5007 = vunpack.c.l.b16 %v4911
      %v5008 = vunpack.c.l.b16 %v4912
      %v5009 = vunpack.c.l.b16 %v4913
      %v5010 = vunpack.c.l.b16 %v4914
      %v5011 = vunpack.c.l.b16 %v4915
      %v5012 = vunpack.c.l.b16 %v4916
      %v5013 = vunpack.c.l.b16 %v4917
      %v5014 = vunpack.c.l.b16 %v4918
      %v5015 = vunpack.c.l.b16 %v4919
      %v5016 = vpack.c.b16 %v5001, %v5000
      %v5017 = vpack.c.b16 %v5003, %v5002
      %v5018 = vpack.c.b16 %v5005, %v5004
      %v5019 = vpack.c.b16 %v5007, %v5006
      %v5020 = vpack.c.b16 %v5009, %v5008
      %v5021 = vpack.c.b16 %v5011, %v5010
      %v5022 = vpack.c.b16 %v5013, %v5012
      %v5023 = vpack.c.b16 %v5015, %v5014
      %5032 = vmatprep.subr.bf16.mxu0 0
      %5033 = vmatpush1.bf16.msra.mxu0 %v5023
      %5034 = vmatprep.subr.bf16.mxu0 0
      %5035 = vmatpush1.bf16.msra.mxu0 %v5022
      %5036 = vmatprep.subr.bf16.mxu0 0
      %5037 = vmatpush1.bf16.msra.mxu0 %v5021
      %5038 = vmatprep.subr.bf16.mxu0 0
      %5039 = vmatpush1.bf16.msra.mxu0 %v5020
      %5040 = vmatprep.subr.bf16.mxu0 0
      %5041 = vmatpush1.bf16.msra.mxu0 %v5019
      %5042 = vmatprep.subr.bf16.mxu0 0
      %5043 = vmatpush1.bf16.msra.mxu0 %v5018
      %5044 = vmatprep.subr.bf16.mxu0 0
      %5045 = vmatpush1.bf16.msra.mxu0 %v5017
      %5046 = vmatprep.subr.bf16.mxu0 0
      %5047 = vmatpush1.bf16.msra.mxu0 %v5016
      %5048 = vmatprep.subr.bf16.mxu0 0
      %5049 = vmatpush2.bf16.msra.mxu0 0
      %5050 = vmatprep.subr.bf16.mxu0 0
      %5051 = vmatpush2.bf16.msra.mxu0 0
      %5052 = vmatprep.subr.bf16.mxu0 0
      %5053 = vmatpush2.bf16.msra.mxu0 0
      %5054 = vmatprep.subr.bf16.mxu0 0
      %5055 = vmatpush2.bf16.msra.mxu0 0
      %5056 = vmatprep.subr.bf16.mxu0 0
      %5057 = vmatpush2.bf16.msra.mxu0 0
      %5058 = vmatprep.subr.bf16.mxu0 0
      %5059 = vmatpush2.bf16.msra.mxu0 0
      %5060 = vmatprep.subr.bf16.mxu0 0
      %5061 = vmatpush2.bf16.msra.mxu0 0
      %5062 = vmatprep.subr.bf16.mxu0 0
      %5063 = vmatpush2.bf16.msra.mxu0 0
      %5064 = vmatprep.mubr.bf16.mxu0 0
      %5065 = vmatmul.mubr.bf16.gmra.mxu0 %v4952
      %v5066 = vpop.f32.mrf.mxu0
      %v5067 = vadd.f32 0.0, %v5066
      %v5068 = vpop.f32.mrf.mxu0
      %v5069 = vpop.f32.mrf.mxu0
      %v5070 = vadd.f32 0.0, %v5069
      %v5071 = vpop.f32.mrf.mxu0
      %5072 = vmatprep.mubr.bf16.mxu0 0
      %5073 = vmatmul.mubr.bf16.gmra.mxu0 %v4953
      %v5074 = vpop.f32.mrf.mxu0
      %v5075 = vadd.f32 0.0, %v5074
      %v5076 = vpop.f32.mrf.mxu0
      %v5077 = vpop.f32.mrf.mxu0
      %v5078 = vadd.f32 0.0, %v5077
      %v5079 = vpop.f32.mrf.mxu0
      %5080 = vmatprep.mubr.bf16.mxu0 0
      %5081 = vmatmul.mubr.bf16.gmra.mxu0 %v4954
      %v5082 = vpop.f32.mrf.mxu0
      %v5083 = vadd.f32 0.0, %v5082
      %v5084 = vpop.f32.mrf.mxu0
      %v5085 = vpop.f32.mrf.mxu0
      %v5086 = vadd.f32 0.0, %v5085
      %v5087 = vpop.f32.mrf.mxu0
      %5088 = vmatprep.mubr.bf16.mxu0 0
      %5089 = vmatmul.mubr.bf16.gmra.mxu0 %v4955
      %v5090 = vpop.f32.mrf.mxu0
      %v5091 = vadd.f32 0.0, %v5090
      %v5092 = vpop.f32.mrf.mxu0
      %v5093 = vpop.f32.mrf.mxu0
      %v5094 = vadd.f32 0.0, %v5093
      %v5095 = vpop.f32.mrf.mxu0
      %5096 = vmatprep.mubr.bf16.mxu0 0
      %5097 = vmatmul.mubr.bf16.gmra.mxu0 %v4956
      %v5098 = vpop.f32.mrf.mxu0
      %v5099 = vadd.f32 0.0, %v5098
      %v5100 = vpop.f32.mrf.mxu0
      %v5101 = vpop.f32.mrf.mxu0
      %v5102 = vadd.f32 0.0, %v5101
      %v5103 = vpop.f32.mrf.mxu0
      %5104 = vmatprep.mubr.bf16.mxu0 0
      %5105 = vmatmul.mubr.bf16.gmra.mxu0 %v4957
      %v5106 = vpop.f32.mrf.mxu0
      %v5107 = vadd.f32 0.0, %v5106
      %v5108 = vpop.f32.mrf.mxu0
      %v5109 = vpop.f32.mrf.mxu0
      %v5110 = vadd.f32 0.0, %v5109
      %v5111 = vpop.f32.mrf.mxu0
      %5112 = vmatprep.mubr.bf16.mxu0 0
      %5113 = vmatmul.mubr.bf16.gmra.mxu0 %v4958
      %v5114 = vpop.f32.mrf.mxu0
      %v5115 = vadd.f32 0.0, %v5114
      %v5116 = vpop.f32.mrf.mxu0
      %v5117 = vpop.f32.mrf.mxu0
      %v5118 = vadd.f32 0.0, %v5117
      %v5119 = vpop.f32.mrf.mxu0
      %5120 = vmatprep.mubr.bf16.mxu0 0
      %5121 = vmatmul.mubr.bf16.gmra.mxu0 %v4959
      %v5122 = vpop.f32.mrf.mxu0
      %v5123 = vadd.f32 0.0, %v5122
      %v5124 = vpop.f32.mrf.mxu0
      %v5125 = vpop.f32.mrf.mxu0
      %v5126 = vadd.f32 0.0, %v5125
      %v5127 = vpop.f32.mrf.mxu0
      %5128 = vmatprep.mubr.bf16.mxu0 0
      %5129 = vmatmul.mubr.bf16.gmra.mxu0 %v4960
      %v5130 = vpop.f32.mrf.mxu0
      %v5131 = vadd.f32 0.0, %v5130
      %v5132 = vpop.f32.mrf.mxu0
      %v5133 = vpop.f32.mrf.mxu0
      %v5134 = vadd.f32 0.0, %v5133
      %v5135 = vpop.f32.mrf.mxu0
      %5136 = vmatprep.mubr.bf16.mxu0 0
      %5137 = vmatmul.mubr.bf16.gmra.mxu0 %v4961
      %v5138 = vpop.f32.mrf.mxu0
      %v5139 = vadd.f32 0.0, %v5138
      %v5140 = vpop.f32.mrf.mxu0
      %v5141 = vpop.f32.mrf.mxu0
      %v5142 = vadd.f32 0.0, %v5141
      %v5143 = vpop.f32.mrf.mxu0
      %5144 = vmatprep.mubr.bf16.mxu0 0
      %5145 = vmatmul.mubr.bf16.gmra.mxu0 %v4962
      %v5146 = vpop.f32.mrf.mxu0
      %v5147 = vadd.f32 0.0, %v5146
      %v5148 = vpop.f32.mrf.mxu0
      %v5149 = vpop.f32.mrf.mxu0
      %v5150 = vadd.f32 0.0, %v5149
      %v5151 = vpop.f32.mrf.mxu0
      %5152 = vmatprep.mubr.bf16.mxu0 0
      %5153 = vmatmul.mubr.bf16.gmra.mxu0 %v4963
      %v5154 = vpop.f32.mrf.mxu0
      %v5155 = vadd.f32 0.0, %v5154
      %v5156 = vpop.f32.mrf.mxu0
      %v5157 = vpop.f32.mrf.mxu0
      %v5158 = vadd.f32 0.0, %v5157
      %v5159 = vpop.f32.mrf.mxu0
      %5160 = vmatprep.mubr.bf16.mxu0 0
      %5161 = vmatmul.mubr.bf16.gmra.mxu0 %v4964
      %v5162 = vpop.f32.mrf.mxu0
      %v5163 = vadd.f32 0.0, %v5162
      %v5164 = vpop.f32.mrf.mxu0
      %v5165 = vpop.f32.mrf.mxu0
      %v5166 = vadd.f32 0.0, %v5165
      %v5167 = vpop.f32.mrf.mxu0
      %5168 = vmatprep.mubr.bf16.mxu0 0
      %5169 = vmatmul.mubr.bf16.gmra.mxu0 %v4965
      %v5170 = vpop.f32.mrf.mxu0
      %v5171 = vadd.f32 0.0, %v5170
      %v5172 = vpop.f32.mrf.mxu0
      %v5173 = vpop.f32.mrf.mxu0
      %v5174 = vadd.f32 0.0, %v5173
      %v5175 = vpop.f32.mrf.mxu0
      %5176 = vmatprep.mubr.bf16.mxu0 0
      %5177 = vmatmul.mubr.bf16.gmra.mxu0 %v4966
      %v5178 = vpop.f32.mrf.mxu0
      %v5179 = vadd.f32 0.0, %v5178
      %v5180 = vpop.f32.mrf.mxu0
      %v5181 = vpop.f32.mrf.mxu0
      %v5182 = vadd.f32 0.0, %v5181
      %v5183 = vpop.f32.mrf.mxu0
      %5184 = vmatprep.mubr.bf16.mxu0 0
      %5185 = vmatmul.mubr.bf16.gmra.mxu0 %v4967
      %v5186 = vpop.f32.mrf.mxu0
      %v5187 = vadd.f32 0.0, %v5186
      %v5188 = vpop.f32.mrf.mxu0
      %v5189 = vpop.f32.mrf.mxu0
      %v5190 = vadd.f32 0.0, %v5189
      %v5191 = vpop.f32.mrf.mxu0
      %5192 = vdwg.mxu0
      %v5193 = vadd.f32 %v4439, %v5067
      %v5194 = vadd.f32 %v4440, %v5070
      %v5195 = vadd.f32 %v4441, %v5075
      %v5196 = vadd.f32 %v4442, %v5078
      %v5197 = vadd.f32 %v4443, %v5083
      %v5198 = vadd.f32 %v4444, %v5086
      %v5199 = vadd.f32 %v4445, %v5091
      %v5200 = vadd.f32 %v4446, %v5094
      %v5201 = vadd.f32 %v4447, %v5099
      %v5202 = vadd.f32 %v4448, %v5102
      %v5203 = vadd.f32 %v4449, %v5107
      %v5204 = vadd.f32 %v4450, %v5110
      %v5205 = vadd.f32 %v4451, %v5115
      %v5206 = vadd.f32 %v4452, %v5118
      %v5207 = vadd.f32 %v4453, %v5123
      %v5208 = vadd.f32 %v4454, %v5126
      %v5209 = vadd.f32 %v4455, %v5131
      %v5210 = vadd.f32 %v4456, %v5134
      %v5211 = vadd.f32 %v4457, %v5139
      %v5212 = vadd.f32 %v4458, %v5142
      %v5213 = vadd.f32 %v4459, %v5147
      %v5214 = vadd.f32 %v4460, %v5150
      %v5215 = vadd.f32 %v4461, %v5155
      %v5216 = vadd.f32 %v4462, %v5158
      %v5217 = vadd.f32 %v4463, %v5163
      %v5218 = vadd.f32 %v4464, %v5166
      %v5219 = vadd.f32 %v4465, %v5171
      %v5220 = vadd.f32 %v4466, %v5174
      %v5221 = vadd.f32 %v4467, %v5179
      %v5222 = vadd.f32 %v4468, %v5182
      %v5223 = vadd.f32 %v4469, %v5187
      %v5224 = vadd.f32 %v4470, %v5190
      %v5225 = vld [vmem:[%s4084] sm:$0xe]
      %v5226 = vld [vmem:[%s4084 + $0xc] sm:$0xe]
      %v5227 = vld [vmem:[%s4084 + $0x18] sm:$0xe]
      %v5228 = vld [vmem:[%s4084 + $0x24] sm:$0xe]
      %v5229 = vld [vmem:[%s4084 + $0x30] sm:$0xe]
      %v5230 = vld [vmem:[%s4084 + $0x3c] sm:$0xe]
      %v5231 = vld [vmem:[%s4084 + $0x48] sm:$0xe]
      %v5232 = vld [vmem:[%s4084 + $0x54] sm:$0xe]
      %v5233 = vld [vmem:[%s4084 + $0x60] sm:$0xe]
      %v5234 = vld [vmem:[%s4084 + $0x6c] sm:$0xe]
      %v5235 = vld [vmem:[%s4084 + $0x78] sm:$0xe]
      %v5236 = vld [vmem:[%s4084 + $0x84] sm:$0xe]
      %v5237 = vld [vmem:[%s4084 + $0x90] sm:$0xe]
      %v5238 = vld [vmem:[%s4084 + $0x9c] sm:$0xe]
      %v5239 = vld [vmem:[%s4084 + $0xa8] sm:$0xe]
      %v5240 = vld [vmem:[%s4084 + $0xb4] sm:$0xe]
      %v5289 = vrot.slane %v5225, 5
      %v5290 = vrot.slane %v5289, 4
      %v5291 = vrot.slane %v4472, 5
      %v5292 = vsel %vm3649, %v5290, %v5291
      %v5293 = vrot.slane %v5291, 4
      %v5294 = vrot.slane %v4473, 5
      %v5295 = vsel %vm3649, %v5293, %v5294
      %v5296 = vrot.slane %v5226, 5
      %v5297 = vrot.slane %v5296, 4
      %v5298 = vrot.slane %v4475, 5
      %v5299 = vsel %vm3649, %v5297, %v5298
      %v5300 = vrot.slane %v5298, 4
      %v5301 = vrot.slane %v4476, 5
      %v5302 = vsel %vm3649, %v5300, %v5301
      %v5303 = vrot.slane %v5227, 5
      %v5304 = vrot.slane %v5303, 4
      %v5305 = vrot.slane %v4478, 5
      %v5306 = vsel %vm3649, %v5304, %v5305
      %v5307 = vrot.slane %v5305, 4
      %v5308 = vrot.slane %v4479, 5
      %v5309 = vsel %vm3649, %v5307, %v5308
      %v5310 = vrot.slane %v5228, 5
      %v5311 = vrot.slane %v5310, 4
      %v5312 = vrot.slane %v4481, 5
      %v5313 = vsel %vm3649, %v5311, %v5312
      %v5314 = vrot.slane %v5312, 4
      %v5315 = vrot.slane %v4482, 5
      %v5316 = vsel %vm3649, %v5314, %v5315
      %v5317 = vrot.slane %v5229, 5
      %v5318 = vrot.slane %v5317, 4
      %v5319 = vrot.slane %v4484, 5
      %v5320 = vsel %vm3649, %v5318, %v5319
      %v5321 = vrot.slane %v5319, 4
      %v5322 = vrot.slane %v4485, 5
      %v5323 = vsel %vm3649, %v5321, %v5322
      %v5324 = vrot.slane %v5230, 5
      %v5325 = vrot.slane %v5324, 4
      %v5326 = vrot.slane %v4487, 5
      %v5327 = vsel %vm3649, %v5325, %v5326
      %v5328 = vrot.slane %v5326, 4
      %v5329 = vrot.slane %v4488, 5
      %v5330 = vsel %vm3649, %v5328, %v5329
      %v5331 = vrot.slane %v5231, 5
      %v5332 = vrot.slane %v5331, 4
      %v5333 = vrot.slane %v4490, 5
      %v5334 = vsel %vm3649, %v5332, %v5333
      %v5335 = vrot.slane %v5333, 4
      %v5336 = vrot.slane %v4491, 5
      %v5337 = vsel %vm3649, %v5335, %v5336
      %v5338 = vrot.slane %v5232, 5
      %v5339 = vrot.slane %v5338, 4
      %v5340 = vrot.slane %v4493, 5
      %v5341 = vsel %vm3649, %v5339, %v5340
      %v5342 = vrot.slane %v5340, 4
      %v5343 = vrot.slane %v4494, 5
      %v5344 = vsel %vm3649, %v5342, %v5343
      %v5345 = vrot.slane %v5233, 5
      %v5346 = vrot.slane %v5345, 4
      %v5347 = vrot.slane %v4496, 5
      %v5348 = vsel %vm3649, %v5346, %v5347
      %v5349 = vrot.slane %v5347, 4
      %v5350 = vrot.slane %v4497, 5
      %v5351 = vsel %vm3649, %v5349, %v5350
      %v5352 = vrot.slane %v5234, 5
      %v5353 = vrot.slane %v5352, 4
      %v5354 = vrot.slane %v4499, 5
      %v5355 = vsel %vm3649, %v5353, %v5354
      %v5356 = vrot.slane %v5354, 4
      %v5357 = vrot.slane %v4500, 5
      %v5358 = vsel %vm3649, %v5356, %v5357
      %v5359 = vrot.slane %v5235, 5
      %v5360 = vrot.slane %v5359, 4
      %v5361 = vrot.slane %v4502, 5
      %v5362 = vsel %vm3649, %v5360, %v5361
      %v5363 = vrot.slane %v5361, 4
      %v5364 = vrot.slane %v4503, 5
      %v5365 = vsel %vm3649, %v5363, %v5364
      %v5366 = vrot.slane %v5236, 5
      %v5367 = vrot.slane %v5366, 4
      %v5368 = vrot.slane %v4505, 5
      %v5369 = vsel %vm3649, %v5367, %v5368
      %v5370 = vrot.slane %v5368, 4
      %v5371 = vrot.slane %v4506, 5
      %v5372 = vsel %vm3649, %v5370, %v5371
      %v5373 = vrot.slane %v5237, 5
      %v5374 = vrot.slane %v5373, 4
      %v5375 = vrot.slane %v4508, 5
      %v5376 = vsel %vm3649, %v5374, %v5375
      %v5377 = vrot.slane %v5375, 4
      %v5378 = vrot.slane %v4509, 5
      %v5379 = vsel %vm3649, %v5377, %v5378
      %v5380 = vrot.slane %v5238, 5
      %v5381 = vrot.slane %v5380, 4
      %v5382 = vrot.slane %v4511, 5
      %v5383 = vsel %vm3649, %v5381, %v5382
      %v5384 = vrot.slane %v5382, 4
      %v5385 = vrot.slane %v4512, 5
      %v5386 = vsel %vm3649, %v5384, %v5385
      %v5387 = vrot.slane %v5239, 5
      %v5388 = vrot.slane %v5387, 4
      %v5389 = vrot.slane %v4514, 5
      %v5390 = vsel %vm3649, %v5388, %v5389
      %v5391 = vrot.slane %v5389, 4
      %v5392 = vrot.slane %v4515, 5
      %v5393 = vsel %vm3649, %v5391, %v5392
      %v5394 = vrot.slane %v5240, 5
      %v5395 = vrot.slane %v5394, 4
      %v5396 = vrot.slane %v4517, 5
      %v5397 = vsel %vm3649, %v5395, %v5396
      %v5398 = vrot.slane %v5396, 4
      %v5399 = vrot.slane %v4518, 5
      %v5400 = vsel %vm3649, %v5398, %v5399
      %s5401 = scalar_lea.vmem %s2, 320
      %v5402 = vld [vmem:[%s5401] sm:$0xf]
      %v5403 = vld [vmem:[%s5401 + $0x4] sm:$0xf]
      %v5404 = vld [vmem:[%s5401 + $0x8] sm:$0xf]
      %v5405 = vld [vmem:[%s5401 + $0xc] sm:$0xf]
      %v5406 = vld [vmem:[%s5401 + $0x10] sm:$0xf]
      %v5407 = vld [vmem:[%s5401 + $0x14] sm:$0xf]
      %v5408 = vld [vmem:[%s5401 + $0x18] sm:$0xf]
      %v5409 = vld [vmem:[%s5401 + $0x1c] sm:$0xf]
      %v5410 = vld [vmem:[%s5401 + $0x20] sm:$0xf]
      %v5411 = vld [vmem:[%s5401 + $0x24] sm:$0xf]
      %v5412 = vld [vmem:[%s5401 + $0x28] sm:$0xf]
      %v5413 = vld [vmem:[%s5401 + $0x2c] sm:$0xf]
      %v5414 = vld [vmem:[%s5401 + $0x30] sm:$0xf]
      %v5415 = vld [vmem:[%s5401 + $0x34] sm:$0xf]
      %v5416 = vld [vmem:[%s5401 + $0x38] sm:$0xf]
      %v5417 = vld [vmem:[%s5401 + $0x3c] sm:$0xf]
      %v5418 = vunpack.c.l.b16 %v5292
      %v5419 = vunpack.c.l.b16 %v5295
      %v5420 = vunpack.c.l.b16 %v5299
      %v5421 = vunpack.c.l.b16 %v5302
      %v5422 = vunpack.c.l.b16 %v5306
      %v5423 = vunpack.c.l.b16 %v5309
      %v5424 = vunpack.c.l.b16 %v5313
      %v5425 = vunpack.c.l.b16 %v5316
      %v5426 = vunpack.c.l.b16 %v5320
      %v5427 = vunpack.c.l.b16 %v5323
      %v5428 = vunpack.c.l.b16 %v5327
      %v5429 = vunpack.c.l.b16 %v5330
      %v5430 = vunpack.c.l.b16 %v5334
      %v5431 = vunpack.c.l.b16 %v5337
      %v5432 = vunpack.c.l.b16 %v5341
      %v5433 = vunpack.c.l.b16 %v5344
      %v5434 = vunpack.c.l.b16 %v5348
      %v5435 = vunpack.c.l.b16 %v5351
      %v5436 = vunpack.c.l.b16 %v5355
      %v5437 = vunpack.c.l.b16 %v5358
      %v5438 = vunpack.c.l.b16 %v5362
      %v5439 = vunpack.c.l.b16 %v5365
      %v5440 = vunpack.c.l.b16 %v5369
      %v5441 = vunpack.c.l.b16 %v5372
      %v5442 = vunpack.c.l.b16 %v5376
      %v5443 = vunpack.c.l.b16 %v5379
      %v5444 = vunpack.c.l.b16 %v5383
      %v5445 = vunpack.c.l.b16 %v5386
      %v5446 = vunpack.c.l.b16 %v5390
      %v5447 = vunpack.c.l.b16 %v5393
      %v5448 = vunpack.c.l.b16 %v5397
      %v5449 = vunpack.c.l.b16 %v5400
      %v5450 = vpack.c.b16 %v5419, %v5418
      %v5451 = vpack.c.b16 %v5421, %v5420
      %v5452 = vpack.c.b16 %v5423, %v5422
      %v5453 = vpack.c.b16 %v5425, %v5424
      %v5454 = vpack.c.b16 %v5427, %v5426
      %v5455 = vpack.c.b16 %v5429, %v5428
      %v5456 = vpack.c.b16 %v5431, %v5430
      %v5457 = vpack.c.b16 %v5433, %v5432
      %v5458 = vpack.c.b16 %v5435, %v5434
      %v5459 = vpack.c.b16 %v5437, %v5436
      %v5460 = vpack.c.b16 %v5439, %v5438
      %v5461 = vpack.c.b16 %v5441, %v5440
      %v5462 = vpack.c.b16 %v5443, %v5442
      %v5463 = vpack.c.b16 %v5445, %v5444
      %v5464 = vpack.c.b16 %v5447, %v5446
      %v5465 = vpack.c.b16 %v5449, %v5448
      %v5498 = vunpack.c.l.b16 %v5402
      %v5499 = vunpack.c.l.b16 %v5403
      %v5500 = vunpack.c.l.b16 %v5404
      %v5501 = vunpack.c.l.b16 %v5405
      %v5502 = vunpack.c.l.b16 %v5406
      %v5503 = vunpack.c.l.b16 %v5407
      %v5504 = vunpack.c.l.b16 %v5408
      %v5505 = vunpack.c.l.b16 %v5409
      %v5506 = vunpack.c.l.b16 %v5410
      %v5507 = vunpack.c.l.b16 %v5411
      %v5508 = vunpack.c.l.b16 %v5412
      %v5509 = vunpack.c.l.b16 %v5413
      %v5510 = vunpack.c.l.b16 %v5414
      %v5511 = vunpack.c.l.b16 %v5415
      %v5512 = vunpack.c.l.b16 %v5416
      %v5513 = vunpack.c.l.b16 %v5417
      %v5514 = vpack.c.b16 %v5499, %v5498
      %v5515 = vpack.c.b16 %v5501, %v5500
      %v5516 = vpack.c.b16 %v5503, %v5502
      %v5517 = vpack.c.b16 %v5505, %v5504
      %v5518 = vpack.c.b16 %v5507, %v5506
      %v5519 = vpack.c.b16 %v5509, %v5508
      %v5520 = vpack.c.b16 %v5511, %v5510
      %v5521 = vpack.c.b16 %v5513, %v5512
      %5530 = vmatprep.subr.bf16.mxu0 0
      %5531 = vmatpush1.bf16.msra.mxu0 %v5521
      %5532 = vmatprep.subr.bf16.mxu0 0
      %5533 = vmatpush1.bf16.msra.mxu0 %v5520
      %5534 = vmatprep.subr.bf16.mxu0 0
      %5535 = vmatpush1.bf16.msra.mxu0 %v5519
      %5536 = vmatprep.subr.bf16.mxu0 0
      %5537 = vmatpush1.bf16.msra.mxu0 %v5518
      %5538 = vmatprep.subr.bf16.mxu0 0
      %5539 = vmatpush1.bf16.msra.mxu0 %v5517
      %5540 = vmatprep.subr.bf16.mxu0 0
      %5541 = vmatpush1.bf16.msra.mxu0 %v5516
      %5542 = vmatprep.subr.bf16.mxu0 0
      %5543 = vmatpush1.bf16.msra.mxu0 %v5515
      %5544 = vmatprep.subr.bf16.mxu0 0
      %5545 = vmatpush1.bf16.msra.mxu0 %v5514
      %5546 = vmatprep.subr.bf16.mxu0 0
      %5547 = vmatpush2.bf16.msra.mxu0 0
      %5548 = vmatprep.subr.bf16.mxu0 0
      %5549 = vmatpush2.bf16.msra.mxu0 0
      %5550 = vmatprep.subr.bf16.mxu0 0
      %5551 = vmatpush2.bf16.msra.mxu0 0
      %5552 = vmatprep.subr.bf16.mxu0 0
      %5553 = vmatpush2.bf16.msra.mxu0 0
      %5554 = vmatprep.subr.bf16.mxu0 0
      %5555 = vmatpush2.bf16.msra.mxu0 0
      %5556 = vmatprep.subr.bf16.mxu0 0
      %5557 = vmatpush2.bf16.msra.mxu0 0
      %5558 = vmatprep.subr.bf16.mxu0 0
      %5559 = vmatpush2.bf16.msra.mxu0 0
      %5560 = vmatprep.subr.bf16.mxu0 0
      %5561 = vmatpush2.bf16.msra.mxu0 0
      %5562 = vmatprep.mubr.bf16.mxu0 0
      %5563 = vmatmul.mubr.bf16.gmra.mxu0 %v5450
      %v5564 = vpop.f32.mrf.mxu0
      %v5565 = vadd.f32 0.0, %v5564
      %v5566 = vpop.f32.mrf.mxu0
      %v5567 = vpop.f32.mrf.mxu0
      %v5568 = vadd.f32 0.0, %v5567
      %v5569 = vpop.f32.mrf.mxu0
      %5570 = vmatprep.mubr.bf16.mxu0 0
      %5571 = vmatmul.mubr.bf16.gmra.mxu0 %v5451
      %v5572 = vpop.f32.mrf.mxu0
      %v5573 = vadd.f32 0.0, %v5572
      %v5574 = vpop.f32.mrf.mxu0
      %v5575 = vpop.f32.mrf.mxu0
      %v5576 = vadd.f32 0.0, %v5575
      %v5577 = vpop.f32.mrf.mxu0
      %5578 = vmatprep.mubr.bf16.mxu0 0
      %5579 = vmatmul.mubr.bf16.gmra.mxu0 %v5452
      %v5580 = vpop.f32.mrf.mxu0
      %v5581 = vadd.f32 0.0, %v5580
      %v5582 = vpop.f32.mrf.mxu0
      %v5583 = vpop.f32.mrf.mxu0
      %v5584 = vadd.f32 0.0, %v5583
      %v5585 = vpop.f32.mrf.mxu0
      %5586 = vmatprep.mubr.bf16.mxu0 0
      %5587 = vmatmul.mubr.bf16.gmra.mxu0 %v5453
      %v5588 = vpop.f32.mrf.mxu0
      %v5589 = vadd.f32 0.0, %v5588
      %v5590 = vpop.f32.mrf.mxu0
      %v5591 = vpop.f32.mrf.mxu0
      %v5592 = vadd.f32 0.0, %v5591
      %v5593 = vpop.f32.mrf.mxu0
      %5594 = vmatprep.mubr.bf16.mxu0 0
      %5595 = vmatmul.mubr.bf16.gmra.mxu0 %v5454
      %v5596 = vpop.f32.mrf.mxu0
      %v5597 = vadd.f32 0.0, %v5596
      %v5598 = vpop.f32.mrf.mxu0
      %v5599 = vpop.f32.mrf.mxu0
      %v5600 = vadd.f32 0.0, %v5599
      %v5601 = vpop.f32.mrf.mxu0
      %5602 = vmatprep.mubr.bf16.mxu0 0
      %5603 = vmatmul.mubr.bf16.gmra.mxu0 %v5455
      %v5604 = vpop.f32.mrf.mxu0
      %v5605 = vadd.f32 0.0, %v5604
      %v5606 = vpop.f32.mrf.mxu0
      %v5607 = vpop.f32.mrf.mxu0
      %v5608 = vadd.f32 0.0, %v5607
      %v5609 = vpop.f32.mrf.mxu0
      %5610 = vmatprep.mubr.bf16.mxu0 0
      %5611 = vmatmul.mubr.bf16.gmra.mxu0 %v5456
      %v5612 = vpop.f32.mrf.mxu0
      %v5613 = vadd.f32 0.0, %v5612
      %v5614 = vpop.f32.mrf.mxu0
      %v5615 = vpop.f32.mrf.mxu0
      %v5616 = vadd.f32 0.0, %v5615
      %v5617 = vpop.f32.mrf.mxu0
      %5618 = vmatprep.mubr.bf16.mxu0 0
      %5619 = vmatmul.mubr.bf16.gmra.mxu0 %v5457
      %v5620 = vpop.f32.mrf.mxu0
      %v5621 = vadd.f32 0.0, %v5620
      %v5622 = vpop.f32.mrf.mxu0
      %v5623 = vpop.f32.mrf.mxu0
      %v5624 = vadd.f32 0.0, %v5623
      %v5625 = vpop.f32.mrf.mxu0
      %5626 = vmatprep.mubr.bf16.mxu0 0
      %5627 = vmatmul.mubr.bf16.gmra.mxu0 %v5458
      %v5628 = vpop.f32.mrf.mxu0
      %v5629 = vadd.f32 0.0, %v5628
      %v5630 = vpop.f32.mrf.mxu0
      %v5631 = vpop.f32.mrf.mxu0
      %v5632 = vadd.f32 0.0, %v5631
      %v5633 = vpop.f32.mrf.mxu0
      %5634 = vmatprep.mubr.bf16.mxu0 0
      %5635 = vmatmul.mubr.bf16.gmra.mxu0 %v5459
      %v5636 = vpop.f32.mrf.mxu0
      %v5637 = vadd.f32 0.0, %v5636
      %v5638 = vpop.f32.mrf.mxu0
      %v5639 = vpop.f32.mrf.mxu0
      %v5640 = vadd.f32 0.0, %v5639
      %v5641 = vpop.f32.mrf.mxu0
      %5642 = vmatprep.mubr.bf16.mxu0 0
      %5643 = vmatmul.mubr.bf16.gmra.mxu0 %v5460
      %v5644 = vpop.f32.mrf.mxu0
      %v5645 = vadd.f32 0.0, %v5644
      %v5646 = vpop.f32.mrf.mxu0
      %v5647 = vpop.f32.mrf.mxu0
      %v5648 = vadd.f32 0.0, %v5647
      %v5649 = vpop.f32.mrf.mxu0
      %5650 = vmatprep.mubr.bf16.mxu0 0
      %5651 = vmatmul.mubr.bf16.gmra.mxu0 %v5461
      %v5652 = vpop.f32.mrf.mxu0
      %v5653 = vadd.f32 0.0, %v5652
      %v5654 = vpop.f32.mrf.mxu0
      %v5655 = vpop.f32.mrf.mxu0
      %v5656 = vadd.f32 0.0, %v5655
      %v5657 = vpop.f32.mrf.mxu0
      %5658 = vmatprep.mubr.bf16.mxu0 0
      %5659 = vmatmul.mubr.bf16.gmra.mxu0 %v5462
      %v5660 = vpop.f32.mrf.mxu0
      %v5661 = vadd.f32 0.0, %v5660
      %v5662 = vpop.f32.mrf.mxu0
      %v5663 = vpop.f32.mrf.mxu0
      %v5664 = vadd.f32 0.0, %v5663
      %v5665 = vpop.f32.mrf.mxu0
      %5666 = vmatprep.mubr.bf16.mxu0 0
      %5667 = vmatmul.mubr.bf16.gmra.mxu0 %v5463
      %v5668 = vpop.f32.mrf.mxu0
      %v5669 = vadd.f32 0.0, %v5668
      %v5670 = vpop.f32.mrf.mxu0
      %v5671 = vpop.f32.mrf.mxu0
      %v5672 = vadd.f32 0.0, %v5671
      %v5673 = vpop.f32.mrf.mxu0
      %5674 = vmatprep.mubr.bf16.mxu0 0
      %5675 = vmatmul.mubr.bf16.gmra.mxu0 %v5464
      %v5676 = vpop.f32.mrf.mxu0
      %v5677 = vadd.f32 0.0, %v5676
      %v5678 = vpop.f32.mrf.mxu0
      %v5679 = vpop.f32.mrf.mxu0
      %v5680 = vadd.f32 0.0, %v5679
      %v5681 = vpop.f32.mrf.mxu0
      %5682 = vmatprep.mubr.bf16.mxu0 0
      %5683 = vmatmul.mubr.bf16.gmra.mxu0 %v5465
      %v5684 = vpop.f32.mrf.mxu0
      %v5685 = vadd.f32 0.0, %v5684
      %v5686 = vpop.f32.mrf.mxu0
      %v5687 = vpop.f32.mrf.mxu0
      %v5688 = vadd.f32 0.0, %v5687
      %v5689 = vpop.f32.mrf.mxu0
      %5690 = vdwg.mxu0
      %v5691 = vadd.f32 %v5193, %v5565
      %v5692 = vadd.f32 %v5194, %v5568
      %v5693 = vadd.f32 %v5195, %v5573
      %v5694 = vadd.f32 %v5196, %v5576
      %v5695 = vadd.f32 %v5197, %v5581
      %v5696 = vadd.f32 %v5198, %v5584
      %v5697 = vadd.f32 %v5199, %v5589
      %v5698 = vadd.f32 %v5200, %v5592
      %v5699 = vadd.f32 %v5201, %v5597
      %v5700 = vadd.f32 %v5202, %v5600
      %v5701 = vadd.f32 %v5203, %v5605
      %v5702 = vadd.f32 %v5204, %v5608
      %v5703 = vadd.f32 %v5205, %v5613
      %v5704 = vadd.f32 %v5206, %v5616
      %v5705 = vadd.f32 %v5207, %v5621
      %v5706 = vadd.f32 %v5208, %v5624
      %v5707 = vadd.f32 %v5209, %v5629
      %v5708 = vadd.f32 %v5210, %v5632
      %v5709 = vadd.f32 %v5211, %v5637
      %v5710 = vadd.f32 %v5212, %v5640
      %v5711 = vadd.f32 %v5213, %v5645
      %v5712 = vadd.f32 %v5214, %v5648
      %v5713 = vadd.f32 %v5215, %v5653
      %v5714 = vadd.f32 %v5216, %v5656
      %v5715 = vadd.f32 %v5217, %v5661
      %v5716 = vadd.f32 %v5218, %v5664
      %v5717 = vadd.f32 %v5219, %v5669
      %v5718 = vadd.f32 %v5220, %v5672
      %v5719 = vadd.f32 %v5221, %v5677
      %v5720 = vadd.f32 %v5222, %v5680
      %v5721 = vadd.f32 %v5223, %v5685
      %v5722 = vadd.f32 %v5224, %v5688
      %s5723 = scalar_lea.vmem [#allocation2], 24
      %v5724 = vld [vmem:[%s5723] sm:$0xf]
      %v5725 = vld [vmem:[%s5723 + $0x4] sm:$0xf]
      %v5726 = vld [vmem:[%s5723 + $0xc] sm:$0xf]
      %v5727 = vld [vmem:[%s5723 + $0x10] sm:$0xf]
      %v5728 = vld [vmem:[%s5723 + $0x18] sm:$0xf]
      %v5729 = vld [vmem:[%s5723 + $0x1c] sm:$0xf]
      %v5730 = vld [vmem:[%s5723 + $0x24] sm:$0xf]
      %v5731 = vld [vmem:[%s5723 + $0x28] sm:$0xf]
      %v5732 = vld [vmem:[%s5723 + $0x30] sm:$0xf]
      %v5733 = vld [vmem:[%s5723 + $0x34] sm:$0xf]
      %v5734 = vld [vmem:[%s5723 + $0x3c] sm:$0xf]
      %v5735 = vld [vmem:[%s5723 + $0x40] sm:$0xf]
      %v5736 = vld [vmem:[%s5723 + $0x48] sm:$0xf]
      %v5737 = vld [vmem:[%s5723 + $0x4c] sm:$0xf]
      %v5738 = vld [vmem:[%s5723 + $0x54] sm:$0xf]
      %v5739 = vld [vmem:[%s5723 + $0x58] sm:$0xf]
      %v5740 = vld [vmem:[%s5723 + $0x60] sm:$0xf]
      %v5741 = vld [vmem:[%s5723 + $0x64] sm:$0xf]
      %v5742 = vld [vmem:[%s5723 + $0x6c] sm:$0xf]
      %v5743 = vld [vmem:[%s5723 + $0x70] sm:$0xf]
      %v5744 = vld [vmem:[%s5723 + $0x78] sm:$0xf]
      %v5745 = vld [vmem:[%s5723 + $0x7c] sm:$0xf]
      %v5746 = vld [vmem:[%s5723 + $0x84] sm:$0xf]
      %v5747 = vld [vmem:[%s5723 + $0x88] sm:$0xf]
      %v5748 = vld [vmem:[%s5723 + $0x90] sm:$0xf]
      %v5749 = vld [vmem:[%s5723 + $0x94] sm:$0xf]
      %v5750 = vld [vmem:[%s5723 + $0x9c] sm:$0xf]
      %v5751 = vld [vmem:[%s5723 + $0xa0] sm:$0xf]
      %v5752 = vld [vmem:[%s5723 + $0xa8] sm:$0xf]
      %v5753 = vld [vmem:[%s5723 + $0xac] sm:$0xf]
      %v5754 = vld [vmem:[%s5723 + $0xb4] sm:$0xf]
      %v5755 = vld [vmem:[%s5723 + $0xb8] sm:$0xf]
      %s5756 = scalar_lea.vmem %s2, 384
      %v5757 = vld [vmem:[%s5756] sm:$0xf]
      %v5758 = vld [vmem:[%s5756 + $0x4] sm:$0xf]
      %v5759 = vld [vmem:[%s5756 + $0x8] sm:$0xf]
      %v5760 = vld [vmem:[%s5756 + $0xc] sm:$0xf]
      %v5761 = vld [vmem:[%s5756 + $0x10] sm:$0xf]
      %v5762 = vld [vmem:[%s5756 + $0x14] sm:$0xf]
      %v5763 = vld [vmem:[%s5756 + $0x18] sm:$0xf]
      %v5764 = vld [vmem:[%s5756 + $0x1c] sm:$0xf]
      %v5765 = vld [vmem:[%s5756 + $0x20] sm:$0xf]
      %v5766 = vld [vmem:[%s5756 + $0x24] sm:$0xf]
      %v5767 = vld [vmem:[%s5756 + $0x28] sm:$0xf]
      %v5768 = vld [vmem:[%s5756 + $0x2c] sm:$0xf]
      %v5769 = vld [vmem:[%s5756 + $0x30] sm:$0xf]
      %v5770 = vld [vmem:[%s5756 + $0x34] sm:$0xf]
      %v5771 = vld [vmem:[%s5756 + $0x38] sm:$0xf]
      %v5772 = vld [vmem:[%s5756 + $0x3c] sm:$0xf]
      %v5805 = vunpack.c.l.b16 %v5724
      %v5806 = vunpack.c.l.b16 %v5725
      %v5807 = vunpack.c.l.b16 %v5726
      %v5808 = vunpack.c.l.b16 %v5727
      %v5809 = vunpack.c.l.b16 %v5728
      %v5810 = vunpack.c.l.b16 %v5729
      %v5811 = vunpack.c.l.b16 %v5730
      %v5812 = vunpack.c.l.b16 %v5731
      %v5813 = vunpack.c.l.b16 %v5732
      %v5814 = vunpack.c.l.b16 %v5733
      %v5815 = vunpack.c.l.b16 %v5734
      %v5816 = vunpack.c.l.b16 %v5735
      %v5817 = vunpack.c.l.b16 %v5736
      %v5818 = vunpack.c.l.b16 %v5737
      %v5819 = vunpack.c.l.b16 %v5738
      %v5820 = vunpack.c.l.b16 %v5739
      %v5821 = vunpack.c.l.b16 %v5740
      %v5822 = vunpack.c.l.b16 %v5741
      %v5823 = vunpack.c.l.b16 %v5742
      %v5824 = vunpack.c.l.b16 %v5743
      %v5825 = vunpack.c.l.b16 %v5744
      %v5826 = vunpack.c.l.b16 %v5745
      %v5827 = vunpack.c.l.b16 %v5746
      %v5828 = vunpack.c.l.b16 %v5747
      %v5829 = vunpack.c.l.b16 %v5748
      %v5830 = vunpack.c.l.b16 %v5749
      %v5831 = vunpack.c.l.b16 %v5750
      %v5832 = vunpack.c.l.b16 %v5751
      %v5833 = vunpack.c.l.b16 %v5752
      %v5834 = vunpack.c.l.b16 %v5753
      %v5835 = vunpack.c.l.b16 %v5754
      %v5836 = vunpack.c.l.b16 %v5755
      %v5837 = vpack.c.b16 %v5806, %v5805
      %v5838 = vpack.c.b16 %v5808, %v5807
      %v5839 = vpack.c.b16 %v5810, %v5809
      %v5840 = vpack.c.b16 %v5812, %v5811
      %v5841 = vpack.c.b16 %v5814, %v5813
      %v5842 = vpack.c.b16 %v5816, %v5815
      %v5843 = vpack.c.b16 %v5818, %v5817
      %v5844 = vpack.c.b16 %v5820, %v5819
      %v5845 = vpack.c.b16 %v5822, %v5821
      %v5846 = vpack.c.b16 %v5824, %v5823
      %v5847 = vpack.c.b16 %v5826, %v5825
      %v5848 = vpack.c.b16 %v5828, %v5827
      %v5849 = vpack.c.b16 %v5830, %v5829
      %v5850 = vpack.c.b16 %v5832, %v5831
      %v5851 = vpack.c.b16 %v5834, %v5833
      %v5852 = vpack.c.b16 %v5836, %v5835
      %v5885 = vunpack.c.l.b16 %v5757
      %v5886 = vunpack.c.l.b16 %v5758
      %v5887 = vunpack.c.l.b16 %v5759
      %v5888 = vunpack.c.l.b16 %v5760
      %v5889 = vunpack.c.l.b16 %v5761
      %v5890 = vunpack.c.l.b16 %v5762
      %v5891 = vunpack.c.l.b16 %v5763
      %v5892 = vunpack.c.l.b16 %v5764
      %v5893 = vunpack.c.l.b16 %v5765
      %v5894 = vunpack.c.l.b16 %v5766
      %v5895 = vunpack.c.l.b16 %v5767
      %v5896 = vunpack.c.l.b16 %v5768
      %v5897 = vunpack.c.l.b16 %v5769
      %v5898 = vunpack.c.l.b16 %v5770
      %v5899 = vunpack.c.l.b16 %v5771
      %v5900 = vunpack.c.l.b16 %v5772
      %v5901 = vpack.c.b16 %v5886, %v5885
      %v5902 = vpack.c.b16 %v5888, %v5887
      %v5903 = vpack.c.b16 %v5890, %v5889
      %v5904 = vpack.c.b16 %v5892, %v5891
      %v5905 = vpack.c.b16 %v5894, %v5893
      %v5906 = vpack.c.b16 %v5896, %v5895
      %v5907 = vpack.c.b16 %v5898, %v5897
      %v5908 = vpack.c.b16 %v5900, %v5899
      %5917 = vmatprep.subr.bf16.mxu0 0
      %5918 = vmatpush1.bf16.msra.mxu0 %v5908
      %5919 = vmatprep.subr.bf16.mxu0 0
      %5920 = vmatpush1.bf16.msra.mxu0 %v5907
      %5921 = vmatprep.subr.bf16.mxu0 0
      %5922 = vmatpush1.bf16.msra.mxu0 %v5906
      %5923 = vmatprep.subr.bf16.mxu0 0
      %5924 = vmatpush1.bf16.msra.mxu0 %v5905
      %5925 = vmatprep.subr.bf16.mxu0 0
      %5926 = vmatpush1.bf16.msra.mxu0 %v5904
      %5927 = vmatprep.subr.bf16.mxu0 0
      %5928 = vmatpush1.bf16.msra.mxu0 %v5903
      %5929 = vmatprep.subr.bf16.mxu0 0
      %5930 = vmatpush1.bf16.msra.mxu0 %v5902
      %5931 = vmatprep.subr.bf16.mxu0 0
      %5932 = vmatpush1.bf16.msra.mxu0 %v5901
      %5933 = vmatprep.subr.bf16.mxu0 0
      %5934 = vmatpush2.bf16.msra.mxu0 0
      %5935 = vmatprep.subr.bf16.mxu0 0
      %5936 = vmatpush2.bf16.msra.mxu0 0
      %5937 = vmatprep.subr.bf16.mxu0 0
      %5938 = vmatpush2.bf16.msra.mxu0 0
      %5939 = vmatprep.subr.bf16.mxu0 0
      %5940 = vmatpush2.bf16.msra.mxu0 0
      %5941 = vmatprep.subr.bf16.mxu0 0
      %5942 = vmatpush2.bf16.msra.mxu0 0
      %5943 = vmatprep.subr.bf16.mxu0 0
      %5944 = vmatpush2.bf16.msra.mxu0 0
      %5945 = vmatprep.subr.bf16.mxu0 0
      %5946 = vmatpush2.bf16.msra.mxu0 0
      %5947 = vmatprep.subr.bf16.mxu0 0
      %5948 = vmatpush2.bf16.msra.mxu0 0
      %5949 = vmatprep.mubr.bf16.mxu0 0
      %5950 = vmatmul.mubr.bf16.gmra.mxu0 %v5837
      %v5951 = vpop.f32.mrf.mxu0
      %v5952 = vadd.f32 0.0, %v5951
      %v5953 = vpop.f32.mrf.mxu0
      %v5954 = vpop.f32.mrf.mxu0
      %v5955 = vadd.f32 0.0, %v5954
      %v5956 = vpop.f32.mrf.mxu0
      %5957 = vmatprep.mubr.bf16.mxu0 0
      %5958 = vmatmul.mubr.bf16.gmra.mxu0 %v5838
      %v5959 = vpop.f32.mrf.mxu0
      %v5960 = vadd.f32 0.0, %v5959
      %v5961 = vpop.f32.mrf.mxu0
      %v5962 = vpop.f32.mrf.mxu0
      %v5963 = vadd.f32 0.0, %v5962
      %v5964 = vpop.f32.mrf.mxu0
      %5965 = vmatprep.mubr.bf16.mxu0 0
      %5966 = vmatmul.mubr.bf16.gmra.mxu0 %v5839
      %v5967 = vpop.f32.mrf.mxu0
      %v5968 = vadd.f32 0.0, %v5967
      %v5969 = vpop.f32.mrf.mxu0
      %v5970 = vpop.f32.mrf.mxu0
      %v5971 = vadd.f32 0.0, %v5970
      %v5972 = vpop.f32.mrf.mxu0
      %5973 = vmatprep.mubr.bf16.mxu0 0
      %5974 = vmatmul.mubr.bf16.gmra.mxu0 %v5840
      %v5975 = vpop.f32.mrf.mxu0
      %v5976 = vadd.f32 0.0, %v5975
      %v5977 = vpop.f32.mrf.mxu0
      %v5978 = vpop.f32.mrf.mxu0
      %v5979 = vadd.f32 0.0, %v5978
      %v5980 = vpop.f32.mrf.mxu0
      %5981 = vmatprep.mubr.bf16.mxu0 0
      %5982 = vmatmul.mubr.bf16.gmra.mxu0 %v5841
      %v5983 = vpop.f32.mrf.mxu0
      %v5984 = vadd.f32 0.0, %v5983
      %v5985 = vpop.f32.mrf.mxu0
      %v5986 = vpop.f32.mrf.mxu0
      %v5987 = vadd.f32 0.0, %v5986
      %v5988 = vpop.f32.mrf.mxu0
      %5989 = vmatprep.mubr.bf16.mxu0 0
      %5990 = vmatmul.mubr.bf16.gmra.mxu0 %v5842
      %v5991 = vpop.f32.mrf.mxu0
      %v5992 = vadd.f32 0.0, %v5991
      %v5993 = vpop.f32.mrf.mxu0
      %v5994 = vpop.f32.mrf.mxu0
      %v5995 = vadd.f32 0.0, %v5994
      %v5996 = vpop.f32.mrf.mxu0
      %5997 = vmatprep.mubr.bf16.mxu0 0
      %5998 = vmatmul.mubr.bf16.gmra.mxu0 %v5843
      %v5999 = vpop.f32.mrf.mxu0
      %v6000 = vadd.f32 0.0, %v5999
      %v6001 = vpop.f32.mrf.mxu0
      %v6002 = vpop.f32.mrf.mxu0
      %v6003 = vadd.f32 0.0, %v6002
      %v6004 = vpop.f32.mrf.mxu0
      %6005 = vmatprep.mubr.bf16.mxu0 0
      %6006 = vmatmul.mubr.bf16.gmra.mxu0 %v5844
      %v6007 = vpop.f32.mrf.mxu0
      %v6008 = vadd.f32 0.0, %v6007
      %v6009 = vpop.f32.mrf.mxu0
      %v6010 = vpop.f32.mrf.mxu0
      %v6011 = vadd.f32 0.0, %v6010
      %v6012 = vpop.f32.mrf.mxu0
      %6013 = vmatprep.mubr.bf16.mxu0 0
      %6014 = vmatmul.mubr.bf16.gmra.mxu0 %v5845
      %v6015 = vpop.f32.mrf.mxu0
      %v6016 = vadd.f32 0.0, %v6015
      %v6017 = vpop.f32.mrf.mxu0
      %v6018 = vpop.f32.mrf.mxu0
      %v6019 = vadd.f32 0.0, %v6018
      %v6020 = vpop.f32.mrf.mxu0
      %6021 = vmatprep.mubr.bf16.mxu0 0
      %6022 = vmatmul.mubr.bf16.gmra.mxu0 %v5846
      %v6023 = vpop.f32.mrf.mxu0
      %v6024 = vadd.f32 0.0, %v6023
      %v6025 = vpop.f32.mrf.mxu0
      %v6026 = vpop.f32.mrf.mxu0
      %v6027 = vadd.f32 0.0, %v6026
      %v6028 = vpop.f32.mrf.mxu0
      %6029 = vmatprep.mubr.bf16.mxu0 0
      %6030 = vmatmul.mubr.bf16.gmra.mxu0 %v5847
      %v6031 = vpop.f32.mrf.mxu0
      %v6032 = vadd.f32 0.0, %v6031
      %v6033 = vpop.f32.mrf.mxu0
      %v6034 = vpop.f32.mrf.mxu0
      %v6035 = vadd.f32 0.0, %v6034
      %v6036 = vpop.f32.mrf.mxu0
      %6037 = vmatprep.mubr.bf16.mxu0 0
      %6038 = vmatmul.mubr.bf16.gmra.mxu0 %v5848
      %v6039 = vpop.f32.mrf.mxu0
      %v6040 = vadd.f32 0.0, %v6039
      %v6041 = vpop.f32.mrf.mxu0
      %v6042 = vpop.f32.mrf.mxu0
      %v6043 = vadd.f32 0.0, %v6042
      %v6044 = vpop.f32.mrf.mxu0
      %6045 = vmatprep.mubr.bf16.mxu0 0
      %6046 = vmatmul.mubr.bf16.gmra.mxu0 %v5849
      %v6047 = vpop.f32.mrf.mxu0
      %v6048 = vadd.f32 0.0, %v6047
      %v6049 = vpop.f32.mrf.mxu0
      %v6050 = vpop.f32.mrf.mxu0
      %v6051 = vadd.f32 0.0, %v6050
      %v6052 = vpop.f32.mrf.mxu0
      %6053 = vmatprep.mubr.bf16.mxu0 0
      %6054 = vmatmul.mubr.bf16.gmra.mxu0 %v5850
      %v6055 = vpop.f32.mrf.mxu0
      %v6056 = vadd.f32 0.0, %v6055
      %v6057 = vpop.f32.mrf.mxu0
      %v6058 = vpop.f32.mrf.mxu0
      %v6059 = vadd.f32 0.0, %v6058
      %v6060 = vpop.f32.mrf.mxu0
      %6061 = vmatprep.mubr.bf16.mxu0 0
      %6062 = vmatmul.mubr.bf16.gmra.mxu0 %v5851
      %v6063 = vpop.f32.mrf.mxu0
      %v6064 = vadd.f32 0.0, %v6063
      %v6065 = vpop.f32.mrf.mxu0
      %v6066 = vpop.f32.mrf.mxu0
      %v6067 = vadd.f32 0.0, %v6066
      %v6068 = vpop.f32.mrf.mxu0
      %6069 = vmatprep.mubr.bf16.mxu0 0
      %6070 = vmatmul.mubr.bf16.gmra.mxu0 %v5852
      %v6071 = vpop.f32.mrf.mxu0
      %v6072 = vadd.f32 0.0, %v6071
      %v6073 = vpop.f32.mrf.mxu0
      %v6074 = vpop.f32.mrf.mxu0
      %v6075 = vadd.f32 0.0, %v6074
      %v6076 = vpop.f32.mrf.mxu0
      %6077 = vdwg.mxu0
      %v6078 = vadd.f32 %v5691, %v5952
      %v6079 = vadd.f32 %v5692, %v5955
      %v6080 = vadd.f32 %v5693, %v5960
      %v6081 = vadd.f32 %v5694, %v5963
      %v6082 = vadd.f32 %v5695, %v5968
      %v6083 = vadd.f32 %v5696, %v5971
      %v6084 = vadd.f32 %v5697, %v5976
      %v6085 = vadd.f32 %v5698, %v5979
      %v6086 = vadd.f32 %v5699, %v5984
      %v6087 = vadd.f32 %v5700, %v5987
      %v6088 = vadd.f32 %v5701, %v5992
      %v6089 = vadd.f32 %v5702, %v5995
      %v6090 = vadd.f32 %v5703, %v6000
      %v6091 = vadd.f32 %v5704, %v6003
      %v6092 = vadd.f32 %v5705, %v6008
      %v6093 = vadd.f32 %v5706, %v6011
      %v6094 = vadd.f32 %v5707, %v6016
      %v6095 = vadd.f32 %v5708, %v6019
      %v6096 = vadd.f32 %v5709, %v6024
      %v6097 = vadd.f32 %v5710, %v6027
      %v6098 = vadd.f32 %v5711, %v6032
      %v6099 = vadd.f32 %v5712, %v6035
      %v6100 = vadd.f32 %v5713, %v6040
      %v6101 = vadd.f32 %v5714, %v6043
      %v6102 = vadd.f32 %v5715, %v6048
      %v6103 = vadd.f32 %v5716, %v6051
      %v6104 = vadd.f32 %v5717, %v6056
      %v6105 = vadd.f32 %v5718, %v6059
      %v6106 = vadd.f32 %v5719, %v6064
      %v6107 = vadd.f32 %v5720, %v6067
      %v6108 = vadd.f32 %v5721, %v6072
      %v6109 = vadd.f32 %v5722, %v6075
      %v6110 = vld [vmem:[%s5723] sm:$0xf]
      %v6111 = vld [vmem:[%s5723 + $0x4] sm:$0xf]
      %v6112 = vld [vmem:[%s5723 + $0x8] sm:$0x1]
      %v6113 = vld [vmem:[%s5723 + $0xc] sm:$0xf]
      %v6114 = vld [vmem:[%s5723 + $0x10] sm:$0xf]
      %v6115 = vld [vmem:[%s5723 + $0x14] sm:$0x1]
      %v6116 = vld [vmem:[%s5723 + $0x18] sm:$0xf]
      %v6117 = vld [vmem:[%s5723 + $0x1c] sm:$0xf]
      %v6118 = vld [vmem:[%s5723 + $0x20] sm:$0x1]
      %v6119 = vld [vmem:[%s5723 + $0x24] sm:$0xf]
      %v6120 = vld [vmem:[%s5723 + $0x28] sm:$0xf]
      %v6121 = vld [vmem:[%s5723 + $0x2c] sm:$0x1]
      %v6122 = vld [vmem:[%s5723 + $0x30] sm:$0xf]
      %v6123 = vld [vmem:[%s5723 + $0x34] sm:$0xf]
      %v6124 = vld [vmem:[%s5723 + $0x38] sm:$0x1]
      %v6125 = vld [vmem:[%s5723 + $0x3c] sm:$0xf]
      %v6126 = vld [vmem:[%s5723 + $0x40] sm:$0xf]
      %v6127 = vld [vmem:[%s5723 + $0x44] sm:$0x1]
      %v6128 = vld [vmem:[%s5723 + $0x48] sm:$0xf]
      %v6129 = vld [vmem:[%s5723 + $0x4c] sm:$0xf]
      %v6130 = vld [vmem:[%s5723 + $0x50] sm:$0x1]
      %v6131 = vld [vmem:[%s5723 + $0x54] sm:$0xf]
      %v6132 = vld [vmem:[%s5723 + $0x58] sm:$0xf]
      %v6133 = vld [vmem:[%s5723 + $0x5c] sm:$0x1]
      %v6134 = vld [vmem:[%s5723 + $0x60] sm:$0xf]
      %v6135 = vld [vmem:[%s5723 + $0x64] sm:$0xf]
      %v6136 = vld [vmem:[%s5723 + $0x68] sm:$0x1]
      %v6137 = vld [vmem:[%s5723 + $0x6c] sm:$0xf]
      %v6138 = vld [vmem:[%s5723 + $0x70] sm:$0xf]
      %v6139 = vld [vmem:[%s5723 + $0x74] sm:$0x1]
      %v6140 = vld [vmem:[%s5723 + $0x78] sm:$0xf]
      %v6141 = vld [vmem:[%s5723 + $0x7c] sm:$0xf]
      %v6142 = vld [vmem:[%s5723 + $0x80] sm:$0x1]
      %v6143 = vld [vmem:[%s5723 + $0x84] sm:$0xf]
      %v6144 = vld [vmem:[%s5723 + $0x88] sm:$0xf]
      %v6145 = vld [vmem:[%s5723 + $0x8c] sm:$0x1]
      %v6146 = vld [vmem:[%s5723 + $0x90] sm:$0xf]
      %v6147 = vld [vmem:[%s5723 + $0x94] sm:$0xf]
      %v6148 = vld [vmem:[%s5723 + $0x98] sm:$0x1]
      %v6149 = vld [vmem:[%s5723 + $0x9c] sm:$0xf]
      %v6150 = vld [vmem:[%s5723 + $0xa0] sm:$0xf]
      %v6151 = vld [vmem:[%s5723 + $0xa4] sm:$0x1]
      %v6152 = vld [vmem:[%s5723 + $0xa8] sm:$0xf]
      %v6153 = vld [vmem:[%s5723 + $0xac] sm:$0xf]
      %v6154 = vld [vmem:[%s5723 + $0xb0] sm:$0x1]
      %v6155 = vld [vmem:[%s5723 + $0xb4] sm:$0xf]
      %v6156 = vld [vmem:[%s5723 + $0xb8] sm:$0xf]
      %v6157 = vld [vmem:[%s5723 + $0xbc] sm:$0x1]
      %v6159 = vshrl.u32 %v6110, 16
      %v6161 = vrot.slane %v6159, 4
      %v6162 = vshll.u32 %v6110, 16
      %v6164 = vrot.slane %v6162, 5
      %v6165 = vor.u32 %v6161, %v6164
      %v6166 = vrot.slane %v6165, 4
      %v6168 = vshll.u32 %v6111, 16
      %v6170 = vrot.slane %v6168, 5
      %v6171 = vsel %vm2619, %v6166, %v6170
      %v6172 = vshrl.u32 %v6111, 16
      %v6174 = vrot.slane %v6172, 4
      %v6175 = vor.u32 %v6174, %v6170
      %v6176 = vrot.slane %v6175, 4
      %v6178 = vshll.u32 %v6112, 16
      %v6180 = vrot.slane %v6178, 5
      %v6181 = vsel %vm2619, %v6176, %v6180
      %v6183 = vshrl.u32 %v6113, 16
      %v6185 = vrot.slane %v6183, 4
      %v6186 = vshll.u32 %v6113, 16
      %v6188 = vrot.slane %v6186, 5
      %v6189 = vor.u32 %v6185, %v6188
      %v6190 = vrot.slane %v6189, 4
      %v6192 = vshll.u32 %v6114, 16
      %v6194 = vrot.slane %v6192, 5
      %v6195 = vsel %vm2619, %v6190, %v6194
      %v6196 = vshrl.u32 %v6114, 16
      %v6198 = vrot.slane %v6196, 4
      %v6199 = vor.u32 %v6198, %v6194
      %v6200 = vrot.slane %v6199, 4
      %v6202 = vshll.u32 %v6115, 16
      %v6204 = vrot.slane %v6202, 5
      %v6205 = vsel %vm2619, %v6200, %v6204
      %v6207 = vshrl.u32 %v6116, 16
      %v6209 = vrot.slane %v6207, 4
      %v6210 = vshll.u32 %v6116, 16
      %v6212 = vrot.slane %v6210, 5
      %v6213 = vor.u32 %v6209, %v6212
      %v6214 = vrot.slane %v6213, 4
      %v6216 = vshll.u32 %v6117, 16
      %v6218 = vrot.slane %v6216, 5
      %v6219 = vsel %vm2619, %v6214, %v6218
      %v6220 = vshrl.u32 %v6117, 16
      %v6222 = vrot.slane %v6220, 4
      %v6223 = vor.u32 %v6222, %v6218
      %v6224 = vrot.slane %v6223, 4
      %v6226 = vshll.u32 %v6118, 16
      %v6228 = vrot.slane %v6226, 5
      %v6229 = vsel %vm2619, %v6224, %v6228
      %v6231 = vshrl.u32 %v6119, 16
      %v6233 = vrot.slane %v6231, 4
      %v6234 = vshll.u32 %v6119, 16
      %v6236 = vrot.slane %v6234, 5
      %v6237 = vor.u32 %v6233, %v6236
      %v6238 = vrot.slane %v6237, 4
      %v6240 = vshll.u32 %v6120, 16
      %v6242 = vrot.slane %v6240, 5
      %v6243 = vsel %vm2619, %v6238, %v6242
      %v6244 = vshrl.u32 %v6120, 16
      %v6246 = vrot.slane %v6244, 4
      %v6247 = vor.u32 %v6246, %v6242
      %v6248 = vrot.slane %v6247, 4
      %v6250 = vshll.u32 %v6121, 16
      %v6252 = vrot.slane %v6250, 5
      %v6253 = vsel %vm2619, %v6248, %v6252
      %v6255 = vshrl.u32 %v6122, 16
      %v6257 = vrot.slane %v6255, 4
      %v6258 = vshll.u32 %v6122, 16
      %v6260 = vrot.slane %v6258, 5
      %v6261 = vor.u32 %v6257, %v6260
      %v6262 = vrot.slane %v6261, 4
      %v6264 = vshll.u32 %v6123, 16
      %v6266 = vrot.slane %v6264, 5
      %v6267 = vsel %vm2619, %v6262, %v6266
      %v6268 = vshrl.u32 %v6123, 16
      %v6270 = vrot.slane %v6268, 4
      %v6271 = vor.u32 %v6270, %v6266
      %v6272 = vrot.slane %v6271, 4
      %v6274 = vshll.u32 %v6124, 16
      %v6276 = vrot.slane %v6274, 5
      %v6277 = vsel %vm2619, %v6272, %v6276
      %v6279 = vshrl.u32 %v6125, 16
      %v6281 = vrot.slane %v6279, 4
      %v6282 = vshll.u32 %v6125, 16
      %v6284 = vrot.slane %v6282, 5
      %v6285 = vor.u32 %v6281, %v6284
      %v6286 = vrot.slane %v6285, 4
      %v6288 = vshll.u32 %v6126, 16
      %v6290 = vrot.slane %v6288, 5
      %v6291 = vsel %vm2619, %v6286, %v6290
      %v6292 = vshrl.u32 %v6126, 16
      %v6294 = vrot.slane %v6292, 4
      %v6295 = vor.u32 %v6294, %v6290
      %v6296 = vrot.slane %v6295, 4
      %v6298 = vshll.u32 %v6127, 16
      %v6300 = vrot.slane %v6298, 5
      %v6301 = vsel %vm2619, %v6296, %v6300
      %v6303 = vshrl.u32 %v6128, 16
      %v6305 = vrot.slane %v6303, 4
      %v6306 = vshll.u32 %v6128, 16
      %v6308 = vrot.slane %v6306, 5
      %v6309 = vor.u32 %v6305, %v6308
      %v6310 = vrot.slane %v6309, 4
      %v6312 = vshll.u32 %v6129, 16
      %v6314 = vrot.slane %v6312, 5
      %v6315 = vsel %vm2619, %v6310, %v6314
      %v6316 = vshrl.u32 %v6129, 16
      %v6318 = vrot.slane %v6316, 4
      %v6319 = vor.u32 %v6318, %v6314
      %v6320 = vrot.slane %v6319, 4
      %v6322 = vshll.u32 %v6130, 16
      %v6324 = vrot.slane %v6322, 5
      %v6325 = vsel %vm2619, %v6320, %v6324
      %v6327 = vshrl.u32 %v6131, 16
      %v6329 = vrot.slane %v6327, 4
      %v6330 = vshll.u32 %v6131, 16
      %v6332 = vrot.slane %v6330, 5
      %v6333 = vor.u32 %v6329, %v6332
      %v6334 = vrot.slane %v6333, 4
      %v6336 = vshll.u32 %v6132, 16
      %v6338 = vrot.slane %v6336, 5
      %v6339 = vsel %vm2619, %v6334, %v6338
      %v6340 = vshrl.u32 %v6132, 16
      %v6342 = vrot.slane %v6340, 4
      %v6343 = vor.u32 %v6342, %v6338
      %v6344 = vrot.slane %v6343, 4
      %v6346 = vshll.u32 %v6133, 16
      %v6348 = vrot.slane %v6346, 5
      %v6349 = vsel %vm2619, %v6344, %v6348
      %v6351 = vshrl.u32 %v6134, 16
      %v6353 = vrot.slane %v6351, 4
      %v6354 = vshll.u32 %v6134, 16
      %v6356 = vrot.slane %v6354, 5
      %v6357 = vor.u32 %v6353, %v6356
      %v6358 = vrot.slane %v6357, 4
      %v6360 = vshll.u32 %v6135, 16
      %v6362 = vrot.slane %v6360, 5
      %v6363 = vsel %vm2619, %v6358, %v6362
      %v6364 = vshrl.u32 %v6135, 16
      %v6366 = vrot.slane %v6364, 4
      %v6367 = vor.u32 %v6366, %v6362
      %v6368 = vrot.slane %v6367, 4
      %v6370 = vshll.u32 %v6136, 16
      %v6372 = vrot.slane %v6370, 5
      %v6373 = vsel %vm2619, %v6368, %v6372
      %v6375 = vshrl.u32 %v6137, 16
      %v6377 = vrot.slane %v6375, 4
      %v6378 = vshll.u32 %v6137, 16
      %v6380 = vrot.slane %v6378, 5
      %v6381 = vor.u32 %v6377, %v6380
      %v6382 = vrot.slane %v6381, 4
      %v6384 = vshll.u32 %v6138, 16
      %v6386 = vrot.slane %v6384, 5
      %v6387 = vsel %vm2619, %v6382, %v6386
      %v6388 = vshrl.u32 %v6138, 16
      %v6390 = vrot.slane %v6388, 4
      %v6391 = vor.u32 %v6390, %v6386
      %v6392 = vrot.slane %v6391, 4
      %v6394 = vshll.u32 %v6139, 16
      %v6396 = vrot.slane %v6394, 5
      %v6397 = vsel %vm2619, %v6392, %v6396
      %v6399 = vshrl.u32 %v6140, 16
      %v6401 = vrot.slane %v6399, 4
      %v6402 = vshll.u32 %v6140, 16
      %v6404 = vrot.slane %v6402, 5
      %v6405 = vor.u32 %v6401, %v6404
      %v6406 = vrot.slane %v6405, 4
      %v6408 = vshll.u32 %v6141, 16
      %v6410 = vrot.slane %v6408, 5
      %v6411 = vsel %vm2619, %v6406, %v6410
      %v6412 = vshrl.u32 %v6141, 16
      %v6414 = vrot.slane %v6412, 4
      %v6415 = vor.u32 %v6414, %v6410
      %v6416 = vrot.slane %v6415, 4
      %v6418 = vshll.u32 %v6142, 16
      %v6420 = vrot.slane %v6418, 5
      %v6421 = vsel %vm2619, %v6416, %v6420
      %v6423 = vshrl.u32 %v6143, 16
      %v6425 = vrot.slane %v6423, 4
      %v6426 = vshll.u32 %v6143, 16
      %v6428 = vrot.slane %v6426, 5
      %v6429 = vor.u32 %v6425, %v6428
      %v6430 = vrot.slane %v6429, 4
      %v6432 = vshll.u32 %v6144, 16
      %v6434 = vrot.slane %v6432, 5
      %v6435 = vsel %vm2619, %v6430, %v6434
      %v6436 = vshrl.u32 %v6144, 16
      %v6438 = vrot.slane %v6436, 4
      %v6439 = vor.u32 %v6438, %v6434
      %v6440 = vrot.slane %v6439, 4
      %v6442 = vshll.u32 %v6145, 16
      %v6444 = vrot.slane %v6442, 5
      %v6445 = vsel %vm2619, %v6440, %v6444
      %v6447 = vshrl.u32 %v6146, 16
      %v6449 = vrot.slane %v6447, 4
      %v6450 = vshll.u32 %v6146, 16
      %v6452 = vrot.slane %v6450, 5
      %v6453 = vor.u32 %v6449, %v6452
      %v6454 = vrot.slane %v6453, 4
      %v6456 = vshll.u32 %v6147, 16
      %v6458 = vrot.slane %v6456, 5
      %v6459 = vsel %vm2619, %v6454, %v6458
      %v6460 = vshrl.u32 %v6147, 16
      %v6462 = vrot.slane %v6460, 4
      %v6463 = vor.u32 %v6462, %v6458
      %v6464 = vrot.slane %v6463, 4
      %v6466 = vshll.u32 %v6148, 16
      %v6468 = vrot.slane %v6466, 5
      %v6469 = vsel %vm2619, %v6464, %v6468
      %v6471 = vshrl.u32 %v6149, 16
      %v6473 = vrot.slane %v6471, 4
      %v6474 = vshll.u32 %v6149, 16
      %v6476 = vrot.slane %v6474, 5
      %v6477 = vor.u32 %v6473, %v6476
      %v6478 = vrot.slane %v6477, 4
      %v6480 = vshll.u32 %v6150, 16
      %v6482 = vrot.slane %v6480, 5
      %v6483 = vsel %vm2619, %v6478, %v6482
      %v6484 = vshrl.u32 %v6150, 16
      %v6486 = vrot.slane %v6484, 4
      %v6487 = vor.u32 %v6486, %v6482
      %v6488 = vrot.slane %v6487, 4
      %v6490 = vshll.u32 %v6151, 16
      %v6492 = vrot.slane %v6490, 5
      %v6493 = vsel %vm2619, %v6488, %v6492
      %v6495 = vshrl.u32 %v6152, 16
      %v6497 = vrot.slane %v6495, 4
      %v6498 = vshll.u32 %v6152, 16
      %v6500 = vrot.slane %v6498, 5
      %v6501 = vor.u32 %v6497, %v6500
      %v6502 = vrot.slane %v6501, 4
      %v6504 = vshll.u32 %v6153, 16
      %v6506 = vrot.slane %v6504, 5
      %v6507 = vsel %vm2619, %v6502, %v6506
      %v6508 = vshrl.u32 %v6153, 16
      %v6510 = vrot.slane %v6508, 4
      %v6511 = vor.u32 %v6510, %v6506
      %v6512 = vrot.slane %v6511, 4
      %v6514 = vshll.u32 %v6154, 16
      %v6516 = vrot.slane %v6514, 5
      %v6517 = vsel %vm2619, %v6512, %v6516
      %v6519 = vshrl.u32 %v6155, 16
      %v6521 = vrot.slane %v6519, 4
      %v6522 = vshll.u32 %v6155, 16
      %v6524 = vrot.slane %v6522, 5
      %v6525 = vor.u32 %v6521, %v6524
      %v6526 = vrot.slane %v6525, 4
      %v6528 = vshll.u32 %v6156, 16
      %v6530 = vrot.slane %v6528, 5
      %v6531 = vsel %vm2619, %v6526, %v6530
      %v6532 = vshrl.u32 %v6156, 16
      %v6534 = vrot.slane %v6532, 4
      %v6535 = vor.u32 %v6534, %v6530
      %v6536 = vrot.slane %v6535, 4
      %v6538 = vshll.u32 %v6157, 16
      %v6540 = vrot.slane %v6538, 5
      %v6541 = vsel %vm2619, %v6536, %v6540
      %s6542 = scalar_lea.vmem %s2, 448
      %v6543 = vld [vmem:[%s6542] sm:$0xf]
      %v6544 = vld [vmem:[%s6542 + $0x4] sm:$0xf]
      %v6545 = vld [vmem:[%s6542 + $0x8] sm:$0xf]
      %v6546 = vld [vmem:[%s6542 + $0xc] sm:$0xf]
      %v6547 = vld [vmem:[%s6542 + $0x10] sm:$0xf]
      %v6548 = vld [vmem:[%s6542 + $0x14] sm:$0xf]
      %v6549 = vld [vmem:[%s6542 + $0x18] sm:$0xf]
      %v6550 = vld [vmem:[%s6542 + $0x1c] sm:$0xf]
      %v6551 = vld [vmem:[%s6542 + $0x20] sm:$0xf]
      %v6552 = vld [vmem:[%s6542 + $0x24] sm:$0xf]
      %v6553 = vld [vmem:[%s6542 + $0x28] sm:$0xf]
      %v6554 = vld [vmem:[%s6542 + $0x2c] sm:$0xf]
      %v6555 = vld [vmem:[%s6542 + $0x30] sm:$0xf]
      %v6556 = vld [vmem:[%s6542 + $0x34] sm:$0xf]
      %v6557 = vld [vmem:[%s6542 + $0x38] sm:$0xf]
      %v6558 = vld [vmem:[%s6542 + $0x3c] sm:$0xf]
      %v6559 = vunpack.c.l.b16 %v6171
      %v6560 = vunpack.c.l.b16 %v6181
      %v6561 = vunpack.c.l.b16 %v6195
      %v6562 = vunpack.c.l.b16 %v6205
      %v6563 = vunpack.c.l.b16 %v6219
      %v6564 = vunpack.c.l.b16 %v6229
      %v6565 = vunpack.c.l.b16 %v6243
      %v6566 = vunpack.c.l.b16 %v6253
      %v6567 = vunpack.c.l.b16 %v6267
      %v6568 = vunpack.c.l.b16 %v6277
      %v6569 = vunpack.c.l.b16 %v6291
      %v6570 = vunpack.c.l.b16 %v6301
      %v6571 = vunpack.c.l.b16 %v6315
      %v6572 = vunpack.c.l.b16 %v6325
      %v6573 = vunpack.c.l.b16 %v6339
      %v6574 = vunpack.c.l.b16 %v6349
      %v6575 = vunpack.c.l.b16 %v6363
      %v6576 = vunpack.c.l.b16 %v6373
      %v6577 = vunpack.c.l.b16 %v6387
      %v6578 = vunpack.c.l.b16 %v6397
      %v6579 = vunpack.c.l.b16 %v6411
      %v6580 = vunpack.c.l.b16 %v6421
      %v6581 = vunpack.c.l.b16 %v6435
      %v6582 = vunpack.c.l.b16 %v6445
      %v6583 = vunpack.c.l.b16 %v6459
      %v6584 = vunpack.c.l.b16 %v6469
      %v6585 = vunpack.c.l.b16 %v6483
      %v6586 = vunpack.c.l.b16 %v6493
      %v6587 = vunpack.c.l.b16 %v6507
      %v6588 = vunpack.c.l.b16 %v6517
      %v6589 = vunpack.c.l.b16 %v6531
      %v6590 = vunpack.c.l.b16 %v6541
      %v6591 = vpack.c.b16 %v6560, %v6559
      %v6592 = vpack.c.b16 %v6562, %v6561
      %v6593 = vpack.c.b16 %v6564, %v6563
      %v6594 = vpack.c.b16 %v6566, %v6565
      %v6595 = vpack.c.b16 %v6568, %v6567
      %v6596 = vpack.c.b16 %v6570, %v6569
      %v6597 = vpack.c.b16 %v6572, %v6571
      %v6598 = vpack.c.b16 %v6574, %v6573
      %v6599 = vpack.c.b16 %v6576, %v6575
      %v6600 = vpack.c.b16 %v6578, %v6577
      %v6601 = vpack.c.b16 %v6580, %v6579
      %v6602 = vpack.c.b16 %v6582, %v6581
      %v6603 = vpack.c.b16 %v6584, %v6583
      %v6604 = vpack.c.b16 %v6586, %v6585
      %v6605 = vpack.c.b16 %v6588, %v6587
      %v6606 = vpack.c.b16 %v6590, %v6589
      %v6639 = vunpack.c.l.b16 %v6543
      %v6640 = vunpack.c.l.b16 %v6544
      %v6641 = vunpack.c.l.b16 %v6545
      %v6642 = vunpack.c.l.b16 %v6546
      %v6643 = vunpack.c.l.b16 %v6547
      %v6644 = vunpack.c.l.b16 %v6548
      %v6645 = vunpack.c.l.b16 %v6549
      %v6646 = vunpack.c.l.b16 %v6550
      %v6647 = vunpack.c.l.b16 %v6551
      %v6648 = vunpack.c.l.b16 %v6552
      %v6649 = vunpack.c.l.b16 %v6553
      %v6650 = vunpack.c.l.b16 %v6554
      %v6651 = vunpack.c.l.b16 %v6555
      %v6652 = vunpack.c.l.b16 %v6556
      %v6653 = vunpack.c.l.b16 %v6557
      %v6654 = vunpack.c.l.b16 %v6558
      %v6655 = vpack.c.b16 %v6640, %v6639
      %v6656 = vpack.c.b16 %v6642, %v6641
      %v6657 = vpack.c.b16 %v6644, %v6643
      %v6658 = vpack.c.b16 %v6646, %v6645
      %v6659 = vpack.c.b16 %v6648, %v6647
      %v6660 = vpack.c.b16 %v6650, %v6649
      %v6661 = vpack.c.b16 %v6652, %v6651
      %v6662 = vpack.c.b16 %v6654, %v6653
      %6671 = vmatprep.subr.bf16.mxu0 0
      %6672 = vmatpush1.bf16.msra.mxu0 %v6662
      %6673 = vmatprep.subr.bf16.mxu0 0
      %6674 = vmatpush1.bf16.msra.mxu0 %v6661
      %6675 = vmatprep.subr.bf16.mxu0 0
      %6676 = vmatpush1.bf16.msra.mxu0 %v6660
      %6677 = vmatprep.subr.bf16.mxu0 0
      %6678 = vmatpush1.bf16.msra.mxu0 %v6659
      %6679 = vmatprep.subr.bf16.mxu0 0
      %6680 = vmatpush1.bf16.msra.mxu0 %v6658
      %6681 = vmatprep.subr.bf16.mxu0 0
      %6682 = vmatpush1.bf16.msra.mxu0 %v6657
      %6683 = vmatprep.subr.bf16.mxu0 0
      %6684 = vmatpush1.bf16.msra.mxu0 %v6656
      %6685 = vmatprep.subr.bf16.mxu0 0
      %6686 = vmatpush1.bf16.msra.mxu0 %v6655
      %6687 = vmatprep.subr.bf16.mxu0 0
      %6688 = vmatpush2.bf16.msra.mxu0 0
      %6689 = vmatprep.subr.bf16.mxu0 0
      %6690 = vmatpush2.bf16.msra.mxu0 0
      %6691 = vmatprep.subr.bf16.mxu0 0
      %6692 = vmatpush2.bf16.msra.mxu0 0
      %6693 = vmatprep.subr.bf16.mxu0 0
      %6694 = vmatpush2.bf16.msra.mxu0 0
      %6695 = vmatprep.subr.bf16.mxu0 0
      %6696 = vmatpush2.bf16.msra.mxu0 0
      %6697 = vmatprep.subr.bf16.mxu0 0
      %6698 = vmatpush2.bf16.msra.mxu0 0
      %6699 = vmatprep.subr.bf16.mxu0 0
      %6700 = vmatpush2.bf16.msra.mxu0 0
      %6701 = vmatprep.subr.bf16.mxu0 0
      %6702 = vmatpush2.bf16.msra.mxu0 0
      %6703 = vmatprep.mubr.bf16.mxu0 0
      %6704 = vmatmul.mubr.bf16.gmra.mxu0 %v6591
      %v6705 = vpop.f32.mrf.mxu0
      %v6706 = vadd.f32 0.0, %v6705
      %v6707 = vpop.f32.mrf.mxu0
      %v6708 = vpop.f32.mrf.mxu0
      %v6709 = vadd.f32 0.0, %v6708
      %v6710 = vpop.f32.mrf.mxu0
      %6711 = vmatprep.mubr.bf16.mxu0 0
      %6712 = vmatmul.mubr.bf16.gmra.mxu0 %v6592
      %v6713 = vpop.f32.mrf.mxu0
      %v6714 = vadd.f32 0.0, %v6713
      %v6715 = vpop.f32.mrf.mxu0
      %v6716 = vpop.f32.mrf.mxu0
      %v6717 = vadd.f32 0.0, %v6716
      %v6718 = vpop.f32.mrf.mxu0
      %6719 = vmatprep.mubr.bf16.mxu0 0
      %6720 = vmatmul.mubr.bf16.gmra.mxu0 %v6593
      %v6721 = vpop.f32.mrf.mxu0
      %v6722 = vadd.f32 0.0, %v6721
      %v6723 = vpop.f32.mrf.mxu0
      %v6724 = vpop.f32.mrf.mxu0
      %v6725 = vadd.f32 0.0, %v6724
      %v6726 = vpop.f32.mrf.mxu0
      %6727 = vmatprep.mubr.bf16.mxu0 0
      %6728 = vmatmul.mubr.bf16.gmra.mxu0 %v6594
      %v6729 = vpop.f32.mrf.mxu0
      %v6730 = vadd.f32 0.0, %v6729
      %v6731 = vpop.f32.mrf.mxu0
      %v6732 = vpop.f32.mrf.mxu0
      %v6733 = vadd.f32 0.0, %v6732
      %v6734 = vpop.f32.mrf.mxu0
      %6735 = vmatprep.mubr.bf16.mxu0 0
      %6736 = vmatmul.mubr.bf16.gmra.mxu0 %v6595
      %v6737 = vpop.f32.mrf.mxu0
      %v6738 = vadd.f32 0.0, %v6737
      %v6739 = vpop.f32.mrf.mxu0
      %v6740 = vpop.f32.mrf.mxu0
      %v6741 = vadd.f32 0.0, %v6740
      %v6742 = vpop.f32.mrf.mxu0
      %6743 = vmatprep.mubr.bf16.mxu0 0
      %6744 = vmatmul.mubr.bf16.gmra.mxu0 %v6596
      %v6745 = vpop.f32.mrf.mxu0
      %v6746 = vadd.f32 0.0, %v6745
      %v6747 = vpop.f32.mrf.mxu0
      %v6748 = vpop.f32.mrf.mxu0
      %v6749 = vadd.f32 0.0, %v6748
      %v6750 = vpop.f32.mrf.mxu0
      %6751 = vmatprep.mubr.bf16.mxu0 0
      %6752 = vmatmul.mubr.bf16.gmra.mxu0 %v6597
      %v6753 = vpop.f32.mrf.mxu0
      %v6754 = vadd.f32 0.0, %v6753
      %v6755 = vpop.f32.mrf.mxu0
      %v6756 = vpop.f32.mrf.mxu0
      %v6757 = vadd.f32 0.0, %v6756
      %v6758 = vpop.f32.mrf.mxu0
      %6759 = vmatprep.mubr.bf16.mxu0 0
      %6760 = vmatmul.mubr.bf16.gmra.mxu0 %v6598
      %v6761 = vpop.f32.mrf.mxu0
      %v6762 = vadd.f32 0.0, %v6761
      %v6763 = vpop.f32.mrf.mxu0
      %v6764 = vpop.f32.mrf.mxu0
      %v6765 = vadd.f32 0.0, %v6764
      %v6766 = vpop.f32.mrf.mxu0
      %6767 = vmatprep.mubr.bf16.mxu0 0
      %6768 = vmatmul.mubr.bf16.gmra.mxu0 %v6599
      %v6769 = vpop.f32.mrf.mxu0
      %v6770 = vadd.f32 0.0, %v6769
      %v6771 = vpop.f32.mrf.mxu0
      %v6772 = vpop.f32.mrf.mxu0
      %v6773 = vadd.f32 0.0, %v6772
      %v6774 = vpop.f32.mrf.mxu0
      %6775 = vmatprep.mubr.bf16.mxu0 0
      %6776 = vmatmul.mubr.bf16.gmra.mxu0 %v6600
      %v6777 = vpop.f32.mrf.mxu0
      %v6778 = vadd.f32 0.0, %v6777
      %v6779 = vpop.f32.mrf.mxu0
      %v6780 = vpop.f32.mrf.mxu0
      %v6781 = vadd.f32 0.0, %v6780
      %v6782 = vpop.f32.mrf.mxu0
      %6783 = vmatprep.mubr.bf16.mxu0 0
      %6784 = vmatmul.mubr.bf16.gmra.mxu0 %v6601
      %v6785 = vpop.f32.mrf.mxu0
      %v6786 = vadd.f32 0.0, %v6785
      %v6787 = vpop.f32.mrf.mxu0
      %v6788 = vpop.f32.mrf.mxu0
      %v6789 = vadd.f32 0.0, %v6788
      %v6790 = vpop.f32.mrf.mxu0
      %6791 = vmatprep.mubr.bf16.mxu0 0
      %6792 = vmatmul.mubr.bf16.gmra.mxu0 %v6602
      %v6793 = vpop.f32.mrf.mxu0
      %v6794 = vadd.f32 0.0, %v6793
      %v6795 = vpop.f32.mrf.mxu0
      %v6796 = vpop.f32.mrf.mxu0
      %v6797 = vadd.f32 0.0, %v6796
      %v6798 = vpop.f32.mrf.mxu0
      %6799 = vmatprep.mubr.bf16.mxu0 0
      %6800 = vmatmul.mubr.bf16.gmra.mxu0 %v6603
      %v6801 = vpop.f32.mrf.mxu0
      %v6802 = vadd.f32 0.0, %v6801
      %v6803 = vpop.f32.mrf.mxu0
      %v6804 = vpop.f32.mrf.mxu0
      %v6805 = vadd.f32 0.0, %v6804
      %v6806 = vpop.f32.mrf.mxu0
      %6807 = vmatprep.mubr.bf16.mxu0 0
      %6808 = vmatmul.mubr.bf16.gmra.mxu0 %v6604
      %v6809 = vpop.f32.mrf.mxu0
      %v6810 = vadd.f32 0.0, %v6809
      %v6811 = vpop.f32.mrf.mxu0
      %v6812 = vpop.f32.mrf.mxu0
      %v6813 = vadd.f32 0.0, %v6812
      %v6814 = vpop.f32.mrf.mxu0
      %6815 = vmatprep.mubr.bf16.mxu0 0
      %6816 = vmatmul.mubr.bf16.gmra.mxu0 %v6605
      %v6817 = vpop.f32.mrf.mxu0
      %v6818 = vadd.f32 0.0, %v6817
      %v6819 = vpop.f32.mrf.mxu0
      %v6820 = vpop.f32.mrf.mxu0
      %v6821 = vadd.f32 0.0, %v6820
      %v6822 = vpop.f32.mrf.mxu0
      %6823 = vmatprep.mubr.bf16.mxu0 0
      %6824 = vmatmul.mubr.bf16.gmra.mxu0 %v6606
      %v6825 = vpop.f32.mrf.mxu0
      %v6826 = vadd.f32 0.0, %v6825
      %v6827 = vpop.f32.mrf.mxu0
      %v6828 = vpop.f32.mrf.mxu0
      %v6829 = vadd.f32 0.0, %v6828
      %v6830 = vpop.f32.mrf.mxu0
      %6831 = vdwg.mxu0
      %v6832 = vadd.f32 %v6078, %v6706
      %v6833 = vadd.f32 %v6079, %v6709
      %v6834 = vadd.f32 %v6080, %v6714
      %v6835 = vadd.f32 %v6081, %v6717
      %v6836 = vadd.f32 %v6082, %v6722
      %v6837 = vadd.f32 %v6083, %v6725
      %v6838 = vadd.f32 %v6084, %v6730
      %v6839 = vadd.f32 %v6085, %v6733
      %v6840 = vadd.f32 %v6086, %v6738
      %v6841 = vadd.f32 %v6087, %v6741
      %v6842 = vadd.f32 %v6088, %v6746
      %v6843 = vadd.f32 %v6089, %v6749
      %v6844 = vadd.f32 %v6090, %v6754
      %v6845 = vadd.f32 %v6091, %v6757
      %v6846 = vadd.f32 %v6092, %v6762
      %v6847 = vadd.f32 %v6093, %v6765
      %v6848 = vadd.f32 %v6094, %v6770
      %v6849 = vadd.f32 %v6095, %v6773
      %v6850 = vadd.f32 %v6096, %v6778
      %v6851 = vadd.f32 %v6097, %v6781
      %v6852 = vadd.f32 %v6098, %v6786
      %v6853 = vadd.f32 %v6099, %v6789
      %v6854 = vadd.f32 %v6100, %v6794
      %v6855 = vadd.f32 %v6101, %v6797
      %v6856 = vadd.f32 %v6102, %v6802
      %v6857 = vadd.f32 %v6103, %v6805
      %v6858 = vadd.f32 %v6104, %v6810
      %v6859 = vadd.f32 %v6105, %v6813
      %v6860 = vadd.f32 %v6106, %v6818
      %v6861 = vadd.f32 %v6107, %v6821
      %v6862 = vadd.f32 %v6108, %v6826
      %v6863 = vadd.f32 %v6109, %v6829
      %v6864 = vld [vmem:[%s5723] sm:$0xe]
      %v6865 = vld [vmem:[%s5723 + $0xc] sm:$0xe]
      %v6866 = vld [vmem:[%s5723 + $0x18] sm:$0xe]
      %v6867 = vld [vmem:[%s5723 + $0x24] sm:$0xe]
      %v6868 = vld [vmem:[%s5723 + $0x30] sm:$0xe]
      %v6869 = vld [vmem:[%s5723 + $0x3c] sm:$0xe]
      %v6870 = vld [vmem:[%s5723 + $0x48] sm:$0xe]
      %v6871 = vld [vmem:[%s5723 + $0x54] sm:$0xe]
      %v6872 = vld [vmem:[%s5723 + $0x60] sm:$0xe]
      %v6873 = vld [vmem:[%s5723 + $0x6c] sm:$0xe]
      %v6874 = vld [vmem:[%s5723 + $0x78] sm:$0xe]
      %v6875 = vld [vmem:[%s5723 + $0x84] sm:$0xe]
      %v6876 = vld [vmem:[%s5723 + $0x90] sm:$0xe]
      %v6877 = vld [vmem:[%s5723 + $0x9c] sm:$0xe]
      %v6878 = vld [vmem:[%s5723 + $0xa8] sm:$0xe]
      %v6879 = vld [vmem:[%s5723 + $0xb4] sm:$0xe]
      %v6928 = vrot.slane %v6864, 5
      %v6929 = vrot.slane %v6928, 4
      %v6930 = vrot.slane %v6111, 5
      %v6931 = vsel %vm3649, %v6929, %v6930
      %v6932 = vrot.slane %v6930, 4
      %v6933 = vrot.slane %v6112, 5
      %v6934 = vsel %vm3649, %v6932, %v6933
      %v6935 = vrot.slane %v6865, 5
      %v6936 = vrot.slane %v6935, 4
      %v6937 = vrot.slane %v6114, 5
      %v6938 = vsel %vm3649, %v6936, %v6937
      %v6939 = vrot.slane %v6937, 4
      %v6940 = vrot.slane %v6115, 5
      %v6941 = vsel %vm3649, %v6939, %v6940
      %v6942 = vrot.slane %v6866, 5
      %v6943 = vrot.slane %v6942, 4
      %v6944 = vrot.slane %v6117, 5
      %v6945 = vsel %vm3649, %v6943, %v6944
      %v6946 = vrot.slane %v6944, 4
      %v6947 = vrot.slane %v6118, 5
      %v6948 = vsel %vm3649, %v6946, %v6947
      %v6949 = vrot.slane %v6867, 5
      %v6950 = vrot.slane %v6949, 4
      %v6951 = vrot.slane %v6120, 5
      %v6952 = vsel %vm3649, %v6950, %v6951
      %v6953 = vrot.slane %v6951, 4
      %v6954 = vrot.slane %v6121, 5
      %v6955 = vsel %vm3649, %v6953, %v6954
      %v6956 = vrot.slane %v6868, 5
      %v6957 = vrot.slane %v6956, 4
      %v6958 = vrot.slane %v6123, 5
      %v6959 = vsel %vm3649, %v6957, %v6958
      %v6960 = vrot.slane %v6958, 4
      %v6961 = vrot.slane %v6124, 5
      %v6962 = vsel %vm3649, %v6960, %v6961
      %v6963 = vrot.slane %v6869, 5
      %v6964 = vrot.slane %v6963, 4
      %v6965 = vrot.slane %v6126, 5
      %v6966 = vsel %vm3649, %v6964, %v6965
      %v6967 = vrot.slane %v6965, 4
      %v6968 = vrot.slane %v6127, 5
      %v6969 = vsel %vm3649, %v6967, %v6968
      %v6970 = vrot.slane %v6870, 5
      %v6971 = vrot.slane %v6970, 4
      %v6972 = vrot.slane %v6129, 5
      %v6973 = vsel %vm3649, %v6971, %v6972
      %v6974 = vrot.slane %v6972, 4
      %v6975 = vrot.slane %v6130, 5
      %v6976 = vsel %vm3649, %v6974, %v6975
      %v6977 = vrot.slane %v6871, 5
      %v6978 = vrot.slane %v6977, 4
      %v6979 = vrot.slane %v6132, 5
      %v6980 = vsel %vm3649, %v6978, %v6979
      %v6981 = vrot.slane %v6979, 4
      %v6982 = vrot.slane %v6133, 5
      %v6983 = vsel %vm3649, %v6981, %v6982
      %v6984 = vrot.slane %v6872, 5
      %v6985 = vrot.slane %v6984, 4
      %v6986 = vrot.slane %v6135, 5
      %v6987 = vsel %vm3649, %v6985, %v6986
      %v6988 = vrot.slane %v6986, 4
      %v6989 = vrot.slane %v6136, 5
      %v6990 = vsel %vm3649, %v6988, %v6989
      %v6991 = vrot.slane %v6873, 5
      %v6992 = vrot.slane %v6991, 4
      %v6993 = vrot.slane %v6138, 5
      %v6994 = vsel %vm3649, %v6992, %v6993
      %v6995 = vrot.slane %v6993, 4
      %v6996 = vrot.slane %v6139, 5
      %v6997 = vsel %vm3649, %v6995, %v6996
      %v6998 = vrot.slane %v6874, 5
      %v6999 = vrot.slane %v6998, 4
      %v7000 = vrot.slane %v6141, 5
      %v7001 = vsel %vm3649, %v6999, %v7000
      %v7002 = vrot.slane %v7000, 4
      %v7003 = vrot.slane %v6142, 5
      %v7004 = vsel %vm3649, %v7002, %v7003
      %v7005 = vrot.slane %v6875, 5
      %v7006 = vrot.slane %v7005, 4
      %v7007 = vrot.slane %v6144, 5
      %v7008 = vsel %vm3649, %v7006, %v7007
      %v7009 = vrot.slane %v7007, 4
      %v7010 = vrot.slane %v6145, 5
      %v7011 = vsel %vm3649, %v7009, %v7010
      %v7012 = vrot.slane %v6876, 5
      %v7013 = vrot.slane %v7012, 4
      %v7014 = vrot.slane %v6147, 5
      %v7015 = vsel %vm3649, %v7013, %v7014
      %v7016 = vrot.slane %v7014, 4
      %v7017 = vrot.slane %v6148, 5
      %v7018 = vsel %vm3649, %v7016, %v7017
      %v7019 = vrot.slane %v6877, 5
      %v7020 = vrot.slane %v7019, 4
      %v7021 = vrot.slane %v6150, 5
      %v7022 = vsel %vm3649, %v7020, %v7021
      %v7023 = vrot.slane %v7021, 4
      %v7024 = vrot.slane %v6151, 5
      %v7025 = vsel %vm3649, %v7023, %v7024
      %v7026 = vrot.slane %v6878, 5
      %v7027 = vrot.slane %v7026, 4
      %v7028 = vrot.slane %v6153, 5
      %v7029 = vsel %vm3649, %v7027, %v7028
      %v7030 = vrot.slane %v7028, 4
      %v7031 = vrot.slane %v6154, 5
      %v7032 = vsel %vm3649, %v7030, %v7031
      %v7033 = vrot.slane %v6879, 5
      %v7034 = vrot.slane %v7033, 4
      %v7035 = vrot.slane %v6156, 5
      %v7036 = vsel %vm3649, %v7034, %v7035
      %v7037 = vrot.slane %v7035, 4
      %v7038 = vrot.slane %v6157, 5
      %v7039 = vsel %vm3649, %v7037, %v7038
      %s7040 = scalar_lea.vmem %s2, 512
      %v7041 = vld [vmem:[%s7040] sm:$0xf]
      %v7042 = vld [vmem:[%s7040 + $0x4] sm:$0xf]
      %v7043 = vld [vmem:[%s7040 + $0x8] sm:$0xf]
      %v7044 = vld [vmem:[%s7040 + $0xc] sm:$0xf]
      %v7045 = vld [vmem:[%s7040 + $0x10] sm:$0xf]
      %v7046 = vld [vmem:[%s7040 + $0x14] sm:$0xf]
      %v7047 = vld [vmem:[%s7040 + $0x18] sm:$0xf]
      %v7048 = vld [vmem:[%s7040 + $0x1c] sm:$0xf]
      %v7049 = vld [vmem:[%s7040 + $0x20] sm:$0xf]
      %v7050 = vld [vmem:[%s7040 + $0x24] sm:$0xf]
      %v7051 = vld [vmem:[%s7040 + $0x28] sm:$0xf]
      %v7052 = vld [vmem:[%s7040 + $0x2c] sm:$0xf]
      %v7053 = vld [vmem:[%s7040 + $0x30] sm:$0xf]
      %v7054 = vld [vmem:[%s7040 + $0x34] sm:$0xf]
      %v7055 = vld [vmem:[%s7040 + $0x38] sm:$0xf]
      %v7056 = vld [vmem:[%s7040 + $0x3c] sm:$0xf]
      %v7057 = vunpack.c.l.b16 %v6931
      %v7058 = vunpack.c.l.b16 %v6934
      %v7059 = vunpack.c.l.b16 %v6938
      %v7060 = vunpack.c.l.b16 %v6941
      %v7061 = vunpack.c.l.b16 %v6945
      %v7062 = vunpack.c.l.b16 %v6948
      %v7063 = vunpack.c.l.b16 %v6952
      %v7064 = vunpack.c.l.b16 %v6955
      %v7065 = vunpack.c.l.b16 %v6959
      %v7066 = vunpack.c.l.b16 %v6962
      %v7067 = vunpack.c.l.b16 %v6966
      %v7068 = vunpack.c.l.b16 %v6969
      %v7069 = vunpack.c.l.b16 %v6973
      %v7070 = vunpack.c.l.b16 %v6976
      %v7071 = vunpack.c.l.b16 %v6980
      %v7072 = vunpack.c.l.b16 %v6983
      %v7073 = vunpack.c.l.b16 %v6987
      %v7074 = vunpack.c.l.b16 %v6990
      %v7075 = vunpack.c.l.b16 %v6994
      %v7076 = vunpack.c.l.b16 %v6997
      %v7077 = vunpack.c.l.b16 %v7001
      %v7078 = vunpack.c.l.b16 %v7004
      %v7079 = vunpack.c.l.b16 %v7008
      %v7080 = vunpack.c.l.b16 %v7011
      %v7081 = vunpack.c.l.b16 %v7015
      %v7082 = vunpack.c.l.b16 %v7018
      %v7083 = vunpack.c.l.b16 %v7022
      %v7084 = vunpack.c.l.b16 %v7025
      %v7085 = vunpack.c.l.b16 %v7029
      %v7086 = vunpack.c.l.b16 %v7032
      %v7087 = vunpack.c.l.b16 %v7036
      %v7088 = vunpack.c.l.b16 %v7039
      %v7089 = vpack.c.b16 %v7058, %v7057
      %v7090 = vpack.c.b16 %v7060, %v7059
      %v7091 = vpack.c.b16 %v7062, %v7061
      %v7092 = vpack.c.b16 %v7064, %v7063
      %v7093 = vpack.c.b16 %v7066, %v7065
      %v7094 = vpack.c.b16 %v7068, %v7067
      %v7095 = vpack.c.b16 %v7070, %v7069
      %v7096 = vpack.c.b16 %v7072, %v7071
      %v7097 = vpack.c.b16 %v7074, %v7073
      %v7098 = vpack.c.b16 %v7076, %v7075
      %v7099 = vpack.c.b16 %v7078, %v7077
      %v7100 = vpack.c.b16 %v7080, %v7079
      %v7101 = vpack.c.b16 %v7082, %v7081
      %v7102 = vpack.c.b16 %v7084, %v7083
      %v7103 = vpack.c.b16 %v7086, %v7085
      %v7104 = vpack.c.b16 %v7088, %v7087
      %v7137 = vunpack.c.l.b16 %v7041
      %v7138 = vunpack.c.l.b16 %v7042
      %v7139 = vunpack.c.l.b16 %v7043
      %v7140 = vunpack.c.l.b16 %v7044
      %v7141 = vunpack.c.l.b16 %v7045
      %v7142 = vunpack.c.l.b16 %v7046
      %v7143 = vunpack.c.l.b16 %v7047
      %v7144 = vunpack.c.l.b16 %v7048
      %v7145 = vunpack.c.l.b16 %v7049
      %v7146 = vunpack.c.l.b16 %v7050
      %v7147 = vunpack.c.l.b16 %v7051
      %v7148 = vunpack.c.l.b16 %v7052
      %v7149 = vunpack.c.l.b16 %v7053
      %v7150 = vunpack.c.l.b16 %v7054
      %v7151 = vunpack.c.l.b16 %v7055
      %v7152 = vunpack.c.l.b16 %v7056
      %v7153 = vpack.c.b16 %v7138, %v7137
      %v7154 = vpack.c.b16 %v7140, %v7139
      %v7155 = vpack.c.b16 %v7142, %v7141
      %v7156 = vpack.c.b16 %v7144, %v7143
      %v7157 = vpack.c.b16 %v7146, %v7145
      %v7158 = vpack.c.b16 %v7148, %v7147
      %v7159 = vpack.c.b16 %v7150, %v7149
      %v7160 = vpack.c.b16 %v7152, %v7151
      %7169 = vmatprep.subr.bf16.mxu0 0
      %7170 = vmatpush1.bf16.msra.mxu0 %v7160
      %7171 = vmatprep.subr.bf16.mxu0 0
      %7172 = vmatpush1.bf16.msra.mxu0 %v7159
      %7173 = vmatprep.subr.bf16.mxu0 0
      %7174 = vmatpush1.bf16.msra.mxu0 %v7158
      %7175 = vmatprep.subr.bf16.mxu0 0
      %7176 = vmatpush1.bf16.msra.mxu0 %v7157
      %7177 = vmatprep.subr.bf16.mxu0 0
      %7178 = vmatpush1.bf16.msra.mxu0 %v7156
      %7179 = vmatprep.subr.bf16.mxu0 0
      %7180 = vmatpush1.bf16.msra.mxu0 %v7155
      %7181 = vmatprep.subr.bf16.mxu0 0
      %7182 = vmatpush1.bf16.msra.mxu0 %v7154
      %7183 = vmatprep.subr.bf16.mxu0 0
      %7184 = vmatpush1.bf16.msra.mxu0 %v7153
      %7185 = vmatprep.subr.bf16.mxu0 0
      %7186 = vmatpush2.bf16.msra.mxu0 0
      %7187 = vmatprep.subr.bf16.mxu0 0
      %7188 = vmatpush2.bf16.msra.mxu0 0
      %7189 = vmatprep.subr.bf16.mxu0 0
      %7190 = vmatpush2.bf16.msra.mxu0 0
      %7191 = vmatprep.subr.bf16.mxu0 0
      %7192 = vmatpush2.bf16.msra.mxu0 0
      %7193 = vmatprep.subr.bf16.mxu0 0
      %7194 = vmatpush2.bf16.msra.mxu0 0
      %7195 = vmatprep.subr.bf16.mxu0 0
      %7196 = vmatpush2.bf16.msra.mxu0 0
      %7197 = vmatprep.subr.bf16.mxu0 0
      %7198 = vmatpush2.bf16.msra.mxu0 0
      %7199 = vmatprep.subr.bf16.mxu0 0
      %7200 = vmatpush2.bf16.msra.mxu0 0
      %7201 = vmatprep.mubr.bf16.mxu0 0
      %7202 = vmatmul.mubr.bf16.gmra.mxu0 %v7089
      %v7203 = vpop.f32.mrf.mxu0
      %v7204 = vadd.f32 0.0, %v7203
      %v7205 = vpop.f32.mrf.mxu0
      %v7206 = vpop.f32.mrf.mxu0
      %v7207 = vadd.f32 0.0, %v7206
      %v7208 = vpop.f32.mrf.mxu0
      %7209 = vmatprep.mubr.bf16.mxu0 0
      %7210 = vmatmul.mubr.bf16.gmra.mxu0 %v7090
      %v7211 = vpop.f32.mrf.mxu0
      %v7212 = vadd.f32 0.0, %v7211
      %v7213 = vpop.f32.mrf.mxu0
      %v7214 = vpop.f32.mrf.mxu0
      %v7215 = vadd.f32 0.0, %v7214
      %v7216 = vpop.f32.mrf.mxu0
      %7217 = vmatprep.mubr.bf16.mxu0 0
      %7218 = vmatmul.mubr.bf16.gmra.mxu0 %v7091
      %v7219 = vpop.f32.mrf.mxu0
      %v7220 = vadd.f32 0.0, %v7219
      %v7221 = vpop.f32.mrf.mxu0
      %v7222 = vpop.f32.mrf.mxu0
      %v7223 = vadd.f32 0.0, %v7222
      %v7224 = vpop.f32.mrf.mxu0
      %7225 = vmatprep.mubr.bf16.mxu0 0
      %7226 = vmatmul.mubr.bf16.gmra.mxu0 %v7092
      %v7227 = vpop.f32.mrf.mxu0
      %v7228 = vadd.f32 0.0, %v7227
      %v7229 = vpop.f32.mrf.mxu0
      %v7230 = vpop.f32.mrf.mxu0
      %v7231 = vadd.f32 0.0, %v7230
      %v7232 = vpop.f32.mrf.mxu0
      %7233 = vmatprep.mubr.bf16.mxu0 0
      %7234 = vmatmul.mubr.bf16.gmra.mxu0 %v7093
      %v7235 = vpop.f32.mrf.mxu0
      %v7236 = vadd.f32 0.0, %v7235
      %v7237 = vpop.f32.mrf.mxu0
      %v7238 = vpop.f32.mrf.mxu0
      %v7239 = vadd.f32 0.0, %v7238
      %v7240 = vpop.f32.mrf.mxu0
      %7241 = vmatprep.mubr.bf16.mxu0 0
      %7242 = vmatmul.mubr.bf16.gmra.mxu0 %v7094
      %v7243 = vpop.f32.mrf.mxu0
      %v7244 = vadd.f32 0.0, %v7243
      %v7245 = vpop.f32.mrf.mxu0
      %v7246 = vpop.f32.mrf.mxu0
      %v7247 = vadd.f32 0.0, %v7246
      %v7248 = vpop.f32.mrf.mxu0
      %7249 = vmatprep.mubr.bf16.mxu0 0
      %7250 = vmatmul.mubr.bf16.gmra.mxu0 %v7095
      %v7251 = vpop.f32.mrf.mxu0
      %v7252 = vadd.f32 0.0, %v7251
      %v7253 = vpop.f32.mrf.mxu0
      %v7254 = vpop.f32.mrf.mxu0
      %v7255 = vadd.f32 0.0, %v7254
      %v7256 = vpop.f32.mrf.mxu0
      %7257 = vmatprep.mubr.bf16.mxu0 0
      %7258 = vmatmul.mubr.bf16.gmra.mxu0 %v7096
      %v7259 = vpop.f32.mrf.mxu0
      %v7260 = vadd.f32 0.0, %v7259
      %v7261 = vpop.f32.mrf.mxu0
      %v7262 = vpop.f32.mrf.mxu0
      %v7263 = vadd.f32 0.0, %v7262
      %v7264 = vpop.f32.mrf.mxu0
      %7265 = vmatprep.mubr.bf16.mxu0 0
      %7266 = vmatmul.mubr.bf16.gmra.mxu0 %v7097
      %v7267 = vpop.f32.mrf.mxu0
      %v7268 = vadd.f32 0.0, %v7267
      %v7269 = vpop.f32.mrf.mxu0
      %v7270 = vpop.f32.mrf.mxu0
      %v7271 = vadd.f32 0.0, %v7270
      %v7272 = vpop.f32.mrf.mxu0
      %7273 = vmatprep.mubr.bf16.mxu0 0
      %7274 = vmatmul.mubr.bf16.gmra.mxu0 %v7098
      %v7275 = vpop.f32.mrf.mxu0
      %v7276 = vadd.f32 0.0, %v7275
      %v7277 = vpop.f32.mrf.mxu0
      %v7278 = vpop.f32.mrf.mxu0
      %v7279 = vadd.f32 0.0, %v7278
      %v7280 = vpop.f32.mrf.mxu0
      %7281 = vmatprep.mubr.bf16.mxu0 0
      %7282 = vmatmul.mubr.bf16.gmra.mxu0 %v7099
      %v7283 = vpop.f32.mrf.mxu0
      %v7284 = vadd.f32 0.0, %v7283
      %v7285 = vpop.f32.mrf.mxu0
      %v7286 = vpop.f32.mrf.mxu0
      %v7287 = vadd.f32 0.0, %v7286
      %v7288 = vpop.f32.mrf.mxu0
      %7289 = vmatprep.mubr.bf16.mxu0 0
      %7290 = vmatmul.mubr.bf16.gmra.mxu0 %v7100
      %v7291 = vpop.f32.mrf.mxu0
      %v7292 = vadd.f32 0.0, %v7291
      %v7293 = vpop.f32.mrf.mxu0
      %v7294 = vpop.f32.mrf.mxu0
      %v7295 = vadd.f32 0.0, %v7294
      %v7296 = vpop.f32.mrf.mxu0
      %7297 = vmatprep.mubr.bf16.mxu0 0
      %7298 = vmatmul.mubr.bf16.gmra.mxu0 %v7101
      %v7299 = vpop.f32.mrf.mxu0
      %v7300 = vadd.f32 0.0, %v7299
      %v7301 = vpop.f32.mrf.mxu0
      %v7302 = vpop.f32.mrf.mxu0
      %v7303 = vadd.f32 0.0, %v7302
      %v7304 = vpop.f32.mrf.mxu0
      %7305 = vmatprep.mubr.bf16.mxu0 0
      %7306 = vmatmul.mubr.bf16.gmra.mxu0 %v7102
      %v7307 = vpop.f32.mrf.mxu0
      %v7308 = vadd.f32 0.0, %v7307
      %v7309 = vpop.f32.mrf.mxu0
      %v7310 = vpop.f32.mrf.mxu0
      %v7311 = vadd.f32 0.0, %v7310
      %v7312 = vpop.f32.mrf.mxu0
      %7313 = vmatprep.mubr.bf16.mxu0 0
      %7314 = vmatmul.mubr.bf16.gmra.mxu0 %v7103
      %v7315 = vpop.f32.mrf.mxu0
      %v7316 = vadd.f32 0.0, %v7315
      %v7317 = vpop.f32.mrf.mxu0
      %v7318 = vpop.f32.mrf.mxu0
      %v7319 = vadd.f32 0.0, %v7318
      %v7320 = vpop.f32.mrf.mxu0
      %7321 = vmatprep.mubr.bf16.mxu0 0
      %7322 = vmatmul.mubr.bf16.gmra.mxu0 %v7104
      %v7323 = vpop.f32.mrf.mxu0
      %v7324 = vadd.f32 0.0, %v7323
      %v7325 = vpop.f32.mrf.mxu0
      %v7326 = vpop.f32.mrf.mxu0
      %v7327 = vadd.f32 0.0, %v7326
      %v7328 = vpop.f32.mrf.mxu0
      %7329 = vdwg.mxu0
      %v7330 = vadd.f32 %v6832, %v7204
      %v7331 = vadd.f32 %v6833, %v7207
      %v7332 = vadd.f32 %v6834, %v7212
      %v7333 = vadd.f32 %v6835, %v7215
      %v7334 = vadd.f32 %v6836, %v7220
      %v7335 = vadd.f32 %v6837, %v7223
      %v7336 = vadd.f32 %v6838, %v7228
      %v7337 = vadd.f32 %v6839, %v7231
      %v7338 = vadd.f32 %v6840, %v7236
      %v7339 = vadd.f32 %v6841, %v7239
      %v7340 = vadd.f32 %v6842, %v7244
      %v7341 = vadd.f32 %v6843, %v7247
      %v7342 = vadd.f32 %v6844, %v7252
      %v7343 = vadd.f32 %v6845, %v7255
      %v7344 = vadd.f32 %v6846, %v7260
      %v7345 = vadd.f32 %v6847, %v7263
      %v7346 = vadd.f32 %v6848, %v7268
      %v7347 = vadd.f32 %v6849, %v7271
      %v7348 = vadd.f32 %v6850, %v7276
      %v7349 = vadd.f32 %v6851, %v7279
      %v7350 = vadd.f32 %v6852, %v7284
      %v7351 = vadd.f32 %v6853, %v7287
      %v7352 = vadd.f32 %v6854, %v7292
      %v7353 = vadd.f32 %v6855, %v7295
      %v7354 = vadd.f32 %v6856, %v7300
      %v7355 = vadd.f32 %v6857, %v7303
      %v7356 = vadd.f32 %v6858, %v7308
      %v7357 = vadd.f32 %v6859, %v7311
      %v7358 = vadd.f32 %v6860, %v7316
      %v7359 = vadd.f32 %v6861, %v7319
      %v7360 = vadd.f32 %v6862, %v7324
      %v7361 = vadd.f32 %v6863, %v7327
      %v7362 = vld [vmem:[%s5] sm:$0x1]
      %v7364 = vlaneseq
      %v7365 = vshrl.u32 %v7364, 7
      %v7366 = vsub.s32 0, %v7365
      %v7367 = vrot.slane %v7362, %v7366
      %v7369 = vmul.f32 %v7330, %v7367
      %v7370 = vmul.f32 %v7331, %v7367
      %v7371 = vmul.f32 %v7332, %v7367
      %v7372 = vmul.f32 %v7333, %v7367
      %v7373 = vmul.f32 %v7334, %v7367
      %v7374 = vmul.f32 %v7335, %v7367
      %v7375 = vmul.f32 %v7336, %v7367
      %v7376 = vmul.f32 %v7337, %v7367
      %v7377 = vmul.f32 %v7338, %v7367
      %v7378 = vmul.f32 %v7339, %v7367
      %v7379 = vmul.f32 %v7340, %v7367
      %v7380 = vmul.f32 %v7341, %v7367
      %v7381 = vmul.f32 %v7342, %v7367
      %v7382 = vmul.f32 %v7343, %v7367
      %v7383 = vmul.f32 %v7344, %v7367
      %v7384 = vmul.f32 %v7345, %v7367
      %v7385 = vmul.f32 %v7346, %v7367
      %v7386 = vmul.f32 %v7347, %v7367
      %v7387 = vmul.f32 %v7348, %v7367
      %v7388 = vmul.f32 %v7349, %v7367
      %v7389 = vmul.f32 %v7350, %v7367
      %v7390 = vmul.f32 %v7351, %v7367
      %v7391 = vmul.f32 %v7352, %v7367
      %v7392 = vmul.f32 %v7353, %v7367
      %v7393 = vmul.f32 %v7354, %v7367
      %v7394 = vmul.f32 %v7355, %v7367
      %v7395 = vmul.f32 %v7356, %v7367
      %v7396 = vmul.f32 %v7357, %v7367
      %v7397 = vmul.f32 %v7358, %v7367
      %v7398 = vmul.f32 %v7359, %v7367
      %v7399 = vmul.f32 %v7360, %v7367
      %v7400 = vmul.f32 %v7361, %v7367
      %v7401 = vld [vmem:[%s6] sm:$0x1]
      %v7403 = vlaneseq
      %v7404 = vshrl.u32 %v7403, 7
      %v7405 = vsub.s32 0, %v7404
      %v7406 = vrot.slane %v7401, %v7405
      %v7408 = vadd.f32 %v7369, %v7406
      %v7409 = vadd.f32 %v7370, %v7406
      %v7410 = vadd.f32 %v7371, %v7406
      %v7411 = vadd.f32 %v7372, %v7406
      %v7412 = vadd.f32 %v7373, %v7406
      %v7413 = vadd.f32 %v7374, %v7406
      %v7414 = vadd.f32 %v7375, %v7406
      %v7415 = vadd.f32 %v7376, %v7406
      %v7416 = vadd.f32 %v7377, %v7406
      %v7417 = vadd.f32 %v7378, %v7406
      %v7418 = vadd.f32 %v7379, %v7406
      %v7419 = vadd.f32 %v7380, %v7406
      %v7420 = vadd.f32 %v7381, %v7406
      %v7421 = vadd.f32 %v7382, %v7406
      %v7422 = vadd.f32 %v7383, %v7406
      %v7423 = vadd.f32 %v7384, %v7406
      %v7424 = vadd.f32 %v7385, %v7406
      %v7425 = vadd.f32 %v7386, %v7406
      %v7426 = vadd.f32 %v7387, %v7406
      %v7427 = vadd.f32 %v7388, %v7406
      %v7428 = vadd.f32 %v7389, %v7406
      %v7429 = vadd.f32 %v7390, %v7406
      %v7430 = vadd.f32 %v7391, %v7406
      %v7431 = vadd.f32 %v7392, %v7406
      %v7432 = vadd.f32 %v7393, %v7406
      %v7433 = vadd.f32 %v7394, %v7406
      %v7434 = vadd.f32 %v7395, %v7406
      %v7435 = vadd.f32 %v7396, %v7406
      %v7436 = vadd.f32 %v7397, %v7406
      %v7437 = vadd.f32 %v7398, %v7406
      %v7438 = vadd.f32 %v7399, %v7406
      %v7439 = vadd.f32 %v7400, %v7406
      %v7440 = vmax.f32 %v7408, 0.0
      %v7441 = vmax.f32 %v7409, 0.0
      %v7442 = vmax.f32 %v7410, 0.0
      %v7443 = vmax.f32 %v7411, 0.0
      %v7444 = vmax.f32 %v7412, 0.0
      %v7445 = vmax.f32 %v7413, 0.0
      %v7446 = vmax.f32 %v7414, 0.0
      %v7447 = vmax.f32 %v7415, 0.0
      %v7448 = vmax.f32 %v7416, 0.0
      %v7449 = vmax.f32 %v7417, 0.0
      %v7450 = vmax.f32 %v7418, 0.0
      %v7451 = vmax.f32 %v7419, 0.0
      %v7452 = vmax.f32 %v7420, 0.0
      %v7453 = vmax.f32 %v7421, 0.0
      %v7454 = vmax.f32 %v7422, 0.0
      %v7455 = vmax.f32 %v7423, 0.0
      %v7456 = vmax.f32 %v7424, 0.0
      %v7457 = vmax.f32 %v7425, 0.0
      %v7458 = vmax.f32 %v7426, 0.0
      %v7459 = vmax.f32 %v7427, 0.0
      %v7460 = vmax.f32 %v7428, 0.0
      %v7461 = vmax.f32 %v7429, 0.0
      %v7462 = vmax.f32 %v7430, 0.0
      %v7463 = vmax.f32 %v7431, 0.0
      %v7464 = vmax.f32 %v7432, 0.0
      %v7465 = vmax.f32 %v7433, 0.0
      %v7466 = vmax.f32 %v7434, 0.0
      %v7467 = vmax.f32 %v7435, 0.0
      %v7468 = vmax.f32 %v7436, 0.0
      %v7469 = vmax.f32 %v7437, 0.0
      %v7470 = vmax.f32 %v7438, 0.0
      %v7471 = vmax.f32 %v7439, 0.0
      %v7472 = vadd.f32 %v7440, %v7442
      %v7473 = vadd.f32 %v7441, %v7443
      %v7474 = vadd.f32 %v7444, %v7446
      %v7475 = vadd.f32 %v7445, %v7447
      %v7476 = vadd.f32 %v7448, %v7450
      %v7477 = vadd.f32 %v7449, %v7451
      %v7478 = vadd.f32 %v7452, %v7454
      %v7479 = vadd.f32 %v7453, %v7455
      %v7480 = vadd.f32 %v7456, %v7458
      %v7481 = vadd.f32 %v7457, %v7459
      %v7482 = vadd.f32 %v7460, %v7462
      %v7483 = vadd.f32 %v7461, %v7463
      %v7484 = vadd.f32 %v7464, %v7466
      %v7485 = vadd.f32 %v7465, %v7467
      %v7486 = vadd.f32 %v7468, %v7470
      %v7487 = vadd.f32 %v7469, %v7471
      %7488 = vst [vmem:[#allocation3] sm:$0xff] %v7472
      %7489 = vst [vmem:[#allocation3 + $0x8] sm:$0xff] %v7473
      %7490 = vst [vmem:[#allocation3 + $0x10] sm:$0xff] %v7474
      %7491 = vst [vmem:[#allocation3 + $0x18] sm:$0xff] %v7475
      %7492 = vst [vmem:[#allocation3 + $0x20] sm:$0xff] %v7476
      %7493 = vst [vmem:[#allocation3 + $0x28] sm:$0xff] %v7477
      %7494 = vst [vmem:[#allocation3 + $0x30] sm:$0xff] %v7478
      %7495 = vst [vmem:[#allocation3 + $0x38] sm:$0xff] %v7479
      %7496 = vst [vmem:[#allocation3 + $0x40] sm:$0xff] %v7480
      %7497 = vst [vmem:[#allocation3 + $0x48] sm:$0xff] %v7481
      %7498 = vst [vmem:[#allocation3 + $0x50] sm:$0xff] %v7482
      %7499 = vst [vmem:[#allocation3 + $0x58] sm:$0xff] %v7483
      %7500 = vst [vmem:[#allocation3 + $0x60] sm:$0xff] %v7484
      %7501 = vst [vmem:[#allocation3 + $0x68] sm:$0xff] %v7485
      %7502 = vst [vmem:[#allocation3 + $0x70] sm:$0xff] %v7486
      %7503 = vst [vmem:[#allocation3 + $0x78] sm:$0xff] %v7487
      %v7504 = vld [vmem:[#allocation3] ss:$2 sm:$0xff]
      %s7505 = scalar_lea.vmem [#allocation3], 16
      %v7506 = vld [vmem:[%s7505] ss:$2 sm:$0xff]
      %s7507 = scalar_lea.vmem [#allocation3], 32
      %v7508 = vld [vmem:[%s7507] ss:$2 sm:$0xff]
      %s7509 = scalar_lea.vmem [#allocation3], 48
      %v7510 = vld [vmem:[%s7509] ss:$2 sm:$0xff]
      %s7511 = scalar_lea.vmem [#allocation3], 64
      %v7512 = vld [vmem:[%s7511] ss:$2 sm:$0xff]
      %s7513 = scalar_lea.vmem [#allocation3], 80
      %v7514 = vld [vmem:[%s7513] ss:$2 sm:$0xff]
      %s7515 = scalar_lea.vmem [#allocation3], 96
      %v7516 = vld [vmem:[%s7515] ss:$2 sm:$0xff]
      %s7517 = scalar_lea.vmem [#allocation3], 112
      %v7518 = vld [vmem:[%s7517] ss:$2 sm:$0xff]
      %s7519 = scalar_lea.vmem [#allocation3], 1
      %v7520 = vld [vmem:[%s7519] ss:$2 sm:$0xff]
      %s7521 = scalar_lea.vmem [#allocation3], 17
      %v7522 = vld [vmem:[%s7521] ss:$2 sm:$0xff]
      %s7523 = scalar_lea.vmem [#allocation3], 33
      %v7524 = vld [vmem:[%s7523] ss:$2 sm:$0xff]
      %s7525 = scalar_lea.vmem [#allocation3], 49
      %v7526 = vld [vmem:[%s7525] ss:$2 sm:$0xff]
      %s7527 = scalar_lea.vmem [#allocation3], 65
      %v7528 = vld [vmem:[%s7527] ss:$2 sm:$0xff]
      %s7529 = scalar_lea.vmem [#allocation3], 81
      %v7530 = vld [vmem:[%s7529] ss:$2 sm:$0xff]
      %s7531 = scalar_lea.vmem [#allocation3], 97
      %v7532 = vld [vmem:[%s7531] ss:$2 sm:$0xff]
      %s7533 = scalar_lea.vmem [#allocation3], 113
      %v7534 = vld [vmem:[%s7533] ss:$2 sm:$0xff]
      %v7535 = vadd.f32 %v7504, %v7520
      %v7536 = vadd.f32 %v7506, %v7522
      %v7537 = vadd.f32 %v7508, %v7524
      %v7538 = vadd.f32 %v7510, %v7526
      %v7539 = vadd.f32 %v7512, %v7528
      %v7540 = vadd.f32 %v7514, %v7530
      %v7541 = vadd.f32 %v7516, %v7532
      %v7542 = vadd.f32 %v7518, %v7534
      %v7543 = vmul.f32 %v7535, 0.25
      %v7544 = vmul.f32 %v7536, 0.25
      %v7545 = vmul.f32 %v7537, 0.25
      %v7546 = vmul.f32 %v7538, 0.25
      %v7547 = vmul.f32 %v7539, 0.25
      %v7548 = vmul.f32 %v7540, 0.25
      %v7549 = vmul.f32 %v7541, 0.25
      %v7550 = vmul.f32 %v7542, 0.25
      %v7551 = vpack.c.bf16 %v7543, %v7543
      %v7552 = vpack.c.bf16 %v7544, %v7544
      %v7553 = vpack.c.bf16 %v7545, %v7545
      %v7554 = vpack.c.bf16 %v7546, %v7546
      %v7555 = vpack.c.bf16 %v7547, %v7547
      %v7556 = vpack.c.bf16 %v7548, %v7548
      %v7557 = vpack.c.bf16 %v7549, %v7549
      %v7558 = vpack.c.bf16 %v7550, %v7550
      %7559 = vst [vmem:[%s314] sm:$0xf] %v7551
      %7560 = vst [vmem:[%s314 + $0x4] sm:$0xf] %v7552
      %7561 = vst [vmem:[%s314 + $0x8] sm:$0xf] %v7553
      %7562 = vst [vmem:[%s314 + $0xc] sm:$0xf] %v7554
      %7563 = vst [vmem:[%s314 + $0x10] sm:$0xf] %v7555
      %7564 = vst [vmem:[%s314 + $0x14] sm:$0xf] %v7556
      %7565 = vst [vmem:[%s314 + $0x18] sm:$0xf] %v7557
      %7566 = vst [vmem:[%s314 + $0x1c] sm:$0xf] %v7558
      %s7567 = smul.u32 8, %s23
      %p7568 = scmp.lt.s32.totalorder %s22, 1
      %s7569 = scalar_select %p7568, %s22, 1
      %p7570 = scmp.lt.s32.totalorder %s7567, 7
      %s7571 = scalar_select %p7570, %s7567, 7
      %s7572 = smul.addr %s7569, 8
      %s7573 = sadd.s32 %s7571, %s7572
      %s7574 = smul.addr %s7573, 4
      %s7575 = scalar_lea.vmem %s7, %s7574
      // Predicated region
      $region53: #{conv_block_forward.1} parent=47 // pred_check
        %p7576 = pneg %p204
      $region54: #{conv_block_forward.1} parent=47 // pred_check_branch
        %7578 = sbr.rel (%p7576) target = $region56
      $region55: #{conv_block_forward.1} parent=47 // pred_region
        %s7579 = smul.u32 8, %s23
      $region56: #{conv_block_forward.1} parent=47 // pred_fallthru
        _
    $region48: #{conv_block_forward.1} parent=5 // pred_fallthru
      _
    %p7580 = scmp.le.s32.totalorder 2, %s13
    // Predicated region
    $region57: #{conv_block_forward.1} parent=5 // pred_check
      %p7581 = pneg %p7580
    $region58: #{conv_block_forward.1} parent=5 // pred_check_branch
      %7583 = sbr.rel (%p7581) target = $region60
    $region59: #{conv_block_forward.1} parent=5 // pred_region
      %s7584 = ssub.s32 %s13, 2
      // Predicated region
      $region61: #{conv_block_forward.1} parent=59 // pred_check
        %p7585 = pneg %p210
      $region62: #{conv_block_forward.1} parent=59 // pred_check_branch
        %7587 = sbr.rel (%p7585) target = $region64
      $region63: #{conv_block_forward.1} parent=59 // pred_region
        %s7588 = smul.u32 8, %s25
        %p7589 = scmp.lt.s32.totalorder %s24, 1
        %s7590 = scalar_select %p7589, %s24, 1
        %p7591 = scmp.lt.s32.totalorder %s7588, 7
        %s7592 = scalar_select %p7591, %s7588, 7
        %s7593 = smul.addr %s7590, 8
        %s7594 = sadd.s32 %s7592, %s7593
        %s7595 = smul.addr %s7594, 4
        %s7596 = scalar_lea.vmem %s7, %s7595
      $region64: #{conv_block_forward.1} parent=59 // pred_fallthru
        _
    $region60: #{conv_block_forward.1} parent=5 // pred_fallthru
      _
  $region6: #{conv_block_forward.1} parent=0 // loop_footer
    %s17 = sadd.s32 1, %s13
  $region7: #{conv_block_forward.1} parent=0 // loop_footer_branch
    %12 = sbr.rel target = $region3
  $region8: #{conv_block_forward.1} parent=0 // loop_exit
    _

</llo_original>
